<compile_context>
chip_gen: v6e
topology: v6e:2x2x1
jax: 0.10.0
libtpu: 0.0.40
codegen_flags: <defaults>
</compile_context>

<pallas_src>
import jax
import jax.numpy as jnp
import numpy as np
from jax.experimental import pallas as pl
from jax.experimental.pallas import tpu as pltpu


def size_conv_output(input_shape, num_kernels):
    w, h = (input_shape[1], input_shape[2])
    w, h = (w // 2, h // 2)
    w, h = (w - 2, h - 2)
    w, h = (w // 2, h // 2)
    w, h = (w - 2, h - 2)
    w, h = (w // 2, h // 2)
    return w * h * num_kernels


# ------------------------------ geometry helpers ---------------------------- #

def _conv_geom(hin, win):
    """3x3 valid conv + 2x2/2 max-pool geometry on a row-major (H*W, C) slab."""
    ho, wo = hin - 2, win - 2
    hp, wp = ho // 2, wo // 2
    # Conv output for (y, x) lives at flat row y*win + x.  Rows with x >= wo hold
    # wrap-around values that the pooling step never reads (finite, harmless).
    span = (ho - 1) * win + wo
    return ho, wo, hp, wp, span


def _decimation_matrix(wp, wo):
    """0/1 matrix D (wp, wo-1) with D[px, 2*px] = 1: picks even columns via a dot."""
    d = np.zeros((wp, wo - 1), np.float32)
    d[np.arange(wp), 2 * np.arange(wp)] = 1.0
    return jnp.asarray(d)


# --------------------------- in-kernel building blocks ----------------------- #

_CHUNK = 128   # conv-output rows per matmul: bounds every live value to ~16-20 vregs


def _conv_im2col(x_ref, w_ref, cs_ref, span, chunk):
    """Stage-1 conv: x_ref already holds 3x3 patches -> one matmul per M-chunk."""
    w = w_ref[...]                                            # (9*cin, 32) bf16
    for start in range(0, span, chunk):
        size = min(chunk, span - start)
        cs_ref[pl.ds(start, size), :] = jnp.dot(
            x_ref[pl.ds(start, size), :], w, preferred_element_type=jnp.float32)


def _conv_taps(a_ref, w_ref, cs_ref, win, cin, span, chunk):
    """3x3 conv as 9 shifted-slice matmuls, accumulated per M-chunk in registers."""
    for start in range(0, span, chunk):
        size = min(chunk, span - start)
        acc = None
        for k in range(9):
            ky, kx = divmod(k, 3)
            lhs = a_ref[pl.ds(start + ky * win + kx, size), :]      # (size, cin) bf16
            wk = w_ref[pl.ds(k * cin, cin), :]                      # (cin, cout) bf16
            d = jnp.dot(lhs, wk, preferred_element_type=jnp.float32)
            acc = d if acc is None else acc + d
        cs_ref[pl.ds(start, size), :] = acc


def _pool_bias_relu(cs_ref, b_ref, dec_ref, o_ref, win, wo, hp, wp):
    """2x2/2 max-pool + bias + ReLU on the conv slab (they commute with the max)."""
    bias = b_ref[...]                                         # (1, cout) f32
    dec = dec_ref[...]                                        # (wp, wo-1) f32
    for py in range(hp):
        m = None
        for dy in range(2):
            for dx in range(2):
                s = cs_ref[pl.ds((2 * py + dy) * win + dx, wo - 1), :]
                m = s if m is None else jnp.maximum(m, s)
        pooled = jnp.dot(dec, m, preferred_element_type=jnp.float32)   # (wp, cout)
        pooled = jnp.maximum(pooled + bias, 0.0)
        o_ref[pl.ds(py * wp, wp), :] = pooled.astype(o_ref.dtype)


def _make_fused_kernel(cin, height, width):
    hin1, win1 = height + 2, width + 2          # conv1 has padding=1
    _, wo1, hp1, wp1, span1 = _conv_geom(hin1, win1)
    _, wo2, hp2, wp2, span2 = _conv_geom(hp1, wp1)
    _, wo3, hp3, wp3, span3 = _conv_geom(hp2, wp2)
    n_pos = hp3 * wp3                           # spatial positions entering the MLP

    def kernel(x_ref, w1_ref, b1_ref, w2_ref, b2_ref, w3_ref, b3_ref,
               fw1_ref, fb1_ref, fw2_ref, fb2_ref, d1_ref, d2_ref, d3_ref,
               o_ref, cs1, a1, cs2, a2, cs3, a3):
        # conv1 -> ReLU -> pool  (input pre-im2col'd: K = 9*cin, single-dot chunks)
        _conv_im2col(x_ref, w1_ref, cs1, span1, 2 * _CHUNK)
        _pool_bias_relu(cs1, b1_ref, d1_ref, a1, win1, wo1, hp1, wp1)
        # conv2 -> ReLU -> pool
        _conv_taps(a1, w2_ref, cs2, wp1, 32, span2, _CHUNK)
        _pool_bias_relu(cs2, b2_ref, d2_ref, a2, wp1, wo2, hp2, wp2)
        # conv3 -> ReLU -> pool
        _conv_taps(a2, w3_ref, cs3, wp2, 64, span3, _CHUNK)
        _pool_bias_relu(cs3, b3_ref, d3_ref, a3, wp2, wo3, hp3, wp3)

        # Flatten + Linear(feat->64) + ReLU + Linear(64->n_classes).  fw1 rows were
        # pre-permuted to NHWC order, so the flatten is a sum of per-position dots.
        hidden = fb1_ref[...]                                  # (1, 64) f32
        for p in range(n_pos):
            hidden = hidden + jnp.dot(a3[pl.ds(p, 1), :],
                                      fw1_ref[pl.ds(p * 64, 64), :],
                                      preferred_element_type=jnp.float32)
        hidden = jnp.maximum(hidden, 0.0)
        logits = jnp.dot(hidden.astype(jnp.bfloat16), fw2_ref[...],
                         preferred_element_type=jnp.float32) + fb2_ref[...]
        o_ref[...] = logits.astype(o_ref.dtype)

    dims = dict(hin1=hin1, win1=win1, wo1=wo1, hp1=hp1, wp1=wp1, span1=span1,
                wo2=wo2, hp2=hp2, wp2=wp2, span2=span2,
                wo3=wo3, hp3=hp3, wp3=wp3, span3=span3, n_pos=n_pos)
    return kernel, dims


# ------------------------------- public forward ----------------------------- #

def hochuli_forward(params, x_nchw):
    batch, cin, height, width = x_nchw.shape
    n_classes = params["fw2"].shape[1]
    feat = params["fw1"].shape[0]

    kernel, d = _make_fused_kernel(cin, height, width)
    n_pos = d["n_pos"]
    assert feat == n_pos * 64, (feat, n_pos)
    hin1, win1, span1 = d["hin1"], d["win1"], d["span1"]

    # Boundary glue (pure layout, tiny): NCHW -> NHWC, pad=1 for conv1, and im2col of
    # the FIRST conv only (cin is small, so K becomes 9*cin instead of nine K=cin dots).
    x = jnp.transpose(x_nchw, (0, 2, 3, 1)).astype(jnp.float32)
    x = jnp.pad(x, ((0, 0), (1, 1), (1, 1), (0, 0)))
    xf = x.reshape(batch, hin1 * win1, cin)
    taps = [xf[:, ky * win1 + kx: ky * win1 + kx + span1, :]
            for ky in range(3) for kx in range(3)]
    patches = jnp.concatenate(taps, axis=2).astype(jnp.bfloat16)   # (B, span1, 9*cin)

    # Conv / linear weights as matmul operands: bf16 on the MXU, f32 bias + accumulate.
    w1 = params["cw1"].reshape(9 * cin, 32).astype(jnp.bfloat16)
    w2 = params["cw2"].reshape(9 * 32, 64).astype(jnp.bfloat16)
    w3 = params["cw3"].reshape(9 * 64, 64).astype(jnp.bfloat16)
    b1 = params["cb1"].reshape(1, 32).astype(jnp.float32)
    b2 = params["cb2"].reshape(1, 64).astype(jnp.float32)
    b3 = params["cb3"].reshape(1, 64).astype(jnp.float32)

    # fc1 rows permuted once from PyTorch's NCHW flatten order to NHWC slab order.
    idx = np.arange(feat)
    perm = (idx % 64) * n_pos + (idx // 64)
    fw1 = params["fw1"][perm, :].astype(jnp.bfloat16)
    fb1 = params["fb1"].reshape(1, 64).astype(jnp.float32)
    fw2 = params["fw2"].astype(jnp.bfloat16)
    fb2 = params["fb2"].reshape(1, n_classes).astype(jnp.float32)

    d1 = _decimation_matrix(d["wp1"], d["wo1"])
    d2 = _decimation_matrix(d["wp2"], d["wo2"])
    d3 = _decimation_matrix(d["wp3"], d["wo3"])

    full = lambda b: (0, 0)
    macs = (span1 * 9 * cin * 32 + d["span2"] * 9 * 32 * 64
            + d["span3"] * 9 * 64 * 64 + feat * 64 + 64 * n_classes)
    weight_bytes = sum(int(np.prod(a.shape)) * a.dtype.itemsize
                       for a in (w1, b1, w2, b2, w3, b3,
                                 fw1, fb1, fw2, fb2, d1, d2, d3))
    cost = pl.CostEstimate(
        flops=2 * batch * macs,
        transcendentals=0,
        bytes_accessed=int(batch * span1 * 9 * cin * 2 + weight_bytes
                           + batch * n_classes * 4))

    out = pl.pallas_call(
        kernel,
        out_shape=jax.ShapeDtypeStruct((batch, 1, n_classes), jnp.float32),
        grid=(batch,),
        in_specs=[
            pl.BlockSpec((None, span1, 9 * cin), lambda b: (b, 0, 0)),
            pl.BlockSpec(w1.shape, full), pl.BlockSpec(b1.shape, full),
            pl.BlockSpec(w2.shape, full), pl.BlockSpec(b2.shape, full),
            pl.BlockSpec(w3.shape, full), pl.BlockSpec(b3.shape, full),
            pl.BlockSpec(fw1.shape, full), pl.BlockSpec(fb1.shape, full),
            pl.BlockSpec(fw2.shape, full), pl.BlockSpec(fb2.shape, full),
            pl.BlockSpec(d1.shape, full), pl.BlockSpec(d2.shape, full),
            pl.BlockSpec(d3.shape, full),
        ],
        out_specs=pl.BlockSpec((None, 1, n_classes), lambda b: (b, 0, 0)),
        scratch_shapes=[
            pltpu.VMEM((d["span1"], 32), jnp.float32),                 # conv1 slab
            pltpu.VMEM((d["hp1"] * d["wp1"], 32), jnp.bfloat16),       # pooled act 1
            pltpu.VMEM((d["span2"], 64), jnp.float32),                 # conv2 slab
            pltpu.VMEM((d["hp2"] * d["wp2"], 64), jnp.bfloat16),       # pooled act 2
            pltpu.VMEM((d["span3"], 64), jnp.float32),                 # conv3 slab
            pltpu.VMEM((d["n_pos"], 64), jnp.bfloat16),                # pooled act 3
        ],
        compiler_params=pltpu.CompilerParams(
            dimension_semantics=("parallel",)),
        cost_estimate=cost,
    )(patches, w1, b1, w2, b2, w3, b3, fw1, fb1, fw2, fb2, d1, d2, d3)
    return out.reshape(batch, n_classes)


# ------------------------------- parameters --------------------------------- #

def init_params(key, input_shape, last_output):
    cin = input_shape[0]
    feat = size_conv_output(input_shape, 64)
    ks = jax.random.split(key, 10)

    def conv_w(k, ci, co):
        return jax.random.normal(k, (3, 3, ci, co), jnp.float32) / np.sqrt(9 * ci)

    def lin_w(k, fi, fo):
        return jax.random.normal(k, (fi, fo), jnp.float32) / np.sqrt(fi)

    def bias(k, n):
        return 0.01 * jax.random.normal(k, (n,), jnp.float32)

    return {
        "cw1": conv_w(ks[0], cin, 32), "cb1": bias(ks[1], 32),
        "cw2": conv_w(ks[2], 32, 64), "cb2": bias(ks[3], 64),
        "cw3": conv_w(ks[4], 64, 64), "cb3": bias(ks[5], 64),
        "fw1": lin_w(ks[6], feat, 64), "fb1": bias(ks[7], 64),
        "fw2": lin_w(ks[8], 64, last_output), "fb2": bias(ks[9], last_output),
    }


# ---------------------------- pure-JAX reference ----------------------------- #

def reference_forward(params, x_nchw):
    x = jnp.transpose(x_nchw, (0, 2, 3, 1)).astype(jnp.float32)

    def conv(x, w, b, padding):
        y = jax.lax.conv_general_dilated(
            x, w, window_strides=(1, 1), padding=padding,
            dimension_numbers=("NHWC", "HWIO", "NHWC"))
        return jax.nn.relu(y + b)

    def pool(x):
        return jax.lax.reduce_window(
            x, -jnp.inf, jax.lax.max, (1, 2, 2, 1), (1, 2, 2, 1), "VALID")

    x = pool(conv(x, params["cw1"], params["cb1"], [(1, 1), (1, 1)]))
    x = pool(conv(x, params["cw2"], params["cb2"], [(0, 0), (0, 0)]))
    x = pool(conv(x, params["cw3"], params["cb3"], [(0, 0), (0, 0)]))
    B = x.shape[0]
    x = jnp.transpose(x, (0, 3, 1, 2)).reshape(B, -1)   # PyTorch NCHW flatten
    h = jax.nn.relu(x @ params["fw1"] + params["fb1"])
    return h @ params["fw2"] + params["fb2"]


# ----------------------------------- main ------------------------------------ #

if __name__ == "__main__":
    input_shape = (3, 32, 32)    # (C, H, W) as the torch module expects
    last_output = 10
    batch = 2

    key = jax.random.PRNGKey(0)
    pkey, xkey = jax.random.split(key)
    params = init_params(pkey, input_shape, last_output)
    x = jax.random.normal(xkey, (batch,) + input_shape, jnp.float32)   # NCHW

    fwd = jax.jit(hochuli_forward)
    out = jax.block_until_ready(fwd(params, x))

    assert out.shape == (batch, last_output), out.shape
    ref = reference_forward(params, x)
    np.testing.assert_allclose(np.asarray(out), np.asarray(ref), rtol=5e-2, atol=5e-2)
    print("KERNEL_OK")
</pallas_src>

<mosaic_0001>
module attributes {stable_mosaic.version = 11 : i64} {
  func.func @kernel(%arg0: i32, %arg1: memref<1x1086x27xbf16, #tpu.memory_space<vmem>>, %arg2: memref<27x32xbf16, #tpu.memory_space<vmem>>, %arg3: memref<1x32xf32, #tpu.memory_space<vmem>>, %arg4: memref<288x64xbf16, #tpu.memory_space<vmem>>, %arg5: memref<1x64xf32, #tpu.memory_space<vmem>>, %arg6: memref<576x64xbf16, #tpu.memory_space<vmem>>, %arg7: memref<1x64xf32, #tpu.memory_space<vmem>>, %arg8: memref<256x64xbf16, #tpu.memory_space<vmem>>, %arg9: memref<1x64xf32, #tpu.memory_space<vmem>>, %arg10: memref<64x10xbf16, #tpu.memory_space<vmem>>, %arg11: memref<1x10xf32, #tpu.memory_space<vmem>>, %arg12: memref<16x31xf32, #tpu.memory_space<vmem>>, %arg13: memref<7x13xf32, #tpu.memory_space<vmem>>, %arg14: memref<2x4xf32, #tpu.memory_space<vmem>>, %arg15: memref<1x1x10xf32, #tpu.memory_space<vmem>>, %arg16: memref<1086x32xf32, #tpu.memory_space<vmem>>, %arg17: memref<256x32xbf16, #tpu.memory_space<vmem>>, %arg18: memref<222x64xf32, #tpu.memory_space<vmem>>, %arg19: memref<49x64xbf16, #tpu.memory_space<vmem>>, %arg20: memref<33x64xf32, #tpu.memory_space<vmem>>, %arg21: memref<4x64xbf16, #tpu.memory_space<vmem>>) attributes {dimension_semantics = [#tpu.dimension_semantics<parallel>], iteration_bounds = array<i64: 2>, scalar_prefetch = 0 : i64, scratch_operands = 6 : i64, tpu.core_type = #tpu.core_type<tc>, window_params = [{transform_indices = @transform_0, window_bounds = array<i64: 1, 1086, 27>}, {pipeline_mode = #tpu.pipeline_mode<synchronous>, transform_indices = @transform_1, window_bounds = array<i64: 27, 32>}, {pipeline_mode = #tpu.pipeline_mode<synchronous>, transform_indices = @transform_2, window_bounds = array<i64: 1, 32>}, {pipeline_mode = #tpu.pipeline_mode<synchronous>, transform_indices = @transform_3, window_bounds = array<i64: 288, 64>}, {pipeline_mode = #tpu.pipeline_mode<synchronous>, transform_indices = @transform_4, window_bounds = array<i64: 1, 64>}, {pipeline_mode = #tpu.pipeline_mode<synchronous>, transform_indices = @transform_5, window_bounds = array<i64: 576, 64>}, {pipeline_mode = #tpu.pipeline_mode<synchronous>, transform_indices = @transform_6, window_bounds = array<i64: 1, 64>}, {pipeline_mode = #tpu.pipeline_mode<synchronous>, transform_indices = @transform_7, window_bounds = array<i64: 256, 64>}, {pipeline_mode = #tpu.pipeline_mode<synchronous>, transform_indices = @transform_8, window_bounds = array<i64: 1, 64>}, {pipeline_mode = #tpu.pipeline_mode<synchronous>, transform_indices = @transform_9, window_bounds = array<i64: 64, 10>}, {pipeline_mode = #tpu.pipeline_mode<synchronous>, transform_indices = @transform_10, window_bounds = array<i64: 1, 10>}, {pipeline_mode = #tpu.pipeline_mode<synchronous>, transform_indices = @transform_11, window_bounds = array<i64: 16, 31>}, {pipeline_mode = #tpu.pipeline_mode<synchronous>, transform_indices = @transform_12, window_bounds = array<i64: 7, 13>}, {pipeline_mode = #tpu.pipeline_mode<synchronous>, transform_indices = @transform_13, window_bounds = array<i64: 2, 4>}, {transform_indices = @transform_14, window_bounds = array<i64: 1, 1, 10>}]} {
    %c0 = arith.constant 0 : index
    %c0_0 = arith.constant 0 : index
    %0 = vector.load %arg2[%c0, %c0_0] : memref<27x32xbf16, #tpu.memory_space<vmem>>, vector<27x32xbf16>
    %c0_1 = arith.constant 0 : index
    %c0_2 = arith.constant 0 : index
    %c0_3 = arith.constant 0 : index
    %1 = vector.load %arg1[%c0_1, %c0_2, %c0_3] : memref<1x1086x27xbf16, #tpu.memory_space<vmem>>, vector<1x256x27xbf16>
    %2 = vector.shape_cast %1 : vector<1x256x27xbf16> to vector<256x27xbf16>
    %cst = arith.constant dense<0.000000e+00> : vector<256x32xf32>
    %3 = tpu.matmul %2, %0, %cst {dimension_numbers = #tpu.dot_dimension_numbers<[1], [0], [0], [1], [0, 0, 1, 1], [], []>} : vector<256x27xbf16>, vector<27x32xbf16>, vector<256x32xf32> -> vector<256x32xf32>
    %c0_4 = arith.constant 0 : index
    %c0_5 = arith.constant 0 : index
    %4 = vector.load %arg16[%c0_4, %c0_5] : memref<1086x32xf32, #tpu.memory_space<vmem>>, vector<256x32xf32>
    tpu.vector_store %arg16[%c0_4, %c0_5], %3 {strides = array<i32>} : memref<1086x32xf32, #tpu.memory_space<vmem>>, vector<256x32xf32>,
    %c0_6 = arith.constant 0 : index
    %c256 = arith.constant 256 : index
    %c0_7 = arith.constant 0 : index
    %5 = vector.load %arg1[%c0_6, %c256, %c0_7] : memref<1x1086x27xbf16, #tpu.memory_space<vmem>>, vector<1x256x27xbf16>
    %6 = vector.shape_cast %5 : vector<1x256x27xbf16> to vector<256x27xbf16>
    %cst_8 = arith.constant dense<0.000000e+00> : vector<256x32xf32>
    %7 = tpu.matmul %6, %0, %cst_8 {dimension_numbers = #tpu.dot_dimension_numbers<[1], [0], [0], [1], [0, 0, 1, 1], [], []>} : vector<256x27xbf16>, vector<27x32xbf16>, vector<256x32xf32> -> vector<256x32xf32>
    %c256_9 = arith.constant 256 : index
    %c0_10 = arith.constant 0 : index
    %8 = vector.load %arg16[%c256_9, %c0_10] : memref<1086x32xf32, #tpu.memory_space<vmem>>, vector<256x32xf32>
    tpu.vector_store %arg16[%c256_9, %c0_10], %7 {strides = array<i32>} : memref<1086x32xf32, #tpu.memory_space<vmem>>, vector<256x32xf32>,
    %c0_11 = arith.constant 0 : index
    %c512 = arith.constant 512 : index
    %c0_12 = arith.constant 0 : index
    %9 = vector.load %arg1[%c0_11, %c512, %c0_12] : memref<1x1086x27xbf16, #tpu.memory_space<vmem>>, vector<1x256x27xbf16>
    %10 = vector.shape_cast %9 : vector<1x256x27xbf16> to vector<256x27xbf16>
    %cst_13 = arith.constant dense<0.000000e+00> : vector<256x32xf32>
    %11 = tpu.matmul %10, %0, %cst_13 {dimension_numbers = #tpu.dot_dimension_numbers<[1], [0], [0], [1], [0, 0, 1, 1], [], []>} : vector<256x27xbf16>, vector<27x32xbf16>, vector<256x32xf32> -> vector<256x32xf32>
    %c512_14 = arith.constant 512 : index
    %c0_15 = arith.constant 0 : index
    %12 = vector.load %arg16[%c512_14, %c0_15] : memref<1086x32xf32, #tpu.memory_space<vmem>>, vector<256x32xf32>
    tpu.vector_store %arg16[%c512_14, %c0_15], %11 {strides = array<i32>} : memref<1086x32xf32, #tpu.memory_space<vmem>>, vector<256x32xf32>,
    %c0_16 = arith.constant 0 : index
    %c768 = arith.constant 768 : index
    %c0_17 = arith.constant 0 : index
    %13 = vector.load %arg1[%c0_16, %c768, %c0_17] : memref<1x1086x27xbf16, #tpu.memory_space<vmem>>, vector<1x256x27xbf16>
    %14 = vector.shape_cast %13 : vector<1x256x27xbf16> to vector<256x27xbf16>
    %cst_18 = arith.constant dense<0.000000e+00> : vector<256x32xf32>
    %15 = tpu.matmul %14, %0, %cst_18 {dimension_numbers = #tpu.dot_dimension_numbers<[1], [0], [0], [1], [0, 0, 1, 1], [], []>} : vector<256x27xbf16>, vector<27x32xbf16>, vector<256x32xf32> -> vector<256x32xf32>
    %c768_19 = arith.constant 768 : index
    %c0_20 = arith.constant 0 : index
    %16 = vector.load %arg16[%c768_19, %c0_20] : memref<1086x32xf32, #tpu.memory_space<vmem>>, vector<256x32xf32>
    tpu.vector_store %arg16[%c768_19, %c0_20], %15 {strides = array<i32>} : memref<1086x32xf32, #tpu.memory_space<vmem>>, vector<256x32xf32>,
    %c0_21 = arith.constant 0 : index
    %c1024 = arith.constant 1024 : index
    %c0_22 = arith.constant 0 : index
    %17 = vector.load %arg1[%c0_21, %c1024, %c0_22] : memref<1x1086x27xbf16, #tpu.memory_space<vmem>>, vector<1x62x27xbf16>
    %18 = vector.shape_cast %17 : vector<1x62x27xbf16> to vector<62x27xbf16>
    %cst_23 = arith.constant dense<0.000000e+00> : vector<62x32xf32>
    %19 = tpu.matmul %18, %0, %cst_23 {dimension_numbers = #tpu.dot_dimension_numbers<[1], [0], [0], [1], [0, 0, 1, 1], [], []>} : vector<62x27xbf16>, vector<27x32xbf16>, vector<62x32xf32> -> vector<62x32xf32>
    %c1024_24 = arith.constant 1024 : index
    %c0_25 = arith.constant 0 : index
    %20 = vector.load %arg16[%c1024_24, %c0_25] : memref<1086x32xf32, #tpu.memory_space<vmem>>, vector<62x32xf32>
    tpu.vector_store %arg16[%c1024_24, %c0_25], %19 {strides = array<i32>} : memref<1086x32xf32, #tpu.memory_space<vmem>>, vector<62x32xf32>,
    %c0_26 = arith.constant 0 : index
    %c0_27 = arith.constant 0 : index
    %21 = vector.load %arg3[%c0_26, %c0_27] : memref<1x32xf32, #tpu.memory_space<vmem>>, vector<1x32xf32>
    %c0_28 = arith.constant 0 : index
    %c0_29 = arith.constant 0 : index
    %22 = vector.load %arg12[%c0_28, %c0_29] : memref<16x31xf32, #tpu.memory_space<vmem>>, vector<16x31xf32>
    %c0_30 = arith.constant 0 : index
    %c0_31 = arith.constant 0 : index
    %23 = vector.load %arg16[%c0_30, %c0_31] : memref<1086x32xf32, #tpu.memory_space<vmem>>, vector<31x32xf32>
    %c1 = arith.constant 1 : index
    %c0_32 = arith.constant 0 : index
    %24 = vector.load %arg16[%c1, %c0_32] : memref<1086x32xf32, #tpu.memory_space<vmem>>, vector<31x32xf32>
    %25 = arith.maximumf %23, %24 : vector<31x32xf32>
    %c34 = arith.constant 34 : index
    %c0_33 = arith.constant 0 : index
    %26 = vector.load %arg16[%c34, %c0_33] : memref<1086x32xf32, #tpu.memory_space<vmem>>, vector<31x32xf32>
    %27 = arith.maximumf %25, %26 : vector<31x32xf32>
    %c35 = arith.constant 35 : index
    %c0_34 = arith.constant 0 : index
    %28 = vector.load %arg16[%c35, %c0_34] : memref<1086x32xf32, #tpu.memory_space<vmem>>, vector<31x32xf32>
    %29 = arith.maximumf %27, %28 : vector<31x32xf32>
    %cst_35 = arith.constant dense<0.000000e+00> : vector<16x32xf32>
    %30 = tpu.matmul %22, %29, %cst_35 {dimension_numbers = #tpu.dot_dimension_numbers<[1], [0], [0], [1], [0, 0, 1, 1], [], []>} : vector<16x31xf32>, vector<31x32xf32>, vector<16x32xf32> -> vector<16x32xf32>
    %31 = vector.broadcast %21 : vector<1x32xf32> to vector<16x32xf32>
    %32 = arith.addf %30, %31 : vector<16x32xf32>
    %cst_36 = arith.constant 0.000000e+00 : f32
    %33 = vector.broadcast %cst_36 : f32 to vector<16x32xf32>
    %34 = arith.maximumf %32, %33 : vector<16x32xf32>
    %35 = arith.truncf %34 : vector<16x32xf32> to vector<16x32xbf16>
    %c0_37 = arith.constant 0 : index
    %c0_38 = arith.constant 0 : index
    %36 = vector.load %arg17[%c0_37, %c0_38] : memref<256x32xbf16, #tpu.memory_space<vmem>>, vector<16x32xbf16>
    tpu.vector_store %arg17[%c0_37, %c0_38], %35 {strides = array<i32>} : memref<256x32xbf16, #tpu.memory_space<vmem>>, vector<16x32xbf16>,
    %c68 = arith.constant 68 : index
    %c0_39 = arith.constant 0 : index
    %37 = vector.load %arg16[%c68, %c0_39] : memref<1086x32xf32, #tpu.memory_space<vmem>>, vector<31x32xf32>
    %c69 = arith.constant 69 : index
    %c0_40 = arith.constant 0 : index
    %38 = vector.load %arg16[%c69, %c0_40] : memref<1086x32xf32, #tpu.memory_space<vmem>>, vector<31x32xf32>
    %39 = arith.maximumf %37, %38 : vector<31x32xf32>
    %c102 = arith.constant 102 : index
    %c0_41 = arith.constant 0 : index
    %40 = vector.load %arg16[%c102, %c0_41] : memref<1086x32xf32, #tpu.memory_space<vmem>>, vector<31x32xf32>
    %41 = arith.maximumf %39, %40 : vector<31x32xf32>
    %c103 = arith.constant 103 : index
    %c0_42 = arith.constant 0 : index
    %42 = vector.load %arg16[%c103, %c0_42] : memref<1086x32xf32, #tpu.memory_space<vmem>>, vector<31x32xf32>
    %43 = arith.maximumf %41, %42 : vector<31x32xf32>
    %cst_43 = arith.constant dense<0.000000e+00> : vector<16x32xf32>
    %44 = tpu.matmul %22, %43, %cst_43 {dimension_numbers = #tpu.dot_dimension_numbers<[1], [0], [0], [1], [0, 0, 1, 1], [], []>} : vector<16x31xf32>, vector<31x32xf32>, vector<16x32xf32> -> vector<16x32xf32>
    %45 = vector.broadcast %21 : vector<1x32xf32> to vector<16x32xf32>
    %46 = arith.addf %44, %45 : vector<16x32xf32>
    %cst_44 = arith.constant 0.000000e+00 : f32
    %47 = vector.broadcast %cst_44 : f32 to vector<16x32xf32>
    %48 = arith.maximumf %46, %47 : vector<16x32xf32>
    %49 = arith.truncf %48 : vector<16x32xf32> to vector<16x32xbf16>
    %c16 = arith.constant 16 : index
    %c0_45 = arith.constant 0 : index
    %50 = vector.load %arg17[%c16, %c0_45] : memref<256x32xbf16, #tpu.memory_space<vmem>>, vector<16x32xbf16>
    tpu.vector_store %arg17[%c16, %c0_45], %49 {strides = array<i32>} : memref<256x32xbf16, #tpu.memory_space<vmem>>, vector<16x32xbf16>,
    %c136 = arith.constant 136 : index
    %c0_46 = arith.constant 0 : index
    %51 = vector.load %arg16[%c136, %c0_46] : memref<1086x32xf32, #tpu.memory_space<vmem>>, vector<31x32xf32>
    %c137 = arith.constant 137 : index
    %c0_47 = arith.constant 0 : index
    %52 = vector.load %arg16[%c137, %c0_47] : memref<1086x32xf32, #tpu.memory_space<vmem>>, vector<31x32xf32>
    %53 = arith.maximumf %51, %52 : vector<31x32xf32>
    %c170 = arith.constant 170 : index
    %c0_48 = arith.constant 0 : index
    %54 = vector.load %arg16[%c170, %c0_48] : memref<1086x32xf32, #tpu.memory_space<vmem>>, vector<31x32xf32>
    %55 = arith.maximumf %53, %54 : vector<31x32xf32>
    %c171 = arith.constant 171 : index
    %c0_49 = arith.constant 0 : index
    %56 = vector.load %arg16[%c171, %c0_49] : memref<1086x32xf32, #tpu.memory_space<vmem>>, vector<31x32xf32>
    %57 = arith.maximumf %55, %56 : vector<31x32xf32>
    %cst_50 = arith.constant dense<0.000000e+00> : vector<16x32xf32>
    %58 = tpu.matmul %22, %57, %cst_50 {dimension_numbers = #tpu.dot_dimension_numbers<[1], [0], [0], [1], [0, 0, 1, 1], [], []>} : vector<16x31xf32>, vector<31x32xf32>, vector<16x32xf32> -> vector<16x32xf32>
    %59 = vector.broadcast %21 : vector<1x32xf32> to vector<16x32xf32>
    %60 = arith.addf %58, %59 : vector<16x32xf32>
    %cst_51 = arith.constant 0.000000e+00 : f32
    %61 = vector.broadcast %cst_51 : f32 to vector<16x32xf32>
    %62 = arith.maximumf %60, %61 : vector<16x32xf32>
    %63 = arith.truncf %62 : vector<16x32xf32> to vector<16x32xbf16>
    %c32 = arith.constant 32 : index
    %c0_52 = arith.constant 0 : index
    %64 = vector.load %arg17[%c32, %c0_52] : memref<256x32xbf16, #tpu.memory_space<vmem>>, vector<16x32xbf16>
    tpu.vector_store %arg17[%c32, %c0_52], %63 {strides = array<i32>} : memref<256x32xbf16, #tpu.memory_space<vmem>>, vector<16x32xbf16>,
    %c204 = arith.constant 204 : index
    %c0_53 = arith.constant 0 : index
    %65 = vector.load %arg16[%c204, %c0_53] : memref<1086x32xf32, #tpu.memory_space<vmem>>, vector<31x32xf32>
    %c205 = arith.constant 205 : index
    %c0_54 = arith.constant 0 : index
    %66 = vector.load %arg16[%c205, %c0_54] : memref<1086x32xf32, #tpu.memory_space<vmem>>, vector<31x32xf32>
    %67 = arith.maximumf %65, %66 : vector<31x32xf32>
    %c238 = arith.constant 238 : index
    %c0_55 = arith.constant 0 : index
    %68 = vector.load %arg16[%c238, %c0_55] : memref<1086x32xf32, #tpu.memory_space<vmem>>, vector<31x32xf32>
    %69 = arith.maximumf %67, %68 : vector<31x32xf32>
    %c239 = arith.constant 239 : index
    %c0_56 = arith.constant 0 : index
    %70 = vector.load %arg16[%c239, %c0_56] : memref<1086x32xf32, #tpu.memory_space<vmem>>, vector<31x32xf32>
    %71 = arith.maximumf %69, %70 : vector<31x32xf32>
    %cst_57 = arith.constant dense<0.000000e+00> : vector<16x32xf32>
    %72 = tpu.matmul %22, %71, %cst_57 {dimension_numbers = #tpu.dot_dimension_numbers<[1], [0], [0], [1], [0, 0, 1, 1], [], []>} : vector<16x31xf32>, vector<31x32xf32>, vector<16x32xf32> -> vector<16x32xf32>
    %73 = vector.broadcast %21 : vector<1x32xf32> to vector<16x32xf32>
    %74 = arith.addf %72, %73 : vector<16x32xf32>
    %cst_58 = arith.constant 0.000000e+00 : f32
    %75 = vector.broadcast %cst_58 : f32 to vector<16x32xf32>
    %76 = arith.maximumf %74, %75 : vector<16x32xf32>
    %77 = arith.truncf %76 : vector<16x32xf32> to vector<16x32xbf16>
    %c48 = arith.constant 48 : index
    %c0_59 = arith.constant 0 : index
    %78 = vector.load %arg17[%c48, %c0_59] : memref<256x32xbf16, #tpu.memory_space<vmem>>, vector<16x32xbf16>
    tpu.vector_store %arg17[%c48, %c0_59], %77 {strides = array<i32>} : memref<256x32xbf16, #tpu.memory_space<vmem>>, vector<16x32xbf16>,
    %c272 = arith.constant 272 : index
    %c0_60 = arith.constant 0 : index
    %79 = vector.load %arg16[%c272, %c0_60] : memref<1086x32xf32, #tpu.memory_space<vmem>>, vector<31x32xf32>
    %c273 = arith.constant 273 : index
    %c0_61 = arith.constant 0 : index
    %80 = vector.load %arg16[%c273, %c0_61] : memref<1086x32xf32, #tpu.memory_space<vmem>>, vector<31x32xf32>
    %81 = arith.maximumf %79, %80 : vector<31x32xf32>
    %c306 = arith.constant 306 : index
    %c0_62 = arith.constant 0 : index
    %82 = vector.load %arg16[%c306, %c0_62] : memref<1086x32xf32, #tpu.memory_space<vmem>>, vector<31x32xf32>
    %83 = arith.maximumf %81, %82 : vector<31x32xf32>
    %c307 = arith.constant 307 : index
    %c0_63 = arith.constant 0 : index
    %84 = vector.load %arg16[%c307, %c0_63] : memref<1086x32xf32, #tpu.memory_space<vmem>>, vector<31x32xf32>
    %85 = arith.maximumf %83, %84 : vector<31x32xf32>
    %cst_64 = arith.constant dense<0.000000e+00> : vector<16x32xf32>
    %86 = tpu.matmul %22, %85, %cst_64 {dimension_numbers = #tpu.dot_dimension_numbers<[1], [0], [0], [1], [0, 0, 1, 1], [], []>} : vector<16x31xf32>, vector<31x32xf32>, vector<16x32xf32> -> vector<16x32xf32>
    %87 = vector.broadcast %21 : vector<1x32xf32> to vector<16x32xf32>
    %88 = arith.addf %86, %87 : vector<16x32xf32>
    %cst_65 = arith.constant 0.000000e+00 : f32
    %89 = vector.broadcast %cst_65 : f32 to vector<16x32xf32>
    %90 = arith.maximumf %88, %89 : vector<16x32xf32>
    %91 = arith.truncf %90 : vector<16x32xf32> to vector<16x32xbf16>
    %c64 = arith.constant 64 : index
    %c0_66 = arith.constant 0 : index
    %92 = vector.load %arg17[%c64, %c0_66] : memref<256x32xbf16, #tpu.memory_space<vmem>>, vector<16x32xbf16>
    tpu.vector_store %arg17[%c64, %c0_66], %91 {strides = array<i32>} : memref<256x32xbf16, #tpu.memory_space<vmem>>, vector<16x32xbf16>,
    %c340 = arith.constant 340 : index
    %c0_67 = arith.constant 0 : index
    %93 = vector.load %arg16[%c340, %c0_67] : memref<1086x32xf32, #tpu.memory_space<vmem>>, vector<31x32xf32>
    %c341 = arith.constant 341 : index
    %c0_68 = arith.constant 0 : index
    %94 = vector.load %arg16[%c341, %c0_68] : memref<1086x32xf32, #tpu.memory_space<vmem>>, vector<31x32xf32>
    %95 = arith.maximumf %93, %94 : vector<31x32xf32>
    %c374 = arith.constant 374 : index
    %c0_69 = arith.constant 0 : index
    %96 = vector.load %arg16[%c374, %c0_69] : memref<1086x32xf32, #tpu.memory_space<vmem>>, vector<31x32xf32>
    %97 = arith.maximumf %95, %96 : vector<31x32xf32>
    %c375 = arith.constant 375 : index
    %c0_70 = arith.constant 0 : index
    %98 = vector.load %arg16[%c375, %c0_70] : memref<1086x32xf32, #tpu.memory_space<vmem>>, vector<31x32xf32>
    %99 = arith.maximumf %97, %98 : vector<31x32xf32>
    %cst_71 = arith.constant dense<0.000000e+00> : vector<16x32xf32>
    %100 = tpu.matmul %22, %99, %cst_71 {dimension_numbers = #tpu.dot_dimension_numbers<[1], [0], [0], [1], [0, 0, 1, 1], [], []>} : vector<16x31xf32>, vector<31x32xf32>, vector<16x32xf32> -> vector<16x32xf32>
    %101 = vector.broadcast %21 : vector<1x32xf32> to vector<16x32xf32>
    %102 = arith.addf %100, %101 : vector<16x32xf32>
    %cst_72 = arith.constant 0.000000e+00 : f32
    %103 = vector.broadcast %cst_72 : f32 to vector<16x32xf32>
    %104 = arith.maximumf %102, %103 : vector<16x32xf32>
    %105 = arith.truncf %104 : vector<16x32xf32> to vector<16x32xbf16>
    %c80 = arith.constant 80 : index
    %c0_73 = arith.constant 0 : index
    %106 = vector.load %arg17[%c80, %c0_73] : memref<256x32xbf16, #tpu.memory_space<vmem>>, vector<16x32xbf16>
    tpu.vector_store %arg17[%c80, %c0_73], %105 {strides = array<i32>} : memref<256x32xbf16, #tpu.memory_space<vmem>>, vector<16x32xbf16>,
    %c408 = arith.constant 408 : index
    %c0_74 = arith.constant 0 : index
    %107 = vector.load %arg16[%c408, %c0_74] : memref<1086x32xf32, #tpu.memory_space<vmem>>, vector<31x32xf32>
    %c409 = arith.constant 409 : index
    %c0_75 = arith.constant 0 : index
    %108 = vector.load %arg16[%c409, %c0_75] : memref<1086x32xf32, #tpu.memory_space<vmem>>, vector<31x32xf32>
    %109 = arith.maximumf %107, %108 : vector<31x32xf32>
    %c442 = arith.constant 442 : index
    %c0_76 = arith.constant 0 : index
    %110 = vector.load %arg16[%c442, %c0_76] : memref<1086x32xf32, #tpu.memory_space<vmem>>, vector<31x32xf32>
    %111 = arith.maximumf %109, %110 : vector<31x32xf32>
    %c443 = arith.constant 443 : index
    %c0_77 = arith.constant 0 : index
    %112 = vector.load %arg16[%c443, %c0_77] : memref<1086x32xf32, #tpu.memory_space<vmem>>, vector<31x32xf32>
    %113 = arith.maximumf %111, %112 : vector<31x32xf32>
    %cst_78 = arith.constant dense<0.000000e+00> : vector<16x32xf32>
    %114 = tpu.matmul %22, %113, %cst_78 {dimension_numbers = #tpu.dot_dimension_numbers<[1], [0], [0], [1], [0, 0, 1, 1], [], []>} : vector<16x31xf32>, vector<31x32xf32>, vector<16x32xf32> -> vector<16x32xf32>
    %115 = vector.broadcast %21 : vector<1x32xf32> to vector<16x32xf32>
    %116 = arith.addf %114, %115 : vector<16x32xf32>
    %cst_79 = arith.constant 0.000000e+00 : f32
    %117 = vector.broadcast %cst_79 : f32 to vector<16x32xf32>
    %118 = arith.maximumf %116, %117 : vector<16x32xf32>
    %119 = arith.truncf %118 : vector<16x32xf32> to vector<16x32xbf16>
    %c96 = arith.constant 96 : index
    %c0_80 = arith.constant 0 : index
    %120 = vector.load %arg17[%c96, %c0_80] : memref<256x32xbf16, #tpu.memory_space<vmem>>, vector<16x32xbf16>
    tpu.vector_store %arg17[%c96, %c0_80], %119 {strides = array<i32>} : memref<256x32xbf16, #tpu.memory_space<vmem>>, vector<16x32xbf16>,
    %c476 = arith.constant 476 : index
    %c0_81 = arith.constant 0 : index
    %121 = vector.load %arg16[%c476, %c0_81] : memref<1086x32xf32, #tpu.memory_space<vmem>>, vector<31x32xf32>
    %c477 = arith.constant 477 : index
    %c0_82 = arith.constant 0 : index
    %122 = vector.load %arg16[%c477, %c0_82] : memref<1086x32xf32, #tpu.memory_space<vmem>>, vector<31x32xf32>
    %123 = arith.maximumf %121, %122 : vector<31x32xf32>
    %c510 = arith.constant 510 : index
    %c0_83 = arith.constant 0 : index
    %124 = vector.load %arg16[%c510, %c0_83] : memref<1086x32xf32, #tpu.memory_space<vmem>>, vector<31x32xf32>
    %125 = arith.maximumf %123, %124 : vector<31x32xf32>
    %c511 = arith.constant 511 : index
    %c0_84 = arith.constant 0 : index
    %126 = vector.load %arg16[%c511, %c0_84] : memref<1086x32xf32, #tpu.memory_space<vmem>>, vector<31x32xf32>
    %127 = arith.maximumf %125, %126 : vector<31x32xf32>
    %cst_85 = arith.constant dense<0.000000e+00> : vector<16x32xf32>
    %128 = tpu.matmul %22, %127, %cst_85 {dimension_numbers = #tpu.dot_dimension_numbers<[1], [0], [0], [1], [0, 0, 1, 1], [], []>} : vector<16x31xf32>, vector<31x32xf32>, vector<16x32xf32> -> vector<16x32xf32>
    %129 = vector.broadcast %21 : vector<1x32xf32> to vector<16x32xf32>
    %130 = arith.addf %128, %129 : vector<16x32xf32>
    %cst_86 = arith.constant 0.000000e+00 : f32
    %131 = vector.broadcast %cst_86 : f32 to vector<16x32xf32>
    %132 = arith.maximumf %130, %131 : vector<16x32xf32>
    %133 = arith.truncf %132 : vector<16x32xf32> to vector<16x32xbf16>
    %c112 = arith.constant 112 : index
    %c0_87 = arith.constant 0 : index
    %134 = vector.load %arg17[%c112, %c0_87] : memref<256x32xbf16, #tpu.memory_space<vmem>>, vector<16x32xbf16>
    tpu.vector_store %arg17[%c112, %c0_87], %133 {strides = array<i32>} : memref<256x32xbf16, #tpu.memory_space<vmem>>, vector<16x32xbf16>,
    %c544 = arith.constant 544 : index
    %c0_88 = arith.constant 0 : index
    %135 = vector.load %arg16[%c544, %c0_88] : memref<1086x32xf32, #tpu.memory_space<vmem>>, vector<31x32xf32>
    %c545 = arith.constant 545 : index
    %c0_89 = arith.constant 0 : index
    %136 = vector.load %arg16[%c545, %c0_89] : memref<1086x32xf32, #tpu.memory_space<vmem>>, vector<31x32xf32>
    %137 = arith.maximumf %135, %136 : vector<31x32xf32>
    %c578 = arith.constant 578 : index
    %c0_90 = arith.constant 0 : index
    %138 = vector.load %arg16[%c578, %c0_90] : memref<1086x32xf32, #tpu.memory_space<vmem>>, vector<31x32xf32>
    %139 = arith.maximumf %137, %138 : vector<31x32xf32>
    %c579 = arith.constant 579 : index
    %c0_91 = arith.constant 0 : index
    %140 = vector.load %arg16[%c579, %c0_91] : memref<1086x32xf32, #tpu.memory_space<vmem>>, vector<31x32xf32>
    %141 = arith.maximumf %139, %140 : vector<31x32xf32>
    %cst_92 = arith.constant dense<0.000000e+00> : vector<16x32xf32>
    %142 = tpu.matmul %22, %141, %cst_92 {dimension_numbers = #tpu.dot_dimension_numbers<[1], [0], [0], [1], [0, 0, 1, 1], [], []>} : vector<16x31xf32>, vector<31x32xf32>, vector<16x32xf32> -> vector<16x32xf32>
    %143 = vector.broadcast %21 : vector<1x32xf32> to vector<16x32xf32>
    %144 = arith.addf %142, %143 : vector<16x32xf32>
    %cst_93 = arith.constant 0.000000e+00 : f32
    %145 = vector.broadcast %cst_93 : f32 to vector<16x32xf32>
    %146 = arith.maximumf %144, %145 : vector<16x32xf32>
    %147 = arith.truncf %146 : vector<16x32xf32> to vector<16x32xbf16>
    %c128 = arith.constant 128 : index
    %c0_94 = arith.constant 0 : index
    %148 = vector.load %arg17[%c128, %c0_94] : memref<256x32xbf16, #tpu.memory_space<vmem>>, vector<16x32xbf16>
    tpu.vector_store %arg17[%c128, %c0_94], %147 {strides = array<i32>} : memref<256x32xbf16, #tpu.memory_space<vmem>>, vector<16x32xbf16>,
    %c612 = arith.constant 612 : index
    %c0_95 = arith.constant 0 : index
    %149 = vector.load %arg16[%c612, %c0_95] : memref<1086x32xf32, #tpu.memory_space<vmem>>, vector<31x32xf32>
    %c613 = arith.constant 613 : index
    %c0_96 = arith.constant 0 : index
    %150 = vector.load %arg16[%c613, %c0_96] : memref<1086x32xf32, #tpu.memory_space<vmem>>, vector<31x32xf32>
    %151 = arith.maximumf %149, %150 : vector<31x32xf32>
    %c646 = arith.constant 646 : index
    %c0_97 = arith.constant 0 : index
    %152 = vector.load %arg16[%c646, %c0_97] : memref<1086x32xf32, #tpu.memory_space<vmem>>, vector<31x32xf32>
    %153 = arith.maximumf %151, %152 : vector<31x32xf32>
    %c647 = arith.constant 647 : index
    %c0_98 = arith.constant 0 : index
    %154 = vector.load %arg16[%c647, %c0_98] : memref<1086x32xf32, #tpu.memory_space<vmem>>, vector<31x32xf32>
    %155 = arith.maximumf %153, %154 : vector<31x32xf32>
    %cst_99 = arith.constant dense<0.000000e+00> : vector<16x32xf32>
    %156 = tpu.matmul %22, %155, %cst_99 {dimension_numbers = #tpu.dot_dimension_numbers<[1], [0], [0], [1], [0, 0, 1, 1], [], []>} : vector<16x31xf32>, vector<31x32xf32>, vector<16x32xf32> -> vector<16x32xf32>
    %157 = vector.broadcast %21 : vector<1x32xf32> to vector<16x32xf32>
    %158 = arith.addf %156, %157 : vector<16x32xf32>
    %cst_100 = arith.constant 0.000000e+00 : f32
    %159 = vector.broadcast %cst_100 : f32 to vector<16x32xf32>
    %160 = arith.maximumf %158, %159 : vector<16x32xf32>
    %161 = arith.truncf %160 : vector<16x32xf32> to vector<16x32xbf16>
    %c144 = arith.constant 144 : index
    %c0_101 = arith.constant 0 : index
    %162 = vector.load %arg17[%c144, %c0_101] : memref<256x32xbf16, #tpu.memory_space<vmem>>, vector<16x32xbf16>
    tpu.vector_store %arg17[%c144, %c0_101], %161 {strides = array<i32>} : memref<256x32xbf16, #tpu.memory_space<vmem>>, vector<16x32xbf16>,
    %c680 = arith.constant 680 : index
    %c0_102 = arith.constant 0 : index
    %163 = vector.load %arg16[%c680, %c0_102] : memref<1086x32xf32, #tpu.memory_space<vmem>>, vector<31x32xf32>
    %c681 = arith.constant 681 : index
    %c0_103 = arith.constant 0 : index
    %164 = vector.load %arg16[%c681, %c0_103] : memref<1086x32xf32, #tpu.memory_space<vmem>>, vector<31x32xf32>
    %165 = arith.maximumf %163, %164 : vector<31x32xf32>
    %c714 = arith.constant 714 : index
    %c0_104 = arith.constant 0 : index
    %166 = vector.load %arg16[%c714, %c0_104] : memref<1086x32xf32, #tpu.memory_space<vmem>>, vector<31x32xf32>
    %167 = arith.maximumf %165, %166 : vector<31x32xf32>
    %c715 = arith.constant 715 : index
    %c0_105 = arith.constant 0 : index
    %168 = vector.load %arg16[%c715, %c0_105] : memref<1086x32xf32, #tpu.memory_space<vmem>>, vector<31x32xf32>
    %169 = arith.maximumf %167, %168 : vector<31x32xf32>
    %cst_106 = arith.constant dense<0.000000e+00> : vector<16x32xf32>
    %170 = tpu.matmul %22, %169, %cst_106 {dimension_numbers = #tpu.dot_dimension_numbers<[1], [0], [0], [1], [0, 0, 1, 1], [], []>} : vector<16x31xf32>, vector<31x32xf32>, vector<16x32xf32> -> vector<16x32xf32>
    %171 = vector.broadcast %21 : vector<1x32xf32> to vector<16x32xf32>
    %172 = arith.addf %170, %171 : vector<16x32xf32>
    %cst_107 = arith.constant 0.000000e+00 : f32
    %173 = vector.broadcast %cst_107 : f32 to vector<16x32xf32>
    %174 = arith.maximumf %172, %173 : vector<16x32xf32>
    %175 = arith.truncf %174 : vector<16x32xf32> to vector<16x32xbf16>
    %c160 = arith.constant 160 : index
    %c0_108 = arith.constant 0 : index
    %176 = vector.load %arg17[%c160, %c0_108] : memref<256x32xbf16, #tpu.memory_space<vmem>>, vector<16x32xbf16>
    tpu.vector_store %arg17[%c160, %c0_108], %175 {strides = array<i32>} : memref<256x32xbf16, #tpu.memory_space<vmem>>, vector<16x32xbf16>,
    %c748 = arith.constant 748 : index
    %c0_109 = arith.constant 0 : index
    %177 = vector.load %arg16[%c748, %c0_109] : memref<1086x32xf32, #tpu.memory_space<vmem>>, vector<31x32xf32>
    %c749 = arith.constant 749 : index
    %c0_110 = arith.constant 0 : index
    %178 = vector.load %arg16[%c749, %c0_110] : memref<1086x32xf32, #tpu.memory_space<vmem>>, vector<31x32xf32>
    %179 = arith.maximumf %177, %178 : vector<31x32xf32>
    %c782 = arith.constant 782 : index
    %c0_111 = arith.constant 0 : index
    %180 = vector.load %arg16[%c782, %c0_111] : memref<1086x32xf32, #tpu.memory_space<vmem>>, vector<31x32xf32>
    %181 = arith.maximumf %179, %180 : vector<31x32xf32>
    %c783 = arith.constant 783 : index
    %c0_112 = arith.constant 0 : index
    %182 = vector.load %arg16[%c783, %c0_112] : memref<1086x32xf32, #tpu.memory_space<vmem>>, vector<31x32xf32>
    %183 = arith.maximumf %181, %182 : vector<31x32xf32>
    %cst_113 = arith.constant dense<0.000000e+00> : vector<16x32xf32>
    %184 = tpu.matmul %22, %183, %cst_113 {dimension_numbers = #tpu.dot_dimension_numbers<[1], [0], [0], [1], [0, 0, 1, 1], [], []>} : vector<16x31xf32>, vector<31x32xf32>, vector<16x32xf32> -> vector<16x32xf32>
    %185 = vector.broadcast %21 : vector<1x32xf32> to vector<16x32xf32>
    %186 = arith.addf %184, %185 : vector<16x32xf32>
    %cst_114 = arith.constant 0.000000e+00 : f32
    %187 = vector.broadcast %cst_114 : f32 to vector<16x32xf32>
    %188 = arith.maximumf %186, %187 : vector<16x32xf32>
    %189 = arith.truncf %188 : vector<16x32xf32> to vector<16x32xbf16>
    %c176 = arith.constant 176 : index
    %c0_115 = arith.constant 0 : index
    %190 = vector.load %arg17[%c176, %c0_115] : memref<256x32xbf16, #tpu.memory_space<vmem>>, vector<16x32xbf16>
    tpu.vector_store %arg17[%c176, %c0_115], %189 {strides = array<i32>} : memref<256x32xbf16, #tpu.memory_space<vmem>>, vector<16x32xbf16>,
    %c816 = arith.constant 816 : index
    %c0_116 = arith.constant 0 : index
    %191 = vector.load %arg16[%c816, %c0_116] : memref<1086x32xf32, #tpu.memory_space<vmem>>, vector<31x32xf32>
    %c817 = arith.constant 817 : index
    %c0_117 = arith.constant 0 : index
    %192 = vector.load %arg16[%c817, %c0_117] : memref<1086x32xf32, #tpu.memory_space<vmem>>, vector<31x32xf32>
    %193 = arith.maximumf %191, %192 : vector<31x32xf32>
    %c850 = arith.constant 850 : index
    %c0_118 = arith.constant 0 : index
    %194 = vector.load %arg16[%c850, %c0_118] : memref<1086x32xf32, #tpu.memory_space<vmem>>, vector<31x32xf32>
    %195 = arith.maximumf %193, %194 : vector<31x32xf32>
    %c851 = arith.constant 851 : index
    %c0_119 = arith.constant 0 : index
    %196 = vector.load %arg16[%c851, %c0_119] : memref<1086x32xf32, #tpu.memory_space<vmem>>, vector<31x32xf32>
    %197 = arith.maximumf %195, %196 : vector<31x32xf32>
    %cst_120 = arith.constant dense<0.000000e+00> : vector<16x32xf32>
    %198 = tpu.matmul %22, %197, %cst_120 {dimension_numbers = #tpu.dot_dimension_numbers<[1], [0], [0], [1], [0, 0, 1, 1], [], []>} : vector<16x31xf32>, vector<31x32xf32>, vector<16x32xf32> -> vector<16x32xf32>
    %199 = vector.broadcast %21 : vector<1x32xf32> to vector<16x32xf32>
    %200 = arith.addf %198, %199 : vector<16x32xf32>
    %cst_121 = arith.constant 0.000000e+00 : f32
    %201 = vector.broadcast %cst_121 : f32 to vector<16x32xf32>
    %202 = arith.maximumf %200, %201 : vector<16x32xf32>
    %203 = arith.truncf %202 : vector<16x32xf32> to vector<16x32xbf16>
    %c192 = arith.constant 192 : index
    %c0_122 = arith.constant 0 : index
    %204 = vector.load %arg17[%c192, %c0_122] : memref<256x32xbf16, #tpu.memory_space<vmem>>, vector<16x32xbf16>
    tpu.vector_store %arg17[%c192, %c0_122], %203 {strides = array<i32>} : memref<256x32xbf16, #tpu.memory_space<vmem>>, vector<16x32xbf16>,
    %c884 = arith.constant 884 : index
    %c0_123 = arith.constant 0 : index
    %205 = vector.load %arg16[%c884, %c0_123] : memref<1086x32xf32, #tpu.memory_space<vmem>>, vector<31x32xf32>
    %c885 = arith.constant 885 : index
    %c0_124 = arith.constant 0 : index
    %206 = vector.load %arg16[%c885, %c0_124] : memref<1086x32xf32, #tpu.memory_space<vmem>>, vector<31x32xf32>
    %207 = arith.maximumf %205, %206 : vector<31x32xf32>
    %c918 = arith.constant 918 : index
    %c0_125 = arith.constant 0 : index
    %208 = vector.load %arg16[%c918, %c0_125] : memref<1086x32xf32, #tpu.memory_space<vmem>>, vector<31x32xf32>
    %209 = arith.maximumf %207, %208 : vector<31x32xf32>
    %c919 = arith.constant 919 : index
    %c0_126 = arith.constant 0 : index
    %210 = vector.load %arg16[%c919, %c0_126] : memref<1086x32xf32, #tpu.memory_space<vmem>>, vector<31x32xf32>
    %211 = arith.maximumf %209, %210 : vector<31x32xf32>
    %cst_127 = arith.constant dense<0.000000e+00> : vector<16x32xf32>
    %212 = tpu.matmul %22, %211, %cst_127 {dimension_numbers = #tpu.dot_dimension_numbers<[1], [0], [0], [1], [0, 0, 1, 1], [], []>} : vector<16x31xf32>, vector<31x32xf32>, vector<16x32xf32> -> vector<16x32xf32>
    %213 = vector.broadcast %21 : vector<1x32xf32> to vector<16x32xf32>
    %214 = arith.addf %212, %213 : vector<16x32xf32>
    %cst_128 = arith.constant 0.000000e+00 : f32
    %215 = vector.broadcast %cst_128 : f32 to vector<16x32xf32>
    %216 = arith.maximumf %214, %215 : vector<16x32xf32>
    %217 = arith.truncf %216 : vector<16x32xf32> to vector<16x32xbf16>
    %c208 = arith.constant 208 : index
    %c0_129 = arith.constant 0 : index
    %218 = vector.load %arg17[%c208, %c0_129] : memref<256x32xbf16, #tpu.memory_space<vmem>>, vector<16x32xbf16>
    tpu.vector_store %arg17[%c208, %c0_129], %217 {strides = array<i32>} : memref<256x32xbf16, #tpu.memory_space<vmem>>, vector<16x32xbf16>,
    %c952 = arith.constant 952 : index
    %c0_130 = arith.constant 0 : index
    %219 = vector.load %arg16[%c952, %c0_130] : memref<1086x32xf32, #tpu.memory_space<vmem>>, vector<31x32xf32>
    %c953 = arith.constant 953 : index
    %c0_131 = arith.constant 0 : index
    %220 = vector.load %arg16[%c953, %c0_131] : memref<1086x32xf32, #tpu.memory_space<vmem>>, vector<31x32xf32>
    %221 = arith.maximumf %219, %220 : vector<31x32xf32>
    %c986 = arith.constant 986 : index
    %c0_132 = arith.constant 0 : index
    %222 = vector.load %arg16[%c986, %c0_132] : memref<1086x32xf32, #tpu.memory_space<vmem>>, vector<31x32xf32>
    %223 = arith.maximumf %221, %222 : vector<31x32xf32>
    %c987 = arith.constant 987 : index
    %c0_133 = arith.constant 0 : index
    %224 = vector.load %arg16[%c987, %c0_133] : memref<1086x32xf32, #tpu.memory_space<vmem>>, vector<31x32xf32>
    %225 = arith.maximumf %223, %224 : vector<31x32xf32>
    %cst_134 = arith.constant dense<0.000000e+00> : vector<16x32xf32>
    %226 = tpu.matmul %22, %225, %cst_134 {dimension_numbers = #tpu.dot_dimension_numbers<[1], [0], [0], [1], [0, 0, 1, 1], [], []>} : vector<16x31xf32>, vector<31x32xf32>, vector<16x32xf32> -> vector<16x32xf32>
    %227 = vector.broadcast %21 : vector<1x32xf32> to vector<16x32xf32>
    %228 = arith.addf %226, %227 : vector<16x32xf32>
    %cst_135 = arith.constant 0.000000e+00 : f32
    %229 = vector.broadcast %cst_135 : f32 to vector<16x32xf32>
    %230 = arith.maximumf %228, %229 : vector<16x32xf32>
    %231 = arith.truncf %230 : vector<16x32xf32> to vector<16x32xbf16>
    %c224 = arith.constant 224 : index
    %c0_136 = arith.constant 0 : index
    %232 = vector.load %arg17[%c224, %c0_136] : memref<256x32xbf16, #tpu.memory_space<vmem>>, vector<16x32xbf16>
    tpu.vector_store %arg17[%c224, %c0_136], %231 {strides = array<i32>} : memref<256x32xbf16, #tpu.memory_space<vmem>>, vector<16x32xbf16>,
    %c1020 = arith.constant 1020 : index
    %c0_137 = arith.constant 0 : index
    %233 = vector.load %arg16[%c1020, %c0_137] : memref<1086x32xf32, #tpu.memory_space<vmem>>, vector<31x32xf32>
    %c1021 = arith.constant 1021 : index
    %c0_138 = arith.constant 0 : index
    %234 = vector.load %arg16[%c1021, %c0_138] : memref<1086x32xf32, #tpu.memory_space<vmem>>, vector<31x32xf32>
    %235 = arith.maximumf %233, %234 : vector<31x32xf32>
    %c1054 = arith.constant 1054 : index
    %c0_139 = arith.constant 0 : index
    %236 = vector.load %arg16[%c1054, %c0_139] : memref<1086x32xf32, #tpu.memory_space<vmem>>, vector<31x32xf32>
    %237 = arith.maximumf %235, %236 : vector<31x32xf32>
    %c1055 = arith.constant 1055 : index
    %c0_140 = arith.constant 0 : index
    %238 = vector.load %arg16[%c1055, %c0_140] : memref<1086x32xf32, #tpu.memory_space<vmem>>, vector<31x32xf32>
    %239 = arith.maximumf %237, %238 : vector<31x32xf32>
    %cst_141 = arith.constant dense<0.000000e+00> : vector<16x32xf32>
    %240 = tpu.matmul %22, %239, %cst_141 {dimension_numbers = #tpu.dot_dimension_numbers<[1], [0], [0], [1], [0, 0, 1, 1], [], []>} : vector<16x31xf32>, vector<31x32xf32>, vector<16x32xf32> -> vector<16x32xf32>
    %241 = vector.broadcast %21 : vector<1x32xf32> to vector<16x32xf32>
    %242 = arith.addf %240, %241 : vector<16x32xf32>
    %cst_142 = arith.constant 0.000000e+00 : f32
    %243 = vector.broadcast %cst_142 : f32 to vector<16x32xf32>
    %244 = arith.maximumf %242, %243 : vector<16x32xf32>
    %245 = arith.truncf %244 : vector<16x32xf32> to vector<16x32xbf16>
    %c240 = arith.constant 240 : index
    %c0_143 = arith.constant 0 : index
    %246 = vector.load %arg17[%c240, %c0_143] : memref<256x32xbf16, #tpu.memory_space<vmem>>, vector<16x32xbf16>
    tpu.vector_store %arg17[%c240, %c0_143], %245 {strides = array<i32>} : memref<256x32xbf16, #tpu.memory_space<vmem>>, vector<16x32xbf16>,
    %c0_144 = arith.constant 0 : index
    %c0_145 = arith.constant 0 : index
    %247 = vector.load %arg17[%c0_144, %c0_145] : memref<256x32xbf16, #tpu.memory_space<vmem>>, vector<128x32xbf16>
    %c0_146 = arith.constant 0 : index
    %c0_147 = arith.constant 0 : index
    %248 = vector.load %arg4[%c0_146, %c0_147] : memref<288x64xbf16, #tpu.memory_space<vmem>>, vector<32x64xbf16>
    %cst_148 = arith.constant dense<0.000000e+00> : vector<128x64xf32>
    %249 = tpu.matmul %247, %248, %cst_148 {dimension_numbers = #tpu.dot_dimension_numbers<[1], [0], [0], [1], [0, 0, 1, 1], [], []>} : vector<128x32xbf16>, vector<32x64xbf16>, vector<128x64xf32> -> vector<128x64xf32>
    %c1_149 = arith.constant 1 : index
    %c0_150 = arith.constant 0 : index
    %250 = vector.load %arg17[%c1_149, %c0_150] : memref<256x32xbf16, #tpu.memory_space<vmem>>, vector<128x32xbf16>
    %c32_151 = arith.constant 32 : index
    %c0_152 = arith.constant 0 : index
    %251 = vector.load %arg4[%c32_151, %c0_152] : memref<288x64xbf16, #tpu.memory_space<vmem>>, vector<32x64xbf16>
    %cst_153 = arith.constant dense<0.000000e+00> : vector<128x64xf32>
    %252 = tpu.matmul %250, %251, %cst_153 {dimension_numbers = #tpu.dot_dimension_numbers<[1], [0], [0], [1], [0, 0, 1, 1], [], []>} : vector<128x32xbf16>, vector<32x64xbf16>, vector<128x64xf32> -> vector<128x64xf32>
    %253 = arith.addf %249, %252 : vector<128x64xf32>
    %c2 = arith.constant 2 : index
    %c0_154 = arith.constant 0 : index
    %254 = vector.load %arg17[%c2, %c0_154] : memref<256x32xbf16, #tpu.memory_space<vmem>>, vector<128x32xbf16>
    %c64_155 = arith.constant 64 : index
    %c0_156 = arith.constant 0 : index
    %255 = vector.load %arg4[%c64_155, %c0_156] : memref<288x64xbf16, #tpu.memory_space<vmem>>, vector<32x64xbf16>
    %cst_157 = arith.constant dense<0.000000e+00> : vector<128x64xf32>
    %256 = tpu.matmul %254, %255, %cst_157 {dimension_numbers = #tpu.dot_dimension_numbers<[1], [0], [0], [1], [0, 0, 1, 1], [], []>} : vector<128x32xbf16>, vector<32x64xbf16>, vector<128x64xf32> -> vector<128x64xf32>
    %257 = arith.addf %253, %256 : vector<128x64xf32>
    %c16_158 = arith.constant 16 : index
    %c0_159 = arith.constant 0 : index
    %258 = vector.load %arg17[%c16_158, %c0_159] : memref<256x32xbf16, #tpu.memory_space<vmem>>, vector<128x32xbf16>
    %c96_160 = arith.constant 96 : index
    %c0_161 = arith.constant 0 : index
    %259 = vector.load %arg4[%c96_160, %c0_161] : memref<288x64xbf16, #tpu.memory_space<vmem>>, vector<32x64xbf16>
    %cst_162 = arith.constant dense<0.000000e+00> : vector<128x64xf32>
    %260 = tpu.matmul %258, %259, %cst_162 {dimension_numbers = #tpu.dot_dimension_numbers<[1], [0], [0], [1], [0, 0, 1, 1], [], []>} : vector<128x32xbf16>, vector<32x64xbf16>, vector<128x64xf32> -> vector<128x64xf32>
    %261 = arith.addf %257, %260 : vector<128x64xf32>
    %c17 = arith.constant 17 : index
    %c0_163 = arith.constant 0 : index
    %262 = vector.load %arg17[%c17, %c0_163] : memref<256x32xbf16, #tpu.memory_space<vmem>>, vector<128x32xbf16>
    %c128_164 = arith.constant 128 : index
    %c0_165 = arith.constant 0 : index
    %263 = vector.load %arg4[%c128_164, %c0_165] : memref<288x64xbf16, #tpu.memory_space<vmem>>, vector<32x64xbf16>
    %cst_166 = arith.constant dense<0.000000e+00> : vector<128x64xf32>
    %264 = tpu.matmul %262, %263, %cst_166 {dimension_numbers = #tpu.dot_dimension_numbers<[1], [0], [0], [1], [0, 0, 1, 1], [], []>} : vector<128x32xbf16>, vector<32x64xbf16>, vector<128x64xf32> -> vector<128x64xf32>
    %265 = arith.addf %261, %264 : vector<128x64xf32>
    %c18 = arith.constant 18 : index
    %c0_167 = arith.constant 0 : index
    %266 = vector.load %arg17[%c18, %c0_167] : memref<256x32xbf16, #tpu.memory_space<vmem>>, vector<128x32xbf16>
    %c160_168 = arith.constant 160 : index
    %c0_169 = arith.constant 0 : index
    %267 = vector.load %arg4[%c160_168, %c0_169] : memref<288x64xbf16, #tpu.memory_space<vmem>>, vector<32x64xbf16>
    %cst_170 = arith.constant dense<0.000000e+00> : vector<128x64xf32>
    %268 = tpu.matmul %266, %267, %cst_170 {dimension_numbers = #tpu.dot_dimension_numbers<[1], [0], [0], [1], [0, 0, 1, 1], [], []>} : vector<128x32xbf16>, vector<32x64xbf16>, vector<128x64xf32> -> vector<128x64xf32>
    %269 = arith.addf %265, %268 : vector<128x64xf32>
    %c32_171 = arith.constant 32 : index
    %c0_172 = arith.constant 0 : index
    %270 = vector.load %arg17[%c32_171, %c0_172] : memref<256x32xbf16, #tpu.memory_space<vmem>>, vector<128x32xbf16>
    %c192_173 = arith.constant 192 : index
    %c0_174 = arith.constant 0 : index
    %271 = vector.load %arg4[%c192_173, %c0_174] : memref<288x64xbf16, #tpu.memory_space<vmem>>, vector<32x64xbf16>
    %cst_175 = arith.constant dense<0.000000e+00> : vector<128x64xf32>
    %272 = tpu.matmul %270, %271, %cst_175 {dimension_numbers = #tpu.dot_dimension_numbers<[1], [0], [0], [1], [0, 0, 1, 1], [], []>} : vector<128x32xbf16>, vector<32x64xbf16>, vector<128x64xf32> -> vector<128x64xf32>
    %273 = arith.addf %269, %272 : vector<128x64xf32>
    %c33 = arith.constant 33 : index
    %c0_176 = arith.constant 0 : index
    %274 = vector.load %arg17[%c33, %c0_176] : memref<256x32xbf16, #tpu.memory_space<vmem>>, vector<128x32xbf16>
    %c224_177 = arith.constant 224 : index
    %c0_178 = arith.constant 0 : index
    %275 = vector.load %arg4[%c224_177, %c0_178] : memref<288x64xbf16, #tpu.memory_space<vmem>>, vector<32x64xbf16>
    %cst_179 = arith.constant dense<0.000000e+00> : vector<128x64xf32>
    %276 = tpu.matmul %274, %275, %cst_179 {dimension_numbers = #tpu.dot_dimension_numbers<[1], [0], [0], [1], [0, 0, 1, 1], [], []>} : vector<128x32xbf16>, vector<32x64xbf16>, vector<128x64xf32> -> vector<128x64xf32>
    %277 = arith.addf %273, %276 : vector<128x64xf32>
    %c34_180 = arith.constant 34 : index
    %c0_181 = arith.constant 0 : index
    %278 = vector.load %arg17[%c34_180, %c0_181] : memref<256x32xbf16, #tpu.memory_space<vmem>>, vector<128x32xbf16>
    %c256_182 = arith.constant 256 : index
    %c0_183 = arith.constant 0 : index
    %279 = vector.load %arg4[%c256_182, %c0_183] : memref<288x64xbf16, #tpu.memory_space<vmem>>, vector<32x64xbf16>
    %cst_184 = arith.constant dense<0.000000e+00> : vector<128x64xf32>
    %280 = tpu.matmul %278, %279, %cst_184 {dimension_numbers = #tpu.dot_dimension_numbers<[1], [0], [0], [1], [0, 0, 1, 1], [], []>} : vector<128x32xbf16>, vector<32x64xbf16>, vector<128x64xf32> -> vector<128x64xf32>
    %281 = arith.addf %277, %280 : vector<128x64xf32>
    %c0_185 = arith.constant 0 : index
    %c0_186 = arith.constant 0 : index
    %282 = vector.load %arg18[%c0_185, %c0_186] : memref<222x64xf32, #tpu.memory_space<vmem>>, vector<128x64xf32>
    tpu.vector_store %arg18[%c0_185, %c0_186], %281 {strides = array<i32>} : memref<222x64xf32, #tpu.memory_space<vmem>>, vector<128x64xf32>,
    %c128_187 = arith.constant 128 : index
    %c0_188 = arith.constant 0 : index
    %283 = vector.load %arg17[%c128_187, %c0_188] : memref<256x32xbf16, #tpu.memory_space<vmem>>, vector<94x32xbf16>
    %c0_189 = arith.constant 0 : index
    %c0_190 = arith.constant 0 : index
    %284 = vector.load %arg4[%c0_189, %c0_190] : memref<288x64xbf16, #tpu.memory_space<vmem>>, vector<32x64xbf16>
    %cst_191 = arith.constant dense<0.000000e+00> : vector<94x64xf32>
    %285 = tpu.matmul %283, %284, %cst_191 {dimension_numbers = #tpu.dot_dimension_numbers<[1], [0], [0], [1], [0, 0, 1, 1], [], []>} : vector<94x32xbf16>, vector<32x64xbf16>, vector<94x64xf32> -> vector<94x64xf32>
    %c129 = arith.constant 129 : index
    %c0_192 = arith.constant 0 : index
    %286 = vector.load %arg17[%c129, %c0_192] : memref<256x32xbf16, #tpu.memory_space<vmem>>, vector<94x32xbf16>
    %c32_193 = arith.constant 32 : index
    %c0_194 = arith.constant 0 : index
    %287 = vector.load %arg4[%c32_193, %c0_194] : memref<288x64xbf16, #tpu.memory_space<vmem>>, vector<32x64xbf16>
    %cst_195 = arith.constant dense<0.000000e+00> : vector<94x64xf32>
    %288 = tpu.matmul %286, %287, %cst_195 {dimension_numbers = #tpu.dot_dimension_numbers<[1], [0], [0], [1], [0, 0, 1, 1], [], []>} : vector<94x32xbf16>, vector<32x64xbf16>, vector<94x64xf32> -> vector<94x64xf32>
    %289 = arith.addf %285, %288 : vector<94x64xf32>
    %c130 = arith.constant 130 : index
    %c0_196 = arith.constant 0 : index
    %290 = vector.load %arg17[%c130, %c0_196] : memref<256x32xbf16, #tpu.memory_space<vmem>>, vector<94x32xbf16>
    %c64_197 = arith.constant 64 : index
    %c0_198 = arith.constant 0 : index
    %291 = vector.load %arg4[%c64_197, %c0_198] : memref<288x64xbf16, #tpu.memory_space<vmem>>, vector<32x64xbf16>
    %cst_199 = arith.constant dense<0.000000e+00> : vector<94x64xf32>
    %292 = tpu.matmul %290, %291, %cst_199 {dimension_numbers = #tpu.dot_dimension_numbers<[1], [0], [0], [1], [0, 0, 1, 1], [], []>} : vector<94x32xbf16>, vector<32x64xbf16>, vector<94x64xf32> -> vector<94x64xf32>
    %293 = arith.addf %289, %292 : vector<94x64xf32>
    %c144_200 = arith.constant 144 : index
    %c0_201 = arith.constant 0 : index
    %294 = vector.load %arg17[%c144_200, %c0_201] : memref<256x32xbf16, #tpu.memory_space<vmem>>, vector<94x32xbf16>
    %c96_202 = arith.constant 96 : index
    %c0_203 = arith.constant 0 : index
    %295 = vector.load %arg4[%c96_202, %c0_203] : memref<288x64xbf16, #tpu.memory_space<vmem>>, vector<32x64xbf16>
    %cst_204 = arith.constant dense<0.000000e+00> : vector<94x64xf32>
    %296 = tpu.matmul %294, %295, %cst_204 {dimension_numbers = #tpu.dot_dimension_numbers<[1], [0], [0], [1], [0, 0, 1, 1], [], []>} : vector<94x32xbf16>, vector<32x64xbf16>, vector<94x64xf32> -> vector<94x64xf32>
    %297 = arith.addf %293, %296 : vector<94x64xf32>
    %c145 = arith.constant 145 : index
    %c0_205 = arith.constant 0 : index
    %298 = vector.load %arg17[%c145, %c0_205] : memref<256x32xbf16, #tpu.memory_space<vmem>>, vector<94x32xbf16>
    %c128_206 = arith.constant 128 : index
    %c0_207 = arith.constant 0 : index
    %299 = vector.load %arg4[%c128_206, %c0_207] : memref<288x64xbf16, #tpu.memory_space<vmem>>, vector<32x64xbf16>
    %cst_208 = arith.constant dense<0.000000e+00> : vector<94x64xf32>
    %300 = tpu.matmul %298, %299, %cst_208 {dimension_numbers = #tpu.dot_dimension_numbers<[1], [0], [0], [1], [0, 0, 1, 1], [], []>} : vector<94x32xbf16>, vector<32x64xbf16>, vector<94x64xf32> -> vector<94x64xf32>
    %301 = arith.addf %297, %300 : vector<94x64xf32>
    %c146 = arith.constant 146 : index
    %c0_209 = arith.constant 0 : index
    %302 = vector.load %arg17[%c146, %c0_209] : memref<256x32xbf16, #tpu.memory_space<vmem>>, vector<94x32xbf16>
    %c160_210 = arith.constant 160 : index
    %c0_211 = arith.constant 0 : index
    %303 = vector.load %arg4[%c160_210, %c0_211] : memref<288x64xbf16, #tpu.memory_space<vmem>>, vector<32x64xbf16>
    %cst_212 = arith.constant dense<0.000000e+00> : vector<94x64xf32>
    %304 = tpu.matmul %302, %303, %cst_212 {dimension_numbers = #tpu.dot_dimension_numbers<[1], [0], [0], [1], [0, 0, 1, 1], [], []>} : vector<94x32xbf16>, vector<32x64xbf16>, vector<94x64xf32> -> vector<94x64xf32>
    %305 = arith.addf %301, %304 : vector<94x64xf32>
    %c160_213 = arith.constant 160 : index
    %c0_214 = arith.constant 0 : index
    %306 = vector.load %arg17[%c160_213, %c0_214] : memref<256x32xbf16, #tpu.memory_space<vmem>>, vector<94x32xbf16>
    %c192_215 = arith.constant 192 : index
    %c0_216 = arith.constant 0 : index
    %307 = vector.load %arg4[%c192_215, %c0_216] : memref<288x64xbf16, #tpu.memory_space<vmem>>, vector<32x64xbf16>
    %cst_217 = arith.constant dense<0.000000e+00> : vector<94x64xf32>
    %308 = tpu.matmul %306, %307, %cst_217 {dimension_numbers = #tpu.dot_dimension_numbers<[1], [0], [0], [1], [0, 0, 1, 1], [], []>} : vector<94x32xbf16>, vector<32x64xbf16>, vector<94x64xf32> -> vector<94x64xf32>
    %309 = arith.addf %305, %308 : vector<94x64xf32>
    %c161 = arith.constant 161 : index
    %c0_218 = arith.constant 0 : index
    %310 = vector.load %arg17[%c161, %c0_218] : memref<256x32xbf16, #tpu.memory_space<vmem>>, vector<94x32xbf16>
    %c224_219 = arith.constant 224 : index
    %c0_220 = arith.constant 0 : index
    %311 = vector.load %arg4[%c224_219, %c0_220] : memref<288x64xbf16, #tpu.memory_space<vmem>>, vector<32x64xbf16>
    %cst_221 = arith.constant dense<0.000000e+00> : vector<94x64xf32>
    %312 = tpu.matmul %310, %311, %cst_221 {dimension_numbers = #tpu.dot_dimension_numbers<[1], [0], [0], [1], [0, 0, 1, 1], [], []>} : vector<94x32xbf16>, vector<32x64xbf16>, vector<94x64xf32> -> vector<94x64xf32>
    %313 = arith.addf %309, %312 : vector<94x64xf32>
    %c162 = arith.constant 162 : index
    %c0_222 = arith.constant 0 : index
    %314 = vector.load %arg17[%c162, %c0_222] : memref<256x32xbf16, #tpu.memory_space<vmem>>, vector<94x32xbf16>
    %c256_223 = arith.constant 256 : index
    %c0_224 = arith.constant 0 : index
    %315 = vector.load %arg4[%c256_223, %c0_224] : memref<288x64xbf16, #tpu.memory_space<vmem>>, vector<32x64xbf16>
    %cst_225 = arith.constant dense<0.000000e+00> : vector<94x64xf32>
    %316 = tpu.matmul %314, %315, %cst_225 {dimension_numbers = #tpu.dot_dimension_numbers<[1], [0], [0], [1], [0, 0, 1, 1], [], []>} : vector<94x32xbf16>, vector<32x64xbf16>, vector<94x64xf32> -> vector<94x64xf32>
    %317 = arith.addf %313, %316 : vector<94x64xf32>
    %c128_226 = arith.constant 128 : index
    %c0_227 = arith.constant 0 : index
    %318 = vector.load %arg18[%c128_226, %c0_227] : memref<222x64xf32, #tpu.memory_space<vmem>>, vector<94x64xf32>
    tpu.vector_store %arg18[%c128_226, %c0_227], %317 {strides = array<i32>} : memref<222x64xf32, #tpu.memory_space<vmem>>, vector<94x64xf32>,
    %c0_228 = arith.constant 0 : index
    %c0_229 = arith.constant 0 : index
    %319 = vector.load %arg5[%c0_228, %c0_229] : memref<1x64xf32, #tpu.memory_space<vmem>>, vector<1x64xf32>
    %c0_230 = arith.constant 0 : index
    %c0_231 = arith.constant 0 : index
    %320 = vector.load %arg13[%c0_230, %c0_231] : memref<7x13xf32, #tpu.memory_space<vmem>>, vector<7x13xf32>
    %c0_232 = arith.constant 0 : index
    %c0_233 = arith.constant 0 : index
    %321 = vector.load %arg18[%c0_232, %c0_233] : memref<222x64xf32, #tpu.memory_space<vmem>>, vector<13x64xf32>
    %c1_234 = arith.constant 1 : index
    %c0_235 = arith.constant 0 : index
    %322 = vector.load %arg18[%c1_234, %c0_235] : memref<222x64xf32, #tpu.memory_space<vmem>>, vector<13x64xf32>
    %323 = arith.maximumf %321, %322 : vector<13x64xf32>
    %c16_236 = arith.constant 16 : index
    %c0_237 = arith.constant 0 : index
    %324 = vector.load %arg18[%c16_236, %c0_237] : memref<222x64xf32, #tpu.memory_space<vmem>>, vector<13x64xf32>
    %325 = arith.maximumf %323, %324 : vector<13x64xf32>
    %c17_238 = arith.constant 17 : index
    %c0_239 = arith.constant 0 : index
    %326 = vector.load %arg18[%c17_238, %c0_239] : memref<222x64xf32, #tpu.memory_space<vmem>>, vector<13x64xf32>
    %327 = arith.maximumf %325, %326 : vector<13x64xf32>
    %cst_240 = arith.constant dense<0.000000e+00> : vector<7x64xf32>
    %328 = tpu.matmul %320, %327, %cst_240 {dimension_numbers = #tpu.dot_dimension_numbers<[1], [0], [0], [1], [0, 0, 1, 1], [], []>} : vector<7x13xf32>, vector<13x64xf32>, vector<7x64xf32> -> vector<7x64xf32>
    %329 = vector.broadcast %319 : vector<1x64xf32> to vector<7x64xf32>
    %330 = arith.addf %328, %329 : vector<7x64xf32>
    %cst_241 = arith.constant 0.000000e+00 : f32
    %331 = vector.broadcast %cst_241 : f32 to vector<7x64xf32>
    %332 = arith.maximumf %330, %331 : vector<7x64xf32>
    %333 = arith.truncf %332 : vector<7x64xf32> to vector<7x64xbf16>
    %c0_242 = arith.constant 0 : index
    %c0_243 = arith.constant 0 : index
    %334 = vector.load %arg19[%c0_242, %c0_243] : memref<49x64xbf16, #tpu.memory_space<vmem>>, vector<7x64xbf16>
    tpu.vector_store %arg19[%c0_242, %c0_243], %333 {strides = array<i32>} : memref<49x64xbf16, #tpu.memory_space<vmem>>, vector<7x64xbf16>,
    %c32_244 = arith.constant 32 : index
    %c0_245 = arith.constant 0 : index
    %335 = vector.load %arg18[%c32_244, %c0_245] : memref<222x64xf32, #tpu.memory_space<vmem>>, vector<13x64xf32>
    %c33_246 = arith.constant 33 : index
    %c0_247 = arith.constant 0 : index
    %336 = vector.load %arg18[%c33_246, %c0_247] : memref<222x64xf32, #tpu.memory_space<vmem>>, vector<13x64xf32>
    %337 = arith.maximumf %335, %336 : vector<13x64xf32>
    %c48_248 = arith.constant 48 : index
    %c0_249 = arith.constant 0 : index
    %338 = vector.load %arg18[%c48_248, %c0_249] : memref<222x64xf32, #tpu.memory_space<vmem>>, vector<13x64xf32>
    %339 = arith.maximumf %337, %338 : vector<13x64xf32>
    %c49 = arith.constant 49 : index
    %c0_250 = arith.constant 0 : index
    %340 = vector.load %arg18[%c49, %c0_250] : memref<222x64xf32, #tpu.memory_space<vmem>>, vector<13x64xf32>
    %341 = arith.maximumf %339, %340 : vector<13x64xf32>
    %cst_251 = arith.constant dense<0.000000e+00> : vector<7x64xf32>
    %342 = tpu.matmul %320, %341, %cst_251 {dimension_numbers = #tpu.dot_dimension_numbers<[1], [0], [0], [1], [0, 0, 1, 1], [], []>} : vector<7x13xf32>, vector<13x64xf32>, vector<7x64xf32> -> vector<7x64xf32>
    %343 = vector.broadcast %319 : vector<1x64xf32> to vector<7x64xf32>
    %344 = arith.addf %342, %343 : vector<7x64xf32>
    %cst_252 = arith.constant 0.000000e+00 : f32
    %345 = vector.broadcast %cst_252 : f32 to vector<7x64xf32>
    %346 = arith.maximumf %344, %345 : vector<7x64xf32>
    %347 = arith.truncf %346 : vector<7x64xf32> to vector<7x64xbf16>
    %c7 = arith.constant 7 : index
    %c0_253 = arith.constant 0 : index
    %348 = vector.load %arg19[%c7, %c0_253] : memref<49x64xbf16, #tpu.memory_space<vmem>>, vector<7x64xbf16>
    tpu.vector_store %arg19[%c7, %c0_253], %347 {strides = array<i32>} : memref<49x64xbf16, #tpu.memory_space<vmem>>, vector<7x64xbf16>,
    %c64_254 = arith.constant 64 : index
    %c0_255 = arith.constant 0 : index
    %349 = vector.load %arg18[%c64_254, %c0_255] : memref<222x64xf32, #tpu.memory_space<vmem>>, vector<13x64xf32>
    %c65 = arith.constant 65 : index
    %c0_256 = arith.constant 0 : index
    %350 = vector.load %arg18[%c65, %c0_256] : memref<222x64xf32, #tpu.memory_space<vmem>>, vector<13x64xf32>
    %351 = arith.maximumf %349, %350 : vector<13x64xf32>
    %c80_257 = arith.constant 80 : index
    %c0_258 = arith.constant 0 : index
    %352 = vector.load %arg18[%c80_257, %c0_258] : memref<222x64xf32, #tpu.memory_space<vmem>>, vector<13x64xf32>
    %353 = arith.maximumf %351, %352 : vector<13x64xf32>
    %c81 = arith.constant 81 : index
    %c0_259 = arith.constant 0 : index
    %354 = vector.load %arg18[%c81, %c0_259] : memref<222x64xf32, #tpu.memory_space<vmem>>, vector<13x64xf32>
    %355 = arith.maximumf %353, %354 : vector<13x64xf32>
    %cst_260 = arith.constant dense<0.000000e+00> : vector<7x64xf32>
    %356 = tpu.matmul %320, %355, %cst_260 {dimension_numbers = #tpu.dot_dimension_numbers<[1], [0], [0], [1], [0, 0, 1, 1], [], []>} : vector<7x13xf32>, vector<13x64xf32>, vector<7x64xf32> -> vector<7x64xf32>
    %357 = vector.broadcast %319 : vector<1x64xf32> to vector<7x64xf32>
    %358 = arith.addf %356, %357 : vector<7x64xf32>
    %cst_261 = arith.constant 0.000000e+00 : f32
    %359 = vector.broadcast %cst_261 : f32 to vector<7x64xf32>
    %360 = arith.maximumf %358, %359 : vector<7x64xf32>
    %361 = arith.truncf %360 : vector<7x64xf32> to vector<7x64xbf16>
    %c14 = arith.constant 14 : index
    %c0_262 = arith.constant 0 : index
    %362 = vector.load %arg19[%c14, %c0_262] : memref<49x64xbf16, #tpu.memory_space<vmem>>, vector<7x64xbf16>
    tpu.vector_store %arg19[%c14, %c0_262], %361 {strides = array<i32>} : memref<49x64xbf16, #tpu.memory_space<vmem>>, vector<7x64xbf16>,
    %c96_263 = arith.constant 96 : index
    %c0_264 = arith.constant 0 : index
    %363 = vector.load %arg18[%c96_263, %c0_264] : memref<222x64xf32, #tpu.memory_space<vmem>>, vector<13x64xf32>
    %c97 = arith.constant 97 : index
    %c0_265 = arith.constant 0 : index
    %364 = vector.load %arg18[%c97, %c0_265] : memref<222x64xf32, #tpu.memory_space<vmem>>, vector<13x64xf32>
    %365 = arith.maximumf %363, %364 : vector<13x64xf32>
    %c112_266 = arith.constant 112 : index
    %c0_267 = arith.constant 0 : index
    %366 = vector.load %arg18[%c112_266, %c0_267] : memref<222x64xf32, #tpu.memory_space<vmem>>, vector<13x64xf32>
    %367 = arith.maximumf %365, %366 : vector<13x64xf32>
    %c113 = arith.constant 113 : index
    %c0_268 = arith.constant 0 : index
    %368 = vector.load %arg18[%c113, %c0_268] : memref<222x64xf32, #tpu.memory_space<vmem>>, vector<13x64xf32>
    %369 = arith.maximumf %367, %368 : vector<13x64xf32>
    %cst_269 = arith.constant dense<0.000000e+00> : vector<7x64xf32>
    %370 = tpu.matmul %320, %369, %cst_269 {dimension_numbers = #tpu.dot_dimension_numbers<[1], [0], [0], [1], [0, 0, 1, 1], [], []>} : vector<7x13xf32>, vector<13x64xf32>, vector<7x64xf32> -> vector<7x64xf32>
    %371 = vector.broadcast %319 : vector<1x64xf32> to vector<7x64xf32>
    %372 = arith.addf %370, %371 : vector<7x64xf32>
    %cst_270 = arith.constant 0.000000e+00 : f32
    %373 = vector.broadcast %cst_270 : f32 to vector<7x64xf32>
    %374 = arith.maximumf %372, %373 : vector<7x64xf32>
    %375 = arith.truncf %374 : vector<7x64xf32> to vector<7x64xbf16>
    %c21 = arith.constant 21 : index
    %c0_271 = arith.constant 0 : index
    %376 = vector.load %arg19[%c21, %c0_271] : memref<49x64xbf16, #tpu.memory_space<vmem>>, vector<7x64xbf16>
    tpu.vector_store %arg19[%c21, %c0_271], %375 {strides = array<i32>} : memref<49x64xbf16, #tpu.memory_space<vmem>>, vector<7x64xbf16>,
    %c128_272 = arith.constant 128 : index
    %c0_273 = arith.constant 0 : index
    %377 = vector.load %arg18[%c128_272, %c0_273] : memref<222x64xf32, #tpu.memory_space<vmem>>, vector<13x64xf32>
    %c129_274 = arith.constant 129 : index
    %c0_275 = arith.constant 0 : index
    %378 = vector.load %arg18[%c129_274, %c0_275] : memref<222x64xf32, #tpu.memory_space<vmem>>, vector<13x64xf32>
    %379 = arith.maximumf %377, %378 : vector<13x64xf32>
    %c144_276 = arith.constant 144 : index
    %c0_277 = arith.constant 0 : index
    %380 = vector.load %arg18[%c144_276, %c0_277] : memref<222x64xf32, #tpu.memory_space<vmem>>, vector<13x64xf32>
    %381 = arith.maximumf %379, %380 : vector<13x64xf32>
    %c145_278 = arith.constant 145 : index
    %c0_279 = arith.constant 0 : index
    %382 = vector.load %arg18[%c145_278, %c0_279] : memref<222x64xf32, #tpu.memory_space<vmem>>, vector<13x64xf32>
    %383 = arith.maximumf %381, %382 : vector<13x64xf32>
    %cst_280 = arith.constant dense<0.000000e+00> : vector<7x64xf32>
    %384 = tpu.matmul %320, %383, %cst_280 {dimension_numbers = #tpu.dot_dimension_numbers<[1], [0], [0], [1], [0, 0, 1, 1], [], []>} : vector<7x13xf32>, vector<13x64xf32>, vector<7x64xf32> -> vector<7x64xf32>
    %385 = vector.broadcast %319 : vector<1x64xf32> to vector<7x64xf32>
    %386 = arith.addf %384, %385 : vector<7x64xf32>
    %cst_281 = arith.constant 0.000000e+00 : f32
    %387 = vector.broadcast %cst_281 : f32 to vector<7x64xf32>
    %388 = arith.maximumf %386, %387 : vector<7x64xf32>
    %389 = arith.truncf %388 : vector<7x64xf32> to vector<7x64xbf16>
    %c28 = arith.constant 28 : index
    %c0_282 = arith.constant 0 : index
    %390 = vector.load %arg19[%c28, %c0_282] : memref<49x64xbf16, #tpu.memory_space<vmem>>, vector<7x64xbf16>
    tpu.vector_store %arg19[%c28, %c0_282], %389 {strides = array<i32>} : memref<49x64xbf16, #tpu.memory_space<vmem>>, vector<7x64xbf16>,
    %c160_283 = arith.constant 160 : index
    %c0_284 = arith.constant 0 : index
    %391 = vector.load %arg18[%c160_283, %c0_284] : memref<222x64xf32, #tpu.memory_space<vmem>>, vector<13x64xf32>
    %c161_285 = arith.constant 161 : index
    %c0_286 = arith.constant 0 : index
    %392 = vector.load %arg18[%c161_285, %c0_286] : memref<222x64xf32, #tpu.memory_space<vmem>>, vector<13x64xf32>
    %393 = arith.maximumf %391, %392 : vector<13x64xf32>
    %c176_287 = arith.constant 176 : index
    %c0_288 = arith.constant 0 : index
    %394 = vector.load %arg18[%c176_287, %c0_288] : memref<222x64xf32, #tpu.memory_space<vmem>>, vector<13x64xf32>
    %395 = arith.maximumf %393, %394 : vector<13x64xf32>
    %c177 = arith.constant 177 : index
    %c0_289 = arith.constant 0 : index
    %396 = vector.load %arg18[%c177, %c0_289] : memref<222x64xf32, #tpu.memory_space<vmem>>, vector<13x64xf32>
    %397 = arith.maximumf %395, %396 : vector<13x64xf32>
    %cst_290 = arith.constant dense<0.000000e+00> : vector<7x64xf32>
    %398 = tpu.matmul %320, %397, %cst_290 {dimension_numbers = #tpu.dot_dimension_numbers<[1], [0], [0], [1], [0, 0, 1, 1], [], []>} : vector<7x13xf32>, vector<13x64xf32>, vector<7x64xf32> -> vector<7x64xf32>
    %399 = vector.broadcast %319 : vector<1x64xf32> to vector<7x64xf32>
    %400 = arith.addf %398, %399 : vector<7x64xf32>
    %cst_291 = arith.constant 0.000000e+00 : f32
    %401 = vector.broadcast %cst_291 : f32 to vector<7x64xf32>
    %402 = arith.maximumf %400, %401 : vector<7x64xf32>
    %403 = arith.truncf %402 : vector<7x64xf32> to vector<7x64xbf16>
    %c35_292 = arith.constant 35 : index
    %c0_293 = arith.constant 0 : index
    %404 = vector.load %arg19[%c35_292, %c0_293] : memref<49x64xbf16, #tpu.memory_space<vmem>>, vector<7x64xbf16>
    tpu.vector_store %arg19[%c35_292, %c0_293], %403 {strides = array<i32>} : memref<49x64xbf16, #tpu.memory_space<vmem>>, vector<7x64xbf16>,
    %c192_294 = arith.constant 192 : index
    %c0_295 = arith.constant 0 : index
    %405 = vector.load %arg18[%c192_294, %c0_295] : memref<222x64xf32, #tpu.memory_space<vmem>>, vector<13x64xf32>
    %c193 = arith.constant 193 : index
    %c0_296 = arith.constant 0 : index
    %406 = vector.load %arg18[%c193, %c0_296] : memref<222x64xf32, #tpu.memory_space<vmem>>, vector<13x64xf32>
    %407 = arith.maximumf %405, %406 : vector<13x64xf32>
    %c208_297 = arith.constant 208 : index
    %c0_298 = arith.constant 0 : index
    %408 = vector.load %arg18[%c208_297, %c0_298] : memref<222x64xf32, #tpu.memory_space<vmem>>, vector<13x64xf32>
    %409 = arith.maximumf %407, %408 : vector<13x64xf32>
    %c209 = arith.constant 209 : index
    %c0_299 = arith.constant 0 : index
    %410 = vector.load %arg18[%c209, %c0_299] : memref<222x64xf32, #tpu.memory_space<vmem>>, vector<13x64xf32>
    %411 = arith.maximumf %409, %410 : vector<13x64xf32>
    %cst_300 = arith.constant dense<0.000000e+00> : vector<7x64xf32>
    %412 = tpu.matmul %320, %411, %cst_300 {dimension_numbers = #tpu.dot_dimension_numbers<[1], [0], [0], [1], [0, 0, 1, 1], [], []>} : vector<7x13xf32>, vector<13x64xf32>, vector<7x64xf32> -> vector<7x64xf32>
    %413 = vector.broadcast %319 : vector<1x64xf32> to vector<7x64xf32>
    %414 = arith.addf %412, %413 : vector<7x64xf32>
    %cst_301 = arith.constant 0.000000e+00 : f32
    %415 = vector.broadcast %cst_301 : f32 to vector<7x64xf32>
    %416 = arith.maximumf %414, %415 : vector<7x64xf32>
    %417 = arith.truncf %416 : vector<7x64xf32> to vector<7x64xbf16>
    %c42 = arith.constant 42 : index
    %c0_302 = arith.constant 0 : index
    %418 = vector.load %arg19[%c42, %c0_302] : memref<49x64xbf16, #tpu.memory_space<vmem>>, vector<7x64xbf16>
    tpu.vector_store %arg19[%c42, %c0_302], %417 {strides = array<i32>} : memref<49x64xbf16, #tpu.memory_space<vmem>>, vector<7x64xbf16>,
    %c0_303 = arith.constant 0 : index
    %c0_304 = arith.constant 0 : index
    %419 = vector.load %arg19[%c0_303, %c0_304] : memref<49x64xbf16, #tpu.memory_space<vmem>>, vector<33x64xbf16>
    %c0_305 = arith.constant 0 : index
    %c0_306 = arith.constant 0 : index
    %420 = vector.load %arg6[%c0_305, %c0_306] : memref<576x64xbf16, #tpu.memory_space<vmem>>, vector<64x64xbf16>
    %cst_307 = arith.constant dense<0.000000e+00> : vector<33x64xf32>
    %421 = tpu.matmul %419, %420, %cst_307 {dimension_numbers = #tpu.dot_dimension_numbers<[1], [0], [0], [1], [0, 0, 1, 1], [], []>} : vector<33x64xbf16>, vector<64x64xbf16>, vector<33x64xf32> -> vector<33x64xf32>
    %c1_308 = arith.constant 1 : index
    %c0_309 = arith.constant 0 : index
    %422 = vector.load %arg19[%c1_308, %c0_309] : memref<49x64xbf16, #tpu.memory_space<vmem>>, vector<33x64xbf16>
    %c64_310 = arith.constant 64 : index
    %c0_311 = arith.constant 0 : index
    %423 = vector.load %arg6[%c64_310, %c0_311] : memref<576x64xbf16, #tpu.memory_space<vmem>>, vector<64x64xbf16>
    %cst_312 = arith.constant dense<0.000000e+00> : vector<33x64xf32>
    %424 = tpu.matmul %422, %423, %cst_312 {dimension_numbers = #tpu.dot_dimension_numbers<[1], [0], [0], [1], [0, 0, 1, 1], [], []>} : vector<33x64xbf16>, vector<64x64xbf16>, vector<33x64xf32> -> vector<33x64xf32>
    %425 = arith.addf %421, %424 : vector<33x64xf32>
    %c2_313 = arith.constant 2 : index
    %c0_314 = arith.constant 0 : index
    %426 = vector.load %arg19[%c2_313, %c0_314] : memref<49x64xbf16, #tpu.memory_space<vmem>>, vector<33x64xbf16>
    %c128_315 = arith.constant 128 : index
    %c0_316 = arith.constant 0 : index
    %427 = vector.load %arg6[%c128_315, %c0_316] : memref<576x64xbf16, #tpu.memory_space<vmem>>, vector<64x64xbf16>
    %cst_317 = arith.constant dense<0.000000e+00> : vector<33x64xf32>
    %428 = tpu.matmul %426, %427, %cst_317 {dimension_numbers = #tpu.dot_dimension_numbers<[1], [0], [0], [1], [0, 0, 1, 1], [], []>} : vector<33x64xbf16>, vector<64x64xbf16>, vector<33x64xf32> -> vector<33x64xf32>
    %429 = arith.addf %425, %428 : vector<33x64xf32>
    %c7_318 = arith.constant 7 : index
    %c0_319 = arith.constant 0 : index
    %430 = vector.load %arg19[%c7_318, %c0_319] : memref<49x64xbf16, #tpu.memory_space<vmem>>, vector<33x64xbf16>
    %c192_320 = arith.constant 192 : index
    %c0_321 = arith.constant 0 : index
    %431 = vector.load %arg6[%c192_320, %c0_321] : memref<576x64xbf16, #tpu.memory_space<vmem>>, vector<64x64xbf16>
    %cst_322 = arith.constant dense<0.000000e+00> : vector<33x64xf32>
    %432 = tpu.matmul %430, %431, %cst_322 {dimension_numbers = #tpu.dot_dimension_numbers<[1], [0], [0], [1], [0, 0, 1, 1], [], []>} : vector<33x64xbf16>, vector<64x64xbf16>, vector<33x64xf32> -> vector<33x64xf32>
    %433 = arith.addf %429, %432 : vector<33x64xf32>
    %c8 = arith.constant 8 : index
    %c0_323 = arith.constant 0 : index
    %434 = vector.load %arg19[%c8, %c0_323] : memref<49x64xbf16, #tpu.memory_space<vmem>>, vector<33x64xbf16>
    %c256_324 = arith.constant 256 : index
    %c0_325 = arith.constant 0 : index
    %435 = vector.load %arg6[%c256_324, %c0_325] : memref<576x64xbf16, #tpu.memory_space<vmem>>, vector<64x64xbf16>
    %cst_326 = arith.constant dense<0.000000e+00> : vector<33x64xf32>
    %436 = tpu.matmul %434, %435, %cst_326 {dimension_numbers = #tpu.dot_dimension_numbers<[1], [0], [0], [1], [0, 0, 1, 1], [], []>} : vector<33x64xbf16>, vector<64x64xbf16>, vector<33x64xf32> -> vector<33x64xf32>
    %437 = arith.addf %433, %436 : vector<33x64xf32>
    %c9 = arith.constant 9 : index
    %c0_327 = arith.constant 0 : index
    %438 = vector.load %arg19[%c9, %c0_327] : memref<49x64xbf16, #tpu.memory_space<vmem>>, vector<33x64xbf16>
    %c320 = arith.constant 320 : index
    %c0_328 = arith.constant 0 : index
    %439 = vector.load %arg6[%c320, %c0_328] : memref<576x64xbf16, #tpu.memory_space<vmem>>, vector<64x64xbf16>
    %cst_329 = arith.constant dense<0.000000e+00> : vector<33x64xf32>
    %440 = tpu.matmul %438, %439, %cst_329 {dimension_numbers = #tpu.dot_dimension_numbers<[1], [0], [0], [1], [0, 0, 1, 1], [], []>} : vector<33x64xbf16>, vector<64x64xbf16>, vector<33x64xf32> -> vector<33x64xf32>
    %441 = arith.addf %437, %440 : vector<33x64xf32>
    %c14_330 = arith.constant 14 : index
    %c0_331 = arith.constant 0 : index
    %442 = vector.load %arg19[%c14_330, %c0_331] : memref<49x64xbf16, #tpu.memory_space<vmem>>, vector<33x64xbf16>
    %c384 = arith.constant 384 : index
    %c0_332 = arith.constant 0 : index
    %443 = vector.load %arg6[%c384, %c0_332] : memref<576x64xbf16, #tpu.memory_space<vmem>>, vector<64x64xbf16>
    %cst_333 = arith.constant dense<0.000000e+00> : vector<33x64xf32>
    %444 = tpu.matmul %442, %443, %cst_333 {dimension_numbers = #tpu.dot_dimension_numbers<[1], [0], [0], [1], [0, 0, 1, 1], [], []>} : vector<33x64xbf16>, vector<64x64xbf16>, vector<33x64xf32> -> vector<33x64xf32>
    %445 = arith.addf %441, %444 : vector<33x64xf32>
    %c15 = arith.constant 15 : index
    %c0_334 = arith.constant 0 : index
    %446 = vector.load %arg19[%c15, %c0_334] : memref<49x64xbf16, #tpu.memory_space<vmem>>, vector<33x64xbf16>
    %c448 = arith.constant 448 : index
    %c0_335 = arith.constant 0 : index
    %447 = vector.load %arg6[%c448, %c0_335] : memref<576x64xbf16, #tpu.memory_space<vmem>>, vector<64x64xbf16>
    %cst_336 = arith.constant dense<0.000000e+00> : vector<33x64xf32>
    %448 = tpu.matmul %446, %447, %cst_336 {dimension_numbers = #tpu.dot_dimension_numbers<[1], [0], [0], [1], [0, 0, 1, 1], [], []>} : vector<33x64xbf16>, vector<64x64xbf16>, vector<33x64xf32> -> vector<33x64xf32>
    %449 = arith.addf %445, %448 : vector<33x64xf32>
    %c16_337 = arith.constant 16 : index
    %c0_338 = arith.constant 0 : index
    %450 = vector.load %arg19[%c16_337, %c0_338] : memref<49x64xbf16, #tpu.memory_space<vmem>>, vector<33x64xbf16>
    %c512_339 = arith.constant 512 : index
    %c0_340 = arith.constant 0 : index
    %451 = vector.load %arg6[%c512_339, %c0_340] : memref<576x64xbf16, #tpu.memory_space<vmem>>, vector<64x64xbf16>
    %cst_341 = arith.constant dense<0.000000e+00> : vector<33x64xf32>
    %452 = tpu.matmul %450, %451, %cst_341 {dimension_numbers = #tpu.dot_dimension_numbers<[1], [0], [0], [1], [0, 0, 1, 1], [], []>} : vector<33x64xbf16>, vector<64x64xbf16>, vector<33x64xf32> -> vector<33x64xf32>
    %453 = arith.addf %449, %452 : vector<33x64xf32>
    %c0_342 = arith.constant 0 : index
    %c0_343 = arith.constant 0 : index
    %454 = vector.load %arg20[%c0_342, %c0_343] : memref<33x64xf32, #tpu.memory_space<vmem>>, vector<33x64xf32>
    tpu.vector_store %arg20[%c0_342, %c0_343], %453 {strides = array<i32>} : memref<33x64xf32, #tpu.memory_space<vmem>>, vector<33x64xf32>,
    %c0_344 = arith.constant 0 : index
    %c0_345 = arith.constant 0 : index
    %455 = vector.load %arg7[%c0_344, %c0_345] : memref<1x64xf32, #tpu.memory_space<vmem>>, vector<1x64xf32>
    %c0_346 = arith.constant 0 : index
    %c0_347 = arith.constant 0 : index
    %456 = vector.load %arg14[%c0_346, %c0_347] : memref<2x4xf32, #tpu.memory_space<vmem>>, vector<2x4xf32>
    %c0_348 = arith.constant 0 : index
    %c0_349 = arith.constant 0 : index
    %457 = vector.load %arg20[%c0_348, %c0_349] : memref<33x64xf32, #tpu.memory_space<vmem>>, vector<4x64xf32>
    %c1_350 = arith.constant 1 : index
    %c0_351 = arith.constant 0 : index
    %458 = vector.load %arg20[%c1_350, %c0_351] : memref<33x64xf32, #tpu.memory_space<vmem>>, vector<4x64xf32>
    %459 = arith.maximumf %457, %458 : vector<4x64xf32>
    %c7_352 = arith.constant 7 : index
    %c0_353 = arith.constant 0 : index
    %460 = vector.load %arg20[%c7_352, %c0_353] : memref<33x64xf32, #tpu.memory_space<vmem>>, vector<4x64xf32>
    %461 = arith.maximumf %459, %460 : vector<4x64xf32>
    %c8_354 = arith.constant 8 : index
    %c0_355 = arith.constant 0 : index
    %462 = vector.load %arg20[%c8_354, %c0_355] : memref<33x64xf32, #tpu.memory_space<vmem>>, vector<4x64xf32>
    %463 = arith.maximumf %461, %462 : vector<4x64xf32>
    %cst_356 = arith.constant dense<0.000000e+00> : vector<2x64xf32>
    %464 = tpu.matmul %456, %463, %cst_356 {dimension_numbers = #tpu.dot_dimension_numbers<[1], [0], [0], [1], [0, 0, 1, 1], [], []>} : vector<2x4xf32>, vector<4x64xf32>, vector<2x64xf32> -> vector<2x64xf32>
    %465 = vector.broadcast %455 : vector<1x64xf32> to vector<2x64xf32>
    %466 = arith.addf %464, %465 : vector<2x64xf32>
    %cst_357 = arith.constant 0.000000e+00 : f32
    %467 = vector.broadcast %cst_357 : f32 to vector<2x64xf32>
    %468 = arith.maximumf %466, %467 : vector<2x64xf32>
    %469 = arith.truncf %468 : vector<2x64xf32> to vector<2x64xbf16>
    %c0_358 = arith.constant 0 : index
    %c0_359 = arith.constant 0 : index
    %470 = vector.load %arg21[%c0_358, %c0_359] : memref<4x64xbf16, #tpu.memory_space<vmem>>, vector<2x64xbf16>
    tpu.vector_store %arg21[%c0_358, %c0_359], %469 {strides = array<i32>} : memref<4x64xbf16, #tpu.memory_space<vmem>>, vector<2x64xbf16>,
    %c14_360 = arith.constant 14 : index
    %c0_361 = arith.constant 0 : index
    %471 = vector.load %arg20[%c14_360, %c0_361] : memref<33x64xf32, #tpu.memory_space<vmem>>, vector<4x64xf32>
    %c15_362 = arith.constant 15 : index
    %c0_363 = arith.constant 0 : index
    %472 = vector.load %arg20[%c15_362, %c0_363] : memref<33x64xf32, #tpu.memory_space<vmem>>, vector<4x64xf32>
    %473 = arith.maximumf %471, %472 : vector<4x64xf32>
    %c21_364 = arith.constant 21 : index
    %c0_365 = arith.constant 0 : index
    %474 = vector.load %arg20[%c21_364, %c0_365] : memref<33x64xf32, #tpu.memory_space<vmem>>, vector<4x64xf32>
    %475 = arith.maximumf %473, %474 : vector<4x64xf32>
    %c22 = arith.constant 22 : index
    %c0_366 = arith.constant 0 : index
    %476 = vector.load %arg20[%c22, %c0_366] : memref<33x64xf32, #tpu.memory_space<vmem>>, vector<4x64xf32>
    %477 = arith.maximumf %475, %476 : vector<4x64xf32>
    %cst_367 = arith.constant dense<0.000000e+00> : vector<2x64xf32>
    %478 = tpu.matmul %456, %477, %cst_367 {dimension_numbers = #tpu.dot_dimension_numbers<[1], [0], [0], [1], [0, 0, 1, 1], [], []>} : vector<2x4xf32>, vector<4x64xf32>, vector<2x64xf32> -> vector<2x64xf32>
    %479 = vector.broadcast %455 : vector<1x64xf32> to vector<2x64xf32>
    %480 = arith.addf %478, %479 : vector<2x64xf32>
    %cst_368 = arith.constant 0.000000e+00 : f32
    %481 = vector.broadcast %cst_368 : f32 to vector<2x64xf32>
    %482 = arith.maximumf %480, %481 : vector<2x64xf32>
    %483 = arith.truncf %482 : vector<2x64xf32> to vector<2x64xbf16>
    %c2_369 = arith.constant 2 : index
    %c0_370 = arith.constant 0 : index
    %484 = vector.load %arg21[%c2_369, %c0_370] : memref<4x64xbf16, #tpu.memory_space<vmem>>, vector<2x64xbf16>
    tpu.vector_store %arg21[%c2_369, %c0_370], %483 {strides = array<i32>} : memref<4x64xbf16, #tpu.memory_space<vmem>>, vector<2x64xbf16>,
    %c0_371 = arith.constant 0 : index
    %c0_372 = arith.constant 0 : index
    %485 = vector.load %arg9[%c0_371, %c0_372] : memref<1x64xf32, #tpu.memory_space<vmem>>, vector<1x64xf32>
    %c0_373 = arith.constant 0 : index
    %c0_374 = arith.constant 0 : index
    %486 = vector.load %arg21[%c0_373, %c0_374] : memref<4x64xbf16, #tpu.memory_space<vmem>>, vector<1x64xbf16>
    %c0_375 = arith.constant 0 : index
    %c0_376 = arith.constant 0 : index
    %487 = vector.load %arg8[%c0_375, %c0_376] : memref<256x64xbf16, #tpu.memory_space<vmem>>, vector<64x64xbf16>
    %cst_377 = arith.constant dense<0.000000e+00> : vector<1x64xf32>
    %488 = tpu.matmul %486, %487, %cst_377 {dimension_numbers = #tpu.dot_dimension_numbers<[1], [0], [0], [1], [0, 0, 1, 1], [], []>} : vector<1x64xbf16>, vector<64x64xbf16>, vector<1x64xf32> -> vector<1x64xf32>
    %489 = arith.addf %485, %488 : vector<1x64xf32>
    %c1_378 = arith.constant 1 : index
    %c0_379 = arith.constant 0 : index
    %490 = vector.load %arg21[%c1_378, %c0_379] : memref<4x64xbf16, #tpu.memory_space<vmem>>, vector<1x64xbf16>
    %c64_380 = arith.constant 64 : index
    %c0_381 = arith.constant 0 : index
    %491 = vector.load %arg8[%c64_380, %c0_381] : memref<256x64xbf16, #tpu.memory_space<vmem>>, vector<64x64xbf16>
    %cst_382 = arith.constant dense<0.000000e+00> : vector<1x64xf32>
    %492 = tpu.matmul %490, %491, %cst_382 {dimension_numbers = #tpu.dot_dimension_numbers<[1], [0], [0], [1], [0, 0, 1, 1], [], []>} : vector<1x64xbf16>, vector<64x64xbf16>, vector<1x64xf32> -> vector<1x64xf32>
    %493 = arith.addf %489, %492 : vector<1x64xf32>
    %c2_383 = arith.constant 2 : index
    %c0_384 = arith.constant 0 : index
    %494 = vector.load %arg21[%c2_383, %c0_384] : memref<4x64xbf16, #tpu.memory_space<vmem>>, vector<1x64xbf16>
    %c128_385 = arith.constant 128 : index
    %c0_386 = arith.constant 0 : index
    %495 = vector.load %arg8[%c128_385, %c0_386] : memref<256x64xbf16, #tpu.memory_space<vmem>>, vector<64x64xbf16>
    %cst_387 = arith.constant dense<0.000000e+00> : vector<1x64xf32>
    %496 = tpu.matmul %494, %495, %cst_387 {dimension_numbers = #tpu.dot_dimension_numbers<[1], [0], [0], [1], [0, 0, 1, 1], [], []>} : vector<1x64xbf16>, vector<64x64xbf16>, vector<1x64xf32> -> vector<1x64xf32>
    %497 = arith.addf %493, %496 : vector<1x64xf32>
    %c3 = arith.constant 3 : index
    %c0_388 = arith.constant 0 : index
    %498 = vector.load %arg21[%c3, %c0_388] : memref<4x64xbf16, #tpu.memory_space<vmem>>, vector<1x64xbf16>
    %c192_389 = arith.constant 192 : index
    %c0_390 = arith.constant 0 : index
    %499 = vector.load %arg8[%c192_389, %c0_390] : memref<256x64xbf16, #tpu.memory_space<vmem>>, vector<64x64xbf16>
    %cst_391 = arith.constant dense<0.000000e+00> : vector<1x64xf32>
    %500 = tpu.matmul %498, %499, %cst_391 {dimension_numbers = #tpu.dot_dimension_numbers<[1], [0], [0], [1], [0, 0, 1, 1], [], []>} : vector<1x64xbf16>, vector<64x64xbf16>, vector<1x64xf32> -> vector<1x64xf32>
    %501 = arith.addf %497, %500 : vector<1x64xf32>
    %cst_392 = arith.constant 0.000000e+00 : f32
    %502 = vector.broadcast %cst_392 : f32 to vector<1x64xf32>
    %503 = arith.maximumf %501, %502 : vector<1x64xf32>
    %504 = arith.truncf %503 : vector<1x64xf32> to vector<1x64xbf16>
    %c0_393 = arith.constant 0 : index
    %c0_394 = arith.constant 0 : index
    %505 = vector.load %arg10[%c0_393, %c0_394] : memref<64x10xbf16, #tpu.memory_space<vmem>>, vector<64x10xbf16>
    %cst_395 = arith.constant dense<0.000000e+00> : vector<1x10xf32>
    %506 = tpu.matmul %504, %505, %cst_395 {dimension_numbers = #tpu.dot_dimension_numbers<[1], [0], [0], [1], [0, 0, 1, 1], [], []>} : vector<1x64xbf16>, vector<64x10xbf16>, vector<1x10xf32> -> vector<1x10xf32>
    %c0_396 = arith.constant 0 : index
    %c0_397 = arith.constant 0 : index
    %507 = vector.load %arg11[%c0_396, %c0_397] : memref<1x10xf32, #tpu.memory_space<vmem>>, vector<1x10xf32>
    %508 = arith.addf %506, %507 : vector<1x10xf32>
    %c0_398 = arith.constant 0 : index
    %c0_399 = arith.constant 0 : index
    %c0_400 = arith.constant 0 : index
    %509 = vector.load %arg15[%c0_398, %c0_399, %c0_400] : memref<1x1x10xf32, #tpu.memory_space<vmem>>, vector<1x1x10xf32>
    %510 = vector.shape_cast %509 : vector<1x1x10xf32> to vector<1x10xf32>
    %511 = vector.shape_cast %508 : vector<1x10xf32> to vector<1x1x10xf32>
    tpu.vector_store %arg15[%c0_398, %c0_399, %c0_400], %511 {strides = array<i32>} : memref<1x1x10xf32, #tpu.memory_space<vmem>>, vector<1x1x10xf32>,
    return
  }
  func.func @transform_0(%arg0: i32) -> (i32, i32, i32) {
    %c0_i32 = arith.constant 0 : i32
    %c0_i32_0 = arith.constant 0 : i32
    %c0_i32_1 = arith.constant 0 : i32
    return %arg0, %c0_i32, %c0_i32_0 : i32, i32, i32
  }
  func.func @transform_1(%arg0: i32) -> (i32, i32) {
    %c0_i32 = arith.constant 0 : i32
    %c0_i32_0 = arith.constant 0 : i32
    %c0_i32_1 = arith.constant 0 : i32
    return %c0_i32, %c0_i32_0 : i32, i32
  }
  func.func @transform_2(%arg0: i32) -> (i32, i32) {
    %c0_i32 = arith.constant 0 : i32
    %c0_i32_0 = arith.constant 0 : i32
    %c0_i32_1 = arith.constant 0 : i32
    return %c0_i32, %c0_i32_0 : i32, i32
  }
  func.func @transform_3(%arg0: i32) -> (i32, i32) {
    %c0_i32 = arith.constant 0 : i32
    %c0_i32_0 = arith.constant 0 : i32
    %c0_i32_1 = arith.constant 0 : i32
    return %c0_i32, %c0_i32_0 : i32, i32
  }
  func.func @transform_4(%arg0: i32) -> (i32, i32) {
    %c0_i32 = arith.constant 0 : i32
    %c0_i32_0 = arith.constant 0 : i32
    %c0_i32_1 = arith.constant 0 : i32
    return %c0_i32, %c0_i32_0 : i32, i32
  }
  func.func @transform_5(%arg0: i32) -> (i32, i32) {
    %c0_i32 = arith.constant 0 : i32
    %c0_i32_0 = arith.constant 0 : i32
    %c0_i32_1 = arith.constant 0 : i32
    return %c0_i32, %c0_i32_0 : i32, i32
  }
  func.func @transform_6(%arg0: i32) -> (i32, i32) {
    %c0_i32 = arith.constant 0 : i32
    %c0_i32_0 = arith.constant 0 : i32
    %c0_i32_1 = arith.constant 0 : i32
    return %c0_i32, %c0_i32_0 : i32, i32
  }
  func.func @transform_7(%arg0: i32) -> (i32, i32) {
    %c0_i32 = arith.constant 0 : i32
    %c0_i32_0 = arith.constant 0 : i32
    %c0_i32_1 = arith.constant 0 : i32
    return %c0_i32, %c0_i32_0 : i32, i32
  }
  func.func @transform_8(%arg0: i32) -> (i32, i32) {
    %c0_i32 = arith.constant 0 : i32
    %c0_i32_0 = arith.constant 0 : i32
    %c0_i32_1 = arith.constant 0 : i32
    return %c0_i32, %c0_i32_0 : i32, i32
  }
  func.func @transform_9(%arg0: i32) -> (i32, i32) {
    %c0_i32 = arith.constant 0 : i32
    %c0_i32_0 = arith.constant 0 : i32
    %c0_i32_1 = arith.constant 0 : i32
    return %c0_i32, %c0_i32_0 : i32, i32
  }
  func.func @transform_10(%arg0: i32) -> (i32, i32) {
    %c0_i32 = arith.constant 0 : i32
    %c0_i32_0 = arith.constant 0 : i32
    %c0_i32_1 = arith.constant 0 : i32
    return %c0_i32, %c0_i32_0 : i32, i32
  }
  func.func @transform_11(%arg0: i32) -> (i32, i32) {
    %c0_i32 = arith.constant 0 : i32
    %c0_i32_0 = arith.constant 0 : i32
    %c0_i32_1 = arith.constant 0 : i32
    return %c0_i32, %c0_i32_0 : i32, i32
  }
  func.func @transform_12(%arg0: i32) -> (i32, i32) {
    %c0_i32 = arith.constant 0 : i32
    %c0_i32_0 = arith.constant 0 : i32
    %c0_i32_1 = arith.constant 0 : i32
    return %c0_i32, %c0_i32_0 : i32, i32
  }
  func.func @transform_13(%arg0: i32) -> (i32, i32) {
    %c0_i32 = arith.constant 0 : i32
    %c0_i32_0 = arith.constant 0 : i32
    %c0_i32_1 = arith.constant 0 : i32
    return %c0_i32, %c0_i32_0 : i32, i32
  }
  func.func @transform_14(%arg0: i32) -> (i32, i32, i32) {
    %c0_i32 = arith.constant 0 : i32
    %c0_i32_0 = arith.constant 0 : i32
    %c0_i32_1 = arith.constant 0 : i32
    return %arg0, %c0_i32, %c0_i32_0 : i32, i32, i32
  }
}

</mosaic_0001>

<llo_original>
// kernel: hochuli_forward.1
$region0: #{hochuli_forward.1}
  #allocation0 [shape = 'u32[]', space=smem, size = 0x4, offset = 0x4, fixed_abs, tag = 'smem constant byte address 0x4 - core index']
  #allocation1 [shape = 'u32[144,128]{1,0:T(1,128)}', space=vmem, size = 0x12000, scoped, tag = 'internal scratch']
  #allocation2 [shape = 'f32[1086,32]{1,0:T(8,128)}', space=vmem, size = 0x88000, scoped, tag = 'scratch operand']
  #allocation3 [shape = 'bf16[256,32]{1,0:T(8,128)(2,1)}', space=vmem, size = 0x10000, scoped, tag = 'scratch operand']
  #allocation4 [shape = 'f32[222,64]{1,0:T(8,128)}', space=vmem, size = 0x1c000, scoped, tag = 'scratch operand']
  #allocation5 [shape = 'bf16[49,64]{1,0:T(8,128)(2,1)}', space=vmem, size = 0x3800, scoped, tag = 'scratch operand']
  #allocation6 [shape = 'f32[33,64]{1,0:T(8,128)}', space=vmem, size = 0x5000, scoped, tag = 'scratch operand']
  #allocation7 [shape = 'bf16[4,64]{1,0:T(4,128)(2,1)}', space=vmem, size = 0x400, scoped, tag = 'scratch operand']
  %s0 = inlined_call_operand.vmem [shape: bf16[2,1086,27], index: 0, kind: input, shape index: {}]
  %s1 = inlined_call_operand.vmem [shape: bf16[27,32], index: 1, kind: input, shape index: {}]
  %s2 = inlined_call_operand.vmem [shape: f32[1,32], index: 2, kind: input, shape index: {}]
  %s3 = inlined_call_operand.vmem [shape: bf16[288,64], index: 3, kind: input, shape index: {}]
  %s4 = inlined_call_operand.vmem [shape: f32[1,64], index: 4, kind: input, shape index: {}]
  %s5 = inlined_call_operand.vmem [shape: bf16[576,64], index: 5, kind: input, shape index: {}]
  %s6 = inlined_call_operand.vmem [shape: f32[1,64], index: 6, kind: input, shape index: {}]
  %s7 = inlined_call_operand.vmem [shape: bf16[256,64], index: 7, kind: input, shape index: {}]
  %s8 = inlined_call_operand.vmem [shape: f32[1,64], index: 8, kind: input, shape index: {}]
  %s9 = inlined_call_operand.vmem [shape: bf16[64,10], index: 9, kind: input, shape index: {}]
  %s10 = inlined_call_operand.vmem [shape: f32[1,10], index: 10, kind: input, shape index: {}]
  %s11 = inlined_call_operand.vmem [shape: f32[16,31], index: 11, kind: input, shape index: {}]
  %s12 = inlined_call_operand.vmem [shape: f32[7,13], index: 12, kind: input, shape index: {}]
  %s13 = inlined_call_operand.vmem [shape: f32[2,4], index: 13, kind: input, shape index: {}]
  %s14 = inlined_call_operand.hbm [shape: f32[2,1,10], index: 14, kind: output, shape index: {}]
  %s15 = sld [smem:[#allocation0]]
  $region89: #{hochuli_forward.1} parent=0
    _
  %s17 = ssub.s32 1, %s15
  %s18 = scalar_select 0, %s17, %s15
  $region1: #{hochuli_forward.1} parent=0
    #allocation8 [shape = 'u8[1024]{0}', space=vmem, size = 0x400, scoped, tag = 'output window, operand 0']
    #allocation9 [shape = 's32[2]{0}', space=sflag, size = 0x8, scoped, tag = 'scoped memory for hochuli_forward.1']
    %19 = vsyncpa [#allocation9], 0
    %s20 = scalar_lea.sflag [#allocation9], 1
    %21 = vsyncpa %s20, 0
    loop: start=0, step=1, limit=4
    $region2: #{hochuli_forward.1} parent=1 // loop_pre_header
      _
    $region3: #{hochuli_forward.1} parent=1 // loop_header
      %s23 = sphi 0, %s27
      %p24 = scmp.ge.s32.totalorder %s23, 4
      %s33 = sphi 0, %s35
      %s36 = sphi 0, %s33
      %s37 = sphi 0, %s36
      %s53 = sphi 0, %s37
      %s57 = sphi 0, %s57
      %s59 = sphi 0, %s57
      %s60 = sphi 0, %s59
      %s74 = sphi 0, %s60
      %s78 = sphi 0, %s78
      %s80 = sphi 0, %s78
      %s81 = sphi 0, %s80
      %s95 = sphi 0, %s81
      %s99 = sphi 0, %s99
      %s101 = sphi 0, %s99
      %s102 = sphi 0, %s101
      %s116 = sphi 0, %s102
      %s120 = sphi 0, %s120
      %s122 = sphi 0, %s120
      %s123 = sphi 0, %s122
      %s137 = sphi 0, %s123
      %s141 = sphi 0, %s141
      %s143 = sphi 0, %s141
      %s144 = sphi 0, %s143
      %s158 = sphi 0, %s144
      %s162 = sphi 0, %s162
      %s164 = sphi 0, %s162
      %s165 = sphi 0, %s164
      %s179 = sphi 0, %s165
      %s183 = sphi 0, %s183
      %s185 = sphi 0, %s183
      %s186 = sphi 0, %s185
      %s200 = sphi 0, %s186
      %s204 = sphi 0, %s204
      %s206 = sphi 0, %s204
      %s207 = sphi 0, %s206
      %s221 = sphi 0, %s207
      %s225 = sphi 0, %s225
      %s227 = sphi 0, %s225
      %s228 = sphi 0, %s227
      %s242 = sphi 0, %s228
      %s246 = sphi 0, %s246
      %s248 = sphi 0, %s246
      %s249 = sphi 0, %s248
      %s263 = sphi 0, %s249
      %s267 = sphi 0, %s267
      %s269 = sphi 0, %s267
      %s270 = sphi 0, %s269
      %s284 = sphi 0, %s270
      %s288 = sphi 0, %s288
      %s290 = sphi 0, %s288
      %s291 = sphi 0, %s290
      %s305 = sphi 0, %s291
      %s309 = sphi 0, %s309
      %s311 = sphi 0, %s309
      %s312 = sphi 0, %s311
      %s326 = sphi 0, %s312
      %s332 = sphi 0, %s334
      %s335 = sphi 0, %s332
      %s336 = sphi 0, %s335
      %s352 = sphi 0, %s336
    $region4: #{hochuli_forward.1} parent=1 // loop_header_branch
      %26 = sbr.rel (%p24) target = $region8
    $region5: #{hochuli_forward.1} parent=1 // loop_body
      %s28 = ssub.s32 %s23, 1
      %s29 = ssub.s32 %s23, 2
      %s30 = sadd.s32 %s23, 1
      %s31 = ssub.s32 %s23, %s30
      %p32 = scmp.eq.s32.totalorder %s31, 0
      %s34 = sadd.s32 %s33, 1
      %s35 = scalar_select %p32, %s33, %s34
      %p38 = pneg %p32
      %p39 = scmp.eq.s32.totalorder %s23, 1
      %p40 = por %p38, %p39
      %p41 = scmp.ne.s32.totalorder %s33, %s36
      %p42 = scmp.eq.s32.totalorder %s23, 0
      %p43 = por %p41, %p42
      %p44 = scmp.ne.s32.totalorder %s33, %s36
      %p45 = scmp.eq.s32.totalorder %s28, 1
      %p46 = por %p44, %p45
      %p47 = scmp.ne.s32.totalorder %s36, %s37
      %p48 = scmp.eq.s32.totalorder %s28, 0
      %p49 = por %p47, %p48
      %p50 = scmp.ne.s32.totalorder %s36, %s37
      %p51 = scmp.eq.s32.totalorder %s29, 1
      %p52 = por %p50, %p51
      %p54 = scmp.ne.s32.totalorder %s37, %s53
      %p55 = scmp.eq.s32.totalorder %s29, 0
      %p56 = por %p54, %p55
      %s58 = sadd.s32 %s57, 1
      %p61 = scmp.eq.s32.totalorder %s23, 1
      %p62 = scmp.ne.s32.totalorder %s57, %s59
      %p63 = scmp.eq.s32.totalorder %s23, 0
      %p64 = por %p62, %p63
      %p65 = scmp.ne.s32.totalorder %s57, %s59
      %p66 = scmp.eq.s32.totalorder %s28, 1
      %p67 = por %p65, %p66
      %p68 = scmp.ne.s32.totalorder %s59, %s60
      %p69 = scmp.eq.s32.totalorder %s28, 0
      %p70 = por %p68, %p69
      %p71 = scmp.ne.s32.totalorder %s59, %s60
      %p72 = scmp.eq.s32.totalorder %s29, 1
      %p73 = por %p71, %p72
      %p75 = scmp.ne.s32.totalorder %s60, %s74
      %p76 = scmp.eq.s32.totalorder %s29, 0
      %p77 = por %p75, %p76
      %s79 = sadd.s32 %s78, 1
      %p82 = scmp.eq.s32.totalorder %s23, 1
      %p83 = scmp.ne.s32.totalorder %s78, %s80
      %p84 = scmp.eq.s32.totalorder %s23, 0
      %p85 = por %p83, %p84
      %p86 = scmp.ne.s32.totalorder %s78, %s80
      %p87 = scmp.eq.s32.totalorder %s28, 1
      %p88 = por %p86, %p87
      %p89 = scmp.ne.s32.totalorder %s80, %s81
      %p90 = scmp.eq.s32.totalorder %s28, 0
      %p91 = por %p89, %p90
      %p92 = scmp.ne.s32.totalorder %s80, %s81
      %p93 = scmp.eq.s32.totalorder %s29, 1
      %p94 = por %p92, %p93
      %p96 = scmp.ne.s32.totalorder %s81, %s95
      %p97 = scmp.eq.s32.totalorder %s29, 0
      %p98 = por %p96, %p97
      %s100 = sadd.s32 %s99, 1
      %p103 = scmp.eq.s32.totalorder %s23, 1
      %p104 = scmp.ne.s32.totalorder %s99, %s101
      %p105 = scmp.eq.s32.totalorder %s23, 0
      %p106 = por %p104, %p105
      %p107 = scmp.ne.s32.totalorder %s99, %s101
      %p108 = scmp.eq.s32.totalorder %s28, 1
      %p109 = por %p107, %p108
      %p110 = scmp.ne.s32.totalorder %s101, %s102
      %p111 = scmp.eq.s32.totalorder %s28, 0
      %p112 = por %p110, %p111
      %p113 = scmp.ne.s32.totalorder %s101, %s102
      %p114 = scmp.eq.s32.totalorder %s29, 1
      %p115 = por %p113, %p114
      %p117 = scmp.ne.s32.totalorder %s102, %s116
      %p118 = scmp.eq.s32.totalorder %s29, 0
      %p119 = por %p117, %p118
      %s121 = sadd.s32 %s120, 1
      %p124 = scmp.eq.s32.totalorder %s23, 1
      %p125 = scmp.ne.s32.totalorder %s120, %s122
      %p126 = scmp.eq.s32.totalorder %s23, 0
      %p127 = por %p125, %p126
      %p128 = scmp.ne.s32.totalorder %s120, %s122
      %p129 = scmp.eq.s32.totalorder %s28, 1
      %p130 = por %p128, %p129
      %p131 = scmp.ne.s32.totalorder %s122, %s123
      %p132 = scmp.eq.s32.totalorder %s28, 0
      %p133 = por %p131, %p132
      %p134 = scmp.ne.s32.totalorder %s122, %s123
      %p135 = scmp.eq.s32.totalorder %s29, 1
      %p136 = por %p134, %p135
      %p138 = scmp.ne.s32.totalorder %s123, %s137
      %p139 = scmp.eq.s32.totalorder %s29, 0
      %p140 = por %p138, %p139
      %s142 = sadd.s32 %s141, 1
      %p145 = scmp.eq.s32.totalorder %s23, 1
      %p146 = scmp.ne.s32.totalorder %s141, %s143
      %p147 = scmp.eq.s32.totalorder %s23, 0
      %p148 = por %p146, %p147
      %p149 = scmp.ne.s32.totalorder %s141, %s143
      %p150 = scmp.eq.s32.totalorder %s28, 1
      %p151 = por %p149, %p150
      %p152 = scmp.ne.s32.totalorder %s143, %s144
      %p153 = scmp.eq.s32.totalorder %s28, 0
      %p154 = por %p152, %p153
      %p155 = scmp.ne.s32.totalorder %s143, %s144
      %p156 = scmp.eq.s32.totalorder %s29, 1
      %p157 = por %p155, %p156
      %p159 = scmp.ne.s32.totalorder %s144, %s158
      %p160 = scmp.eq.s32.totalorder %s29, 0
      %p161 = por %p159, %p160
      %s163 = sadd.s32 %s162, 1
      %p166 = scmp.eq.s32.totalorder %s23, 1
      %p167 = scmp.ne.s32.totalorder %s162, %s164
      %p168 = scmp.eq.s32.totalorder %s23, 0
      %p169 = por %p167, %p168
      %p170 = scmp.ne.s32.totalorder %s162, %s164
      %p171 = scmp.eq.s32.totalorder %s28, 1
      %p172 = por %p170, %p171
      %p173 = scmp.ne.s32.totalorder %s164, %s165
      %p174 = scmp.eq.s32.totalorder %s28, 0
      %p175 = por %p173, %p174
      %p176 = scmp.ne.s32.totalorder %s164, %s165
      %p177 = scmp.eq.s32.totalorder %s29, 1
      %p178 = por %p176, %p177
      %p180 = scmp.ne.s32.totalorder %s165, %s179
      %p181 = scmp.eq.s32.totalorder %s29, 0
      %p182 = por %p180, %p181
      %s184 = sadd.s32 %s183, 1
      %p187 = scmp.eq.s32.totalorder %s23, 1
      %p188 = scmp.ne.s32.totalorder %s183, %s185
      %p189 = scmp.eq.s32.totalorder %s23, 0
      %p190 = por %p188, %p189
      %p191 = scmp.ne.s32.totalorder %s183, %s185
      %p192 = scmp.eq.s32.totalorder %s28, 1
      %p193 = por %p191, %p192
      %p194 = scmp.ne.s32.totalorder %s185, %s186
      %p195 = scmp.eq.s32.totalorder %s28, 0
      %p196 = por %p194, %p195
      %p197 = scmp.ne.s32.totalorder %s185, %s186
      %p198 = scmp.eq.s32.totalorder %s29, 1
      %p199 = por %p197, %p198
      %p201 = scmp.ne.s32.totalorder %s186, %s200
      %p202 = scmp.eq.s32.totalorder %s29, 0
      %p203 = por %p201, %p202
      %s205 = sadd.s32 %s204, 1
      %p208 = scmp.eq.s32.totalorder %s23, 1
      %p209 = scmp.ne.s32.totalorder %s204, %s206
      %p210 = scmp.eq.s32.totalorder %s23, 0
      %p211 = por %p209, %p210
      %p212 = scmp.ne.s32.totalorder %s204, %s206
      %p213 = scmp.eq.s32.totalorder %s28, 1
      %p214 = por %p212, %p213
      %p215 = scmp.ne.s32.totalorder %s206, %s207
      %p216 = scmp.eq.s32.totalorder %s28, 0
      %p217 = por %p215, %p216
      %p218 = scmp.ne.s32.totalorder %s206, %s207
      %p219 = scmp.eq.s32.totalorder %s29, 1
      %p220 = por %p218, %p219
      %p222 = scmp.ne.s32.totalorder %s207, %s221
      %p223 = scmp.eq.s32.totalorder %s29, 0
      %p224 = por %p222, %p223
      %s226 = sadd.s32 %s225, 1
      %p229 = scmp.eq.s32.totalorder %s23, 1
      %p230 = scmp.ne.s32.totalorder %s225, %s227
      %p231 = scmp.eq.s32.totalorder %s23, 0
      %p232 = por %p230, %p231
      %p233 = scmp.ne.s32.totalorder %s225, %s227
      %p234 = scmp.eq.s32.totalorder %s28, 1
      %p235 = por %p233, %p234
      %p236 = scmp.ne.s32.totalorder %s227, %s228
      %p237 = scmp.eq.s32.totalorder %s28, 0
      %p238 = por %p236, %p237
      %p239 = scmp.ne.s32.totalorder %s227, %s228
      %p240 = scmp.eq.s32.totalorder %s29, 1
      %p241 = por %p239, %p240
      %p243 = scmp.ne.s32.totalorder %s228, %s242
      %p244 = scmp.eq.s32.totalorder %s29, 0
      %p245 = por %p243, %p244
      %s247 = sadd.s32 %s246, 1
      %p250 = scmp.eq.s32.totalorder %s23, 1
      %p251 = scmp.ne.s32.totalorder %s246, %s248
      %p252 = scmp.eq.s32.totalorder %s23, 0
      %p253 = por %p251, %p252
      %p254 = scmp.ne.s32.totalorder %s246, %s248
      %p255 = scmp.eq.s32.totalorder %s28, 1
      %p256 = por %p254, %p255
      %p257 = scmp.ne.s32.totalorder %s248, %s249
      %p258 = scmp.eq.s32.totalorder %s28, 0
      %p259 = por %p257, %p258
      %p260 = scmp.ne.s32.totalorder %s248, %s249
      %p261 = scmp.eq.s32.totalorder %s29, 1
      %p262 = por %p260, %p261
      %p264 = scmp.ne.s32.totalorder %s249, %s263
      %p265 = scmp.eq.s32.totalorder %s29, 0
      %p266 = por %p264, %p265
      %s268 = sadd.s32 %s267, 1
      %p271 = scmp.eq.s32.totalorder %s23, 1
      %p272 = scmp.ne.s32.totalorder %s267, %s269
      %p273 = scmp.eq.s32.totalorder %s23, 0
      %p274 = por %p272, %p273
      %p275 = scmp.ne.s32.totalorder %s267, %s269
      %p276 = scmp.eq.s32.totalorder %s28, 1
      %p277 = por %p275, %p276
      %p278 = scmp.ne.s32.totalorder %s269, %s270
      %p279 = scmp.eq.s32.totalorder %s28, 0
      %p280 = por %p278, %p279
      %p281 = scmp.ne.s32.totalorder %s269, %s270
      %p282 = scmp.eq.s32.totalorder %s29, 1
      %p283 = por %p281, %p282
      %p285 = scmp.ne.s32.totalorder %s270, %s284
      %p286 = scmp.eq.s32.totalorder %s29, 0
      %p287 = por %p285, %p286
      %s289 = sadd.s32 %s288, 1
      %p292 = scmp.eq.s32.totalorder %s23, 1
      %p293 = scmp.ne.s32.totalorder %s288, %s290
      %p294 = scmp.eq.s32.totalorder %s23, 0
      %p295 = por %p293, %p294
      %p296 = scmp.ne.s32.totalorder %s288, %s290
      %p297 = scmp.eq.s32.totalorder %s28, 1
      %p298 = por %p296, %p297
      %p299 = scmp.ne.s32.totalorder %s290, %s291
      %p300 = scmp.eq.s32.totalorder %s28, 0
      %p301 = por %p299, %p300
      %p302 = scmp.ne.s32.totalorder %s290, %s291
      %p303 = scmp.eq.s32.totalorder %s29, 1
      %p304 = por %p302, %p303
      %p306 = scmp.ne.s32.totalorder %s291, %s305
      %p307 = scmp.eq.s32.totalorder %s29, 0
      %p308 = por %p306, %p307
      %s310 = sadd.s32 %s309, 1
      %p313 = scmp.eq.s32.totalorder %s23, 1
      %p314 = scmp.ne.s32.totalorder %s309, %s311
      %p315 = scmp.eq.s32.totalorder %s23, 0
      %p316 = por %p314, %p315
      %p317 = scmp.ne.s32.totalorder %s309, %s311
      %p318 = scmp.eq.s32.totalorder %s28, 1
      %p319 = por %p317, %p318
      %p320 = scmp.ne.s32.totalorder %s311, %s312
      %p321 = scmp.eq.s32.totalorder %s28, 0
      %p322 = por %p320, %p321
      %p323 = scmp.ne.s32.totalorder %s311, %s312
      %p324 = scmp.eq.s32.totalorder %s29, 1
      %p325 = por %p323, %p324
      %p327 = scmp.ne.s32.totalorder %s312, %s326
      %p328 = scmp.eq.s32.totalorder %s29, 0
      %p329 = por %p327, %p328
      %s330 = ssub.s32 %s23, %s30
      %p331 = scmp.eq.s32.totalorder %s330, 0
      %s333 = sadd.s32 %s332, 1
      %s334 = scalar_select %p331, %s332, %s333
      %p337 = pneg %p331
      %p338 = scmp.eq.s32.totalorder %s23, 1
      %p339 = por %p337, %p338
      %p340 = scmp.ne.s32.totalorder %s332, %s335
      %p341 = scmp.eq.s32.totalorder %s23, 0
      %p342 = por %p340, %p341
      %p343 = scmp.ne.s32.totalorder %s332, %s335
      %p344 = scmp.eq.s32.totalorder %s28, 1
      %p345 = por %p343, %p344
      %p346 = scmp.ne.s32.totalorder %s335, %s336
      %p347 = scmp.eq.s32.totalorder %s28, 0
      %p348 = por %p346, %p347
      %p349 = scmp.ne.s32.totalorder %s335, %s336
      %p350 = scmp.eq.s32.totalorder %s29, 1
      %p351 = por %p349, %p350
      %p353 = scmp.ne.s32.totalorder %s336, %s352
      %p354 = scmp.eq.s32.totalorder %s29, 0
      %p355 = por %p353, %p354
      %p356 = scmp.le.s32.totalorder 1, %s23
      %p357 = scmp.lt.s32.totalorder %s23, 3
      %p358 = pnand %p356, %p357
      %p359 = pneg %p358
      // Predicated region
      $region9: #{hochuli_forward.1} parent=5 // pred_check
        _
      $region10: #{hochuli_forward.1} parent=5 // pred_check_branch
        %361 = sbr.rel (%p358) target = $region12
      $region11: #{hochuli_forward.1} parent=5 // pred_region
        %s362 = ssub.s32 %s23, 1
        // Predicated region
        $region13: #{hochuli_forward.1} parent=11 // pred_check
          %p363 = pneg %p70
        $region14: #{hochuli_forward.1} parent=11 // pred_check_branch
          %365 = sbr.rel (%p363) target = $region16
        $region15: #{hochuli_forward.1} parent=11 // pred_region
          _
        $region16: #{hochuli_forward.1} parent=11 // pred_fallthru
          _
        // Predicated region
        $region17: #{hochuli_forward.1} parent=11 // pred_check
          %p366 = pneg %p91
        $region18: #{hochuli_forward.1} parent=11 // pred_check_branch
          %368 = sbr.rel (%p366) target = $region20
        $region19: #{hochuli_forward.1} parent=11 // pred_region
          _
        $region20: #{hochuli_forward.1} parent=11 // pred_fallthru
          _
        // Predicated region
        $region21: #{hochuli_forward.1} parent=11 // pred_check
          %p369 = pneg %p112
        $region22: #{hochuli_forward.1} parent=11 // pred_check_branch
          %371 = sbr.rel (%p369) target = $region24
        $region23: #{hochuli_forward.1} parent=11 // pred_region
          _
        $region24: #{hochuli_forward.1} parent=11 // pred_fallthru
          _
        // Predicated region
        $region25: #{hochuli_forward.1} parent=11 // pred_check
          %p372 = pneg %p133
        $region26: #{hochuli_forward.1} parent=11 // pred_check_branch
          %374 = sbr.rel (%p372) target = $region28
        $region27: #{hochuli_forward.1} parent=11 // pred_region
          _
        $region28: #{hochuli_forward.1} parent=11 // pred_fallthru
          _
        // Predicated region
        $region29: #{hochuli_forward.1} parent=11 // pred_check
          %p375 = pneg %p154
        $region30: #{hochuli_forward.1} parent=11 // pred_check_branch
          %377 = sbr.rel (%p375) target = $region32
        $region31: #{hochuli_forward.1} parent=11 // pred_region
          _
        $region32: #{hochuli_forward.1} parent=11 // pred_fallthru
          _
        // Predicated region
        $region33: #{hochuli_forward.1} parent=11 // pred_check
          %p378 = pneg %p175
        $region34: #{hochuli_forward.1} parent=11 // pred_check_branch
          %380 = sbr.rel (%p378) target = $region36
        $region35: #{hochuli_forward.1} parent=11 // pred_region
          _
        $region36: #{hochuli_forward.1} parent=11 // pred_fallthru
          _
        // Predicated region
        $region37: #{hochuli_forward.1} parent=11 // pred_check
          %p381 = pneg %p196
        $region38: #{hochuli_forward.1} parent=11 // pred_check_branch
          %383 = sbr.rel (%p381) target = $region40
        $region39: #{hochuli_forward.1} parent=11 // pred_region
          _
        $region40: #{hochuli_forward.1} parent=11 // pred_fallthru
          _
        // Predicated region
        $region41: #{hochuli_forward.1} parent=11 // pred_check
          %p384 = pneg %p217
        $region42: #{hochuli_forward.1} parent=11 // pred_check_branch
          %386 = sbr.rel (%p384) target = $region44
        $region43: #{hochuli_forward.1} parent=11 // pred_region
          _
        $region44: #{hochuli_forward.1} parent=11 // pred_fallthru
          _
        // Predicated region
        $region45: #{hochuli_forward.1} parent=11 // pred_check
          %p387 = pneg %p238
        $region46: #{hochuli_forward.1} parent=11 // pred_check_branch
          %389 = sbr.rel (%p387) target = $region48
        $region47: #{hochuli_forward.1} parent=11 // pred_region
          _
        $region48: #{hochuli_forward.1} parent=11 // pred_fallthru
          _
        // Predicated region
        $region49: #{hochuli_forward.1} parent=11 // pred_check
          %p390 = pneg %p259
        $region50: #{hochuli_forward.1} parent=11 // pred_check_branch
          %392 = sbr.rel (%p390) target = $region52
        $region51: #{hochuli_forward.1} parent=11 // pred_region
          _
        $region52: #{hochuli_forward.1} parent=11 // pred_fallthru
          _
        // Predicated region
        $region53: #{hochuli_forward.1} parent=11 // pred_check
          %p393 = pneg %p280
        $region54: #{hochuli_forward.1} parent=11 // pred_check_branch
          %395 = sbr.rel (%p393) target = $region56
        $region55: #{hochuli_forward.1} parent=11 // pred_region
          _
        $region56: #{hochuli_forward.1} parent=11 // pred_fallthru
          _
        // Predicated region
        $region57: #{hochuli_forward.1} parent=11 // pred_check
          %p396 = pneg %p301
        $region58: #{hochuli_forward.1} parent=11 // pred_check_branch
          %398 = sbr.rel (%p396) target = $region60
        $region59: #{hochuli_forward.1} parent=11 // pred_region
          _
        $region60: #{hochuli_forward.1} parent=11 // pred_fallthru
          _
        // Predicated region
        $region61: #{hochuli_forward.1} parent=11 // pred_check
          %p399 = pneg %p322
        $region62: #{hochuli_forward.1} parent=11 // pred_check_branch
          %401 = sbr.rel (%p399) target = $region64
        $region63: #{hochuli_forward.1} parent=11 // pred_region
          _
        $region64: #{hochuli_forward.1} parent=11 // pred_fallthru
          _
      $region12: #{hochuli_forward.1} parent=5 // pred_fallthru
        _
      %p402 = scmp.lt.s32.totalorder %s23, 2
      // Predicated region
      $region65: #{hochuli_forward.1} parent=5 // pred_check
        %p403 = pneg %p402
      $region66: #{hochuli_forward.1} parent=5 // pred_check_branch
        %405 = sbr.rel (%p403) target = $region68
      $region67: #{hochuli_forward.1} parent=5 // pred_region
        // Predicated region
        $region69: #{hochuli_forward.1} parent=67 // pred_check
          %p406 = pneg %p43
        $region70: #{hochuli_forward.1} parent=67 // pred_check_branch
          %408 = sbr.rel (%p406) target = $region72
        $region71: #{hochuli_forward.1} parent=67 // pred_region
          %p409 = scmp.lt.s32.totalorder %s23, 1
          %s410 = scalar_select %p409, %s23, 1
          %s411 = smul.addr %s410, 136
          %s412 = smul.addr %s411, 4
          %s413 = scalar_lea.vmem %s0, %s412
        $region72: #{hochuli_forward.1} parent=67 // pred_fallthru
          _
      $region68: #{hochuli_forward.1} parent=5 // pred_fallthru
        _
      %p414 = scmp.le.s32.totalorder 1, %s23
      %p415 = scmp.lt.s32.totalorder %s23, 3
      %p416 = pnand %p414, %p415
      %p417 = pneg %p416
      // Predicated region
      $region73: #{hochuli_forward.1} parent=5 // pred_check
        _
      $region74: #{hochuli_forward.1} parent=5 // pred_check_branch
        %419 = sbr.rel (%p416) target = $region76
      $region75: #{hochuli_forward.1} parent=5 // pred_region
        %s420 = ssub.s32 %s23, 1
        %p421 = scmp.lt.s32.totalorder %s28, 1
        %s422 = scalar_select %p421, %s28, 1
        %s423 = smul.addr %s422, 136
        %s424 = smul.addr %s423, 4
        %s425 = scalar_lea.vmem %s0, %s424
        %p426 = pneg %p49
        %p427 = pneg %p46
        %p428 = pneg %p70
        %p429 = pneg %p67
        %p430 = pneg %p91
        %p431 = pneg %p88
        %p432 = pneg %p112
        %p433 = pneg %p109
        %p434 = pneg %p133
        %p435 = pneg %p130
        %p436 = pneg %p154
        %p437 = pneg %p151
        %p438 = pneg %p175
        %p439 = pneg %p172
        %p440 = pneg %p196
        %p441 = pneg %p193
        %p442 = pneg %p217
        %p443 = pneg %p214
        %p444 = pneg %p238
        %p445 = pneg %p235
        %p446 = pneg %p259
        %p447 = pneg %p256
        %p448 = pneg %p280
        %p449 = pneg %p277
        %p450 = pneg %p301
        %p451 = pneg %p298
        %p452 = pneg %p322
        %p453 = pneg %p319
        %p454 = pneg %p348
        %p455 = pneg %p345
        %s456 = sand.u32 %s335, 1
        %s457 = scalar_lea.sflag [#allocation9], %s456
        %s458 = sand.u32 %s335, 1
        %s459 = scalar_lea.vmem [#allocation8], %s458
        %p460 = scmp.lt.s32.totalorder %s28, 1
        %s461 = scalar_select %p460, %s28, 1
        %s462 = smul.addr %s461, 136
        %s463 = smul.addr %s462, 4
        %s464 = scalar_lea.vmem %s0, %s463
        %v466 = vld [vmem:[%s1] sm:$0xf]
        %v467 = vld [vmem:[%s1 + $0x4] sm:$0xf]
        %v468 = vld [vmem:[%s1 + $0x8] sm:$0xf]
        %v469 = vld [vmem:[%s1 + $0xc] sm:$0x3]
        %v470 = vld [vmem:[%s464] sm:$0xf]
        %v471 = vld [vmem:[%s464 + $0x4] sm:$0xf]
        %v472 = vld [vmem:[%s464 + $0x8] sm:$0xf]
        %v473 = vld [vmem:[%s464 + $0xc] sm:$0xf]
        %v474 = vld [vmem:[%s464 + $0x10] sm:$0xf]
        %v475 = vld [vmem:[%s464 + $0x14] sm:$0xf]
        %v476 = vld [vmem:[%s464 + $0x18] sm:$0xf]
        %v477 = vld [vmem:[%s464 + $0x1c] sm:$0xf]
        %v478 = vld [vmem:[%s464 + $0x20] sm:$0xf]
        %v479 = vld [vmem:[%s464 + $0x24] sm:$0xf]
        %v480 = vld [vmem:[%s464 + $0x28] sm:$0xf]
        %v481 = vld [vmem:[%s464 + $0x2c] sm:$0xf]
        %v482 = vld [vmem:[%s464 + $0x30] sm:$0xf]
        %v483 = vld [vmem:[%s464 + $0x34] sm:$0xf]
        %v484 = vld [vmem:[%s464 + $0x38] sm:$0xf]
        %v485 = vld [vmem:[%s464 + $0x3c] sm:$0xf]
        %v486 = vld [vmem:[%s464 + $0x40] sm:$0xf]
        %v487 = vld [vmem:[%s464 + $0x44] sm:$0xf]
        %v488 = vld [vmem:[%s464 + $0x48] sm:$0xf]
        %v489 = vld [vmem:[%s464 + $0x4c] sm:$0xf]
        %v490 = vld [vmem:[%s464 + $0x50] sm:$0xf]
        %v491 = vld [vmem:[%s464 + $0x54] sm:$0xf]
        %v492 = vld [vmem:[%s464 + $0x58] sm:$0xf]
        %v493 = vld [vmem:[%s464 + $0x5c] sm:$0xf]
        %v494 = vld [vmem:[%s464 + $0x60] sm:$0xf]
        %v495 = vld [vmem:[%s464 + $0x64] sm:$0xf]
        %v496 = vld [vmem:[%s464 + $0x68] sm:$0xf]
        %v497 = vld [vmem:[%s464 + $0x6c] sm:$0xf]
        %v498 = vld [vmem:[%s464 + $0x70] sm:$0xf]
        %v499 = vld [vmem:[%s464 + $0x74] sm:$0xf]
        %v500 = vld [vmem:[%s464 + $0x78] sm:$0xf]
        %v501 = vld [vmem:[%s464 + $0x7c] sm:$0xf]
        %v534 = vunpack.c.l.b16 %v470
        %v535 = vunpack.c.l.b16 %v471
        %v536 = vunpack.c.l.b16 %v472
        %v537 = vunpack.c.l.b16 %v473
        %v538 = vunpack.c.l.b16 %v474
        %v539 = vunpack.c.l.b16 %v475
        %v540 = vunpack.c.l.b16 %v476
        %v541 = vunpack.c.l.b16 %v477
        %v542 = vunpack.c.l.b16 %v478
        %v543 = vunpack.c.l.b16 %v479
        %v544 = vunpack.c.l.b16 %v480
        %v545 = vunpack.c.l.b16 %v481
        %v546 = vunpack.c.l.b16 %v482
        %v547 = vunpack.c.l.b16 %v483
        %v548 = vunpack.c.l.b16 %v484
        %v549 = vunpack.c.l.b16 %v485
        %v550 = vunpack.c.l.b16 %v486
        %v551 = vunpack.c.l.b16 %v487
        %v552 = vunpack.c.l.b16 %v488
        %v553 = vunpack.c.l.b16 %v489
        %v554 = vunpack.c.l.b16 %v490
        %v555 = vunpack.c.l.b16 %v491
        %v556 = vunpack.c.l.b16 %v492
        %v557 = vunpack.c.l.b16 %v493
        %v558 = vunpack.c.l.b16 %v494
        %v559 = vunpack.c.l.b16 %v495
        %v560 = vunpack.c.l.b16 %v496
        %v561 = vunpack.c.l.b16 %v497
        %v562 = vunpack.c.l.b16 %v498
        %v563 = vunpack.c.l.b16 %v499
        %v564 = vunpack.c.l.b16 %v500
        %v565 = vunpack.c.l.b16 %v501
        %v566 = vpack.c.b16 %v535, %v534
        %v567 = vpack.c.b16 %v537, %v536
        %v568 = vpack.c.b16 %v539, %v538
        %v569 = vpack.c.b16 %v541, %v540
        %v570 = vpack.c.b16 %v543, %v542
        %v571 = vpack.c.b16 %v545, %v544
        %v572 = vpack.c.b16 %v547, %v546
        %v573 = vpack.c.b16 %v549, %v548
        %v574 = vpack.c.b16 %v551, %v550
        %v575 = vpack.c.b16 %v553, %v552
        %v576 = vpack.c.b16 %v555, %v554
        %v577 = vpack.c.b16 %v557, %v556
        %v578 = vpack.c.b16 %v559, %v558
        %v579 = vpack.c.b16 %v561, %v560
        %v580 = vpack.c.b16 %v563, %v562
        %v581 = vpack.c.b16 %v565, %v564
        %v586 = vunpack.c.l.b16 %v466
        %v587 = vunpack.c.l.b16 %v467
        %v588 = vunpack.c.l.b16 %v468
        %v589 = vunpack.c.l.b16 %v469
        %v590 = vpack.c.b16 %v587, %v586
        %v591 = vpack.c.b16 %v589, %v588
        %vm593 = vcmask 220160
        %v595 = vsel %vm593, %v566, 0
        %v598 = vsel %vm593, %v567, 0
        %v601 = vsel %vm593, %v568, 0
        %v604 = vsel %vm593, %v569, 0
        %v607 = vsel %vm593, %v570, 0
        %v610 = vsel %vm593, %v571, 0
        %v613 = vsel %vm593, %v572, 0
        %v616 = vsel %vm593, %v573, 0
        %v619 = vsel %vm593, %v574, 0
        %v622 = vsel %vm593, %v575, 0
        %v625 = vsel %vm593, %v576, 0
        %v628 = vsel %vm593, %v577, 0
        %v631 = vsel %vm593, %v578, 0
        %v634 = vsel %vm593, %v579, 0
        %v637 = vsel %vm593, %v580, 0
        %v640 = vsel %vm593, %v581, 0
        %vm642 = vcmask 1044480
        %vm643 = vcmask 1045504
        %v644 = vsel %vm642, 4294967295, 65535
        %v645 = vsel %vm643, %v644, 0
        %v647 = vand.u32 %v591, %v645
        %649 = vmatprep.subr.bf16.mxu0 0
        %650 = vmatpush1.bf16.msra.mxu0 0
        %651 = vmatprep.subr.bf16.mxu0 0
        %652 = vmatpush1.bf16.msra.mxu0 0
        %653 = vmatprep.subr.bf16.mxu0 0
        %654 = vmatpush1.bf16.msra.mxu0 0
        %655 = vmatprep.subr.bf16.mxu0 0
        %656 = vmatpush1.bf16.msra.mxu0 0
        %657 = vmatprep.subr.bf16.mxu0 0
        %658 = vmatpush1.bf16.msra.mxu0 0
        %659 = vmatprep.subr.bf16.mxu0 0
        %660 = vmatpush1.bf16.msra.mxu0 0
        %661 = vmatprep.subr.bf16.mxu0 0
        %662 = vmatpush1.bf16.msra.mxu0 %v647
        %663 = vmatprep.subr.bf16.mxu0 0
        %664 = vmatpush1.bf16.msra.mxu0 %v590
        %665 = vmatprep.subr.bf16.mxu0 0
        %666 = vmatpush2.bf16.msra.mxu0 0
        %667 = vmatprep.subr.bf16.mxu0 0
        %668 = vmatpush2.bf16.msra.mxu0 0
        %669 = vmatprep.subr.bf16.mxu0 0
        %670 = vmatpush2.bf16.msra.mxu0 0
        %671 = vmatprep.subr.bf16.mxu0 0
        %672 = vmatpush2.bf16.msra.mxu0 0
        %673 = vmatprep.subr.bf16.mxu0 0
        %674 = vmatpush2.bf16.msra.mxu0 0
        %675 = vmatprep.subr.bf16.mxu0 0
        %676 = vmatpush2.bf16.msra.mxu0 0
        %677 = vmatprep.subr.bf16.mxu0 0
        %678 = vmatpush2.bf16.msra.mxu0 0
        %679 = vmatprep.subr.bf16.mxu0 0
        %680 = vmatpush2.bf16.msra.mxu0 0
        %681 = vmatprep.mubr.bf16.mxu0 0
        %682 = vmatmul.mubr.bf16.gmra.mxu0 %v595
        %v683 = vpop.f32.mrf.mxu0
        %v684 = vadd.f32 0.0, %v683
        %v685 = vpop.f32.mrf.mxu0
        %v686 = vpop.f32.mrf.mxu0
        %v687 = vadd.f32 0.0, %v686
        %v688 = vpop.f32.mrf.mxu0
        %689 = vmatprep.mubr.bf16.mxu0 0
        %690 = vmatmul.mubr.bf16.gmra.mxu0 %v598
        %v691 = vpop.f32.mrf.mxu0
        %v692 = vadd.f32 0.0, %v691
        %v693 = vpop.f32.mrf.mxu0
        %v694 = vpop.f32.mrf.mxu0
        %v695 = vadd.f32 0.0, %v694
        %v696 = vpop.f32.mrf.mxu0
        %697 = vmatprep.mubr.bf16.mxu0 0
        %698 = vmatmul.mubr.bf16.gmra.mxu0 %v601
        %v699 = vpop.f32.mrf.mxu0
        %v700 = vadd.f32 0.0, %v699
        %v701 = vpop.f32.mrf.mxu0
        %v702 = vpop.f32.mrf.mxu0
        %v703 = vadd.f32 0.0, %v702
        %v704 = vpop.f32.mrf.mxu0
        %705 = vmatprep.mubr.bf16.mxu0 0
        %706 = vmatmul.mubr.bf16.gmra.mxu0 %v604
        %v707 = vpop.f32.mrf.mxu0
        %v708 = vadd.f32 0.0, %v707
        %v709 = vpop.f32.mrf.mxu0
        %v710 = vpop.f32.mrf.mxu0
        %v711 = vadd.f32 0.0, %v710
        %v712 = vpop.f32.mrf.mxu0
        %713 = vmatprep.mubr.bf16.mxu0 0
        %714 = vmatmul.mubr.bf16.gmra.mxu0 %v607
        %v715 = vpop.f32.mrf.mxu0
        %v716 = vadd.f32 0.0, %v715
        %v717 = vpop.f32.mrf.mxu0
        %v718 = vpop.f32.mrf.mxu0
        %v719 = vadd.f32 0.0, %v718
        %v720 = vpop.f32.mrf.mxu0
        %721 = vmatprep.mubr.bf16.mxu0 0
        %722 = vmatmul.mubr.bf16.gmra.mxu0 %v610
        %v723 = vpop.f32.mrf.mxu0
        %v724 = vadd.f32 0.0, %v723
        %v725 = vpop.f32.mrf.mxu0
        %v726 = vpop.f32.mrf.mxu0
        %v727 = vadd.f32 0.0, %v726
        %v728 = vpop.f32.mrf.mxu0
        %729 = vmatprep.mubr.bf16.mxu0 0
        %730 = vmatmul.mubr.bf16.gmra.mxu0 %v613
        %v731 = vpop.f32.mrf.mxu0
        %v732 = vadd.f32 0.0, %v731
        %v733 = vpop.f32.mrf.mxu0
        %v734 = vpop.f32.mrf.mxu0
        %v735 = vadd.f32 0.0, %v734
        %v736 = vpop.f32.mrf.mxu0
        %737 = vmatprep.mubr.bf16.mxu0 0
        %738 = vmatmul.mubr.bf16.gmra.mxu0 %v616
        %v739 = vpop.f32.mrf.mxu0
        %v740 = vadd.f32 0.0, %v739
        %v741 = vpop.f32.mrf.mxu0
        %v742 = vpop.f32.mrf.mxu0
        %v743 = vadd.f32 0.0, %v742
        %v744 = vpop.f32.mrf.mxu0
        %745 = vmatprep.mubr.bf16.mxu0 0
        %746 = vmatmul.mubr.bf16.gmra.mxu0 %v619
        %v747 = vpop.f32.mrf.mxu0
        %v748 = vadd.f32 0.0, %v747
        %v749 = vpop.f32.mrf.mxu0
        %v750 = vpop.f32.mrf.mxu0
        %v751 = vadd.f32 0.0, %v750
        %v752 = vpop.f32.mrf.mxu0
        %753 = vmatprep.mubr.bf16.mxu0 0
        %754 = vmatmul.mubr.bf16.gmra.mxu0 %v622
        %v755 = vpop.f32.mrf.mxu0
        %v756 = vadd.f32 0.0, %v755
        %v757 = vpop.f32.mrf.mxu0
        %v758 = vpop.f32.mrf.mxu0
        %v759 = vadd.f32 0.0, %v758
        %v760 = vpop.f32.mrf.mxu0
        %761 = vmatprep.mubr.bf16.mxu0 0
        %762 = vmatmul.mubr.bf16.gmra.mxu0 %v625
        %v763 = vpop.f32.mrf.mxu0
        %v764 = vadd.f32 0.0, %v763
        %v765 = vpop.f32.mrf.mxu0
        %v766 = vpop.f32.mrf.mxu0
        %v767 = vadd.f32 0.0, %v766
        %v768 = vpop.f32.mrf.mxu0
        %769 = vmatprep.mubr.bf16.mxu0 0
        %770 = vmatmul.mubr.bf16.gmra.mxu0 %v628
        %v771 = vpop.f32.mrf.mxu0
        %v772 = vadd.f32 0.0, %v771
        %v773 = vpop.f32.mrf.mxu0
        %v774 = vpop.f32.mrf.mxu0
        %v775 = vadd.f32 0.0, %v774
        %v776 = vpop.f32.mrf.mxu0
        %777 = vmatprep.mubr.bf16.mxu0 0
        %778 = vmatmul.mubr.bf16.gmra.mxu0 %v631
        %v779 = vpop.f32.mrf.mxu0
        %v780 = vadd.f32 0.0, %v779
        %v781 = vpop.f32.mrf.mxu0
        %v782 = vpop.f32.mrf.mxu0
        %v783 = vadd.f32 0.0, %v782
        %v784 = vpop.f32.mrf.mxu0
        %785 = vmatprep.mubr.bf16.mxu0 0
        %786 = vmatmul.mubr.bf16.gmra.mxu0 %v634
        %v787 = vpop.f32.mrf.mxu0
        %v788 = vadd.f32 0.0, %v787
        %v789 = vpop.f32.mrf.mxu0
        %v790 = vpop.f32.mrf.mxu0
        %v791 = vadd.f32 0.0, %v790
        %v792 = vpop.f32.mrf.mxu0
        %793 = vmatprep.mubr.bf16.mxu0 0
        %794 = vmatmul.mubr.bf16.gmra.mxu0 %v637
        %v795 = vpop.f32.mrf.mxu0
        %v796 = vadd.f32 0.0, %v795
        %v797 = vpop.f32.mrf.mxu0
        %v798 = vpop.f32.mrf.mxu0
        %v799 = vadd.f32 0.0, %v798
        %v800 = vpop.f32.mrf.mxu0
        %801 = vmatprep.mubr.bf16.mxu0 0
        %802 = vmatmul.mubr.bf16.gmra.mxu0 %v640
        %v803 = vpop.f32.mrf.mxu0
        %v804 = vadd.f32 0.0, %v803
        %v805 = vpop.f32.mrf.mxu0
        %v806 = vpop.f32.mrf.mxu0
        %v807 = vadd.f32 0.0, %v806
        %v808 = vpop.f32.mrf.mxu0
        %809 = vdwg.mxu0
        %vm810 = vcmask 261120
        %811 = vst.msk [vmem:[#allocation2] sm:$0xff] %vm810, %v684
        %812 = vst.msk [vmem:[#allocation2 + $0x8] sm:$0xff] %vm810, %v687
        %813 = vst.msk [vmem:[#allocation2 + $0x10] sm:$0xff] %vm810, %v692
        %814 = vst.msk [vmem:[#allocation2 + $0x18] sm:$0xff] %vm810, %v695
        %815 = vst.msk [vmem:[#allocation2 + $0x20] sm:$0xff] %vm810, %v700
        %816 = vst.msk [vmem:[#allocation2 + $0x28] sm:$0xff] %vm810, %v703
        %817 = vst.msk [vmem:[#allocation2 + $0x30] sm:$0xff] %vm810, %v708
        %818 = vst.msk [vmem:[#allocation2 + $0x38] sm:$0xff] %vm810, %v711
        %819 = vst.msk [vmem:[#allocation2 + $0x40] sm:$0xff] %vm810, %v716
        %820 = vst.msk [vmem:[#allocation2 + $0x48] sm:$0xff] %vm810, %v719
        %821 = vst.msk [vmem:[#allocation2 + $0x50] sm:$0xff] %vm810, %v724
        %822 = vst.msk [vmem:[#allocation2 + $0x58] sm:$0xff] %vm810, %v727
        %823 = vst.msk [vmem:[#allocation2 + $0x60] sm:$0xff] %vm810, %v732
        %824 = vst.msk [vmem:[#allocation2 + $0x68] sm:$0xff] %vm810, %v735
        %825 = vst.msk [vmem:[#allocation2 + $0x70] sm:$0xff] %vm810, %v740
        %826 = vst.msk [vmem:[#allocation2 + $0x78] sm:$0xff] %vm810, %v743
        %827 = vst.msk [vmem:[#allocation2 + $0x80] sm:$0xff] %vm810, %v748
        %828 = vst.msk [vmem:[#allocation2 + $0x88] sm:$0xff] %vm810, %v751
        %829 = vst.msk [vmem:[#allocation2 + $0x90] sm:$0xff] %vm810, %v756
        %830 = vst.msk [vmem:[#allocation2 + $0x98] sm:$0xff] %vm810, %v759
        %831 = vst.msk [vmem:[#allocation2 + $0xa0] sm:$0xff] %vm810, %v764
        %832 = vst.msk [vmem:[#allocation2 + $0xa8] sm:$0xff] %vm810, %v767
        %833 = vst.msk [vmem:[#allocation2 + $0xb0] sm:$0xff] %vm810, %v772
        %834 = vst.msk [vmem:[#allocation2 + $0xb8] sm:$0xff] %vm810, %v775
        %835 = vst.msk [vmem:[#allocation2 + $0xc0] sm:$0xff] %vm810, %v780
        %836 = vst.msk [vmem:[#allocation2 + $0xc8] sm:$0xff] %vm810, %v783
        %837 = vst.msk [vmem:[#allocation2 + $0xd0] sm:$0xff] %vm810, %v788
        %838 = vst.msk [vmem:[#allocation2 + $0xd8] sm:$0xff] %vm810, %v791
        %839 = vst.msk [vmem:[#allocation2 + $0xe0] sm:$0xff] %vm810, %v796
        %840 = vst.msk [vmem:[#allocation2 + $0xe8] sm:$0xff] %vm810, %v799
        %841 = vst.msk [vmem:[#allocation2 + $0xf0] sm:$0xff] %vm810, %v804
        %842 = vst.msk [vmem:[#allocation2 + $0xf8] sm:$0xff] %vm810, %v807
        %v843 = vld [vmem:[%s464 + $0x80] sm:$0xf]
        %v844 = vld [vmem:[%s464 + $0x84] sm:$0xf]
        %v845 = vld [vmem:[%s464 + $0x88] sm:$0xf]
        %v846 = vld [vmem:[%s464 + $0x8c] sm:$0xf]
        %v847 = vld [vmem:[%s464 + $0x90] sm:$0xf]
        %v848 = vld [vmem:[%s464 + $0x94] sm:$0xf]
        %v849 = vld [vmem:[%s464 + $0x98] sm:$0xf]
        %v850 = vld [vmem:[%s464 + $0x9c] sm:$0xf]
        %v851 = vld [vmem:[%s464 + $0xa0] sm:$0xf]
        %v852 = vld [vmem:[%s464 + $0xa4] sm:$0xf]
        %v853 = vld [vmem:[%s464 + $0xa8] sm:$0xf]
        %v854 = vld [vmem:[%s464 + $0xac] sm:$0xf]
        %v855 = vld [vmem:[%s464 + $0xb0] sm:$0xf]
        %v856 = vld [vmem:[%s464 + $0xb4] sm:$0xf]
        %v857 = vld [vmem:[%s464 + $0xb8] sm:$0xf]
        %v858 = vld [vmem:[%s464 + $0xbc] sm:$0xf]
        %v859 = vld [vmem:[%s464 + $0xc0] sm:$0xf]
        %v860 = vld [vmem:[%s464 + $0xc4] sm:$0xf]
        %v861 = vld [vmem:[%s464 + $0xc8] sm:$0xf]
        %v862 = vld [vmem:[%s464 + $0xcc] sm:$0xf]
        %v863 = vld [vmem:[%s464 + $0xd0] sm:$0xf]
        %v864 = vld [vmem:[%s464 + $0xd4] sm:$0xf]
        %v865 = vld [vmem:[%s464 + $0xd8] sm:$0xf]
        %v866 = vld [vmem:[%s464 + $0xdc] sm:$0xf]
        %v867 = vld [vmem:[%s464 + $0xe0] sm:$0xf]
        %v868 = vld [vmem:[%s464 + $0xe4] sm:$0xf]
        %v869 = vld [vmem:[%s464 + $0xe8] sm:$0xf]
        %v870 = vld [vmem:[%s464 + $0xec] sm:$0xf]
        %v871 = vld [vmem:[%s464 + $0xf0] sm:$0xf]
        %v872 = vld [vmem:[%s464 + $0xf4] sm:$0xf]
        %v873 = vld [vmem:[%s464 + $0xf8] sm:$0xf]
        %v874 = vld [vmem:[%s464 + $0xfc] sm:$0xf]
        %v907 = vunpack.c.l.b16 %v843
        %v908 = vunpack.c.l.b16 %v844
        %v909 = vunpack.c.l.b16 %v845
        %v910 = vunpack.c.l.b16 %v846
        %v911 = vunpack.c.l.b16 %v847
        %v912 = vunpack.c.l.b16 %v848
        %v913 = vunpack.c.l.b16 %v849
        %v914 = vunpack.c.l.b16 %v850
        %v915 = vunpack.c.l.b16 %v851
        %v916 = vunpack.c.l.b16 %v852
        %v917 = vunpack.c.l.b16 %v853
        %v918 = vunpack.c.l.b16 %v854
        %v919 = vunpack.c.l.b16 %v855
        %v920 = vunpack.c.l.b16 %v856
        %v921 = vunpack.c.l.b16 %v857
        %v922 = vunpack.c.l.b16 %v858
        %v923 = vunpack.c.l.b16 %v859
        %v924 = vunpack.c.l.b16 %v860
        %v925 = vunpack.c.l.b16 %v861
        %v926 = vunpack.c.l.b16 %v862
        %v927 = vunpack.c.l.b16 %v863
        %v928 = vunpack.c.l.b16 %v864
        %v929 = vunpack.c.l.b16 %v865
        %v930 = vunpack.c.l.b16 %v866
        %v931 = vunpack.c.l.b16 %v867
        %v932 = vunpack.c.l.b16 %v868
        %v933 = vunpack.c.l.b16 %v869
        %v934 = vunpack.c.l.b16 %v870
        %v935 = vunpack.c.l.b16 %v871
        %v936 = vunpack.c.l.b16 %v872
        %v937 = vunpack.c.l.b16 %v873
        %v938 = vunpack.c.l.b16 %v874
        %v939 = vpack.c.b16 %v908, %v907
        %v940 = vpack.c.b16 %v910, %v909
        %v941 = vpack.c.b16 %v912, %v911
        %v942 = vpack.c.b16 %v914, %v913
        %v943 = vpack.c.b16 %v916, %v915
        %v944 = vpack.c.b16 %v918, %v917
        %v945 = vpack.c.b16 %v920, %v919
        %v946 = vpack.c.b16 %v922, %v921
        %v947 = vpack.c.b16 %v924, %v923
        %v948 = vpack.c.b16 %v926, %v925
        %v949 = vpack.c.b16 %v928, %v927
        %v950 = vpack.c.b16 %v930, %v929
        %v951 = vpack.c.b16 %v932, %v931
        %v952 = vpack.c.b16 %v934, %v933
        %v953 = vpack.c.b16 %v936, %v935
        %v954 = vpack.c.b16 %v938, %v937
        %v956 = vsel %vm593, %v939, 0
        %v959 = vsel %vm593, %v940, 0
        %v962 = vsel %vm593, %v941, 0
        %v965 = vsel %vm593, %v942, 0
        %v968 = vsel %vm593, %v943, 0
        %v971 = vsel %vm593, %v944, 0
        %v974 = vsel %vm593, %v945, 0
        %v977 = vsel %vm593, %v946, 0
        %v980 = vsel %vm593, %v947, 0
        %v983 = vsel %vm593, %v948, 0
        %v986 = vsel %vm593, %v949, 0
        %v989 = vsel %vm593, %v950, 0
        %v992 = vsel %vm593, %v951, 0
        %v995 = vsel %vm593, %v952, 0
        %v998 = vsel %vm593, %v953, 0
        %v1001 = vsel %vm593, %v954, 0
        %1003 = vmatprep.subr.bf16.mxu0 0
        %1004 = vmatpush1.bf16.msra.mxu0 0
        %1005 = vmatprep.subr.bf16.mxu0 0
        %1006 = vmatpush1.bf16.msra.mxu0 0
        %1007 = vmatprep.subr.bf16.mxu0 0
        %1008 = vmatpush1.bf16.msra.mxu0 0
        %1009 = vmatprep.subr.bf16.mxu0 0
        %1010 = vmatpush1.bf16.msra.mxu0 0
        %1011 = vmatprep.subr.bf16.mxu0 0
        %1012 = vmatpush1.bf16.msra.mxu0 0
        %1013 = vmatprep.subr.bf16.mxu0 0
        %1014 = vmatpush1.bf16.msra.mxu0 0
        %1015 = vmatprep.subr.bf16.mxu0 0
        %1016 = vmatpush1.bf16.msra.mxu0 %v647
        %1017 = vmatprep.subr.bf16.mxu0 0
        %1018 = vmatpush1.bf16.msra.mxu0 %v590
        %1019 = vmatprep.subr.bf16.mxu0 0
        %1020 = vmatpush2.bf16.msra.mxu0 0
        %1021 = vmatprep.subr.bf16.mxu0 0
        %1022 = vmatpush2.bf16.msra.mxu0 0
        %1023 = vmatprep.subr.bf16.mxu0 0
        %1024 = vmatpush2.bf16.msra.mxu0 0
        %1025 = vmatprep.subr.bf16.mxu0 0
        %1026 = vmatpush2.bf16.msra.mxu0 0
        %1027 = vmatprep.subr.bf16.mxu0 0
        %1028 = vmatpush2.bf16.msra.mxu0 0
        %1029 = vmatprep.subr.bf16.mxu0 0
        %1030 = vmatpush2.bf16.msra.mxu0 0
        %1031 = vmatprep.subr.bf16.mxu0 0
        %1032 = vmatpush2.bf16.msra.mxu0 0
        %1033 = vmatprep.subr.bf16.mxu0 0
        %1034 = vmatpush2.bf16.msra.mxu0 0
        %1035 = vmatprep.mubr.bf16.mxu0 0
        %1036 = vmatmul.mubr.bf16.gmra.mxu0 %v956
        %v1037 = vpop.f32.mrf.mxu0
        %v1038 = vadd.f32 0.0, %v1037
        %v1039 = vpop.f32.mrf.mxu0
        %v1040 = vpop.f32.mrf.mxu0
        %v1041 = vadd.f32 0.0, %v1040
        %v1042 = vpop.f32.mrf.mxu0
        %1043 = vmatprep.mubr.bf16.mxu0 0
        %1044 = vmatmul.mubr.bf16.gmra.mxu0 %v959
        %v1045 = vpop.f32.mrf.mxu0
        %v1046 = vadd.f32 0.0, %v1045
        %v1047 = vpop.f32.mrf.mxu0
        %v1048 = vpop.f32.mrf.mxu0
        %v1049 = vadd.f32 0.0, %v1048
        %v1050 = vpop.f32.mrf.mxu0
        %1051 = vmatprep.mubr.bf16.mxu0 0
        %1052 = vmatmul.mubr.bf16.gmra.mxu0 %v962
        %v1053 = vpop.f32.mrf.mxu0
        %v1054 = vadd.f32 0.0, %v1053
        %v1055 = vpop.f32.mrf.mxu0
        %v1056 = vpop.f32.mrf.mxu0
        %v1057 = vadd.f32 0.0, %v1056
        %v1058 = vpop.f32.mrf.mxu0
        %1059 = vmatprep.mubr.bf16.mxu0 0
        %1060 = vmatmul.mubr.bf16.gmra.mxu0 %v965
        %v1061 = vpop.f32.mrf.mxu0
        %v1062 = vadd.f32 0.0, %v1061
        %v1063 = vpop.f32.mrf.mxu0
        %v1064 = vpop.f32.mrf.mxu0
        %v1065 = vadd.f32 0.0, %v1064
        %v1066 = vpop.f32.mrf.mxu0
        %1067 = vmatprep.mubr.bf16.mxu0 0
        %1068 = vmatmul.mubr.bf16.gmra.mxu0 %v968
        %v1069 = vpop.f32.mrf.mxu0
        %v1070 = vadd.f32 0.0, %v1069
        %v1071 = vpop.f32.mrf.mxu0
        %v1072 = vpop.f32.mrf.mxu0
        %v1073 = vadd.f32 0.0, %v1072
        %v1074 = vpop.f32.mrf.mxu0
        %1075 = vmatprep.mubr.bf16.mxu0 0
        %1076 = vmatmul.mubr.bf16.gmra.mxu0 %v971
        %v1077 = vpop.f32.mrf.mxu0
        %v1078 = vadd.f32 0.0, %v1077
        %v1079 = vpop.f32.mrf.mxu0
        %v1080 = vpop.f32.mrf.mxu0
        %v1081 = vadd.f32 0.0, %v1080
        %v1082 = vpop.f32.mrf.mxu0
        %1083 = vmatprep.mubr.bf16.mxu0 0
        %1084 = vmatmul.mubr.bf16.gmra.mxu0 %v974
        %v1085 = vpop.f32.mrf.mxu0
        %v1086 = vadd.f32 0.0, %v1085
        %v1087 = vpop.f32.mrf.mxu0
        %v1088 = vpop.f32.mrf.mxu0
        %v1089 = vadd.f32 0.0, %v1088
        %v1090 = vpop.f32.mrf.mxu0
        %1091 = vmatprep.mubr.bf16.mxu0 0
        %1092 = vmatmul.mubr.bf16.gmra.mxu0 %v977
        %v1093 = vpop.f32.mrf.mxu0
        %v1094 = vadd.f32 0.0, %v1093
        %v1095 = vpop.f32.mrf.mxu0
        %v1096 = vpop.f32.mrf.mxu0
        %v1097 = vadd.f32 0.0, %v1096
        %v1098 = vpop.f32.mrf.mxu0
        %1099 = vmatprep.mubr.bf16.mxu0 0
        %1100 = vmatmul.mubr.bf16.gmra.mxu0 %v980
        %v1101 = vpop.f32.mrf.mxu0
        %v1102 = vadd.f32 0.0, %v1101
        %v1103 = vpop.f32.mrf.mxu0
        %v1104 = vpop.f32.mrf.mxu0
        %v1105 = vadd.f32 0.0, %v1104
        %v1106 = vpop.f32.mrf.mxu0
        %1107 = vmatprep.mubr.bf16.mxu0 0
        %1108 = vmatmul.mubr.bf16.gmra.mxu0 %v983
        %v1109 = vpop.f32.mrf.mxu0
        %v1110 = vadd.f32 0.0, %v1109
        %v1111 = vpop.f32.mrf.mxu0
        %v1112 = vpop.f32.mrf.mxu0
        %v1113 = vadd.f32 0.0, %v1112
        %v1114 = vpop.f32.mrf.mxu0
        %1115 = vmatprep.mubr.bf16.mxu0 0
        %1116 = vmatmul.mubr.bf16.gmra.mxu0 %v986
        %v1117 = vpop.f32.mrf.mxu0
        %v1118 = vadd.f32 0.0, %v1117
        %v1119 = vpop.f32.mrf.mxu0
        %v1120 = vpop.f32.mrf.mxu0
        %v1121 = vadd.f32 0.0, %v1120
        %v1122 = vpop.f32.mrf.mxu0
        %1123 = vmatprep.mubr.bf16.mxu0 0
        %1124 = vmatmul.mubr.bf16.gmra.mxu0 %v989
        %v1125 = vpop.f32.mrf.mxu0
        %v1126 = vadd.f32 0.0, %v1125
        %v1127 = vpop.f32.mrf.mxu0
        %v1128 = vpop.f32.mrf.mxu0
        %v1129 = vadd.f32 0.0, %v1128
        %v1130 = vpop.f32.mrf.mxu0
        %1131 = vmatprep.mubr.bf16.mxu0 0
        %1132 = vmatmul.mubr.bf16.gmra.mxu0 %v992
        %v1133 = vpop.f32.mrf.mxu0
        %v1134 = vadd.f32 0.0, %v1133
        %v1135 = vpop.f32.mrf.mxu0
        %v1136 = vpop.f32.mrf.mxu0
        %v1137 = vadd.f32 0.0, %v1136
        %v1138 = vpop.f32.mrf.mxu0
        %1139 = vmatprep.mubr.bf16.mxu0 0
        %1140 = vmatmul.mubr.bf16.gmra.mxu0 %v995
        %v1141 = vpop.f32.mrf.mxu0
        %v1142 = vadd.f32 0.0, %v1141
        %v1143 = vpop.f32.mrf.mxu0
        %v1144 = vpop.f32.mrf.mxu0
        %v1145 = vadd.f32 0.0, %v1144
        %v1146 = vpop.f32.mrf.mxu0
        %1147 = vmatprep.mubr.bf16.mxu0 0
        %1148 = vmatmul.mubr.bf16.gmra.mxu0 %v998
        %v1149 = vpop.f32.mrf.mxu0
        %v1150 = vadd.f32 0.0, %v1149
        %v1151 = vpop.f32.mrf.mxu0
        %v1152 = vpop.f32.mrf.mxu0
        %v1153 = vadd.f32 0.0, %v1152
        %v1154 = vpop.f32.mrf.mxu0
        %1155 = vmatprep.mubr.bf16.mxu0 0
        %1156 = vmatmul.mubr.bf16.gmra.mxu0 %v1001
        %v1157 = vpop.f32.mrf.mxu0
        %v1158 = vadd.f32 0.0, %v1157
        %v1159 = vpop.f32.mrf.mxu0
        %v1160 = vpop.f32.mrf.mxu0
        %v1161 = vadd.f32 0.0, %v1160
        %v1162 = vpop.f32.mrf.mxu0
        %1163 = vdwg.mxu0
        %1164 = vst.msk [vmem:[#allocation2 + $0x100] sm:$0xff] %vm810, %v1038
        %1165 = vst.msk [vmem:[#allocation2 + $0x108] sm:$0xff] %vm810, %v1041
        %1166 = vst.msk [vmem:[#allocation2 + $0x110] sm:$0xff] %vm810, %v1046
        %1167 = vst.msk [vmem:[#allocation2 + $0x118] sm:$0xff] %vm810, %v1049
        %1168 = vst.msk [vmem:[#allocation2 + $0x120] sm:$0xff] %vm810, %v1054
        %1169 = vst.msk [vmem:[#allocation2 + $0x128] sm:$0xff] %vm810, %v1057
        %1170 = vst.msk [vmem:[#allocation2 + $0x130] sm:$0xff] %vm810, %v1062
        %1171 = vst.msk [vmem:[#allocation2 + $0x138] sm:$0xff] %vm810, %v1065
        %1172 = vst.msk [vmem:[#allocation2 + $0x140] sm:$0xff] %vm810, %v1070
        %1173 = vst.msk [vmem:[#allocation2 + $0x148] sm:$0xff] %vm810, %v1073
        %1174 = vst.msk [vmem:[#allocation2 + $0x150] sm:$0xff] %vm810, %v1078
        %1175 = vst.msk [vmem:[#allocation2 + $0x158] sm:$0xff] %vm810, %v1081
        %1176 = vst.msk [vmem:[#allocation2 + $0x160] sm:$0xff] %vm810, %v1086
        %1177 = vst.msk [vmem:[#allocation2 + $0x168] sm:$0xff] %vm810, %v1089
        %1178 = vst.msk [vmem:[#allocation2 + $0x170] sm:$0xff] %vm810, %v1094
        %1179 = vst.msk [vmem:[#allocation2 + $0x178] sm:$0xff] %vm810, %v1097
        %1180 = vst.msk [vmem:[#allocation2 + $0x180] sm:$0xff] %vm810, %v1102
        %1181 = vst.msk [vmem:[#allocation2 + $0x188] sm:$0xff] %vm810, %v1105
        %1182 = vst.msk [vmem:[#allocation2 + $0x190] sm:$0xff] %vm810, %v1110
        %1183 = vst.msk [vmem:[#allocation2 + $0x198] sm:$0xff] %vm810, %v1113
        %1184 = vst.msk [vmem:[#allocation2 + $0x1a0] sm:$0xff] %vm810, %v1118
        %1185 = vst.msk [vmem:[#allocation2 + $0x1a8] sm:$0xff] %vm810, %v1121
        %1186 = vst.msk [vmem:[#allocation2 + $0x1b0] sm:$0xff] %vm810, %v1126
        %1187 = vst.msk [vmem:[#allocation2 + $0x1b8] sm:$0xff] %vm810, %v1129
        %1188 = vst.msk [vmem:[#allocation2 + $0x1c0] sm:$0xff] %vm810, %v1134
        %1189 = vst.msk [vmem:[#allocation2 + $0x1c8] sm:$0xff] %vm810, %v1137
        %1190 = vst.msk [vmem:[#allocation2 + $0x1d0] sm:$0xff] %vm810, %v1142
        %1191 = vst.msk [vmem:[#allocation2 + $0x1d8] sm:$0xff] %vm810, %v1145
        %1192 = vst.msk [vmem:[#allocation2 + $0x1e0] sm:$0xff] %vm810, %v1150
        %1193 = vst.msk [vmem:[#allocation2 + $0x1e8] sm:$0xff] %vm810, %v1153
        %1194 = vst.msk [vmem:[#allocation2 + $0x1f0] sm:$0xff] %vm810, %v1158
        %1195 = vst.msk [vmem:[#allocation2 + $0x1f8] sm:$0xff] %vm810, %v1161
        %v1196 = vld [vmem:[%s464 + $0x100] sm:$0xf]
        %v1197 = vld [vmem:[%s464 + $0x104] sm:$0xf]
        %v1198 = vld [vmem:[%s464 + $0x108] sm:$0xf]
        %v1199 = vld [vmem:[%s464 + $0x10c] sm:$0xf]
        %v1200 = vld [vmem:[%s464 + $0x110] sm:$0xf]
        %v1201 = vld [vmem:[%s464 + $0x114] sm:$0xf]
        %v1202 = vld [vmem:[%s464 + $0x118] sm:$0xf]
        %v1203 = vld [vmem:[%s464 + $0x11c] sm:$0xf]
        %v1204 = vld [vmem:[%s464 + $0x120] sm:$0xf]
        %v1205 = vld [vmem:[%s464 + $0x124] sm:$0xf]
        %v1206 = vld [vmem:[%s464 + $0x128] sm:$0xf]
        %v1207 = vld [vmem:[%s464 + $0x12c] sm:$0xf]
        %v1208 = vld [vmem:[%s464 + $0x130] sm:$0xf]
        %v1209 = vld [vmem:[%s464 + $0x134] sm:$0xf]
        %v1210 = vld [vmem:[%s464 + $0x138] sm:$0xf]
        %v1211 = vld [vmem:[%s464 + $0x13c] sm:$0xf]
        %v1212 = vld [vmem:[%s464 + $0x140] sm:$0xf]
        %v1213 = vld [vmem:[%s464 + $0x144] sm:$0xf]
        %v1214 = vld [vmem:[%s464 + $0x148] sm:$0xf]
        %v1215 = vld [vmem:[%s464 + $0x14c] sm:$0xf]
        %v1216 = vld [vmem:[%s464 + $0x150] sm:$0xf]
        %v1217 = vld [vmem:[%s464 + $0x154] sm:$0xf]
        %v1218 = vld [vmem:[%s464 + $0x158] sm:$0xf]
        %v1219 = vld [vmem:[%s464 + $0x15c] sm:$0xf]
        %v1220 = vld [vmem:[%s464 + $0x160] sm:$0xf]
        %v1221 = vld [vmem:[%s464 + $0x164] sm:$0xf]
        %v1222 = vld [vmem:[%s464 + $0x168] sm:$0xf]
        %v1223 = vld [vmem:[%s464 + $0x16c] sm:$0xf]
        %v1224 = vld [vmem:[%s464 + $0x170] sm:$0xf]
        %v1225 = vld [vmem:[%s464 + $0x174] sm:$0xf]
        %v1226 = vld [vmem:[%s464 + $0x178] sm:$0xf]
        %v1227 = vld [vmem:[%s464 + $0x17c] sm:$0xf]
        %v1260 = vunpack.c.l.b16 %v1196
        %v1261 = vunpack.c.l.b16 %v1197
        %v1262 = vunpack.c.l.b16 %v1198
        %v1263 = vunpack.c.l.b16 %v1199
        %v1264 = vunpack.c.l.b16 %v1200
        %v1265 = vunpack.c.l.b16 %v1201
        %v1266 = vunpack.c.l.b16 %v1202
        %v1267 = vunpack.c.l.b16 %v1203
        %v1268 = vunpack.c.l.b16 %v1204
        %v1269 = vunpack.c.l.b16 %v1205
        %v1270 = vunpack.c.l.b16 %v1206
        %v1271 = vunpack.c.l.b16 %v1207
        %v1272 = vunpack.c.l.b16 %v1208
        %v1273 = vunpack.c.l.b16 %v1209
        %v1274 = vunpack.c.l.b16 %v1210
        %v1275 = vunpack.c.l.b16 %v1211
        %v1276 = vunpack.c.l.b16 %v1212
        %v1277 = vunpack.c.l.b16 %v1213
        %v1278 = vunpack.c.l.b16 %v1214
        %v1279 = vunpack.c.l.b16 %v1215
        %v1280 = vunpack.c.l.b16 %v1216
        %v1281 = vunpack.c.l.b16 %v1217
        %v1282 = vunpack.c.l.b16 %v1218
        %v1283 = vunpack.c.l.b16 %v1219
        %v1284 = vunpack.c.l.b16 %v1220
        %v1285 = vunpack.c.l.b16 %v1221
        %v1286 = vunpack.c.l.b16 %v1222
        %v1287 = vunpack.c.l.b16 %v1223
        %v1288 = vunpack.c.l.b16 %v1224
        %v1289 = vunpack.c.l.b16 %v1225
        %v1290 = vunpack.c.l.b16 %v1226
        %v1291 = vunpack.c.l.b16 %v1227
        %v1292 = vpack.c.b16 %v1261, %v1260
        %v1293 = vpack.c.b16 %v1263, %v1262
        %v1294 = vpack.c.b16 %v1265, %v1264
        %v1295 = vpack.c.b16 %v1267, %v1266
        %v1296 = vpack.c.b16 %v1269, %v1268
        %v1297 = vpack.c.b16 %v1271, %v1270
        %v1298 = vpack.c.b16 %v1273, %v1272
        %v1299 = vpack.c.b16 %v1275, %v1274
        %v1300 = vpack.c.b16 %v1277, %v1276
        %v1301 = vpack.c.b16 %v1279, %v1278
        %v1302 = vpack.c.b16 %v1281, %v1280
        %v1303 = vpack.c.b16 %v1283, %v1282
        %v1304 = vpack.c.b16 %v1285, %v1284
        %v1305 = vpack.c.b16 %v1287, %v1286
        %v1306 = vpack.c.b16 %v1289, %v1288
        %v1307 = vpack.c.b16 %v1291, %v1290
        %v1309 = vsel %vm593, %v1292, 0
        %v1312 = vsel %vm593, %v1293, 0
        %v1315 = vsel %vm593, %v1294, 0
        %v1318 = vsel %vm593, %v1295, 0
        %v1321 = vsel %vm593, %v1296, 0
        %v1324 = vsel %vm593, %v1297, 0
        %v1327 = vsel %vm593, %v1298, 0
        %v1330 = vsel %vm593, %v1299, 0
        %v1333 = vsel %vm593, %v1300, 0
        %v1336 = vsel %vm593, %v1301, 0
        %v1339 = vsel %vm593, %v1302, 0
        %v1342 = vsel %vm593, %v1303, 0
        %v1345 = vsel %vm593, %v1304, 0
        %v1348 = vsel %vm593, %v1305, 0
        %v1351 = vsel %vm593, %v1306, 0
        %v1354 = vsel %vm593, %v1307, 0
        %1356 = vmatprep.subr.bf16.mxu0 0
        %1357 = vmatpush1.bf16.msra.mxu0 0
        %1358 = vmatprep.subr.bf16.mxu0 0
        %1359 = vmatpush1.bf16.msra.mxu0 0
        %1360 = vmatprep.subr.bf16.mxu0 0
        %1361 = vmatpush1.bf16.msra.mxu0 0
        %1362 = vmatprep.subr.bf16.mxu0 0
        %1363 = vmatpush1.bf16.msra.mxu0 0
        %1364 = vmatprep.subr.bf16.mxu0 0
        %1365 = vmatpush1.bf16.msra.mxu0 0
        %1366 = vmatprep.subr.bf16.mxu0 0
        %1367 = vmatpush1.bf16.msra.mxu0 0
        %1368 = vmatprep.subr.bf16.mxu0 0
        %1369 = vmatpush1.bf16.msra.mxu0 %v647
        %1370 = vmatprep.subr.bf16.mxu0 0
        %1371 = vmatpush1.bf16.msra.mxu0 %v590
        %1372 = vmatprep.subr.bf16.mxu0 0
        %1373 = vmatpush2.bf16.msra.mxu0 0
        %1374 = vmatprep.subr.bf16.mxu0 0
        %1375 = vmatpush2.bf16.msra.mxu0 0
        %1376 = vmatprep.subr.bf16.mxu0 0
        %1377 = vmatpush2.bf16.msra.mxu0 0
        %1378 = vmatprep.subr.bf16.mxu0 0
        %1379 = vmatpush2.bf16.msra.mxu0 0
        %1380 = vmatprep.subr.bf16.mxu0 0
        %1381 = vmatpush2.bf16.msra.mxu0 0
        %1382 = vmatprep.subr.bf16.mxu0 0
        %1383 = vmatpush2.bf16.msra.mxu0 0
        %1384 = vmatprep.subr.bf16.mxu0 0
        %1385 = vmatpush2.bf16.msra.mxu0 0
        %1386 = vmatprep.subr.bf16.mxu0 0
        %1387 = vmatpush2.bf16.msra.mxu0 0
        %1388 = vmatprep.mubr.bf16.mxu0 0
        %1389 = vmatmul.mubr.bf16.gmra.mxu0 %v1309
        %v1390 = vpop.f32.mrf.mxu0
        %v1391 = vadd.f32 0.0, %v1390
        %v1392 = vpop.f32.mrf.mxu0
        %v1393 = vpop.f32.mrf.mxu0
        %v1394 = vadd.f32 0.0, %v1393
        %v1395 = vpop.f32.mrf.mxu0
        %1396 = vmatprep.mubr.bf16.mxu0 0
        %1397 = vmatmul.mubr.bf16.gmra.mxu0 %v1312
        %v1398 = vpop.f32.mrf.mxu0
        %v1399 = vadd.f32 0.0, %v1398
        %v1400 = vpop.f32.mrf.mxu0
        %v1401 = vpop.f32.mrf.mxu0
        %v1402 = vadd.f32 0.0, %v1401
        %v1403 = vpop.f32.mrf.mxu0
        %1404 = vmatprep.mubr.bf16.mxu0 0
        %1405 = vmatmul.mubr.bf16.gmra.mxu0 %v1315
        %v1406 = vpop.f32.mrf.mxu0
        %v1407 = vadd.f32 0.0, %v1406
        %v1408 = vpop.f32.mrf.mxu0
        %v1409 = vpop.f32.mrf.mxu0
        %v1410 = vadd.f32 0.0, %v1409
        %v1411 = vpop.f32.mrf.mxu0
        %1412 = vmatprep.mubr.bf16.mxu0 0
        %1413 = vmatmul.mubr.bf16.gmra.mxu0 %v1318
        %v1414 = vpop.f32.mrf.mxu0
        %v1415 = vadd.f32 0.0, %v1414
        %v1416 = vpop.f32.mrf.mxu0
        %v1417 = vpop.f32.mrf.mxu0
        %v1418 = vadd.f32 0.0, %v1417
        %v1419 = vpop.f32.mrf.mxu0
        %1420 = vmatprep.mubr.bf16.mxu0 0
        %1421 = vmatmul.mubr.bf16.gmra.mxu0 %v1321
        %v1422 = vpop.f32.mrf.mxu0
        %v1423 = vadd.f32 0.0, %v1422
        %v1424 = vpop.f32.mrf.mxu0
        %v1425 = vpop.f32.mrf.mxu0
        %v1426 = vadd.f32 0.0, %v1425
        %v1427 = vpop.f32.mrf.mxu0
        %1428 = vmatprep.mubr.bf16.mxu0 0
        %1429 = vmatmul.mubr.bf16.gmra.mxu0 %v1324
        %v1430 = vpop.f32.mrf.mxu0
        %v1431 = vadd.f32 0.0, %v1430
        %v1432 = vpop.f32.mrf.mxu0
        %v1433 = vpop.f32.mrf.mxu0
        %v1434 = vadd.f32 0.0, %v1433
        %v1435 = vpop.f32.mrf.mxu0
        %1436 = vmatprep.mubr.bf16.mxu0 0
        %1437 = vmatmul.mubr.bf16.gmra.mxu0 %v1327
        %v1438 = vpop.f32.mrf.mxu0
        %v1439 = vadd.f32 0.0, %v1438
        %v1440 = vpop.f32.mrf.mxu0
        %v1441 = vpop.f32.mrf.mxu0
        %v1442 = vadd.f32 0.0, %v1441
        %v1443 = vpop.f32.mrf.mxu0
        %1444 = vmatprep.mubr.bf16.mxu0 0
        %1445 = vmatmul.mubr.bf16.gmra.mxu0 %v1330
        %v1446 = vpop.f32.mrf.mxu0
        %v1447 = vadd.f32 0.0, %v1446
        %v1448 = vpop.f32.mrf.mxu0
        %v1449 = vpop.f32.mrf.mxu0
        %v1450 = vadd.f32 0.0, %v1449
        %v1451 = vpop.f32.mrf.mxu0
        %1452 = vmatprep.mubr.bf16.mxu0 0
        %1453 = vmatmul.mubr.bf16.gmra.mxu0 %v1333
        %v1454 = vpop.f32.mrf.mxu0
        %v1455 = vadd.f32 0.0, %v1454
        %v1456 = vpop.f32.mrf.mxu0
        %v1457 = vpop.f32.mrf.mxu0
        %v1458 = vadd.f32 0.0, %v1457
        %v1459 = vpop.f32.mrf.mxu0
        %1460 = vmatprep.mubr.bf16.mxu0 0
        %1461 = vmatmul.mubr.bf16.gmra.mxu0 %v1336
        %v1462 = vpop.f32.mrf.mxu0
        %v1463 = vadd.f32 0.0, %v1462
        %v1464 = vpop.f32.mrf.mxu0
        %v1465 = vpop.f32.mrf.mxu0
        %v1466 = vadd.f32 0.0, %v1465
        %v1467 = vpop.f32.mrf.mxu0
        %1468 = vmatprep.mubr.bf16.mxu0 0
        %1469 = vmatmul.mubr.bf16.gmra.mxu0 %v1339
        %v1470 = vpop.f32.mrf.mxu0
        %v1471 = vadd.f32 0.0, %v1470
        %v1472 = vpop.f32.mrf.mxu0
        %v1473 = vpop.f32.mrf.mxu0
        %v1474 = vadd.f32 0.0, %v1473
        %v1475 = vpop.f32.mrf.mxu0
        %1476 = vmatprep.mubr.bf16.mxu0 0
        %1477 = vmatmul.mubr.bf16.gmra.mxu0 %v1342
        %v1478 = vpop.f32.mrf.mxu0
        %v1479 = vadd.f32 0.0, %v1478
        %v1480 = vpop.f32.mrf.mxu0
        %v1481 = vpop.f32.mrf.mxu0
        %v1482 = vadd.f32 0.0, %v1481
        %v1483 = vpop.f32.mrf.mxu0
        %1484 = vmatprep.mubr.bf16.mxu0 0
        %1485 = vmatmul.mubr.bf16.gmra.mxu0 %v1345
        %v1486 = vpop.f32.mrf.mxu0
        %v1487 = vadd.f32 0.0, %v1486
        %v1488 = vpop.f32.mrf.mxu0
        %v1489 = vpop.f32.mrf.mxu0
        %v1490 = vadd.f32 0.0, %v1489
        %v1491 = vpop.f32.mrf.mxu0
        %1492 = vmatprep.mubr.bf16.mxu0 0
        %1493 = vmatmul.mubr.bf16.gmra.mxu0 %v1348
        %v1494 = vpop.f32.mrf.mxu0
        %v1495 = vadd.f32 0.0, %v1494
        %v1496 = vpop.f32.mrf.mxu0
        %v1497 = vpop.f32.mrf.mxu0
        %v1498 = vadd.f32 0.0, %v1497
        %v1499 = vpop.f32.mrf.mxu0
        %1500 = vmatprep.mubr.bf16.mxu0 0
        %1501 = vmatmul.mubr.bf16.gmra.mxu0 %v1351
        %v1502 = vpop.f32.mrf.mxu0
        %v1503 = vadd.f32 0.0, %v1502
        %v1504 = vpop.f32.mrf.mxu0
        %v1505 = vpop.f32.mrf.mxu0
        %v1506 = vadd.f32 0.0, %v1505
        %v1507 = vpop.f32.mrf.mxu0
        %1508 = vmatprep.mubr.bf16.mxu0 0
        %1509 = vmatmul.mubr.bf16.gmra.mxu0 %v1354
        %v1510 = vpop.f32.mrf.mxu0
        %v1511 = vadd.f32 0.0, %v1510
        %v1512 = vpop.f32.mrf.mxu0
        %v1513 = vpop.f32.mrf.mxu0
        %v1514 = vadd.f32 0.0, %v1513
        %v1515 = vpop.f32.mrf.mxu0
        %1516 = vdwg.mxu0
        %1517 = vst.msk [vmem:[#allocation2 + $0x200] sm:$0xff] %vm810, %v1391
        %1518 = vst.msk [vmem:[#allocation2 + $0x208] sm:$0xff] %vm810, %v1394
        %1519 = vst.msk [vmem:[#allocation2 + $0x210] sm:$0xff] %vm810, %v1399
        %1520 = vst.msk [vmem:[#allocation2 + $0x218] sm:$0xff] %vm810, %v1402
        %1521 = vst.msk [vmem:[#allocation2 + $0x220] sm:$0xff] %vm810, %v1407
        %1522 = vst.msk [vmem:[#allocation2 + $0x228] sm:$0xff] %vm810, %v1410
        %1523 = vst.msk [vmem:[#allocation2 + $0x230] sm:$0xff] %vm810, %v1415
        %1524 = vst.msk [vmem:[#allocation2 + $0x238] sm:$0xff] %vm810, %v1418
        %1525 = vst.msk [vmem:[#allocation2 + $0x240] sm:$0xff] %vm810, %v1423
        %1526 = vst.msk [vmem:[#allocation2 + $0x248] sm:$0xff] %vm810, %v1426
        %1527 = vst.msk [vmem:[#allocation2 + $0x250] sm:$0xff] %vm810, %v1431
        %1528 = vst.msk [vmem:[#allocation2 + $0x258] sm:$0xff] %vm810, %v1434
        %1529 = vst.msk [vmem:[#allocation2 + $0x260] sm:$0xff] %vm810, %v1439
        %1530 = vst.msk [vmem:[#allocation2 + $0x268] sm:$0xff] %vm810, %v1442
        %1531 = vst.msk [vmem:[#allocation2 + $0x270] sm:$0xff] %vm810, %v1447
        %1532 = vst.msk [vmem:[#allocation2 + $0x278] sm:$0xff] %vm810, %v1450
        %1533 = vst.msk [vmem:[#allocation2 + $0x280] sm:$0xff] %vm810, %v1455
        %1534 = vst.msk [vmem:[#allocation2 + $0x288] sm:$0xff] %vm810, %v1458
        %1535 = vst.msk [vmem:[#allocation2 + $0x290] sm:$0xff] %vm810, %v1463
        %1536 = vst.msk [vmem:[#allocation2 + $0x298] sm:$0xff] %vm810, %v1466
        %1537 = vst.msk [vmem:[#allocation2 + $0x2a0] sm:$0xff] %vm810, %v1471
        %1538 = vst.msk [vmem:[#allocation2 + $0x2a8] sm:$0xff] %vm810, %v1474
        %1539 = vst.msk [vmem:[#allocation2 + $0x2b0] sm:$0xff] %vm810, %v1479
        %1540 = vst.msk [vmem:[#allocation2 + $0x2b8] sm:$0xff] %vm810, %v1482
        %1541 = vst.msk [vmem:[#allocation2 + $0x2c0] sm:$0xff] %vm810, %v1487
        %1542 = vst.msk [vmem:[#allocation2 + $0x2c8] sm:$0xff] %vm810, %v1490
        %1543 = vst.msk [vmem:[#allocation2 + $0x2d0] sm:$0xff] %vm810, %v1495
        %1544 = vst.msk [vmem:[#allocation2 + $0x2d8] sm:$0xff] %vm810, %v1498
        %1545 = vst.msk [vmem:[#allocation2 + $0x2e0] sm:$0xff] %vm810, %v1503
        %1546 = vst.msk [vmem:[#allocation2 + $0x2e8] sm:$0xff] %vm810, %v1506
        %1547 = vst.msk [vmem:[#allocation2 + $0x2f0] sm:$0xff] %vm810, %v1511
        %1548 = vst.msk [vmem:[#allocation2 + $0x2f8] sm:$0xff] %vm810, %v1514
        %v1549 = vld [vmem:[%s464 + $0x180] sm:$0xf]
        %v1550 = vld [vmem:[%s464 + $0x184] sm:$0xf]
        %v1551 = vld [vmem:[%s464 + $0x188] sm:$0xf]
        %v1552 = vld [vmem:[%s464 + $0x18c] sm:$0xf]
        %v1553 = vld [vmem:[%s464 + $0x190] sm:$0xf]
        %v1554 = vld [vmem:[%s464 + $0x194] sm:$0xf]
        %v1555 = vld [vmem:[%s464 + $0x198] sm:$0xf]
        %v1556 = vld [vmem:[%s464 + $0x19c] sm:$0xf]
        %v1557 = vld [vmem:[%s464 + $0x1a0] sm:$0xf]
        %v1558 = vld [vmem:[%s464 + $0x1a4] sm:$0xf]
        %v1559 = vld [vmem:[%s464 + $0x1a8] sm:$0xf]
        %v1560 = vld [vmem:[%s464 + $0x1ac] sm:$0xf]
        %v1561 = vld [vmem:[%s464 + $0x1b0] sm:$0xf]
        %v1562 = vld [vmem:[%s464 + $0x1b4] sm:$0xf]
        %v1563 = vld [vmem:[%s464 + $0x1b8] sm:$0xf]
        %v1564 = vld [vmem:[%s464 + $0x1bc] sm:$0xf]
        %v1565 = vld [vmem:[%s464 + $0x1c0] sm:$0xf]
        %v1566 = vld [vmem:[%s464 + $0x1c4] sm:$0xf]
        %v1567 = vld [vmem:[%s464 + $0x1c8] sm:$0xf]
        %v1568 = vld [vmem:[%s464 + $0x1cc] sm:$0xf]
        %v1569 = vld [vmem:[%s464 + $0x1d0] sm:$0xf]
        %v1570 = vld [vmem:[%s464 + $0x1d4] sm:$0xf]
        %v1571 = vld [vmem:[%s464 + $0x1d8] sm:$0xf]
        %v1572 = vld [vmem:[%s464 + $0x1dc] sm:$0xf]
        %v1573 = vld [vmem:[%s464 + $0x1e0] sm:$0xf]
        %v1574 = vld [vmem:[%s464 + $0x1e4] sm:$0xf]
        %v1575 = vld [vmem:[%s464 + $0x1e8] sm:$0xf]
        %v1576 = vld [vmem:[%s464 + $0x1ec] sm:$0xf]
        %v1577 = vld [vmem:[%s464 + $0x1f0] sm:$0xf]
        %v1578 = vld [vmem:[%s464 + $0x1f4] sm:$0xf]
        %v1579 = vld [vmem:[%s464 + $0x1f8] sm:$0xf]
        %v1580 = vld [vmem:[%s464 + $0x1fc] sm:$0xf]
        %v1613 = vunpack.c.l.b16 %v1549
        %v1614 = vunpack.c.l.b16 %v1550
        %v1615 = vunpack.c.l.b16 %v1551
        %v1616 = vunpack.c.l.b16 %v1552
        %v1617 = vunpack.c.l.b16 %v1553
        %v1618 = vunpack.c.l.b16 %v1554
        %v1619 = vunpack.c.l.b16 %v1555
        %v1620 = vunpack.c.l.b16 %v1556
        %v1621 = vunpack.c.l.b16 %v1557
        %v1622 = vunpack.c.l.b16 %v1558
        %v1623 = vunpack.c.l.b16 %v1559
        %v1624 = vunpack.c.l.b16 %v1560
        %v1625 = vunpack.c.l.b16 %v1561
        %v1626 = vunpack.c.l.b16 %v1562
        %v1627 = vunpack.c.l.b16 %v1563
        %v1628 = vunpack.c.l.b16 %v1564
        %v1629 = vunpack.c.l.b16 %v1565
        %v1630 = vunpack.c.l.b16 %v1566
        %v1631 = vunpack.c.l.b16 %v1567
        %v1632 = vunpack.c.l.b16 %v1568
        %v1633 = vunpack.c.l.b16 %v1569
        %v1634 = vunpack.c.l.b16 %v1570
        %v1635 = vunpack.c.l.b16 %v1571
        %v1636 = vunpack.c.l.b16 %v1572
        %v1637 = vunpack.c.l.b16 %v1573
        %v1638 = vunpack.c.l.b16 %v1574
        %v1639 = vunpack.c.l.b16 %v1575
        %v1640 = vunpack.c.l.b16 %v1576
        %v1641 = vunpack.c.l.b16 %v1577
        %v1642 = vunpack.c.l.b16 %v1578
        %v1643 = vunpack.c.l.b16 %v1579
        %v1644 = vunpack.c.l.b16 %v1580
        %v1645 = vpack.c.b16 %v1614, %v1613
        %v1646 = vpack.c.b16 %v1616, %v1615
        %v1647 = vpack.c.b16 %v1618, %v1617
        %v1648 = vpack.c.b16 %v1620, %v1619
        %v1649 = vpack.c.b16 %v1622, %v1621
        %v1650 = vpack.c.b16 %v1624, %v1623
        %v1651 = vpack.c.b16 %v1626, %v1625
        %v1652 = vpack.c.b16 %v1628, %v1627
        %v1653 = vpack.c.b16 %v1630, %v1629
        %v1654 = vpack.c.b16 %v1632, %v1631
        %v1655 = vpack.c.b16 %v1634, %v1633
        %v1656 = vpack.c.b16 %v1636, %v1635
        %v1657 = vpack.c.b16 %v1638, %v1637
        %v1658 = vpack.c.b16 %v1640, %v1639
        %v1659 = vpack.c.b16 %v1642, %v1641
        %v1660 = vpack.c.b16 %v1644, %v1643
        %v1662 = vsel %vm593, %v1645, 0
        %v1665 = vsel %vm593, %v1646, 0
        %v1668 = vsel %vm593, %v1647, 0
        %v1671 = vsel %vm593, %v1648, 0
        %v1674 = vsel %vm593, %v1649, 0
        %v1677 = vsel %vm593, %v1650, 0
        %v1680 = vsel %vm593, %v1651, 0
        %v1683 = vsel %vm593, %v1652, 0
        %v1686 = vsel %vm593, %v1653, 0
        %v1689 = vsel %vm593, %v1654, 0
        %v1692 = vsel %vm593, %v1655, 0
        %v1695 = vsel %vm593, %v1656, 0
        %v1698 = vsel %vm593, %v1657, 0
        %v1701 = vsel %vm593, %v1658, 0
        %v1704 = vsel %vm593, %v1659, 0
        %v1707 = vsel %vm593, %v1660, 0
        %1709 = vmatprep.subr.bf16.mxu0 0
        %1710 = vmatpush1.bf16.msra.mxu0 0
        %1711 = vmatprep.subr.bf16.mxu0 0
        %1712 = vmatpush1.bf16.msra.mxu0 0
        %1713 = vmatprep.subr.bf16.mxu0 0
        %1714 = vmatpush1.bf16.msra.mxu0 0
        %1715 = vmatprep.subr.bf16.mxu0 0
        %1716 = vmatpush1.bf16.msra.mxu0 0
        %1717 = vmatprep.subr.bf16.mxu0 0
        %1718 = vmatpush1.bf16.msra.mxu0 0
        %1719 = vmatprep.subr.bf16.mxu0 0
        %1720 = vmatpush1.bf16.msra.mxu0 0
        %1721 = vmatprep.subr.bf16.mxu0 0
        %1722 = vmatpush1.bf16.msra.mxu0 %v647
        %1723 = vmatprep.subr.bf16.mxu0 0
        %1724 = vmatpush1.bf16.msra.mxu0 %v590
        %1725 = vmatprep.subr.bf16.mxu0 0
        %1726 = vmatpush2.bf16.msra.mxu0 0
        %1727 = vmatprep.subr.bf16.mxu0 0
        %1728 = vmatpush2.bf16.msra.mxu0 0
        %1729 = vmatprep.subr.bf16.mxu0 0
        %1730 = vmatpush2.bf16.msra.mxu0 0
        %1731 = vmatprep.subr.bf16.mxu0 0
        %1732 = vmatpush2.bf16.msra.mxu0 0
        %1733 = vmatprep.subr.bf16.mxu0 0
        %1734 = vmatpush2.bf16.msra.mxu0 0
        %1735 = vmatprep.subr.bf16.mxu0 0
        %1736 = vmatpush2.bf16.msra.mxu0 0
        %1737 = vmatprep.subr.bf16.mxu0 0
        %1738 = vmatpush2.bf16.msra.mxu0 0
        %1739 = vmatprep.subr.bf16.mxu0 0
        %1740 = vmatpush2.bf16.msra.mxu0 0
        %1741 = vmatprep.mubr.bf16.mxu0 0
        %1742 = vmatmul.mubr.bf16.gmra.mxu0 %v1662
        %v1743 = vpop.f32.mrf.mxu0
        %v1744 = vadd.f32 0.0, %v1743
        %v1745 = vpop.f32.mrf.mxu0
        %v1746 = vpop.f32.mrf.mxu0
        %v1747 = vadd.f32 0.0, %v1746
        %v1748 = vpop.f32.mrf.mxu0
        %1749 = vmatprep.mubr.bf16.mxu0 0
        %1750 = vmatmul.mubr.bf16.gmra.mxu0 %v1665
        %v1751 = vpop.f32.mrf.mxu0
        %v1752 = vadd.f32 0.0, %v1751
        %v1753 = vpop.f32.mrf.mxu0
        %v1754 = vpop.f32.mrf.mxu0
        %v1755 = vadd.f32 0.0, %v1754
        %v1756 = vpop.f32.mrf.mxu0
        %1757 = vmatprep.mubr.bf16.mxu0 0
        %1758 = vmatmul.mubr.bf16.gmra.mxu0 %v1668
        %v1759 = vpop.f32.mrf.mxu0
        %v1760 = vadd.f32 0.0, %v1759
        %v1761 = vpop.f32.mrf.mxu0
        %v1762 = vpop.f32.mrf.mxu0
        %v1763 = vadd.f32 0.0, %v1762
        %v1764 = vpop.f32.mrf.mxu0
        %1765 = vmatprep.mubr.bf16.mxu0 0
        %1766 = vmatmul.mubr.bf16.gmra.mxu0 %v1671
        %v1767 = vpop.f32.mrf.mxu0
        %v1768 = vadd.f32 0.0, %v1767
        %v1769 = vpop.f32.mrf.mxu0
        %v1770 = vpop.f32.mrf.mxu0
        %v1771 = vadd.f32 0.0, %v1770
        %v1772 = vpop.f32.mrf.mxu0
        %1773 = vmatprep.mubr.bf16.mxu0 0
        %1774 = vmatmul.mubr.bf16.gmra.mxu0 %v1674
        %v1775 = vpop.f32.mrf.mxu0
        %v1776 = vadd.f32 0.0, %v1775
        %v1777 = vpop.f32.mrf.mxu0
        %v1778 = vpop.f32.mrf.mxu0
        %v1779 = vadd.f32 0.0, %v1778
        %v1780 = vpop.f32.mrf.mxu0
        %1781 = vmatprep.mubr.bf16.mxu0 0
        %1782 = vmatmul.mubr.bf16.gmra.mxu0 %v1677
        %v1783 = vpop.f32.mrf.mxu0
        %v1784 = vadd.f32 0.0, %v1783
        %v1785 = vpop.f32.mrf.mxu0
        %v1786 = vpop.f32.mrf.mxu0
        %v1787 = vadd.f32 0.0, %v1786
        %v1788 = vpop.f32.mrf.mxu0
        %1789 = vmatprep.mubr.bf16.mxu0 0
        %1790 = vmatmul.mubr.bf16.gmra.mxu0 %v1680
        %v1791 = vpop.f32.mrf.mxu0
        %v1792 = vadd.f32 0.0, %v1791
        %v1793 = vpop.f32.mrf.mxu0
        %v1794 = vpop.f32.mrf.mxu0
        %v1795 = vadd.f32 0.0, %v1794
        %v1796 = vpop.f32.mrf.mxu0
        %1797 = vmatprep.mubr.bf16.mxu0 0
        %1798 = vmatmul.mubr.bf16.gmra.mxu0 %v1683
        %v1799 = vpop.f32.mrf.mxu0
        %v1800 = vadd.f32 0.0, %v1799
        %v1801 = vpop.f32.mrf.mxu0
        %v1802 = vpop.f32.mrf.mxu0
        %v1803 = vadd.f32 0.0, %v1802
        %v1804 = vpop.f32.mrf.mxu0
        %1805 = vmatprep.mubr.bf16.mxu0 0
        %1806 = vmatmul.mubr.bf16.gmra.mxu0 %v1686
        %v1807 = vpop.f32.mrf.mxu0
        %v1808 = vadd.f32 0.0, %v1807
        %v1809 = vpop.f32.mrf.mxu0
        %v1810 = vpop.f32.mrf.mxu0
        %v1811 = vadd.f32 0.0, %v1810
        %v1812 = vpop.f32.mrf.mxu0
        %1813 = vmatprep.mubr.bf16.mxu0 0
        %1814 = vmatmul.mubr.bf16.gmra.mxu0 %v1689
        %v1815 = vpop.f32.mrf.mxu0
        %v1816 = vadd.f32 0.0, %v1815
        %v1817 = vpop.f32.mrf.mxu0
        %v1818 = vpop.f32.mrf.mxu0
        %v1819 = vadd.f32 0.0, %v1818
        %v1820 = vpop.f32.mrf.mxu0
        %1821 = vmatprep.mubr.bf16.mxu0 0
        %1822 = vmatmul.mubr.bf16.gmra.mxu0 %v1692
        %v1823 = vpop.f32.mrf.mxu0
        %v1824 = vadd.f32 0.0, %v1823
        %v1825 = vpop.f32.mrf.mxu0
        %v1826 = vpop.f32.mrf.mxu0
        %v1827 = vadd.f32 0.0, %v1826
        %v1828 = vpop.f32.mrf.mxu0
        %1829 = vmatprep.mubr.bf16.mxu0 0
        %1830 = vmatmul.mubr.bf16.gmra.mxu0 %v1695
        %v1831 = vpop.f32.mrf.mxu0
        %v1832 = vadd.f32 0.0, %v1831
        %v1833 = vpop.f32.mrf.mxu0
        %v1834 = vpop.f32.mrf.mxu0
        %v1835 = vadd.f32 0.0, %v1834
        %v1836 = vpop.f32.mrf.mxu0
        %1837 = vmatprep.mubr.bf16.mxu0 0
        %1838 = vmatmul.mubr.bf16.gmra.mxu0 %v1698
        %v1839 = vpop.f32.mrf.mxu0
        %v1840 = vadd.f32 0.0, %v1839
        %v1841 = vpop.f32.mrf.mxu0
        %v1842 = vpop.f32.mrf.mxu0
        %v1843 = vadd.f32 0.0, %v1842
        %v1844 = vpop.f32.mrf.mxu0
        %1845 = vmatprep.mubr.bf16.mxu0 0
        %1846 = vmatmul.mubr.bf16.gmra.mxu0 %v1701
        %v1847 = vpop.f32.mrf.mxu0
        %v1848 = vadd.f32 0.0, %v1847
        %v1849 = vpop.f32.mrf.mxu0
        %v1850 = vpop.f32.mrf.mxu0
        %v1851 = vadd.f32 0.0, %v1850
        %v1852 = vpop.f32.mrf.mxu0
        %1853 = vmatprep.mubr.bf16.mxu0 0
        %1854 = vmatmul.mubr.bf16.gmra.mxu0 %v1704
        %v1855 = vpop.f32.mrf.mxu0
        %v1856 = vadd.f32 0.0, %v1855
        %v1857 = vpop.f32.mrf.mxu0
        %v1858 = vpop.f32.mrf.mxu0
        %v1859 = vadd.f32 0.0, %v1858
        %v1860 = vpop.f32.mrf.mxu0
        %1861 = vmatprep.mubr.bf16.mxu0 0
        %1862 = vmatmul.mubr.bf16.gmra.mxu0 %v1707
        %v1863 = vpop.f32.mrf.mxu0
        %v1864 = vadd.f32 0.0, %v1863
        %v1865 = vpop.f32.mrf.mxu0
        %v1866 = vpop.f32.mrf.mxu0
        %v1867 = vadd.f32 0.0, %v1866
        %v1868 = vpop.f32.mrf.mxu0
        %1869 = vdwg.mxu0
        %1870 = vst.msk [vmem:[#allocation2 + $0x300] sm:$0xff] %vm810, %v1744
        %1871 = vst.msk [vmem:[#allocation2 + $0x308] sm:$0xff] %vm810, %v1747
        %1872 = vst.msk [vmem:[#allocation2 + $0x310] sm:$0xff] %vm810, %v1752
        %1873 = vst.msk [vmem:[#allocation2 + $0x318] sm:$0xff] %vm810, %v1755
        %1874 = vst.msk [vmem:[#allocation2 + $0x320] sm:$0xff] %vm810, %v1760
        %1875 = vst.msk [vmem:[#allocation2 + $0x328] sm:$0xff] %vm810, %v1763
        %1876 = vst.msk [vmem:[#allocation2 + $0x330] sm:$0xff] %vm810, %v1768
        %1877 = vst.msk [vmem:[#allocation2 + $0x338] sm:$0xff] %vm810, %v1771
        %1878 = vst.msk [vmem:[#allocation2 + $0x340] sm:$0xff] %vm810, %v1776
        %1879 = vst.msk [vmem:[#allocation2 + $0x348] sm:$0xff] %vm810, %v1779
        %1880 = vst.msk [vmem:[#allocation2 + $0x350] sm:$0xff] %vm810, %v1784
        %1881 = vst.msk [vmem:[#allocation2 + $0x358] sm:$0xff] %vm810, %v1787
        %1882 = vst.msk [vmem:[#allocation2 + $0x360] sm:$0xff] %vm810, %v1792
        %1883 = vst.msk [vmem:[#allocation2 + $0x368] sm:$0xff] %vm810, %v1795
        %1884 = vst.msk [vmem:[#allocation2 + $0x370] sm:$0xff] %vm810, %v1800
        %1885 = vst.msk [vmem:[#allocation2 + $0x378] sm:$0xff] %vm810, %v1803
        %1886 = vst.msk [vmem:[#allocation2 + $0x380] sm:$0xff] %vm810, %v1808
        %1887 = vst.msk [vmem:[#allocation2 + $0x388] sm:$0xff] %vm810, %v1811
        %1888 = vst.msk [vmem:[#allocation2 + $0x390] sm:$0xff] %vm810, %v1816
        %1889 = vst.msk [vmem:[#allocation2 + $0x398] sm:$0xff] %vm810, %v1819
        %1890 = vst.msk [vmem:[#allocation2 + $0x3a0] sm:$0xff] %vm810, %v1824
        %1891 = vst.msk [vmem:[#allocation2 + $0x3a8] sm:$0xff] %vm810, %v1827
        %1892 = vst.msk [vmem:[#allocation2 + $0x3b0] sm:$0xff] %vm810, %v1832
        %1893 = vst.msk [vmem:[#allocation2 + $0x3b8] sm:$0xff] %vm810, %v1835
        %1894 = vst.msk [vmem:[#allocation2 + $0x3c0] sm:$0xff] %vm810, %v1840
        %1895 = vst.msk [vmem:[#allocation2 + $0x3c8] sm:$0xff] %vm810, %v1843
        %1896 = vst.msk [vmem:[#allocation2 + $0x3d0] sm:$0xff] %vm810, %v1848
        %1897 = vst.msk [vmem:[#allocation2 + $0x3d8] sm:$0xff] %vm810, %v1851
        %1898 = vst.msk [vmem:[#allocation2 + $0x3e0] sm:$0xff] %vm810, %v1856
        %1899 = vst.msk [vmem:[#allocation2 + $0x3e8] sm:$0xff] %vm810, %v1859
        %1900 = vst.msk [vmem:[#allocation2 + $0x3f0] sm:$0xff] %vm810, %v1864
        %1901 = vst.msk [vmem:[#allocation2 + $0x3f8] sm:$0xff] %vm810, %v1867
        %v1902 = vld [vmem:[%s464 + $0x200] sm:$0xf]
        %v1903 = vld [vmem:[%s464 + $0x204] sm:$0xf]
        %v1904 = vld [vmem:[%s464 + $0x208] sm:$0xf]
        %v1905 = vld [vmem:[%s464 + $0x20c] sm:$0xf]
        %v1906 = vld [vmem:[%s464 + $0x210] sm:$0xf]
        %v1907 = vld [vmem:[%s464 + $0x214] sm:$0xf]
        %v1908 = vld [vmem:[%s464 + $0x218] sm:$0xf]
        %v1909 = vld [vmem:[%s464 + $0x21c] sm:$0x7]
        %v1918 = vunpack.c.l.b16 %v1902
        %v1919 = vunpack.c.l.b16 %v1903
        %v1920 = vunpack.c.l.b16 %v1904
        %v1921 = vunpack.c.l.b16 %v1905
        %v1922 = vunpack.c.l.b16 %v1906
        %v1923 = vunpack.c.l.b16 %v1907
        %v1924 = vunpack.c.l.b16 %v1908
        %v1925 = vunpack.c.l.b16 %v1909
        %v1926 = vpack.c.b16 %v1919, %v1918
        %v1927 = vpack.c.b16 %v1921, %v1920
        %v1928 = vpack.c.b16 %v1923, %v1922
        %v1929 = vpack.c.b16 %v1925, %v1924
        %v1931 = vsel %vm593, %v1926, 0
        %v1934 = vsel %vm593, %v1927, 0
        %v1937 = vsel %vm593, %v1928, 0
        %v1940 = vsel %vm593, %v1929, 0
        %1942 = vmatprep.subr.bf16.mxu0 0
        %1943 = vmatpush1.bf16.msra.mxu0 0
        %1944 = vmatprep.subr.bf16.mxu0 0
        %1945 = vmatpush1.bf16.msra.mxu0 0
        %1946 = vmatprep.subr.bf16.mxu0 0
        %1947 = vmatpush1.bf16.msra.mxu0 0
        %1948 = vmatprep.subr.bf16.mxu0 0
        %1949 = vmatpush1.bf16.msra.mxu0 0
        %1950 = vmatprep.subr.bf16.mxu0 0
        %1951 = vmatpush1.bf16.msra.mxu0 0
        %1952 = vmatprep.subr.bf16.mxu0 0
        %1953 = vmatpush1.bf16.msra.mxu0 0
        %1954 = vmatprep.subr.bf16.mxu0 0
        %1955 = vmatpush1.bf16.msra.mxu0 %v647
        %1956 = vmatprep.subr.bf16.mxu0 0
        %1957 = vmatpush1.bf16.msra.mxu0 %v590
        %1958 = vmatprep.subr.bf16.mxu0 0
        %1959 = vmatpush2.bf16.msra.mxu0 0
        %1960 = vmatprep.subr.bf16.mxu0 0
        %1961 = vmatpush2.bf16.msra.mxu0 0
        %1962 = vmatprep.subr.bf16.mxu0 0
        %1963 = vmatpush2.bf16.msra.mxu0 0
        %1964 = vmatprep.subr.bf16.mxu0 0
        %1965 = vmatpush2.bf16.msra.mxu0 0
        %1966 = vmatprep.subr.bf16.mxu0 0
        %1967 = vmatpush2.bf16.msra.mxu0 0
        %1968 = vmatprep.subr.bf16.mxu0 0
        %1969 = vmatpush2.bf16.msra.mxu0 0
        %1970 = vmatprep.subr.bf16.mxu0 0
        %1971 = vmatpush2.bf16.msra.mxu0 0
        %1972 = vmatprep.subr.bf16.mxu0 0
        %1973 = vmatpush2.bf16.msra.mxu0 0
        %1974 = vmatprep.mubr.bf16.mxu0 0
        %1975 = vmatmul.mubr.bf16.gmra.mxu0 %v1931
        %v1976 = vpop.f32.mrf.mxu0
        %v1977 = vadd.f32 0.0, %v1976
        %v1978 = vpop.f32.mrf.mxu0
        %v1979 = vpop.f32.mrf.mxu0
        %v1980 = vadd.f32 0.0, %v1979
        %v1981 = vpop.f32.mrf.mxu0
        %1982 = vmatprep.mubr.bf16.mxu0 0
        %1983 = vmatmul.mubr.bf16.gmra.mxu0 %v1934
        %v1984 = vpop.f32.mrf.mxu0
        %v1985 = vadd.f32 0.0, %v1984
        %v1986 = vpop.f32.mrf.mxu0
        %v1987 = vpop.f32.mrf.mxu0
        %v1988 = vadd.f32 0.0, %v1987
        %v1989 = vpop.f32.mrf.mxu0
        %1990 = vmatprep.mubr.bf16.mxu0 0
        %1991 = vmatmul.mubr.bf16.gmra.mxu0 %v1937
        %v1992 = vpop.f32.mrf.mxu0
        %v1993 = vadd.f32 0.0, %v1992
        %v1994 = vpop.f32.mrf.mxu0
        %v1995 = vpop.f32.mrf.mxu0
        %v1996 = vadd.f32 0.0, %v1995
        %v1997 = vpop.f32.mrf.mxu0
        %1998 = vmatprep.mubr.bf16.mxu0 0
        %1999 = vmatmul.mubr.bf16.gmra.mxu0 %v1940
        %v2000 = vpop.f32.mrf.mxu0
        %v2001 = vadd.f32 0.0, %v2000
        %v2002 = vpop.f32.mrf.mxu0
        %v2003 = vpop.f32.mrf.mxu0
        %v2004 = vadd.f32 0.0, %v2003
        %v2005 = vpop.f32.mrf.mxu0
        %2006 = vdwg.mxu0
        %2007 = vst.msk [vmem:[#allocation2 + $0x400] sm:$0xff] %vm810, %v1977
        %2008 = vst.msk [vmem:[#allocation2 + $0x408] sm:$0xff] %vm810, %v1980
        %2009 = vst.msk [vmem:[#allocation2 + $0x410] sm:$0xff] %vm810, %v1985
        %2010 = vst.msk [vmem:[#allocation2 + $0x418] sm:$0xff] %vm810, %v1988
        %2011 = vst.msk [vmem:[#allocation2 + $0x420] sm:$0xff] %vm810, %v1993
        %2012 = vst.msk [vmem:[#allocation2 + $0x428] sm:$0xff] %vm810, %v1996
        %2013 = vst.msk [vmem:[#allocation2 + $0x430] sm:$0xff] %vm810, %v2001
        %vm2014 = vcmask 259072
        %2015 = vst.msk [vmem:[#allocation2 + $0x438] sm:$0x3f] %vm2014, %v2004
        %v2016 = vld [vmem:[%s2] sm:$0x1]
        %v2017 = vld [vmem:[%s11] sm:$0xff]
        %v2018 = vld [vmem:[%s11 + $0x8] sm:$0xff]
        %v2019 = vld [vmem:[#allocation2] sm:$0xff]
        %v2020 = vld [vmem:[#allocation2 + $0x8] sm:$0xff]
        %v2021 = vld [vmem:[#allocation2 + $0x10] sm:$0xff]
        %v2022 = vld [vmem:[#allocation2 + $0x18] sm:$0x7f]
        %v2023 = vld [vmem:[#allocation2 + $0x1] sm:$0xff]
        %v2024 = vld [vmem:[#allocation2 + $0x9] sm:$0xff]
        %v2025 = vld [vmem:[#allocation2 + $0x11] sm:$0xff]
        %v2026 = vld [vmem:[#allocation2 + $0x19] sm:$0x7f]
        %v2027 = vmax.f32 %v2019, %v2023
        %v2028 = vmax.f32 %v2020, %v2024
        %v2029 = vmax.f32 %v2021, %v2025
        %v2030 = vmax.f32 %v2022, %v2026
        %v2031 = vld [vmem:[#allocation2 + $0x22] sm:$0xff]
        %v2032 = vld [vmem:[#allocation2 + $0x2a] sm:$0xff]
        %v2033 = vld [vmem:[#allocation2 + $0x32] sm:$0xff]
        %v2034 = vld [vmem:[#allocation2 + $0x3a] sm:$0x7f]
        %v2035 = vmax.f32 %v2027, %v2031
        %v2036 = vmax.f32 %v2028, %v2032
        %v2037 = vmax.f32 %v2029, %v2033
        %v2038 = vmax.f32 %v2030, %v2034
        %v2039 = vld [vmem:[#allocation2 + $0x23] sm:$0xff]
        %v2040 = vld [vmem:[#allocation2 + $0x2b] sm:$0xff]
        %v2041 = vld [vmem:[#allocation2 + $0x33] sm:$0xff]
        %v2042 = vld [vmem:[#allocation2 + $0x3b] sm:$0x7f]
        %v2043 = vmax.f32 %v2035, %v2039
        %v2044 = vmax.f32 %v2036, %v2040
        %v2045 = vmax.f32 %v2037, %v2041
        %v2046 = vmax.f32 %v2038, %v2042
        %v2048 = vlaneseq
        %v2049 = vshrl.u32 %v2048, 7
        %v2050 = vsub.s32 0, %v2049
        %v2051 = vrot.slane %v2016, %v2050
        %vm2053 = vcmask 252928
        %v2055 = vsel %vm2053, %v2017, 0
        %v2058 = vsel %vm2053, %v2018, 0
        %vm2060 = vcmask 1046528
        %v2062 = vsel %vm2060, %v2046, 0
        %2064 = vmatprep.subr.mxu0 0.0
        %2065 = vmatpush1.msra.mxu0 0.0
        %2066 = vmatprep.subr.mxu0 0.0
        %2067 = vmatpush1.msra.mxu0 0.0
        %2068 = vmatprep.subr.mxu0 0.0
        %2069 = vmatpush1.msra.mxu0 0.0
        %2070 = vmatprep.subr.mxu0 0.0
        %2071 = vmatpush1.msra.mxu0 0.0
        %2072 = vmatprep.subr.mxu0 0.0
        %2073 = vmatpush1.msra.mxu0 0.0
        %2074 = vmatprep.subr.mxu0 0.0
        %2075 = vmatpush1.msra.mxu0 0.0
        %2076 = vmatprep.subr.mxu0 0.0
        %2077 = vmatpush1.msra.mxu0 0.0
        %2078 = vmatprep.subr.mxu0 0.0
        %2079 = vmatpush1.msra.mxu0 0.0
        %2080 = vmatprep.subr.mxu0 0.0
        %2081 = vmatpush1.msra.mxu0 0.0
        %2082 = vmatprep.subr.mxu0 0.0
        %2083 = vmatpush1.msra.mxu0 0.0
        %2084 = vmatprep.subr.mxu0 0.0
        %2085 = vmatpush1.msra.mxu0 0.0
        %2086 = vmatprep.subr.mxu0 0.0
        %2087 = vmatpush1.msra.mxu0 0.0
        %2088 = vmatprep.subr.mxu0 0.0
        %2089 = vmatpush1.msra.mxu0 %v2062
        %2090 = vmatprep.subr.mxu0 0.0
        %2091 = vmatpush1.msra.mxu0 %v2045
        %2092 = vmatprep.subr.mxu0 0.0
        %2093 = vmatpush1.msra.mxu0 %v2044
        %2094 = vmatprep.subr.mxu0 0.0
        %2095 = vmatpush1.msra.mxu0 %v2043
        %2096 = vmatprep.subr.mxu0 0.0
        %2097 = vmatpush2.msra.mxu0 0.0
        %2098 = vmatprep.subr.mxu0 0.0
        %2099 = vmatpush2.msra.mxu0 0.0
        %2100 = vmatprep.subr.mxu0 0.0
        %2101 = vmatpush2.msra.mxu0 0.0
        %2102 = vmatprep.subr.mxu0 0.0
        %2103 = vmatpush2.msra.mxu0 0.0
        %2104 = vmatprep.subr.mxu0 0.0
        %2105 = vmatpush2.msra.mxu0 0.0
        %2106 = vmatprep.subr.mxu0 0.0
        %2107 = vmatpush2.msra.mxu0 0.0
        %2108 = vmatprep.subr.mxu0 0.0
        %2109 = vmatpush2.msra.mxu0 0.0
        %2110 = vmatprep.subr.mxu0 0.0
        %2111 = vmatpush2.msra.mxu0 0.0
        %2112 = vmatprep.subr.mxu0 0.0
        %2113 = vmatpush2.msra.mxu0 0.0
        %2114 = vmatprep.subr.mxu0 0.0
        %2115 = vmatpush2.msra.mxu0 0.0
        %2116 = vmatprep.subr.mxu0 0.0
        %2117 = vmatpush2.msra.mxu0 0.0
        %2118 = vmatprep.subr.mxu0 0.0
        %2119 = vmatpush2.msra.mxu0 0.0
        %2120 = vmatprep.subr.mxu0 0.0
        %2121 = vmatpush2.msra.mxu0 0.0
        %2122 = vmatprep.subr.mxu0 0.0
        %2123 = vmatpush2.msra.mxu0 0.0
        %2124 = vmatprep.subr.mxu0 0.0
        %2125 = vmatpush2.msra.mxu0 0.0
        %2126 = vmatprep.subr.mxu0 0.0
        %2127 = vmatpush2.msra.mxu0 0.0
        %2128 = vmatprep.mubr.f32.mxu0 0.0
        %2129 = vmatmul.mubr.f32.gmra.mxu0 %v2055
        %v2130 = vpop.f32.mrf.mxu0
        %v2131 = vadd.f32 %v2051, %v2130
        %v2132 = vpop.f32.mrf.mxu0
        %2133 = vmatprep.mubr.f32.mxu0 0.0
        %2134 = vmatmul.mubr.f32.gmra.mxu0 %v2058
        %v2135 = vpop.f32.mrf.mxu0
        %v2136 = vadd.f32 %v2051, %v2135
        %v2137 = vpop.f32.mrf.mxu0
        %2138 = vdwg.mxu0
        %v2139 = vmax.f32 %v2131, 0.0
        %v2140 = vmax.f32 %v2136, 0.0
        %v2141 = vpack.c.bf16 %v2140, %v2139
        %v2143 = vunpack.c.l.b16 %v2141
        %v2144 = vunpack.c.h.b16 %v2141
        %v2145 = vpack.c.b16 %v2143, %v2143
        %v2146 = vpack.c.b16 %v2144, %v2144
        %vm2149 = vcmask 257024
        %2150 = vst.msk [vmem:[#allocation3] sm:$0xf] %vm2149, %v2145
        %2151 = vst.msk [vmem:[#allocation3 + $0x4] sm:$0xf] %vm2149, %v2146
        %v2152 = vld [vmem:[#allocation2 + $0x44] sm:$0xff]
        %v2153 = vld [vmem:[#allocation2 + $0x4c] sm:$0xff]
        %v2154 = vld [vmem:[#allocation2 + $0x54] sm:$0xff]
        %v2155 = vld [vmem:[#allocation2 + $0x5c] sm:$0x7f]
        %v2156 = vld [vmem:[#allocation2 + $0x45] sm:$0xff]
        %v2157 = vld [vmem:[#allocation2 + $0x4d] sm:$0xff]
        %v2158 = vld [vmem:[#allocation2 + $0x55] sm:$0xff]
        %v2159 = vld [vmem:[#allocation2 + $0x5d] sm:$0x7f]
        %v2160 = vmax.f32 %v2152, %v2156
        %v2161 = vmax.f32 %v2153, %v2157
        %v2162 = vmax.f32 %v2154, %v2158
        %v2163 = vmax.f32 %v2155, %v2159
        %v2164 = vld [vmem:[#allocation2 + $0x66] sm:$0xff]
        %v2165 = vld [vmem:[#allocation2 + $0x6e] sm:$0xff]
        %v2166 = vld [vmem:[#allocation2 + $0x76] sm:$0xff]
        %v2167 = vld [vmem:[#allocation2 + $0x7e] sm:$0x7f]
        %v2168 = vmax.f32 %v2160, %v2164
        %v2169 = vmax.f32 %v2161, %v2165
        %v2170 = vmax.f32 %v2162, %v2166
        %v2171 = vmax.f32 %v2163, %v2167
        %v2172 = vld [vmem:[#allocation2 + $0x67] sm:$0xff]
        %v2173 = vld [vmem:[#allocation2 + $0x6f] sm:$0xff]
        %v2174 = vld [vmem:[#allocation2 + $0x77] sm:$0xff]
        %v2175 = vld [vmem:[#allocation2 + $0x7f] sm:$0x7f]
        %v2176 = vmax.f32 %v2168, %v2172
        %v2177 = vmax.f32 %v2169, %v2173
        %v2178 = vmax.f32 %v2170, %v2174
        %v2179 = vmax.f32 %v2171, %v2175
        %v2181 = vsel %vm2060, %v2179, 0
        %2183 = vmatprep.subr.mxu0 0.0
        %2184 = vmatpush1.msra.mxu0 0.0
        %2185 = vmatprep.subr.mxu0 0.0
        %2186 = vmatpush1.msra.mxu0 0.0
        %2187 = vmatprep.subr.mxu0 0.0
        %2188 = vmatpush1.msra.mxu0 0.0
        %2189 = vmatprep.subr.mxu0 0.0
        %2190 = vmatpush1.msra.mxu0 0.0
        %2191 = vmatprep.subr.mxu0 0.0
        %2192 = vmatpush1.msra.mxu0 0.0
        %2193 = vmatprep.subr.mxu0 0.0
        %2194 = vmatpush1.msra.mxu0 0.0
        %2195 = vmatprep.subr.mxu0 0.0
        %2196 = vmatpush1.msra.mxu0 0.0
        %2197 = vmatprep.subr.mxu0 0.0
        %2198 = vmatpush1.msra.mxu0 0.0
        %2199 = vmatprep.subr.mxu0 0.0
        %2200 = vmatpush1.msra.mxu0 0.0
        %2201 = vmatprep.subr.mxu0 0.0
        %2202 = vmatpush1.msra.mxu0 0.0
        %2203 = vmatprep.subr.mxu0 0.0
        %2204 = vmatpush1.msra.mxu0 0.0
        %2205 = vmatprep.subr.mxu0 0.0
        %2206 = vmatpush1.msra.mxu0 0.0
        %2207 = vmatprep.subr.mxu0 0.0
        %2208 = vmatpush1.msra.mxu0 %v2181
        %2209 = vmatprep.subr.mxu0 0.0
        %2210 = vmatpush1.msra.mxu0 %v2178
        %2211 = vmatprep.subr.mxu0 0.0
        %2212 = vmatpush1.msra.mxu0 %v2177
        %2213 = vmatprep.subr.mxu0 0.0
        %2214 = vmatpush1.msra.mxu0 %v2176
        %2215 = vmatprep.subr.mxu0 0.0
        %2216 = vmatpush2.msra.mxu0 0.0
        %2217 = vmatprep.subr.mxu0 0.0
        %2218 = vmatpush2.msra.mxu0 0.0
        %2219 = vmatprep.subr.mxu0 0.0
        %2220 = vmatpush2.msra.mxu0 0.0
        %2221 = vmatprep.subr.mxu0 0.0
        %2222 = vmatpush2.msra.mxu0 0.0
        %2223 = vmatprep.subr.mxu0 0.0
        %2224 = vmatpush2.msra.mxu0 0.0
        %2225 = vmatprep.subr.mxu0 0.0
        %2226 = vmatpush2.msra.mxu0 0.0
        %2227 = vmatprep.subr.mxu0 0.0
        %2228 = vmatpush2.msra.mxu0 0.0
        %2229 = vmatprep.subr.mxu0 0.0
        %2230 = vmatpush2.msra.mxu0 0.0
        %2231 = vmatprep.subr.mxu0 0.0
        %2232 = vmatpush2.msra.mxu0 0.0
        %2233 = vmatprep.subr.mxu0 0.0
        %2234 = vmatpush2.msra.mxu0 0.0
        %2235 = vmatprep.subr.mxu0 0.0
        %2236 = vmatpush2.msra.mxu0 0.0
        %2237 = vmatprep.subr.mxu0 0.0
        %2238 = vmatpush2.msra.mxu0 0.0
        %2239 = vmatprep.subr.mxu0 0.0
        %2240 = vmatpush2.msra.mxu0 0.0
        %2241 = vmatprep.subr.mxu0 0.0
        %2242 = vmatpush2.msra.mxu0 0.0
        %2243 = vmatprep.subr.mxu0 0.0
        %2244 = vmatpush2.msra.mxu0 0.0
        %2245 = vmatprep.subr.mxu0 0.0
        %2246 = vmatpush2.msra.mxu0 0.0
        %2247 = vmatprep.mubr.f32.mxu0 0.0
        %2248 = vmatmul.mubr.f32.gmra.mxu0 %v2055
        %v2249 = vpop.f32.mrf.mxu0
        %v2250 = vadd.f32 %v2051, %v2249
        %v2251 = vpop.f32.mrf.mxu0
        %2252 = vmatprep.mubr.f32.mxu0 0.0
        %2253 = vmatmul.mubr.f32.gmra.mxu0 %v2058
        %v2254 = vpop.f32.mrf.mxu0
        %v2255 = vadd.f32 %v2051, %v2254
        %v2256 = vpop.f32.mrf.mxu0
        %2257 = vdwg.mxu0
        %v2258 = vmax.f32 %v2250, 0.0
        %v2259 = vmax.f32 %v2255, 0.0
        %v2260 = vpack.c.bf16 %v2259, %v2258
        %v2262 = vunpack.c.l.b16 %v2260
        %v2263 = vunpack.c.h.b16 %v2260
        %v2264 = vpack.c.b16 %v2262, %v2262
        %v2265 = vpack.c.b16 %v2263, %v2263
        %2268 = vst.msk [vmem:[#allocation3 + $0x8] sm:$0xf] %vm2149, %v2264
        %2269 = vst.msk [vmem:[#allocation3 + $0xc] sm:$0xf] %vm2149, %v2265
        %v2270 = vld [vmem:[#allocation2 + $0x88] sm:$0xff]
        %v2271 = vld [vmem:[#allocation2 + $0x90] sm:$0xff]
        %v2272 = vld [vmem:[#allocation2 + $0x98] sm:$0xff]
        %v2273 = vld [vmem:[#allocation2 + $0xa0] sm:$0x7f]
        %v2274 = vld [vmem:[#allocation2 + $0x89] sm:$0xff]
        %v2275 = vld [vmem:[#allocation2 + $0x91] sm:$0xff]
        %v2276 = vld [vmem:[#allocation2 + $0x99] sm:$0xff]
        %v2277 = vld [vmem:[#allocation2 + $0xa1] sm:$0x7f]
        %v2278 = vmax.f32 %v2270, %v2274
        %v2279 = vmax.f32 %v2271, %v2275
        %v2280 = vmax.f32 %v2272, %v2276
        %v2281 = vmax.f32 %v2273, %v2277
        %v2282 = vld [vmem:[#allocation2 + $0xaa] sm:$0xff]
        %v2283 = vld [vmem:[#allocation2 + $0xb2] sm:$0xff]
        %v2284 = vld [vmem:[#allocation2 + $0xba] sm:$0xff]
        %v2285 = vld [vmem:[#allocation2 + $0xc2] sm:$0x7f]
        %v2286 = vmax.f32 %v2278, %v2282
        %v2287 = vmax.f32 %v2279, %v2283
        %v2288 = vmax.f32 %v2280, %v2284
        %v2289 = vmax.f32 %v2281, %v2285
        %v2290 = vld [vmem:[#allocation2 + $0xab] sm:$0xff]
        %v2291 = vld [vmem:[#allocation2 + $0xb3] sm:$0xff]
        %v2292 = vld [vmem:[#allocation2 + $0xbb] sm:$0xff]
        %v2293 = vld [vmem:[#allocation2 + $0xc3] sm:$0x7f]
        %v2294 = vmax.f32 %v2286, %v2290
        %v2295 = vmax.f32 %v2287, %v2291
        %v2296 = vmax.f32 %v2288, %v2292
        %v2297 = vmax.f32 %v2289, %v2293
        %v2299 = vsel %vm2060, %v2297, 0
        %2301 = vmatprep.subr.mxu0 0.0
        %2302 = vmatpush1.msra.mxu0 0.0
        %2303 = vmatprep.subr.mxu0 0.0
        %2304 = vmatpush1.msra.mxu0 0.0
        %2305 = vmatprep.subr.mxu0 0.0
        %2306 = vmatpush1.msra.mxu0 0.0
        %2307 = vmatprep.subr.mxu0 0.0
        %2308 = vmatpush1.msra.mxu0 0.0
        %2309 = vmatprep.subr.mxu0 0.0
        %2310 = vmatpush1.msra.mxu0 0.0
        %2311 = vmatprep.subr.mxu0 0.0
        %2312 = vmatpush1.msra.mxu0 0.0
        %2313 = vmatprep.subr.mxu0 0.0
        %2314 = vmatpush1.msra.mxu0 0.0
        %2315 = vmatprep.subr.mxu0 0.0
        %2316 = vmatpush1.msra.mxu0 0.0
        %2317 = vmatprep.subr.mxu0 0.0
        %2318 = vmatpush1.msra.mxu0 0.0
        %2319 = vmatprep.subr.mxu0 0.0
        %2320 = vmatpush1.msra.mxu0 0.0
        %2321 = vmatprep.subr.mxu0 0.0
        %2322 = vmatpush1.msra.mxu0 0.0
        %2323 = vmatprep.subr.mxu0 0.0
        %2324 = vmatpush1.msra.mxu0 0.0
        %2325 = vmatprep.subr.mxu0 0.0
        %2326 = vmatpush1.msra.mxu0 %v2299
        %2327 = vmatprep.subr.mxu0 0.0
        %2328 = vmatpush1.msra.mxu0 %v2296
        %2329 = vmatprep.subr.mxu0 0.0
        %2330 = vmatpush1.msra.mxu0 %v2295
        %2331 = vmatprep.subr.mxu0 0.0
        %2332 = vmatpush1.msra.mxu0 %v2294
        %2333 = vmatprep.subr.mxu0 0.0
        %2334 = vmatpush2.msra.mxu0 0.0
        %2335 = vmatprep.subr.mxu0 0.0
        %2336 = vmatpush2.msra.mxu0 0.0
        %2337 = vmatprep.subr.mxu0 0.0
        %2338 = vmatpush2.msra.mxu0 0.0
        %2339 = vmatprep.subr.mxu0 0.0
        %2340 = vmatpush2.msra.mxu0 0.0
        %2341 = vmatprep.subr.mxu0 0.0
        %2342 = vmatpush2.msra.mxu0 0.0
        %2343 = vmatprep.subr.mxu0 0.0
        %2344 = vmatpush2.msra.mxu0 0.0
        %2345 = vmatprep.subr.mxu0 0.0
        %2346 = vmatpush2.msra.mxu0 0.0
        %2347 = vmatprep.subr.mxu0 0.0
        %2348 = vmatpush2.msra.mxu0 0.0
        %2349 = vmatprep.subr.mxu0 0.0
        %2350 = vmatpush2.msra.mxu0 0.0
        %2351 = vmatprep.subr.mxu0 0.0
        %2352 = vmatpush2.msra.mxu0 0.0
        %2353 = vmatprep.subr.mxu0 0.0
        %2354 = vmatpush2.msra.mxu0 0.0
        %2355 = vmatprep.subr.mxu0 0.0
        %2356 = vmatpush2.msra.mxu0 0.0
        %2357 = vmatprep.subr.mxu0 0.0
        %2358 = vmatpush2.msra.mxu0 0.0
        %2359 = vmatprep.subr.mxu0 0.0
        %2360 = vmatpush2.msra.mxu0 0.0
        %2361 = vmatprep.subr.mxu0 0.0
        %2362 = vmatpush2.msra.mxu0 0.0
        %2363 = vmatprep.subr.mxu0 0.0
        %2364 = vmatpush2.msra.mxu0 0.0
        %2365 = vmatprep.mubr.f32.mxu0 0.0
        %2366 = vmatmul.mubr.f32.gmra.mxu0 %v2055
        %v2367 = vpop.f32.mrf.mxu0
        %v2368 = vadd.f32 %v2051, %v2367
        %v2369 = vpop.f32.mrf.mxu0
        %2370 = vmatprep.mubr.f32.mxu0 0.0
        %2371 = vmatmul.mubr.f32.gmra.mxu0 %v2058
        %v2372 = vpop.f32.mrf.mxu0
        %v2373 = vadd.f32 %v2051, %v2372
        %v2374 = vpop.f32.mrf.mxu0
        %2375 = vdwg.mxu0
        %v2376 = vmax.f32 %v2368, 0.0
        %v2377 = vmax.f32 %v2373, 0.0
        %v2378 = vpack.c.bf16 %v2377, %v2376
        %v2380 = vunpack.c.l.b16 %v2378
        %v2381 = vunpack.c.h.b16 %v2378
        %v2382 = vpack.c.b16 %v2380, %v2380
        %v2383 = vpack.c.b16 %v2381, %v2381
        %2386 = vst.msk [vmem:[#allocation3 + $0x10] sm:$0xf] %vm2149, %v2382
        %2387 = vst.msk [vmem:[#allocation3 + $0x14] sm:$0xf] %vm2149, %v2383
        %v2388 = vld [vmem:[#allocation2 + $0xcc] sm:$0xff]
        %v2389 = vld [vmem:[#allocation2 + $0xd4] sm:$0xff]
        %v2390 = vld [vmem:[#allocation2 + $0xdc] sm:$0xff]
        %v2391 = vld [vmem:[#allocation2 + $0xe4] sm:$0x7f]
        %v2392 = vld [vmem:[#allocation2 + $0xcd] sm:$0xff]
        %v2393 = vld [vmem:[#allocation2 + $0xd5] sm:$0xff]
        %v2394 = vld [vmem:[#allocation2 + $0xdd] sm:$0xff]
        %v2395 = vld [vmem:[#allocation2 + $0xe5] sm:$0x7f]
        %v2396 = vmax.f32 %v2388, %v2392
        %v2397 = vmax.f32 %v2389, %v2393
        %v2398 = vmax.f32 %v2390, %v2394
        %v2399 = vmax.f32 %v2391, %v2395
        %v2400 = vld [vmem:[#allocation2 + $0xee] sm:$0xff]
        %v2401 = vld [vmem:[#allocation2 + $0xf6] sm:$0xff]
        %v2402 = vld [vmem:[#allocation2 + $0xfe] sm:$0xff]
        %v2403 = vld [vmem:[#allocation2 + $0x106] sm:$0x7f]
        %v2404 = vmax.f32 %v2396, %v2400
        %v2405 = vmax.f32 %v2397, %v2401
        %v2406 = vmax.f32 %v2398, %v2402
        %v2407 = vmax.f32 %v2399, %v2403
        %v2408 = vld [vmem:[#allocation2 + $0xef] sm:$0xff]
        %v2409 = vld [vmem:[#allocation2 + $0xf7] sm:$0xff]
        %v2410 = vld [vmem:[#allocation2 + $0xff] sm:$0xff]
        %v2411 = vld [vmem:[#allocation2 + $0x107] sm:$0x7f]
        %v2412 = vmax.f32 %v2404, %v2408
        %v2413 = vmax.f32 %v2405, %v2409
        %v2414 = vmax.f32 %v2406, %v2410
        %v2415 = vmax.f32 %v2407, %v2411
        %v2417 = vsel %vm2060, %v2415, 0
        %2419 = vmatprep.subr.mxu0 0.0
        %2420 = vmatpush1.msra.mxu0 0.0
        %2421 = vmatprep.subr.mxu0 0.0
        %2422 = vmatpush1.msra.mxu0 0.0
        %2423 = vmatprep.subr.mxu0 0.0
        %2424 = vmatpush1.msra.mxu0 0.0
        %2425 = vmatprep.subr.mxu0 0.0
        %2426 = vmatpush1.msra.mxu0 0.0
        %2427 = vmatprep.subr.mxu0 0.0
        %2428 = vmatpush1.msra.mxu0 0.0
        %2429 = vmatprep.subr.mxu0 0.0
        %2430 = vmatpush1.msra.mxu0 0.0
        %2431 = vmatprep.subr.mxu0 0.0
        %2432 = vmatpush1.msra.mxu0 0.0
        %2433 = vmatprep.subr.mxu0 0.0
        %2434 = vmatpush1.msra.mxu0 0.0
        %2435 = vmatprep.subr.mxu0 0.0
        %2436 = vmatpush1.msra.mxu0 0.0
        %2437 = vmatprep.subr.mxu0 0.0
        %2438 = vmatpush1.msra.mxu0 0.0
        %2439 = vmatprep.subr.mxu0 0.0
        %2440 = vmatpush1.msra.mxu0 0.0
        %2441 = vmatprep.subr.mxu0 0.0
        %2442 = vmatpush1.msra.mxu0 0.0
        %2443 = vmatprep.subr.mxu0 0.0
        %2444 = vmatpush1.msra.mxu0 %v2417
        %2445 = vmatprep.subr.mxu0 0.0
        %2446 = vmatpush1.msra.mxu0 %v2414
        %2447 = vmatprep.subr.mxu0 0.0
        %2448 = vmatpush1.msra.mxu0 %v2413
        %2449 = vmatprep.subr.mxu0 0.0
        %2450 = vmatpush1.msra.mxu0 %v2412
        %2451 = vmatprep.subr.mxu0 0.0
        %2452 = vmatpush2.msra.mxu0 0.0
        %2453 = vmatprep.subr.mxu0 0.0
        %2454 = vmatpush2.msra.mxu0 0.0
        %2455 = vmatprep.subr.mxu0 0.0
        %2456 = vmatpush2.msra.mxu0 0.0
        %2457 = vmatprep.subr.mxu0 0.0
        %2458 = vmatpush2.msra.mxu0 0.0
        %2459 = vmatprep.subr.mxu0 0.0
        %2460 = vmatpush2.msra.mxu0 0.0
        %2461 = vmatprep.subr.mxu0 0.0
        %2462 = vmatpush2.msra.mxu0 0.0
        %2463 = vmatprep.subr.mxu0 0.0
        %2464 = vmatpush2.msra.mxu0 0.0
        %2465 = vmatprep.subr.mxu0 0.0
        %2466 = vmatpush2.msra.mxu0 0.0
        %2467 = vmatprep.subr.mxu0 0.0
        %2468 = vmatpush2.msra.mxu0 0.0
        %2469 = vmatprep.subr.mxu0 0.0
        %2470 = vmatpush2.msra.mxu0 0.0
        %2471 = vmatprep.subr.mxu0 0.0
        %2472 = vmatpush2.msra.mxu0 0.0
        %2473 = vmatprep.subr.mxu0 0.0
        %2474 = vmatpush2.msra.mxu0 0.0
        %2475 = vmatprep.subr.mxu0 0.0
        %2476 = vmatpush2.msra.mxu0 0.0
        %2477 = vmatprep.subr.mxu0 0.0
        %2478 = vmatpush2.msra.mxu0 0.0
        %2479 = vmatprep.subr.mxu0 0.0
        %2480 = vmatpush2.msra.mxu0 0.0
        %2481 = vmatprep.subr.mxu0 0.0
        %2482 = vmatpush2.msra.mxu0 0.0
        %2483 = vmatprep.mubr.f32.mxu0 0.0
        %2484 = vmatmul.mubr.f32.gmra.mxu0 %v2055
        %v2485 = vpop.f32.mrf.mxu0
        %v2486 = vadd.f32 %v2051, %v2485
        %v2487 = vpop.f32.mrf.mxu0
        %2488 = vmatprep.mubr.f32.mxu0 0.0
        %2489 = vmatmul.mubr.f32.gmra.mxu0 %v2058
        %v2490 = vpop.f32.mrf.mxu0
        %v2491 = vadd.f32 %v2051, %v2490
        %v2492 = vpop.f32.mrf.mxu0
        %2493 = vdwg.mxu0
        %v2494 = vmax.f32 %v2486, 0.0
        %v2495 = vmax.f32 %v2491, 0.0
        %v2496 = vpack.c.bf16 %v2495, %v2494
        %v2498 = vunpack.c.l.b16 %v2496
        %v2499 = vunpack.c.h.b16 %v2496
        %v2500 = vpack.c.b16 %v2498, %v2498
        %v2501 = vpack.c.b16 %v2499, %v2499
        %2504 = vst.msk [vmem:[#allocation3 + $0x18] sm:$0xf] %vm2149, %v2500
        %2505 = vst.msk [vmem:[#allocation3 + $0x1c] sm:$0xf] %vm2149, %v2501
        %v2506 = vld [vmem:[#allocation2 + $0x110] sm:$0xff]
        %v2507 = vld [vmem:[#allocation2 + $0x118] sm:$0xff]
        %v2508 = vld [vmem:[#allocation2 + $0x120] sm:$0xff]
        %v2509 = vld [vmem:[#allocation2 + $0x128] sm:$0x7f]
        %v2510 = vld [vmem:[#allocation2 + $0x111] sm:$0xff]
        %v2511 = vld [vmem:[#allocation2 + $0x119] sm:$0xff]
        %v2512 = vld [vmem:[#allocation2 + $0x121] sm:$0xff]
        %v2513 = vld [vmem:[#allocation2 + $0x129] sm:$0x7f]
        %v2514 = vmax.f32 %v2506, %v2510
        %v2515 = vmax.f32 %v2507, %v2511
        %v2516 = vmax.f32 %v2508, %v2512
        %v2517 = vmax.f32 %v2509, %v2513
        %v2518 = vld [vmem:[#allocation2 + $0x132] sm:$0xff]
        %v2519 = vld [vmem:[#allocation2 + $0x13a] sm:$0xff]
        %v2520 = vld [vmem:[#allocation2 + $0x142] sm:$0xff]
        %v2521 = vld [vmem:[#allocation2 + $0x14a] sm:$0x7f]
        %v2522 = vmax.f32 %v2514, %v2518
        %v2523 = vmax.f32 %v2515, %v2519
        %v2524 = vmax.f32 %v2516, %v2520
        %v2525 = vmax.f32 %v2517, %v2521
        %v2526 = vld [vmem:[#allocation2 + $0x133] sm:$0xff]
        %v2527 = vld [vmem:[#allocation2 + $0x13b] sm:$0xff]
        %v2528 = vld [vmem:[#allocation2 + $0x143] sm:$0xff]
        %v2529 = vld [vmem:[#allocation2 + $0x14b] sm:$0x7f]
        %v2530 = vmax.f32 %v2522, %v2526
        %v2531 = vmax.f32 %v2523, %v2527
        %v2532 = vmax.f32 %v2524, %v2528
        %v2533 = vmax.f32 %v2525, %v2529
        %v2535 = vsel %vm2060, %v2533, 0
        %2537 = vmatprep.subr.mxu0 0.0
        %2538 = vmatpush1.msra.mxu0 0.0
        %2539 = vmatprep.subr.mxu0 0.0
        %2540 = vmatpush1.msra.mxu0 0.0
        %2541 = vmatprep.subr.mxu0 0.0
        %2542 = vmatpush1.msra.mxu0 0.0
        %2543 = vmatprep.subr.mxu0 0.0
        %2544 = vmatpush1.msra.mxu0 0.0
        %2545 = vmatprep.subr.mxu0 0.0
        %2546 = vmatpush1.msra.mxu0 0.0
        %2547 = vmatprep.subr.mxu0 0.0
        %2548 = vmatpush1.msra.mxu0 0.0
        %2549 = vmatprep.subr.mxu0 0.0
        %2550 = vmatpush1.msra.mxu0 0.0
        %2551 = vmatprep.subr.mxu0 0.0
        %2552 = vmatpush1.msra.mxu0 0.0
        %2553 = vmatprep.subr.mxu0 0.0
        %2554 = vmatpush1.msra.mxu0 0.0
        %2555 = vmatprep.subr.mxu0 0.0
        %2556 = vmatpush1.msra.mxu0 0.0
        %2557 = vmatprep.subr.mxu0 0.0
        %2558 = vmatpush1.msra.mxu0 0.0
        %2559 = vmatprep.subr.mxu0 0.0
        %2560 = vmatpush1.msra.mxu0 0.0
        %2561 = vmatprep.subr.mxu0 0.0
        %2562 = vmatpush1.msra.mxu0 %v2535
        %2563 = vmatprep.subr.mxu0 0.0
        %2564 = vmatpush1.msra.mxu0 %v2532
        %2565 = vmatprep.subr.mxu0 0.0
        %2566 = vmatpush1.msra.mxu0 %v2531
        %2567 = vmatprep.subr.mxu0 0.0
        %2568 = vmatpush1.msra.mxu0 %v2530
        %2569 = vmatprep.subr.mxu0 0.0
        %2570 = vmatpush2.msra.mxu0 0.0
        %2571 = vmatprep.subr.mxu0 0.0
        %2572 = vmatpush2.msra.mxu0 0.0
        %2573 = vmatprep.subr.mxu0 0.0
        %2574 = vmatpush2.msra.mxu0 0.0
        %2575 = vmatprep.subr.mxu0 0.0
        %2576 = vmatpush2.msra.mxu0 0.0
        %2577 = vmatprep.subr.mxu0 0.0
        %2578 = vmatpush2.msra.mxu0 0.0
        %2579 = vmatprep.subr.mxu0 0.0
        %2580 = vmatpush2.msra.mxu0 0.0
        %2581 = vmatprep.subr.mxu0 0.0
        %2582 = vmatpush2.msra.mxu0 0.0
        %2583 = vmatprep.subr.mxu0 0.0
        %2584 = vmatpush2.msra.mxu0 0.0
        %2585 = vmatprep.subr.mxu0 0.0
        %2586 = vmatpush2.msra.mxu0 0.0
        %2587 = vmatprep.subr.mxu0 0.0
        %2588 = vmatpush2.msra.mxu0 0.0
        %2589 = vmatprep.subr.mxu0 0.0
        %2590 = vmatpush2.msra.mxu0 0.0
        %2591 = vmatprep.subr.mxu0 0.0
        %2592 = vmatpush2.msra.mxu0 0.0
        %2593 = vmatprep.subr.mxu0 0.0
        %2594 = vmatpush2.msra.mxu0 0.0
        %2595 = vmatprep.subr.mxu0 0.0
        %2596 = vmatpush2.msra.mxu0 0.0
        %2597 = vmatprep.subr.mxu0 0.0
        %2598 = vmatpush2.msra.mxu0 0.0
        %2599 = vmatprep.subr.mxu0 0.0
        %2600 = vmatpush2.msra.mxu0 0.0
        %2601 = vmatprep.mubr.f32.mxu0 0.0
        %2602 = vmatmul.mubr.f32.gmra.mxu0 %v2055
        %v2603 = vpop.f32.mrf.mxu0
        %v2604 = vadd.f32 %v2051, %v2603
        %v2605 = vpop.f32.mrf.mxu0
        %2606 = vmatprep.mubr.f32.mxu0 0.0
        %2607 = vmatmul.mubr.f32.gmra.mxu0 %v2058
        %v2608 = vpop.f32.mrf.mxu0
        %v2609 = vadd.f32 %v2051, %v2608
        %v2610 = vpop.f32.mrf.mxu0
        %2611 = vdwg.mxu0
        %v2612 = vmax.f32 %v2604, 0.0
        %v2613 = vmax.f32 %v2609, 0.0
        %v2614 = vpack.c.bf16 %v2613, %v2612
        %v2616 = vunpack.c.l.b16 %v2614
        %v2617 = vunpack.c.h.b16 %v2614
        %v2618 = vpack.c.b16 %v2616, %v2616
        %v2619 = vpack.c.b16 %v2617, %v2617
        %2622 = vst.msk [vmem:[#allocation3 + $0x20] sm:$0xf] %vm2149, %v2618
        %2623 = vst.msk [vmem:[#allocation3 + $0x24] sm:$0xf] %vm2149, %v2619
        %v2624 = vld [vmem:[#allocation2 + $0x154] sm:$0xff]
        %v2625 = vld [vmem:[#allocation2 + $0x15c] sm:$0xff]
        %v2626 = vld [vmem:[#allocation2 + $0x164] sm:$0xff]
        %v2627 = vld [vmem:[#allocation2 + $0x16c] sm:$0x7f]
        %v2628 = vld [vmem:[#allocation2 + $0x155] sm:$0xff]
        %v2629 = vld [vmem:[#allocation2 + $0x15d] sm:$0xff]
        %v2630 = vld [vmem:[#allocation2 + $0x165] sm:$0xff]
        %v2631 = vld [vmem:[#allocation2 + $0x16d] sm:$0x7f]
        %v2632 = vmax.f32 %v2624, %v2628
        %v2633 = vmax.f32 %v2625, %v2629
        %v2634 = vmax.f32 %v2626, %v2630
        %v2635 = vmax.f32 %v2627, %v2631
        %v2636 = vld [vmem:[#allocation2 + $0x176] sm:$0xff]
        %v2637 = vld [vmem:[#allocation2 + $0x17e] sm:$0xff]
        %v2638 = vld [vmem:[#allocation2 + $0x186] sm:$0xff]
        %v2639 = vld [vmem:[#allocation2 + $0x18e] sm:$0x7f]
        %v2640 = vmax.f32 %v2632, %v2636
        %v2641 = vmax.f32 %v2633, %v2637
        %v2642 = vmax.f32 %v2634, %v2638
        %v2643 = vmax.f32 %v2635, %v2639
        %v2644 = vld [vmem:[#allocation2 + $0x177] sm:$0xff]
        %v2645 = vld [vmem:[#allocation2 + $0x17f] sm:$0xff]
        %v2646 = vld [vmem:[#allocation2 + $0x187] sm:$0xff]
        %v2647 = vld [vmem:[#allocation2 + $0x18f] sm:$0x7f]
        %v2648 = vmax.f32 %v2640, %v2644
        %v2649 = vmax.f32 %v2641, %v2645
        %v2650 = vmax.f32 %v2642, %v2646
        %v2651 = vmax.f32 %v2643, %v2647
        %v2653 = vsel %vm2060, %v2651, 0
        %2655 = vmatprep.subr.mxu0 0.0
        %2656 = vmatpush1.msra.mxu0 0.0
        %2657 = vmatprep.subr.mxu0 0.0
        %2658 = vmatpush1.msra.mxu0 0.0
        %2659 = vmatprep.subr.mxu0 0.0
        %2660 = vmatpush1.msra.mxu0 0.0
        %2661 = vmatprep.subr.mxu0 0.0
        %2662 = vmatpush1.msra.mxu0 0.0
        %2663 = vmatprep.subr.mxu0 0.0
        %2664 = vmatpush1.msra.mxu0 0.0
        %2665 = vmatprep.subr.mxu0 0.0
        %2666 = vmatpush1.msra.mxu0 0.0
        %2667 = vmatprep.subr.mxu0 0.0
        %2668 = vmatpush1.msra.mxu0 0.0
        %2669 = vmatprep.subr.mxu0 0.0
        %2670 = vmatpush1.msra.mxu0 0.0
        %2671 = vmatprep.subr.mxu0 0.0
        %2672 = vmatpush1.msra.mxu0 0.0
        %2673 = vmatprep.subr.mxu0 0.0
        %2674 = vmatpush1.msra.mxu0 0.0
        %2675 = vmatprep.subr.mxu0 0.0
        %2676 = vmatpush1.msra.mxu0 0.0
        %2677 = vmatprep.subr.mxu0 0.0
        %2678 = vmatpush1.msra.mxu0 0.0
        %2679 = vmatprep.subr.mxu0 0.0
        %2680 = vmatpush1.msra.mxu0 %v2653
        %2681 = vmatprep.subr.mxu0 0.0
        %2682 = vmatpush1.msra.mxu0 %v2650
        %2683 = vmatprep.subr.mxu0 0.0
        %2684 = vmatpush1.msra.mxu0 %v2649
        %2685 = vmatprep.subr.mxu0 0.0
        %2686 = vmatpush1.msra.mxu0 %v2648
        %2687 = vmatprep.subr.mxu0 0.0
        %2688 = vmatpush2.msra.mxu0 0.0
        %2689 = vmatprep.subr.mxu0 0.0
        %2690 = vmatpush2.msra.mxu0 0.0
        %2691 = vmatprep.subr.mxu0 0.0
        %2692 = vmatpush2.msra.mxu0 0.0
        %2693 = vmatprep.subr.mxu0 0.0
        %2694 = vmatpush2.msra.mxu0 0.0
        %2695 = vmatprep.subr.mxu0 0.0
        %2696 = vmatpush2.msra.mxu0 0.0
        %2697 = vmatprep.subr.mxu0 0.0
        %2698 = vmatpush2.msra.mxu0 0.0
        %2699 = vmatprep.subr.mxu0 0.0
        %2700 = vmatpush2.msra.mxu0 0.0
        %2701 = vmatprep.subr.mxu0 0.0
        %2702 = vmatpush2.msra.mxu0 0.0
        %2703 = vmatprep.subr.mxu0 0.0
        %2704 = vmatpush2.msra.mxu0 0.0
        %2705 = vmatprep.subr.mxu0 0.0
        %2706 = vmatpush2.msra.mxu0 0.0
        %2707 = vmatprep.subr.mxu0 0.0
        %2708 = vmatpush2.msra.mxu0 0.0
        %2709 = vmatprep.subr.mxu0 0.0
        %2710 = vmatpush2.msra.mxu0 0.0
        %2711 = vmatprep.subr.mxu0 0.0
        %2712 = vmatpush2.msra.mxu0 0.0
        %2713 = vmatprep.subr.mxu0 0.0
        %2714 = vmatpush2.msra.mxu0 0.0
        %2715 = vmatprep.subr.mxu0 0.0
        %2716 = vmatpush2.msra.mxu0 0.0
        %2717 = vmatprep.subr.mxu0 0.0
        %2718 = vmatpush2.msra.mxu0 0.0
        %2719 = vmatprep.mubr.f32.mxu0 0.0
        %2720 = vmatmul.mubr.f32.gmra.mxu0 %v2055
        %v2721 = vpop.f32.mrf.mxu0
        %v2722 = vadd.f32 %v2051, %v2721
        %v2723 = vpop.f32.mrf.mxu0
        %2724 = vmatprep.mubr.f32.mxu0 0.0
        %2725 = vmatmul.mubr.f32.gmra.mxu0 %v2058
        %v2726 = vpop.f32.mrf.mxu0
        %v2727 = vadd.f32 %v2051, %v2726
        %v2728 = vpop.f32.mrf.mxu0
        %2729 = vdwg.mxu0
        %v2730 = vmax.f32 %v2722, 0.0
        %v2731 = vmax.f32 %v2727, 0.0
        %v2732 = vpack.c.bf16 %v2731, %v2730
        %v2734 = vunpack.c.l.b16 %v2732
        %v2735 = vunpack.c.h.b16 %v2732
        %v2736 = vpack.c.b16 %v2734, %v2734
        %v2737 = vpack.c.b16 %v2735, %v2735
        %2740 = vst.msk [vmem:[#allocation3 + $0x28] sm:$0xf] %vm2149, %v2736
        %2741 = vst.msk [vmem:[#allocation3 + $0x2c] sm:$0xf] %vm2149, %v2737
        %v2742 = vld [vmem:[#allocation2 + $0x198] sm:$0xff]
        %v2743 = vld [vmem:[#allocation2 + $0x1a0] sm:$0xff]
        %v2744 = vld [vmem:[#allocation2 + $0x1a8] sm:$0xff]
        %v2745 = vld [vmem:[#allocation2 + $0x1b0] sm:$0x7f]
        %v2746 = vld [vmem:[#allocation2 + $0x199] sm:$0xff]
        %v2747 = vld [vmem:[#allocation2 + $0x1a1] sm:$0xff]
        %v2748 = vld [vmem:[#allocation2 + $0x1a9] sm:$0xff]
        %v2749 = vld [vmem:[#allocation2 + $0x1b1] sm:$0x7f]
        %v2750 = vmax.f32 %v2742, %v2746
        %v2751 = vmax.f32 %v2743, %v2747
        %v2752 = vmax.f32 %v2744, %v2748
        %v2753 = vmax.f32 %v2745, %v2749
        %v2754 = vld [vmem:[#allocation2 + $0x1ba] sm:$0xff]
        %v2755 = vld [vmem:[#allocation2 + $0x1c2] sm:$0xff]
        %v2756 = vld [vmem:[#allocation2 + $0x1ca] sm:$0xff]
        %v2757 = vld [vmem:[#allocation2 + $0x1d2] sm:$0x7f]
        %v2758 = vmax.f32 %v2750, %v2754
        %v2759 = vmax.f32 %v2751, %v2755
        %v2760 = vmax.f32 %v2752, %v2756
        %v2761 = vmax.f32 %v2753, %v2757
        %v2762 = vld [vmem:[#allocation2 + $0x1bb] sm:$0xff]
        %v2763 = vld [vmem:[#allocation2 + $0x1c3] sm:$0xff]
        %v2764 = vld [vmem:[#allocation2 + $0x1cb] sm:$0xff]
        %v2765 = vld [vmem:[#allocation2 + $0x1d3] sm:$0x7f]
        %v2766 = vmax.f32 %v2758, %v2762
        %v2767 = vmax.f32 %v2759, %v2763
        %v2768 = vmax.f32 %v2760, %v2764
        %v2769 = vmax.f32 %v2761, %v2765
        %v2771 = vsel %vm2060, %v2769, 0
        %2773 = vmatprep.subr.mxu0 0.0
        %2774 = vmatpush1.msra.mxu0 0.0
        %2775 = vmatprep.subr.mxu0 0.0
        %2776 = vmatpush1.msra.mxu0 0.0
        %2777 = vmatprep.subr.mxu0 0.0
        %2778 = vmatpush1.msra.mxu0 0.0
        %2779 = vmatprep.subr.mxu0 0.0
        %2780 = vmatpush1.msra.mxu0 0.0
        %2781 = vmatprep.subr.mxu0 0.0
        %2782 = vmatpush1.msra.mxu0 0.0
        %2783 = vmatprep.subr.mxu0 0.0
        %2784 = vmatpush1.msra.mxu0 0.0
        %2785 = vmatprep.subr.mxu0 0.0
        %2786 = vmatpush1.msra.mxu0 0.0
        %2787 = vmatprep.subr.mxu0 0.0
        %2788 = vmatpush1.msra.mxu0 0.0
        %2789 = vmatprep.subr.mxu0 0.0
        %2790 = vmatpush1.msra.mxu0 0.0
        %2791 = vmatprep.subr.mxu0 0.0
        %2792 = vmatpush1.msra.mxu0 0.0
        %2793 = vmatprep.subr.mxu0 0.0
        %2794 = vmatpush1.msra.mxu0 0.0
        %2795 = vmatprep.subr.mxu0 0.0
        %2796 = vmatpush1.msra.mxu0 0.0
        %2797 = vmatprep.subr.mxu0 0.0
        %2798 = vmatpush1.msra.mxu0 %v2771
        %2799 = vmatprep.subr.mxu0 0.0
        %2800 = vmatpush1.msra.mxu0 %v2768
        %2801 = vmatprep.subr.mxu0 0.0
        %2802 = vmatpush1.msra.mxu0 %v2767
        %2803 = vmatprep.subr.mxu0 0.0
        %2804 = vmatpush1.msra.mxu0 %v2766
        %2805 = vmatprep.subr.mxu0 0.0
        %2806 = vmatpush2.msra.mxu0 0.0
        %2807 = vmatprep.subr.mxu0 0.0
        %2808 = vmatpush2.msra.mxu0 0.0
        %2809 = vmatprep.subr.mxu0 0.0
        %2810 = vmatpush2.msra.mxu0 0.0
        %2811 = vmatprep.subr.mxu0 0.0
        %2812 = vmatpush2.msra.mxu0 0.0
        %2813 = vmatprep.subr.mxu0 0.0
        %2814 = vmatpush2.msra.mxu0 0.0
        %2815 = vmatprep.subr.mxu0 0.0
        %2816 = vmatpush2.msra.mxu0 0.0
        %2817 = vmatprep.subr.mxu0 0.0
        %2818 = vmatpush2.msra.mxu0 0.0
        %2819 = vmatprep.subr.mxu0 0.0
        %2820 = vmatpush2.msra.mxu0 0.0
        %2821 = vmatprep.subr.mxu0 0.0
        %2822 = vmatpush2.msra.mxu0 0.0
        %2823 = vmatprep.subr.mxu0 0.0
        %2824 = vmatpush2.msra.mxu0 0.0
        %2825 = vmatprep.subr.mxu0 0.0
        %2826 = vmatpush2.msra.mxu0 0.0
        %2827 = vmatprep.subr.mxu0 0.0
        %2828 = vmatpush2.msra.mxu0 0.0
        %2829 = vmatprep.subr.mxu0 0.0
        %2830 = vmatpush2.msra.mxu0 0.0
        %2831 = vmatprep.subr.mxu0 0.0
        %2832 = vmatpush2.msra.mxu0 0.0
        %2833 = vmatprep.subr.mxu0 0.0
        %2834 = vmatpush2.msra.mxu0 0.0
        %2835 = vmatprep.subr.mxu0 0.0
        %2836 = vmatpush2.msra.mxu0 0.0
        %2837 = vmatprep.mubr.f32.mxu0 0.0
        %2838 = vmatmul.mubr.f32.gmra.mxu0 %v2055
        %v2839 = vpop.f32.mrf.mxu0
        %v2840 = vadd.f32 %v2051, %v2839
        %v2841 = vpop.f32.mrf.mxu0
        %2842 = vmatprep.mubr.f32.mxu0 0.0
        %2843 = vmatmul.mubr.f32.gmra.mxu0 %v2058
        %v2844 = vpop.f32.mrf.mxu0
        %v2845 = vadd.f32 %v2051, %v2844
        %v2846 = vpop.f32.mrf.mxu0
        %2847 = vdwg.mxu0
        %v2848 = vmax.f32 %v2840, 0.0
        %v2849 = vmax.f32 %v2845, 0.0
        %v2850 = vpack.c.bf16 %v2849, %v2848
        %v2852 = vunpack.c.l.b16 %v2850
        %v2853 = vunpack.c.h.b16 %v2850
        %v2854 = vpack.c.b16 %v2852, %v2852
        %v2855 = vpack.c.b16 %v2853, %v2853
        %2858 = vst.msk [vmem:[#allocation3 + $0x30] sm:$0xf] %vm2149, %v2854
        %2859 = vst.msk [vmem:[#allocation3 + $0x34] sm:$0xf] %vm2149, %v2855
        %v2860 = vld [vmem:[#allocation2 + $0x1dc] sm:$0xff]
        %v2861 = vld [vmem:[#allocation2 + $0x1e4] sm:$0xff]
        %v2862 = vld [vmem:[#allocation2 + $0x1ec] sm:$0xff]
        %v2863 = vld [vmem:[#allocation2 + $0x1f4] sm:$0x7f]
        %v2864 = vld [vmem:[#allocation2 + $0x1dd] sm:$0xff]
        %v2865 = vld [vmem:[#allocation2 + $0x1e5] sm:$0xff]
        %v2866 = vld [vmem:[#allocation2 + $0x1ed] sm:$0xff]
        %v2867 = vld [vmem:[#allocation2 + $0x1f5] sm:$0x7f]
        %v2868 = vmax.f32 %v2860, %v2864
        %v2869 = vmax.f32 %v2861, %v2865
        %v2870 = vmax.f32 %v2862, %v2866
        %v2871 = vmax.f32 %v2863, %v2867
        %v2872 = vld [vmem:[#allocation2 + $0x1fe] sm:$0xff]
        %v2873 = vld [vmem:[#allocation2 + $0x206] sm:$0xff]
        %v2874 = vld [vmem:[#allocation2 + $0x20e] sm:$0xff]
        %v2875 = vld [vmem:[#allocation2 + $0x216] sm:$0x7f]
        %v2876 = vmax.f32 %v2868, %v2872
        %v2877 = vmax.f32 %v2869, %v2873
        %v2878 = vmax.f32 %v2870, %v2874
        %v2879 = vmax.f32 %v2871, %v2875
        %v2880 = vld [vmem:[#allocation2 + $0x1ff] sm:$0xff]
        %v2881 = vld [vmem:[#allocation2 + $0x207] sm:$0xff]
        %v2882 = vld [vmem:[#allocation2 + $0x20f] sm:$0xff]
        %v2883 = vld [vmem:[#allocation2 + $0x217] sm:$0x7f]
        %v2884 = vmax.f32 %v2876, %v2880
        %v2885 = vmax.f32 %v2877, %v2881
        %v2886 = vmax.f32 %v2878, %v2882
        %v2887 = vmax.f32 %v2879, %v2883
        %v2889 = vsel %vm2060, %v2887, 0
        %2891 = vmatprep.subr.mxu0 0.0
        %2892 = vmatpush1.msra.mxu0 0.0
        %2893 = vmatprep.subr.mxu0 0.0
        %2894 = vmatpush1.msra.mxu0 0.0
        %2895 = vmatprep.subr.mxu0 0.0
        %2896 = vmatpush1.msra.mxu0 0.0
        %2897 = vmatprep.subr.mxu0 0.0
        %2898 = vmatpush1.msra.mxu0 0.0
        %2899 = vmatprep.subr.mxu0 0.0
        %2900 = vmatpush1.msra.mxu0 0.0
        %2901 = vmatprep.subr.mxu0 0.0
        %2902 = vmatpush1.msra.mxu0 0.0
        %2903 = vmatprep.subr.mxu0 0.0
        %2904 = vmatpush1.msra.mxu0 0.0
        %2905 = vmatprep.subr.mxu0 0.0
        %2906 = vmatpush1.msra.mxu0 0.0
        %2907 = vmatprep.subr.mxu0 0.0
        %2908 = vmatpush1.msra.mxu0 0.0
        %2909 = vmatprep.subr.mxu0 0.0
        %2910 = vmatpush1.msra.mxu0 0.0
        %2911 = vmatprep.subr.mxu0 0.0
        %2912 = vmatpush1.msra.mxu0 0.0
        %2913 = vmatprep.subr.mxu0 0.0
        %2914 = vmatpush1.msra.mxu0 0.0
        %2915 = vmatprep.subr.mxu0 0.0
        %2916 = vmatpush1.msra.mxu0 %v2889
        %2917 = vmatprep.subr.mxu0 0.0
        %2918 = vmatpush1.msra.mxu0 %v2886
        %2919 = vmatprep.subr.mxu0 0.0
        %2920 = vmatpush1.msra.mxu0 %v2885
        %2921 = vmatprep.subr.mxu0 0.0
        %2922 = vmatpush1.msra.mxu0 %v2884
        %2923 = vmatprep.subr.mxu0 0.0
        %2924 = vmatpush2.msra.mxu0 0.0
        %2925 = vmatprep.subr.mxu0 0.0
        %2926 = vmatpush2.msra.mxu0 0.0
        %2927 = vmatprep.subr.mxu0 0.0
        %2928 = vmatpush2.msra.mxu0 0.0
        %2929 = vmatprep.subr.mxu0 0.0
        %2930 = vmatpush2.msra.mxu0 0.0
        %2931 = vmatprep.subr.mxu0 0.0
        %2932 = vmatpush2.msra.mxu0 0.0
        %2933 = vmatprep.subr.mxu0 0.0
        %2934 = vmatpush2.msra.mxu0 0.0
        %2935 = vmatprep.subr.mxu0 0.0
        %2936 = vmatpush2.msra.mxu0 0.0
        %2937 = vmatprep.subr.mxu0 0.0
        %2938 = vmatpush2.msra.mxu0 0.0
        %2939 = vmatprep.subr.mxu0 0.0
        %2940 = vmatpush2.msra.mxu0 0.0
        %2941 = vmatprep.subr.mxu0 0.0
        %2942 = vmatpush2.msra.mxu0 0.0
        %2943 = vmatprep.subr.mxu0 0.0
        %2944 = vmatpush2.msra.mxu0 0.0
        %2945 = vmatprep.subr.mxu0 0.0
        %2946 = vmatpush2.msra.mxu0 0.0
        %2947 = vmatprep.subr.mxu0 0.0
        %2948 = vmatpush2.msra.mxu0 0.0
        %2949 = vmatprep.subr.mxu0 0.0
        %2950 = vmatpush2.msra.mxu0 0.0
        %2951 = vmatprep.subr.mxu0 0.0
        %2952 = vmatpush2.msra.mxu0 0.0
        %2953 = vmatprep.subr.mxu0 0.0
        %2954 = vmatpush2.msra.mxu0 0.0
        %2955 = vmatprep.mubr.f32.mxu0 0.0
        %2956 = vmatmul.mubr.f32.gmra.mxu0 %v2055
        %v2957 = vpop.f32.mrf.mxu0
        %v2958 = vadd.f32 %v2051, %v2957
        %v2959 = vpop.f32.mrf.mxu0
        %2960 = vmatprep.mubr.f32.mxu0 0.0
        %2961 = vmatmul.mubr.f32.gmra.mxu0 %v2058
        %v2962 = vpop.f32.mrf.mxu0
        %v2963 = vadd.f32 %v2051, %v2962
        %v2964 = vpop.f32.mrf.mxu0
        %2965 = vdwg.mxu0
        %v2966 = vmax.f32 %v2958, 0.0
        %v2967 = vmax.f32 %v2963, 0.0
        %v2968 = vpack.c.bf16 %v2967, %v2966
        %v2970 = vunpack.c.l.b16 %v2968
        %v2971 = vunpack.c.h.b16 %v2968
        %v2972 = vpack.c.b16 %v2970, %v2970
        %v2973 = vpack.c.b16 %v2971, %v2971
        %2976 = vst.msk [vmem:[#allocation3 + $0x38] sm:$0xf] %vm2149, %v2972
        %2977 = vst.msk [vmem:[#allocation3 + $0x3c] sm:$0xf] %vm2149, %v2973
        %v2978 = vld [vmem:[#allocation2 + $0x220] sm:$0xff]
        %v2979 = vld [vmem:[#allocation2 + $0x228] sm:$0xff]
        %v2980 = vld [vmem:[#allocation2 + $0x230] sm:$0xff]
        %v2981 = vld [vmem:[#allocation2 + $0x238] sm:$0x7f]
        %v2982 = vld [vmem:[#allocation2 + $0x221] sm:$0xff]
        %v2983 = vld [vmem:[#allocation2 + $0x229] sm:$0xff]
        %v2984 = vld [vmem:[#allocation2 + $0x231] sm:$0xff]
        %v2985 = vld [vmem:[#allocation2 + $0x239] sm:$0x7f]
        %v2986 = vmax.f32 %v2978, %v2982
        %v2987 = vmax.f32 %v2979, %v2983
        %v2988 = vmax.f32 %v2980, %v2984
        %v2989 = vmax.f32 %v2981, %v2985
        %v2990 = vld [vmem:[#allocation2 + $0x242] sm:$0xff]
        %v2991 = vld [vmem:[#allocation2 + $0x24a] sm:$0xff]
        %v2992 = vld [vmem:[#allocation2 + $0x252] sm:$0xff]
        %v2993 = vld [vmem:[#allocation2 + $0x25a] sm:$0x7f]
        %v2994 = vmax.f32 %v2986, %v2990
        %v2995 = vmax.f32 %v2987, %v2991
        %v2996 = vmax.f32 %v2988, %v2992
        %v2997 = vmax.f32 %v2989, %v2993
        %v2998 = vld [vmem:[#allocation2 + $0x243] sm:$0xff]
        %v2999 = vld [vmem:[#allocation2 + $0x24b] sm:$0xff]
        %v3000 = vld [vmem:[#allocation2 + $0x253] sm:$0xff]
        %v3001 = vld [vmem:[#allocation2 + $0x25b] sm:$0x7f]
        %v3002 = vmax.f32 %v2994, %v2998
        %v3003 = vmax.f32 %v2995, %v2999
        %v3004 = vmax.f32 %v2996, %v3000
        %v3005 = vmax.f32 %v2997, %v3001
        %v3007 = vsel %vm2060, %v3005, 0
        %3009 = vmatprep.subr.mxu0 0.0
        %3010 = vmatpush1.msra.mxu0 0.0
        %3011 = vmatprep.subr.mxu0 0.0
        %3012 = vmatpush1.msra.mxu0 0.0
        %3013 = vmatprep.subr.mxu0 0.0
        %3014 = vmatpush1.msra.mxu0 0.0
        %3015 = vmatprep.subr.mxu0 0.0
        %3016 = vmatpush1.msra.mxu0 0.0
        %3017 = vmatprep.subr.mxu0 0.0
        %3018 = vmatpush1.msra.mxu0 0.0
        %3019 = vmatprep.subr.mxu0 0.0
        %3020 = vmatpush1.msra.mxu0 0.0
        %3021 = vmatprep.subr.mxu0 0.0
        %3022 = vmatpush1.msra.mxu0 0.0
        %3023 = vmatprep.subr.mxu0 0.0
        %3024 = vmatpush1.msra.mxu0 0.0
        %3025 = vmatprep.subr.mxu0 0.0
        %3026 = vmatpush1.msra.mxu0 0.0
        %3027 = vmatprep.subr.mxu0 0.0
        %3028 = vmatpush1.msra.mxu0 0.0
        %3029 = vmatprep.subr.mxu0 0.0
        %3030 = vmatpush1.msra.mxu0 0.0
        %3031 = vmatprep.subr.mxu0 0.0
        %3032 = vmatpush1.msra.mxu0 0.0
        %3033 = vmatprep.subr.mxu0 0.0
        %3034 = vmatpush1.msra.mxu0 %v3007
        %3035 = vmatprep.subr.mxu0 0.0
        %3036 = vmatpush1.msra.mxu0 %v3004
        %3037 = vmatprep.subr.mxu0 0.0
        %3038 = vmatpush1.msra.mxu0 %v3003
        %3039 = vmatprep.subr.mxu0 0.0
        %3040 = vmatpush1.msra.mxu0 %v3002
        %3041 = vmatprep.subr.mxu0 0.0
        %3042 = vmatpush2.msra.mxu0 0.0
        %3043 = vmatprep.subr.mxu0 0.0
        %3044 = vmatpush2.msra.mxu0 0.0
        %3045 = vmatprep.subr.mxu0 0.0
        %3046 = vmatpush2.msra.mxu0 0.0
        %3047 = vmatprep.subr.mxu0 0.0
        %3048 = vmatpush2.msra.mxu0 0.0
        %3049 = vmatprep.subr.mxu0 0.0
        %3050 = vmatpush2.msra.mxu0 0.0
        %3051 = vmatprep.subr.mxu0 0.0
        %3052 = vmatpush2.msra.mxu0 0.0
        %3053 = vmatprep.subr.mxu0 0.0
        %3054 = vmatpush2.msra.mxu0 0.0
        %3055 = vmatprep.subr.mxu0 0.0
        %3056 = vmatpush2.msra.mxu0 0.0
        %3057 = vmatprep.subr.mxu0 0.0
        %3058 = vmatpush2.msra.mxu0 0.0
        %3059 = vmatprep.subr.mxu0 0.0
        %3060 = vmatpush2.msra.mxu0 0.0
        %3061 = vmatprep.subr.mxu0 0.0
        %3062 = vmatpush2.msra.mxu0 0.0
        %3063 = vmatprep.subr.mxu0 0.0
        %3064 = vmatpush2.msra.mxu0 0.0
        %3065 = vmatprep.subr.mxu0 0.0
        %3066 = vmatpush2.msra.mxu0 0.0
        %3067 = vmatprep.subr.mxu0 0.0
        %3068 = vmatpush2.msra.mxu0 0.0
        %3069 = vmatprep.subr.mxu0 0.0
        %3070 = vmatpush2.msra.mxu0 0.0
        %3071 = vmatprep.subr.mxu0 0.0
        %3072 = vmatpush2.msra.mxu0 0.0
        %3073 = vmatprep.mubr.f32.mxu0 0.0
        %3074 = vmatmul.mubr.f32.gmra.mxu0 %v2055
        %v3075 = vpop.f32.mrf.mxu0
        %v3076 = vadd.f32 %v2051, %v3075
        %v3077 = vpop.f32.mrf.mxu0
        %3078 = vmatprep.mubr.f32.mxu0 0.0
        %3079 = vmatmul.mubr.f32.gmra.mxu0 %v2058
        %v3080 = vpop.f32.mrf.mxu0
        %v3081 = vadd.f32 %v2051, %v3080
        %v3082 = vpop.f32.mrf.mxu0
        %3083 = vdwg.mxu0
        %v3084 = vmax.f32 %v3076, 0.0
        %v3085 = vmax.f32 %v3081, 0.0
        %v3086 = vpack.c.bf16 %v3085, %v3084
        %v3088 = vunpack.c.l.b16 %v3086
        %v3089 = vunpack.c.h.b16 %v3086
        %v3090 = vpack.c.b16 %v3088, %v3088
        %v3091 = vpack.c.b16 %v3089, %v3089
        %3094 = vst.msk [vmem:[#allocation3 + $0x40] sm:$0xf] %vm2149, %v3090
        %3095 = vst.msk [vmem:[#allocation3 + $0x44] sm:$0xf] %vm2149, %v3091
        %v3096 = vld [vmem:[#allocation2 + $0x264] sm:$0xff]
        %v3097 = vld [vmem:[#allocation2 + $0x26c] sm:$0xff]
        %v3098 = vld [vmem:[#allocation2 + $0x274] sm:$0xff]
        %v3099 = vld [vmem:[#allocation2 + $0x27c] sm:$0x7f]
        %v3100 = vld [vmem:[#allocation2 + $0x265] sm:$0xff]
        %v3101 = vld [vmem:[#allocation2 + $0x26d] sm:$0xff]
        %v3102 = vld [vmem:[#allocation2 + $0x275] sm:$0xff]
        %v3103 = vld [vmem:[#allocation2 + $0x27d] sm:$0x7f]
        %v3104 = vmax.f32 %v3096, %v3100
        %v3105 = vmax.f32 %v3097, %v3101
        %v3106 = vmax.f32 %v3098, %v3102
        %v3107 = vmax.f32 %v3099, %v3103
        %v3108 = vld [vmem:[#allocation2 + $0x286] sm:$0xff]
        %v3109 = vld [vmem:[#allocation2 + $0x28e] sm:$0xff]
        %v3110 = vld [vmem:[#allocation2 + $0x296] sm:$0xff]
        %v3111 = vld [vmem:[#allocation2 + $0x29e] sm:$0x7f]
        %v3112 = vmax.f32 %v3104, %v3108
        %v3113 = vmax.f32 %v3105, %v3109
        %v3114 = vmax.f32 %v3106, %v3110
        %v3115 = vmax.f32 %v3107, %v3111
        %v3116 = vld [vmem:[#allocation2 + $0x287] sm:$0xff]
        %v3117 = vld [vmem:[#allocation2 + $0x28f] sm:$0xff]
        %v3118 = vld [vmem:[#allocation2 + $0x297] sm:$0xff]
        %v3119 = vld [vmem:[#allocation2 + $0x29f] sm:$0x7f]
        %v3120 = vmax.f32 %v3112, %v3116
        %v3121 = vmax.f32 %v3113, %v3117
        %v3122 = vmax.f32 %v3114, %v3118
        %v3123 = vmax.f32 %v3115, %v3119
        %v3125 = vsel %vm2060, %v3123, 0
        %3127 = vmatprep.subr.mxu0 0.0
        %3128 = vmatpush1.msra.mxu0 0.0
        %3129 = vmatprep.subr.mxu0 0.0
        %3130 = vmatpush1.msra.mxu0 0.0
        %3131 = vmatprep.subr.mxu0 0.0
        %3132 = vmatpush1.msra.mxu0 0.0
        %3133 = vmatprep.subr.mxu0 0.0
        %3134 = vmatpush1.msra.mxu0 0.0
        %3135 = vmatprep.subr.mxu0 0.0
        %3136 = vmatpush1.msra.mxu0 0.0
        %3137 = vmatprep.subr.mxu0 0.0
        %3138 = vmatpush1.msra.mxu0 0.0
        %3139 = vmatprep.subr.mxu0 0.0
        %3140 = vmatpush1.msra.mxu0 0.0
        %3141 = vmatprep.subr.mxu0 0.0
        %3142 = vmatpush1.msra.mxu0 0.0
        %3143 = vmatprep.subr.mxu0 0.0
        %3144 = vmatpush1.msra.mxu0 0.0
        %3145 = vmatprep.subr.mxu0 0.0
        %3146 = vmatpush1.msra.mxu0 0.0
        %3147 = vmatprep.subr.mxu0 0.0
        %3148 = vmatpush1.msra.mxu0 0.0
        %3149 = vmatprep.subr.mxu0 0.0
        %3150 = vmatpush1.msra.mxu0 0.0
        %3151 = vmatprep.subr.mxu0 0.0
        %3152 = vmatpush1.msra.mxu0 %v3125
        %3153 = vmatprep.subr.mxu0 0.0
        %3154 = vmatpush1.msra.mxu0 %v3122
        %3155 = vmatprep.subr.mxu0 0.0
        %3156 = vmatpush1.msra.mxu0 %v3121
        %3157 = vmatprep.subr.mxu0 0.0
        %3158 = vmatpush1.msra.mxu0 %v3120
        %3159 = vmatprep.subr.mxu0 0.0
        %3160 = vmatpush2.msra.mxu0 0.0
        %3161 = vmatprep.subr.mxu0 0.0
        %3162 = vmatpush2.msra.mxu0 0.0
        %3163 = vmatprep.subr.mxu0 0.0
        %3164 = vmatpush2.msra.mxu0 0.0
        %3165 = vmatprep.subr.mxu0 0.0
        %3166 = vmatpush2.msra.mxu0 0.0
        %3167 = vmatprep.subr.mxu0 0.0
        %3168 = vmatpush2.msra.mxu0 0.0
        %3169 = vmatprep.subr.mxu0 0.0
        %3170 = vmatpush2.msra.mxu0 0.0
        %3171 = vmatprep.subr.mxu0 0.0
        %3172 = vmatpush2.msra.mxu0 0.0
        %3173 = vmatprep.subr.mxu0 0.0
        %3174 = vmatpush2.msra.mxu0 0.0
        %3175 = vmatprep.subr.mxu0 0.0
        %3176 = vmatpush2.msra.mxu0 0.0
        %3177 = vmatprep.subr.mxu0 0.0
        %3178 = vmatpush2.msra.mxu0 0.0
        %3179 = vmatprep.subr.mxu0 0.0
        %3180 = vmatpush2.msra.mxu0 0.0
        %3181 = vmatprep.subr.mxu0 0.0
        %3182 = vmatpush2.msra.mxu0 0.0
        %3183 = vmatprep.subr.mxu0 0.0
        %3184 = vmatpush2.msra.mxu0 0.0
        %3185 = vmatprep.subr.mxu0 0.0
        %3186 = vmatpush2.msra.mxu0 0.0
        %3187 = vmatprep.subr.mxu0 0.0
        %3188 = vmatpush2.msra.mxu0 0.0
        %3189 = vmatprep.subr.mxu0 0.0
        %3190 = vmatpush2.msra.mxu0 0.0
        %3191 = vmatprep.mubr.f32.mxu0 0.0
        %3192 = vmatmul.mubr.f32.gmra.mxu0 %v2055
        %v3193 = vpop.f32.mrf.mxu0
        %v3194 = vadd.f32 %v2051, %v3193
        %v3195 = vpop.f32.mrf.mxu0
        %3196 = vmatprep.mubr.f32.mxu0 0.0
        %3197 = vmatmul.mubr.f32.gmra.mxu0 %v2058
        %v3198 = vpop.f32.mrf.mxu0
        %v3199 = vadd.f32 %v2051, %v3198
        %v3200 = vpop.f32.mrf.mxu0
        %3201 = vdwg.mxu0
        %v3202 = vmax.f32 %v3194, 0.0
        %v3203 = vmax.f32 %v3199, 0.0
        %v3204 = vpack.c.bf16 %v3203, %v3202
        %v3206 = vunpack.c.l.b16 %v3204
        %v3207 = vunpack.c.h.b16 %v3204
        %v3208 = vpack.c.b16 %v3206, %v3206
        %v3209 = vpack.c.b16 %v3207, %v3207
        %3212 = vst.msk [vmem:[#allocation3 + $0x48] sm:$0xf] %vm2149, %v3208
        %3213 = vst.msk [vmem:[#allocation3 + $0x4c] sm:$0xf] %vm2149, %v3209
        %v3214 = vld [vmem:[#allocation2 + $0x2a8] sm:$0xff]
        %v3215 = vld [vmem:[#allocation2 + $0x2b0] sm:$0xff]
        %v3216 = vld [vmem:[#allocation2 + $0x2b8] sm:$0xff]
        %v3217 = vld [vmem:[#allocation2 + $0x2c0] sm:$0x7f]
        %v3218 = vld [vmem:[#allocation2 + $0x2a9] sm:$0xff]
        %v3219 = vld [vmem:[#allocation2 + $0x2b1] sm:$0xff]
        %v3220 = vld [vmem:[#allocation2 + $0x2b9] sm:$0xff]
        %v3221 = vld [vmem:[#allocation2 + $0x2c1] sm:$0x7f]
        %v3222 = vmax.f32 %v3214, %v3218
        %v3223 = vmax.f32 %v3215, %v3219
        %v3224 = vmax.f32 %v3216, %v3220
        %v3225 = vmax.f32 %v3217, %v3221
        %v3226 = vld [vmem:[#allocation2 + $0x2ca] sm:$0xff]
        %v3227 = vld [vmem:[#allocation2 + $0x2d2] sm:$0xff]
        %v3228 = vld [vmem:[#allocation2 + $0x2da] sm:$0xff]
        %v3229 = vld [vmem:[#allocation2 + $0x2e2] sm:$0x7f]
        %v3230 = vmax.f32 %v3222, %v3226
        %v3231 = vmax.f32 %v3223, %v3227
        %v3232 = vmax.f32 %v3224, %v3228
        %v3233 = vmax.f32 %v3225, %v3229
        %v3234 = vld [vmem:[#allocation2 + $0x2cb] sm:$0xff]
        %v3235 = vld [vmem:[#allocation2 + $0x2d3] sm:$0xff]
        %v3236 = vld [vmem:[#allocation2 + $0x2db] sm:$0xff]
        %v3237 = vld [vmem:[#allocation2 + $0x2e3] sm:$0x7f]
        %v3238 = vmax.f32 %v3230, %v3234
        %v3239 = vmax.f32 %v3231, %v3235
        %v3240 = vmax.f32 %v3232, %v3236
        %v3241 = vmax.f32 %v3233, %v3237
        %v3243 = vsel %vm2060, %v3241, 0
        %3245 = vmatprep.subr.mxu0 0.0
        %3246 = vmatpush1.msra.mxu0 0.0
        %3247 = vmatprep.subr.mxu0 0.0
        %3248 = vmatpush1.msra.mxu0 0.0
        %3249 = vmatprep.subr.mxu0 0.0
        %3250 = vmatpush1.msra.mxu0 0.0
        %3251 = vmatprep.subr.mxu0 0.0
        %3252 = vmatpush1.msra.mxu0 0.0
        %3253 = vmatprep.subr.mxu0 0.0
        %3254 = vmatpush1.msra.mxu0 0.0
        %3255 = vmatprep.subr.mxu0 0.0
        %3256 = vmatpush1.msra.mxu0 0.0
        %3257 = vmatprep.subr.mxu0 0.0
        %3258 = vmatpush1.msra.mxu0 0.0
        %3259 = vmatprep.subr.mxu0 0.0
        %3260 = vmatpush1.msra.mxu0 0.0
        %3261 = vmatprep.subr.mxu0 0.0
        %3262 = vmatpush1.msra.mxu0 0.0
        %3263 = vmatprep.subr.mxu0 0.0
        %3264 = vmatpush1.msra.mxu0 0.0
        %3265 = vmatprep.subr.mxu0 0.0
        %3266 = vmatpush1.msra.mxu0 0.0
        %3267 = vmatprep.subr.mxu0 0.0
        %3268 = vmatpush1.msra.mxu0 0.0
        %3269 = vmatprep.subr.mxu0 0.0
        %3270 = vmatpush1.msra.mxu0 %v3243
        %3271 = vmatprep.subr.mxu0 0.0
        %3272 = vmatpush1.msra.mxu0 %v3240
        %3273 = vmatprep.subr.mxu0 0.0
        %3274 = vmatpush1.msra.mxu0 %v3239
        %3275 = vmatprep.subr.mxu0 0.0
        %3276 = vmatpush1.msra.mxu0 %v3238
        %3277 = vmatprep.subr.mxu0 0.0
        %3278 = vmatpush2.msra.mxu0 0.0
        %3279 = vmatprep.subr.mxu0 0.0
        %3280 = vmatpush2.msra.mxu0 0.0
        %3281 = vmatprep.subr.mxu0 0.0
        %3282 = vmatpush2.msra.mxu0 0.0
        %3283 = vmatprep.subr.mxu0 0.0
        %3284 = vmatpush2.msra.mxu0 0.0
        %3285 = vmatprep.subr.mxu0 0.0
        %3286 = vmatpush2.msra.mxu0 0.0
        %3287 = vmatprep.subr.mxu0 0.0
        %3288 = vmatpush2.msra.mxu0 0.0
        %3289 = vmatprep.subr.mxu0 0.0
        %3290 = vmatpush2.msra.mxu0 0.0
        %3291 = vmatprep.subr.mxu0 0.0
        %3292 = vmatpush2.msra.mxu0 0.0
        %3293 = vmatprep.subr.mxu0 0.0
        %3294 = vmatpush2.msra.mxu0 0.0
        %3295 = vmatprep.subr.mxu0 0.0
        %3296 = vmatpush2.msra.mxu0 0.0
        %3297 = vmatprep.subr.mxu0 0.0
        %3298 = vmatpush2.msra.mxu0 0.0
        %3299 = vmatprep.subr.mxu0 0.0
        %3300 = vmatpush2.msra.mxu0 0.0
        %3301 = vmatprep.subr.mxu0 0.0
        %3302 = vmatpush2.msra.mxu0 0.0
        %3303 = vmatprep.subr.mxu0 0.0
        %3304 = vmatpush2.msra.mxu0 0.0
        %3305 = vmatprep.subr.mxu0 0.0
        %3306 = vmatpush2.msra.mxu0 0.0
        %3307 = vmatprep.subr.mxu0 0.0
        %3308 = vmatpush2.msra.mxu0 0.0
        %3309 = vmatprep.mubr.f32.mxu0 0.0
        %3310 = vmatmul.mubr.f32.gmra.mxu0 %v2055
        %v3311 = vpop.f32.mrf.mxu0
        %v3312 = vadd.f32 %v2051, %v3311
        %v3313 = vpop.f32.mrf.mxu0
        %3314 = vmatprep.mubr.f32.mxu0 0.0
        %3315 = vmatmul.mubr.f32.gmra.mxu0 %v2058
        %v3316 = vpop.f32.mrf.mxu0
        %v3317 = vadd.f32 %v2051, %v3316
        %v3318 = vpop.f32.mrf.mxu0
        %3319 = vdwg.mxu0
        %v3320 = vmax.f32 %v3312, 0.0
        %v3321 = vmax.f32 %v3317, 0.0
        %v3322 = vpack.c.bf16 %v3321, %v3320
        %v3324 = vunpack.c.l.b16 %v3322
        %v3325 = vunpack.c.h.b16 %v3322
        %v3326 = vpack.c.b16 %v3324, %v3324
        %v3327 = vpack.c.b16 %v3325, %v3325
        %3330 = vst.msk [vmem:[#allocation3 + $0x50] sm:$0xf] %vm2149, %v3326
        %3331 = vst.msk [vmem:[#allocation3 + $0x54] sm:$0xf] %vm2149, %v3327
        %v3332 = vld [vmem:[#allocation2 + $0x2ec] sm:$0xff]
        %v3333 = vld [vmem:[#allocation2 + $0x2f4] sm:$0xff]
        %v3334 = vld [vmem:[#allocation2 + $0x2fc] sm:$0xff]
        %v3335 = vld [vmem:[#allocation2 + $0x304] sm:$0x7f]
        %v3336 = vld [vmem:[#allocation2 + $0x2ed] sm:$0xff]
        %v3337 = vld [vmem:[#allocation2 + $0x2f5] sm:$0xff]
        %v3338 = vld [vmem:[#allocation2 + $0x2fd] sm:$0xff]
        %v3339 = vld [vmem:[#allocation2 + $0x305] sm:$0x7f]
        %v3340 = vmax.f32 %v3332, %v3336
        %v3341 = vmax.f32 %v3333, %v3337
        %v3342 = vmax.f32 %v3334, %v3338
        %v3343 = vmax.f32 %v3335, %v3339
        %v3344 = vld [vmem:[#allocation2 + $0x30e] sm:$0xff]
        %v3345 = vld [vmem:[#allocation2 + $0x316] sm:$0xff]
        %v3346 = vld [vmem:[#allocation2 + $0x31e] sm:$0xff]
        %v3347 = vld [vmem:[#allocation2 + $0x326] sm:$0x7f]
        %v3348 = vmax.f32 %v3340, %v3344
        %v3349 = vmax.f32 %v3341, %v3345
        %v3350 = vmax.f32 %v3342, %v3346
        %v3351 = vmax.f32 %v3343, %v3347
        %v3352 = vld [vmem:[#allocation2 + $0x30f] sm:$0xff]
        %v3353 = vld [vmem:[#allocation2 + $0x317] sm:$0xff]
        %v3354 = vld [vmem:[#allocation2 + $0x31f] sm:$0xff]
        %v3355 = vld [vmem:[#allocation2 + $0x327] sm:$0x7f]
        %v3356 = vmax.f32 %v3348, %v3352
        %v3357 = vmax.f32 %v3349, %v3353
        %v3358 = vmax.f32 %v3350, %v3354
        %v3359 = vmax.f32 %v3351, %v3355
        %v3361 = vsel %vm2060, %v3359, 0
        %3363 = vmatprep.subr.mxu0 0.0
        %3364 = vmatpush1.msra.mxu0 0.0
        %3365 = vmatprep.subr.mxu0 0.0
        %3366 = vmatpush1.msra.mxu0 0.0
        %3367 = vmatprep.subr.mxu0 0.0
        %3368 = vmatpush1.msra.mxu0 0.0
        %3369 = vmatprep.subr.mxu0 0.0
        %3370 = vmatpush1.msra.mxu0 0.0
        %3371 = vmatprep.subr.mxu0 0.0
        %3372 = vmatpush1.msra.mxu0 0.0
        %3373 = vmatprep.subr.mxu0 0.0
        %3374 = vmatpush1.msra.mxu0 0.0
        %3375 = vmatprep.subr.mxu0 0.0
        %3376 = vmatpush1.msra.mxu0 0.0
        %3377 = vmatprep.subr.mxu0 0.0
        %3378 = vmatpush1.msra.mxu0 0.0
        %3379 = vmatprep.subr.mxu0 0.0
        %3380 = vmatpush1.msra.mxu0 0.0
        %3381 = vmatprep.subr.mxu0 0.0
        %3382 = vmatpush1.msra.mxu0 0.0
        %3383 = vmatprep.subr.mxu0 0.0
        %3384 = vmatpush1.msra.mxu0 0.0
        %3385 = vmatprep.subr.mxu0 0.0
        %3386 = vmatpush1.msra.mxu0 0.0
        %3387 = vmatprep.subr.mxu0 0.0
        %3388 = vmatpush1.msra.mxu0 %v3361
        %3389 = vmatprep.subr.mxu0 0.0
        %3390 = vmatpush1.msra.mxu0 %v3358
        %3391 = vmatprep.subr.mxu0 0.0
        %3392 = vmatpush1.msra.mxu0 %v3357
        %3393 = vmatprep.subr.mxu0 0.0
        %3394 = vmatpush1.msra.mxu0 %v3356
        %3395 = vmatprep.subr.mxu0 0.0
        %3396 = vmatpush2.msra.mxu0 0.0
        %3397 = vmatprep.subr.mxu0 0.0
        %3398 = vmatpush2.msra.mxu0 0.0
        %3399 = vmatprep.subr.mxu0 0.0
        %3400 = vmatpush2.msra.mxu0 0.0
        %3401 = vmatprep.subr.mxu0 0.0
        %3402 = vmatpush2.msra.mxu0 0.0
        %3403 = vmatprep.subr.mxu0 0.0
        %3404 = vmatpush2.msra.mxu0 0.0
        %3405 = vmatprep.subr.mxu0 0.0
        %3406 = vmatpush2.msra.mxu0 0.0
        %3407 = vmatprep.subr.mxu0 0.0
        %3408 = vmatpush2.msra.mxu0 0.0
        %3409 = vmatprep.subr.mxu0 0.0
        %3410 = vmatpush2.msra.mxu0 0.0
        %3411 = vmatprep.subr.mxu0 0.0
        %3412 = vmatpush2.msra.mxu0 0.0
        %3413 = vmatprep.subr.mxu0 0.0
        %3414 = vmatpush2.msra.mxu0 0.0
        %3415 = vmatprep.subr.mxu0 0.0
        %3416 = vmatpush2.msra.mxu0 0.0
        %3417 = vmatprep.subr.mxu0 0.0
        %3418 = vmatpush2.msra.mxu0 0.0
        %3419 = vmatprep.subr.mxu0 0.0
        %3420 = vmatpush2.msra.mxu0 0.0
        %3421 = vmatprep.subr.mxu0 0.0
        %3422 = vmatpush2.msra.mxu0 0.0
        %3423 = vmatprep.subr.mxu0 0.0
        %3424 = vmatpush2.msra.mxu0 0.0
        %3425 = vmatprep.subr.mxu0 0.0
        %3426 = vmatpush2.msra.mxu0 0.0
        %3427 = vmatprep.mubr.f32.mxu0 0.0
        %3428 = vmatmul.mubr.f32.gmra.mxu0 %v2055
        %v3429 = vpop.f32.mrf.mxu0
        %v3430 = vadd.f32 %v2051, %v3429
        %v3431 = vpop.f32.mrf.mxu0
        %3432 = vmatprep.mubr.f32.mxu0 0.0
        %3433 = vmatmul.mubr.f32.gmra.mxu0 %v2058
        %v3434 = vpop.f32.mrf.mxu0
        %v3435 = vadd.f32 %v2051, %v3434
        %v3436 = vpop.f32.mrf.mxu0
        %3437 = vdwg.mxu0
        %v3438 = vmax.f32 %v3430, 0.0
        %v3439 = vmax.f32 %v3435, 0.0
        %v3440 = vpack.c.bf16 %v3439, %v3438
        %v3442 = vunpack.c.l.b16 %v3440
        %v3443 = vunpack.c.h.b16 %v3440
        %v3444 = vpack.c.b16 %v3442, %v3442
        %v3445 = vpack.c.b16 %v3443, %v3443
        %3448 = vst.msk [vmem:[#allocation3 + $0x58] sm:$0xf] %vm2149, %v3444
        %3449 = vst.msk [vmem:[#allocation3 + $0x5c] sm:$0xf] %vm2149, %v3445
        %v3450 = vld [vmem:[#allocation2 + $0x330] sm:$0xff]
        %v3451 = vld [vmem:[#allocation2 + $0x338] sm:$0xff]
        %v3452 = vld [vmem:[#allocation2 + $0x340] sm:$0xff]
        %v3453 = vld [vmem:[#allocation2 + $0x348] sm:$0x7f]
        %v3454 = vld [vmem:[#allocation2 + $0x331] sm:$0xff]
        %v3455 = vld [vmem:[#allocation2 + $0x339] sm:$0xff]
        %v3456 = vld [vmem:[#allocation2 + $0x341] sm:$0xff]
        %v3457 = vld [vmem:[#allocation2 + $0x349] sm:$0x7f]
        %v3458 = vmax.f32 %v3450, %v3454
        %v3459 = vmax.f32 %v3451, %v3455
        %v3460 = vmax.f32 %v3452, %v3456
        %v3461 = vmax.f32 %v3453, %v3457
        %v3462 = vld [vmem:[#allocation2 + $0x352] sm:$0xff]
        %v3463 = vld [vmem:[#allocation2 + $0x35a] sm:$0xff]
        %v3464 = vld [vmem:[#allocation2 + $0x362] sm:$0xff]
        %v3465 = vld [vmem:[#allocation2 + $0x36a] sm:$0x7f]
        %v3466 = vmax.f32 %v3458, %v3462
        %v3467 = vmax.f32 %v3459, %v3463
        %v3468 = vmax.f32 %v3460, %v3464
        %v3469 = vmax.f32 %v3461, %v3465
        %v3470 = vld [vmem:[#allocation2 + $0x353] sm:$0xff]
        %v3471 = vld [vmem:[#allocation2 + $0x35b] sm:$0xff]
        %v3472 = vld [vmem:[#allocation2 + $0x363] sm:$0xff]
        %v3473 = vld [vmem:[#allocation2 + $0x36b] sm:$0x7f]
        %v3474 = vmax.f32 %v3466, %v3470
        %v3475 = vmax.f32 %v3467, %v3471
        %v3476 = vmax.f32 %v3468, %v3472
        %v3477 = vmax.f32 %v3469, %v3473
        %v3479 = vsel %vm2060, %v3477, 0
        %3481 = vmatprep.subr.mxu0 0.0
        %3482 = vmatpush1.msra.mxu0 0.0
        %3483 = vmatprep.subr.mxu0 0.0
        %3484 = vmatpush1.msra.mxu0 0.0
        %3485 = vmatprep.subr.mxu0 0.0
        %3486 = vmatpush1.msra.mxu0 0.0
        %3487 = vmatprep.subr.mxu0 0.0
        %3488 = vmatpush1.msra.mxu0 0.0
        %3489 = vmatprep.subr.mxu0 0.0
        %3490 = vmatpush1.msra.mxu0 0.0
        %3491 = vmatprep.subr.mxu0 0.0
        %3492 = vmatpush1.msra.mxu0 0.0
        %3493 = vmatprep.subr.mxu0 0.0
        %3494 = vmatpush1.msra.mxu0 0.0
        %3495 = vmatprep.subr.mxu0 0.0
        %3496 = vmatpush1.msra.mxu0 0.0
        %3497 = vmatprep.subr.mxu0 0.0
        %3498 = vmatpush1.msra.mxu0 0.0
        %3499 = vmatprep.subr.mxu0 0.0
        %3500 = vmatpush1.msra.mxu0 0.0
        %3501 = vmatprep.subr.mxu0 0.0
        %3502 = vmatpush1.msra.mxu0 0.0
        %3503 = vmatprep.subr.mxu0 0.0
        %3504 = vmatpush1.msra.mxu0 0.0
        %3505 = vmatprep.subr.mxu0 0.0
        %3506 = vmatpush1.msra.mxu0 %v3479
        %3507 = vmatprep.subr.mxu0 0.0
        %3508 = vmatpush1.msra.mxu0 %v3476
        %3509 = vmatprep.subr.mxu0 0.0
        %3510 = vmatpush1.msra.mxu0 %v3475
        %3511 = vmatprep.subr.mxu0 0.0
        %3512 = vmatpush1.msra.mxu0 %v3474
        %3513 = vmatprep.subr.mxu0 0.0
        %3514 = vmatpush2.msra.mxu0 0.0
        %3515 = vmatprep.subr.mxu0 0.0
        %3516 = vmatpush2.msra.mxu0 0.0
        %3517 = vmatprep.subr.mxu0 0.0
        %3518 = vmatpush2.msra.mxu0 0.0
        %3519 = vmatprep.subr.mxu0 0.0
        %3520 = vmatpush2.msra.mxu0 0.0
        %3521 = vmatprep.subr.mxu0 0.0
        %3522 = vmatpush2.msra.mxu0 0.0
        %3523 = vmatprep.subr.mxu0 0.0
        %3524 = vmatpush2.msra.mxu0 0.0
        %3525 = vmatprep.subr.mxu0 0.0
        %3526 = vmatpush2.msra.mxu0 0.0
        %3527 = vmatprep.subr.mxu0 0.0
        %3528 = vmatpush2.msra.mxu0 0.0
        %3529 = vmatprep.subr.mxu0 0.0
        %3530 = vmatpush2.msra.mxu0 0.0
        %3531 = vmatprep.subr.mxu0 0.0
        %3532 = vmatpush2.msra.mxu0 0.0
        %3533 = vmatprep.subr.mxu0 0.0
        %3534 = vmatpush2.msra.mxu0 0.0
        %3535 = vmatprep.subr.mxu0 0.0
        %3536 = vmatpush2.msra.mxu0 0.0
        %3537 = vmatprep.subr.mxu0 0.0
        %3538 = vmatpush2.msra.mxu0 0.0
        %3539 = vmatprep.subr.mxu0 0.0
        %3540 = vmatpush2.msra.mxu0 0.0
        %3541 = vmatprep.subr.mxu0 0.0
        %3542 = vmatpush2.msra.mxu0 0.0
        %3543 = vmatprep.subr.mxu0 0.0
        %3544 = vmatpush2.msra.mxu0 0.0
        %3545 = vmatprep.mubr.f32.mxu0 0.0
        %3546 = vmatmul.mubr.f32.gmra.mxu0 %v2055
        %v3547 = vpop.f32.mrf.mxu0
        %v3548 = vadd.f32 %v2051, %v3547
        %v3549 = vpop.f32.mrf.mxu0
        %3550 = vmatprep.mubr.f32.mxu0 0.0
        %3551 = vmatmul.mubr.f32.gmra.mxu0 %v2058
        %v3552 = vpop.f32.mrf.mxu0
        %v3553 = vadd.f32 %v2051, %v3552
        %v3554 = vpop.f32.mrf.mxu0
        %3555 = vdwg.mxu0
        %v3556 = vmax.f32 %v3548, 0.0
        %v3557 = vmax.f32 %v3553, 0.0
        %v3558 = vpack.c.bf16 %v3557, %v3556
        %v3560 = vunpack.c.l.b16 %v3558
        %v3561 = vunpack.c.h.b16 %v3558
        %v3562 = vpack.c.b16 %v3560, %v3560
        %v3563 = vpack.c.b16 %v3561, %v3561
        %3566 = vst.msk [vmem:[#allocation3 + $0x60] sm:$0xf] %vm2149, %v3562
        %3567 = vst.msk [vmem:[#allocation3 + $0x64] sm:$0xf] %vm2149, %v3563
        %v3568 = vld [vmem:[#allocation2 + $0x374] sm:$0xff]
        %v3569 = vld [vmem:[#allocation2 + $0x37c] sm:$0xff]
        %v3570 = vld [vmem:[#allocation2 + $0x384] sm:$0xff]
        %v3571 = vld [vmem:[#allocation2 + $0x38c] sm:$0x7f]
        %v3572 = vld [vmem:[#allocation2 + $0x375] sm:$0xff]
        %v3573 = vld [vmem:[#allocation2 + $0x37d] sm:$0xff]
        %v3574 = vld [vmem:[#allocation2 + $0x385] sm:$0xff]
        %v3575 = vld [vmem:[#allocation2 + $0x38d] sm:$0x7f]
        %v3576 = vmax.f32 %v3568, %v3572
        %v3577 = vmax.f32 %v3569, %v3573
        %v3578 = vmax.f32 %v3570, %v3574
        %v3579 = vmax.f32 %v3571, %v3575
        %v3580 = vld [vmem:[#allocation2 + $0x396] sm:$0xff]
        %v3581 = vld [vmem:[#allocation2 + $0x39e] sm:$0xff]
        %v3582 = vld [vmem:[#allocation2 + $0x3a6] sm:$0xff]
        %v3583 = vld [vmem:[#allocation2 + $0x3ae] sm:$0x7f]
        %v3584 = vmax.f32 %v3576, %v3580
        %v3585 = vmax.f32 %v3577, %v3581
        %v3586 = vmax.f32 %v3578, %v3582
        %v3587 = vmax.f32 %v3579, %v3583
        %v3588 = vld [vmem:[#allocation2 + $0x397] sm:$0xff]
        %v3589 = vld [vmem:[#allocation2 + $0x39f] sm:$0xff]
        %v3590 = vld [vmem:[#allocation2 + $0x3a7] sm:$0xff]
        %v3591 = vld [vmem:[#allocation2 + $0x3af] sm:$0x7f]
        %v3592 = vmax.f32 %v3584, %v3588
        %v3593 = vmax.f32 %v3585, %v3589
        %v3594 = vmax.f32 %v3586, %v3590
        %v3595 = vmax.f32 %v3587, %v3591
        %v3597 = vsel %vm2060, %v3595, 0
        %3599 = vmatprep.subr.mxu0 0.0
        %3600 = vmatpush1.msra.mxu0 0.0
        %3601 = vmatprep.subr.mxu0 0.0
        %3602 = vmatpush1.msra.mxu0 0.0
        %3603 = vmatprep.subr.mxu0 0.0
        %3604 = vmatpush1.msra.mxu0 0.0
        %3605 = vmatprep.subr.mxu0 0.0
        %3606 = vmatpush1.msra.mxu0 0.0
        %3607 = vmatprep.subr.mxu0 0.0
        %3608 = vmatpush1.msra.mxu0 0.0
        %3609 = vmatprep.subr.mxu0 0.0
        %3610 = vmatpush1.msra.mxu0 0.0
        %3611 = vmatprep.subr.mxu0 0.0
        %3612 = vmatpush1.msra.mxu0 0.0
        %3613 = vmatprep.subr.mxu0 0.0
        %3614 = vmatpush1.msra.mxu0 0.0
        %3615 = vmatprep.subr.mxu0 0.0
        %3616 = vmatpush1.msra.mxu0 0.0
        %3617 = vmatprep.subr.mxu0 0.0
        %3618 = vmatpush1.msra.mxu0 0.0
        %3619 = vmatprep.subr.mxu0 0.0
        %3620 = vmatpush1.msra.mxu0 0.0
        %3621 = vmatprep.subr.mxu0 0.0
        %3622 = vmatpush1.msra.mxu0 0.0
        %3623 = vmatprep.subr.mxu0 0.0
        %3624 = vmatpush1.msra.mxu0 %v3597
        %3625 = vmatprep.subr.mxu0 0.0
        %3626 = vmatpush1.msra.mxu0 %v3594
        %3627 = vmatprep.subr.mxu0 0.0
        %3628 = vmatpush1.msra.mxu0 %v3593
        %3629 = vmatprep.subr.mxu0 0.0
        %3630 = vmatpush1.msra.mxu0 %v3592
        %3631 = vmatprep.subr.mxu0 0.0
        %3632 = vmatpush2.msra.mxu0 0.0
        %3633 = vmatprep.subr.mxu0 0.0
        %3634 = vmatpush2.msra.mxu0 0.0
        %3635 = vmatprep.subr.mxu0 0.0
        %3636 = vmatpush2.msra.mxu0 0.0
        %3637 = vmatprep.subr.mxu0 0.0
        %3638 = vmatpush2.msra.mxu0 0.0
        %3639 = vmatprep.subr.mxu0 0.0
        %3640 = vmatpush2.msra.mxu0 0.0
        %3641 = vmatprep.subr.mxu0 0.0
        %3642 = vmatpush2.msra.mxu0 0.0
        %3643 = vmatprep.subr.mxu0 0.0
        %3644 = vmatpush2.msra.mxu0 0.0
        %3645 = vmatprep.subr.mxu0 0.0
        %3646 = vmatpush2.msra.mxu0 0.0
        %3647 = vmatprep.subr.mxu0 0.0
        %3648 = vmatpush2.msra.mxu0 0.0
        %3649 = vmatprep.subr.mxu0 0.0
        %3650 = vmatpush2.msra.mxu0 0.0
        %3651 = vmatprep.subr.mxu0 0.0
        %3652 = vmatpush2.msra.mxu0 0.0
        %3653 = vmatprep.subr.mxu0 0.0
        %3654 = vmatpush2.msra.mxu0 0.0
        %3655 = vmatprep.subr.mxu0 0.0
        %3656 = vmatpush2.msra.mxu0 0.0
        %3657 = vmatprep.subr.mxu0 0.0
        %3658 = vmatpush2.msra.mxu0 0.0
        %3659 = vmatprep.subr.mxu0 0.0
        %3660 = vmatpush2.msra.mxu0 0.0
        %3661 = vmatprep.subr.mxu0 0.0
        %3662 = vmatpush2.msra.mxu0 0.0
        %3663 = vmatprep.mubr.f32.mxu0 0.0
        %3664 = vmatmul.mubr.f32.gmra.mxu0 %v2055
        %v3665 = vpop.f32.mrf.mxu0
        %v3666 = vadd.f32 %v2051, %v3665
        %v3667 = vpop.f32.mrf.mxu0
        %3668 = vmatprep.mubr.f32.mxu0 0.0
        %3669 = vmatmul.mubr.f32.gmra.mxu0 %v2058
        %v3670 = vpop.f32.mrf.mxu0
        %v3671 = vadd.f32 %v2051, %v3670
        %v3672 = vpop.f32.mrf.mxu0
        %3673 = vdwg.mxu0
        %v3674 = vmax.f32 %v3666, 0.0
        %v3675 = vmax.f32 %v3671, 0.0
        %v3676 = vpack.c.bf16 %v3675, %v3674
        %v3678 = vunpack.c.l.b16 %v3676
        %v3679 = vunpack.c.h.b16 %v3676
        %v3680 = vpack.c.b16 %v3678, %v3678
        %v3681 = vpack.c.b16 %v3679, %v3679
        %3684 = vst.msk [vmem:[#allocation3 + $0x68] sm:$0xf] %vm2149, %v3680
        %3685 = vst.msk [vmem:[#allocation3 + $0x6c] sm:$0xf] %vm2149, %v3681
        %v3686 = vld [vmem:[#allocation2 + $0x3b8] sm:$0xff]
        %v3687 = vld [vmem:[#allocation2 + $0x3c0] sm:$0xff]
        %v3688 = vld [vmem:[#allocation2 + $0x3c8] sm:$0xff]
        %v3689 = vld [vmem:[#allocation2 + $0x3d0] sm:$0x7f]
        %v3690 = vld [vmem:[#allocation2 + $0x3b9] sm:$0xff]
        %v3691 = vld [vmem:[#allocation2 + $0x3c1] sm:$0xff]
        %v3692 = vld [vmem:[#allocation2 + $0x3c9] sm:$0xff]
        %v3693 = vld [vmem:[#allocation2 + $0x3d1] sm:$0x7f]
        %v3694 = vmax.f32 %v3686, %v3690
        %v3695 = vmax.f32 %v3687, %v3691
        %v3696 = vmax.f32 %v3688, %v3692
        %v3697 = vmax.f32 %v3689, %v3693
        %v3698 = vld [vmem:[#allocation2 + $0x3da] sm:$0xff]
        %v3699 = vld [vmem:[#allocation2 + $0x3e2] sm:$0xff]
        %v3700 = vld [vmem:[#allocation2 + $0x3ea] sm:$0xff]
        %v3701 = vld [vmem:[#allocation2 + $0x3f2] sm:$0x7f]
        %v3702 = vmax.f32 %v3694, %v3698
        %v3703 = vmax.f32 %v3695, %v3699
        %v3704 = vmax.f32 %v3696, %v3700
        %v3705 = vmax.f32 %v3697, %v3701
        %v3706 = vld [vmem:[#allocation2 + $0x3db] sm:$0xff]
        %v3707 = vld [vmem:[#allocation2 + $0x3e3] sm:$0xff]
        %v3708 = vld [vmem:[#allocation2 + $0x3eb] sm:$0xff]
        %v3709 = vld [vmem:[#allocation2 + $0x3f3] sm:$0x7f]
        %v3710 = vmax.f32 %v3702, %v3706
        %v3711 = vmax.f32 %v3703, %v3707
        %v3712 = vmax.f32 %v3704, %v3708
        %v3713 = vmax.f32 %v3705, %v3709
        %v3715 = vsel %vm2060, %v3713, 0
        %3717 = vmatprep.subr.mxu0 0.0
        %3718 = vmatpush1.msra.mxu0 0.0
        %3719 = vmatprep.subr.mxu0 0.0
        %3720 = vmatpush1.msra.mxu0 0.0
        %3721 = vmatprep.subr.mxu0 0.0
        %3722 = vmatpush1.msra.mxu0 0.0
        %3723 = vmatprep.subr.mxu0 0.0
        %3724 = vmatpush1.msra.mxu0 0.0
        %3725 = vmatprep.subr.mxu0 0.0
        %3726 = vmatpush1.msra.mxu0 0.0
        %3727 = vmatprep.subr.mxu0 0.0
        %3728 = vmatpush1.msra.mxu0 0.0
        %3729 = vmatprep.subr.mxu0 0.0
        %3730 = vmatpush1.msra.mxu0 0.0
        %3731 = vmatprep.subr.mxu0 0.0
        %3732 = vmatpush1.msra.mxu0 0.0
        %3733 = vmatprep.subr.mxu0 0.0
        %3734 = vmatpush1.msra.mxu0 0.0
        %3735 = vmatprep.subr.mxu0 0.0
        %3736 = vmatpush1.msra.mxu0 0.0
        %3737 = vmatprep.subr.mxu0 0.0
        %3738 = vmatpush1.msra.mxu0 0.0
        %3739 = vmatprep.subr.mxu0 0.0
        %3740 = vmatpush1.msra.mxu0 0.0
        %3741 = vmatprep.subr.mxu0 0.0
        %3742 = vmatpush1.msra.mxu0 %v3715
        %3743 = vmatprep.subr.mxu0 0.0
        %3744 = vmatpush1.msra.mxu0 %v3712
        %3745 = vmatprep.subr.mxu0 0.0
        %3746 = vmatpush1.msra.mxu0 %v3711
        %3747 = vmatprep.subr.mxu0 0.0
        %3748 = vmatpush1.msra.mxu0 %v3710
        %3749 = vmatprep.subr.mxu0 0.0
        %3750 = vmatpush2.msra.mxu0 0.0
        %3751 = vmatprep.subr.mxu0 0.0
        %3752 = vmatpush2.msra.mxu0 0.0
        %3753 = vmatprep.subr.mxu0 0.0
        %3754 = vmatpush2.msra.mxu0 0.0
        %3755 = vmatprep.subr.mxu0 0.0
        %3756 = vmatpush2.msra.mxu0 0.0
        %3757 = vmatprep.subr.mxu0 0.0
        %3758 = vmatpush2.msra.mxu0 0.0
        %3759 = vmatprep.subr.mxu0 0.0
        %3760 = vmatpush2.msra.mxu0 0.0
        %3761 = vmatprep.subr.mxu0 0.0
        %3762 = vmatpush2.msra.mxu0 0.0
        %3763 = vmatprep.subr.mxu0 0.0
        %3764 = vmatpush2.msra.mxu0 0.0
        %3765 = vmatprep.subr.mxu0 0.0
        %3766 = vmatpush2.msra.mxu0 0.0
        %3767 = vmatprep.subr.mxu0 0.0
        %3768 = vmatpush2.msra.mxu0 0.0
        %3769 = vmatprep.subr.mxu0 0.0
        %3770 = vmatpush2.msra.mxu0 0.0
        %3771 = vmatprep.subr.mxu0 0.0
        %3772 = vmatpush2.msra.mxu0 0.0
        %3773 = vmatprep.subr.mxu0 0.0
        %3774 = vmatpush2.msra.mxu0 0.0
        %3775 = vmatprep.subr.mxu0 0.0
        %3776 = vmatpush2.msra.mxu0 0.0
        %3777 = vmatprep.subr.mxu0 0.0
        %3778 = vmatpush2.msra.mxu0 0.0
        %3779 = vmatprep.subr.mxu0 0.0
        %3780 = vmatpush2.msra.mxu0 0.0
        %3781 = vmatprep.mubr.f32.mxu0 0.0
        %3782 = vmatmul.mubr.f32.gmra.mxu0 %v2055
        %v3783 = vpop.f32.mrf.mxu0
        %v3784 = vadd.f32 %v2051, %v3783
        %v3785 = vpop.f32.mrf.mxu0
        %3786 = vmatprep.mubr.f32.mxu0 0.0
        %3787 = vmatmul.mubr.f32.gmra.mxu0 %v2058
        %v3788 = vpop.f32.mrf.mxu0
        %v3789 = vadd.f32 %v2051, %v3788
        %v3790 = vpop.f32.mrf.mxu0
        %3791 = vdwg.mxu0
        %v3792 = vmax.f32 %v3784, 0.0
        %v3793 = vmax.f32 %v3789, 0.0
        %v3794 = vpack.c.bf16 %v3793, %v3792
        %v3796 = vunpack.c.l.b16 %v3794
        %v3797 = vunpack.c.h.b16 %v3794
        %v3798 = vpack.c.b16 %v3796, %v3796
        %v3799 = vpack.c.b16 %v3797, %v3797
        %3802 = vst.msk [vmem:[#allocation3 + $0x70] sm:$0xf] %vm2149, %v3798
        %3803 = vst.msk [vmem:[#allocation3 + $0x74] sm:$0xf] %vm2149, %v3799
        %v3804 = vld [vmem:[#allocation2 + $0x3fc] sm:$0xff]
        %v3805 = vld [vmem:[#allocation2 + $0x404] sm:$0xff]
        %v3806 = vld [vmem:[#allocation2 + $0x40c] sm:$0xff]
        %v3807 = vld [vmem:[#allocation2 + $0x414] sm:$0x7f]
        %v3808 = vld [vmem:[#allocation2 + $0x3fd] sm:$0xff]
        %v3809 = vld [vmem:[#allocation2 + $0x405] sm:$0xff]
        %v3810 = vld [vmem:[#allocation2 + $0x40d] sm:$0xff]
        %v3811 = vld [vmem:[#allocation2 + $0x415] sm:$0x7f]
        %v3812 = vmax.f32 %v3804, %v3808
        %v3813 = vmax.f32 %v3805, %v3809
        %v3814 = vmax.f32 %v3806, %v3810
        %v3815 = vmax.f32 %v3807, %v3811
        %v3816 = vld [vmem:[#allocation2 + $0x41e] sm:$0xff]
        %v3817 = vld [vmem:[#allocation2 + $0x426] sm:$0xff]
        %v3818 = vld [vmem:[#allocation2 + $0x42e] sm:$0xff]
        %v3819 = vld [vmem:[#allocation2 + $0x436] sm:$0x7f]
        %v3820 = vmax.f32 %v3812, %v3816
        %v3821 = vmax.f32 %v3813, %v3817
        %v3822 = vmax.f32 %v3814, %v3818
        %v3823 = vmax.f32 %v3815, %v3819
        %v3824 = vld [vmem:[#allocation2 + $0x41f] sm:$0xff]
        %v3825 = vld [vmem:[#allocation2 + $0x427] sm:$0xff]
        %v3826 = vld [vmem:[#allocation2 + $0x42f] sm:$0xff]
        %v3827 = vld [vmem:[#allocation2 + $0x437] sm:$0x7f]
        %v3828 = vmax.f32 %v3820, %v3824
        %v3829 = vmax.f32 %v3821, %v3825
        %v3830 = vmax.f32 %v3822, %v3826
        %v3831 = vmax.f32 %v3823, %v3827
        %v3833 = vsel %vm2060, %v3831, 0
        %3835 = vmatprep.subr.mxu0 0.0
        %3836 = vmatpush1.msra.mxu0 0.0
        %3837 = vmatprep.subr.mxu0 0.0
        %3838 = vmatpush1.msra.mxu0 0.0
        %3839 = vmatprep.subr.mxu0 0.0
        %3840 = vmatpush1.msra.mxu0 0.0
        %3841 = vmatprep.subr.mxu0 0.0
        %3842 = vmatpush1.msra.mxu0 0.0
        %3843 = vmatprep.subr.mxu0 0.0
        %3844 = vmatpush1.msra.mxu0 0.0
        %3845 = vmatprep.subr.mxu0 0.0
        %3846 = vmatpush1.msra.mxu0 0.0
        %3847 = vmatprep.subr.mxu0 0.0
        %3848 = vmatpush1.msra.mxu0 0.0
        %3849 = vmatprep.subr.mxu0 0.0
        %3850 = vmatpush1.msra.mxu0 0.0
        %3851 = vmatprep.subr.mxu0 0.0
        %3852 = vmatpush1.msra.mxu0 0.0
        %3853 = vmatprep.subr.mxu0 0.0
        %3854 = vmatpush1.msra.mxu0 0.0
        %3855 = vmatprep.subr.mxu0 0.0
        %3856 = vmatpush1.msra.mxu0 0.0
        %3857 = vmatprep.subr.mxu0 0.0
        %3858 = vmatpush1.msra.mxu0 0.0
        %3859 = vmatprep.subr.mxu0 0.0
        %3860 = vmatpush1.msra.mxu0 %v3833
        %3861 = vmatprep.subr.mxu0 0.0
        %3862 = vmatpush1.msra.mxu0 %v3830
        %3863 = vmatprep.subr.mxu0 0.0
        %3864 = vmatpush1.msra.mxu0 %v3829
        %3865 = vmatprep.subr.mxu0 0.0
        %3866 = vmatpush1.msra.mxu0 %v3828
        %3867 = vmatprep.subr.mxu0 0.0
        %3868 = vmatpush2.msra.mxu0 0.0
        %3869 = vmatprep.subr.mxu0 0.0
        %3870 = vmatpush2.msra.mxu0 0.0
        %3871 = vmatprep.subr.mxu0 0.0
        %3872 = vmatpush2.msra.mxu0 0.0
        %3873 = vmatprep.subr.mxu0 0.0
        %3874 = vmatpush2.msra.mxu0 0.0
        %3875 = vmatprep.subr.mxu0 0.0
        %3876 = vmatpush2.msra.mxu0 0.0
        %3877 = vmatprep.subr.mxu0 0.0
        %3878 = vmatpush2.msra.mxu0 0.0
        %3879 = vmatprep.subr.mxu0 0.0
        %3880 = vmatpush2.msra.mxu0 0.0
        %3881 = vmatprep.subr.mxu0 0.0
        %3882 = vmatpush2.msra.mxu0 0.0
        %3883 = vmatprep.subr.mxu0 0.0
        %3884 = vmatpush2.msra.mxu0 0.0
        %3885 = vmatprep.subr.mxu0 0.0
        %3886 = vmatpush2.msra.mxu0 0.0
        %3887 = vmatprep.subr.mxu0 0.0
        %3888 = vmatpush2.msra.mxu0 0.0
        %3889 = vmatprep.subr.mxu0 0.0
        %3890 = vmatpush2.msra.mxu0 0.0
        %3891 = vmatprep.subr.mxu0 0.0
        %3892 = vmatpush2.msra.mxu0 0.0
        %3893 = vmatprep.subr.mxu0 0.0
        %3894 = vmatpush2.msra.mxu0 0.0
        %3895 = vmatprep.subr.mxu0 0.0
        %3896 = vmatpush2.msra.mxu0 0.0
        %3897 = vmatprep.subr.mxu0 0.0
        %3898 = vmatpush2.msra.mxu0 0.0
        %3899 = vmatprep.mubr.f32.mxu0 0.0
        %3900 = vmatmul.mubr.f32.gmra.mxu0 %v2055
        %v3901 = vpop.f32.mrf.mxu0
        %v3902 = vadd.f32 %v2051, %v3901
        %v3903 = vpop.f32.mrf.mxu0
        %3904 = vmatprep.mubr.f32.mxu0 0.0
        %3905 = vmatmul.mubr.f32.gmra.mxu0 %v2058
        %v3906 = vpop.f32.mrf.mxu0
        %v3907 = vadd.f32 %v2051, %v3906
        %v3908 = vpop.f32.mrf.mxu0
        %3909 = vdwg.mxu0
        %v3910 = vmax.f32 %v3902, 0.0
        %v3911 = vmax.f32 %v3907, 0.0
        %v3912 = vpack.c.bf16 %v3911, %v3910
        %v3914 = vunpack.c.l.b16 %v3912
        %v3915 = vunpack.c.h.b16 %v3912
        %v3916 = vpack.c.b16 %v3914, %v3914
        %v3917 = vpack.c.b16 %v3915, %v3915
        %3920 = vst.msk [vmem:[#allocation3 + $0x78] sm:$0xf] %vm2149, %v3916
        %3921 = vst.msk [vmem:[#allocation3 + $0x7c] sm:$0xf] %vm2149, %v3917
        %v3922 = vld [vmem:[#allocation3] sm:$0xf]
        %v3923 = vld [vmem:[#allocation3 + $0x4] sm:$0xf]
        %v3924 = vld [vmem:[#allocation3 + $0x8] sm:$0xf]
        %v3925 = vld [vmem:[#allocation3 + $0xc] sm:$0xf]
        %v3926 = vld [vmem:[#allocation3 + $0x10] sm:$0xf]
        %v3927 = vld [vmem:[#allocation3 + $0x14] sm:$0xf]
        %v3928 = vld [vmem:[#allocation3 + $0x18] sm:$0xf]
        %v3929 = vld [vmem:[#allocation3 + $0x1c] sm:$0xf]
        %v3930 = vld [vmem:[#allocation3 + $0x20] sm:$0xf]
        %v3931 = vld [vmem:[#allocation3 + $0x24] sm:$0xf]
        %v3932 = vld [vmem:[#allocation3 + $0x28] sm:$0xf]
        %v3933 = vld [vmem:[#allocation3 + $0x2c] sm:$0xf]
        %v3934 = vld [vmem:[#allocation3 + $0x30] sm:$0xf]
        %v3935 = vld [vmem:[#allocation3 + $0x34] sm:$0xf]
        %v3936 = vld [vmem:[#allocation3 + $0x38] sm:$0xf]
        %v3937 = vld [vmem:[#allocation3 + $0x3c] sm:$0xf]
        %v3938 = vld [vmem:[%s3] sm:$0xf]
        %v3939 = vld [vmem:[%s3 + $0x4] sm:$0xf]
        %v3940 = vld [vmem:[%s3 + $0x8] sm:$0xf]
        %v3941 = vld [vmem:[%s3 + $0xc] sm:$0xf]
        %v3942 = vld [vmem:[#allocation3 + $0x40] sm:$0x1]
        %v3943 = vld [vmem:[%s3 + $0x10] sm:$0xf]
        %v3944 = vld [vmem:[%s3 + $0x14] sm:$0xf]
        %v3945 = vld [vmem:[%s3 + $0x18] sm:$0xf]
        %v3946 = vld [vmem:[%s3 + $0x1c] sm:$0xf]
        %v3964 = vunpack.c.l.b16 %v3922
        %v3965 = vunpack.c.l.b16 %v3923
        %v3966 = vunpack.c.l.b16 %v3924
        %v3967 = vunpack.c.l.b16 %v3925
        %v3968 = vunpack.c.l.b16 %v3926
        %v3969 = vunpack.c.l.b16 %v3927
        %v3970 = vunpack.c.l.b16 %v3928
        %v3971 = vunpack.c.l.b16 %v3929
        %v3972 = vunpack.c.l.b16 %v3930
        %v3973 = vunpack.c.l.b16 %v3931
        %v3974 = vunpack.c.l.b16 %v3932
        %v3975 = vunpack.c.l.b16 %v3933
        %v3976 = vunpack.c.l.b16 %v3934
        %v3977 = vunpack.c.l.b16 %v3935
        %v3978 = vunpack.c.l.b16 %v3936
        %v3979 = vunpack.c.l.b16 %v3937
        %v3980 = vunpack.c.l.b16 %v3942
        %v3981 = vpack.c.b16 %v3965, %v3964
        %v3982 = vpack.c.b16 %v3967, %v3966
        %v3983 = vpack.c.b16 %v3969, %v3968
        %v3984 = vpack.c.b16 %v3971, %v3970
        %v3985 = vpack.c.b16 %v3973, %v3972
        %v3986 = vpack.c.b16 %v3975, %v3974
        %v3987 = vpack.c.b16 %v3977, %v3976
        %v3988 = vpack.c.b16 %v3979, %v3978
        %v3989 = vpack.c.b16 %v3980, %v3980
        %vm3990 = vsmask.f32 7424
        %v3992 = vshrl.u32 %v3981, 16
        %v3994 = vshll.u32 %v3981, 16
        %v3996 = vrot.slane %v3994, 1
        %v3997 = vor.u32 %v3992, %v3996
        %v3999 = vshll.u32 %v3982, 16
        %v4001 = vrot.slane %v3999, 1
        %v4002 = vsel %vm3990, %v3997, %v4001
        %v4003 = vshrl.u32 %v3982, 16
        %v4005 = vor.u32 %v4003, %v4001
        %v4007 = vshll.u32 %v3983, 16
        %v4009 = vrot.slane %v4007, 1
        %v4010 = vsel %vm3990, %v4005, %v4009
        %v4011 = vshrl.u32 %v3983, 16
        %v4013 = vor.u32 %v4011, %v4009
        %v4015 = vshll.u32 %v3984, 16
        %v4017 = vrot.slane %v4015, 1
        %v4018 = vsel %vm3990, %v4013, %v4017
        %v4019 = vshrl.u32 %v3984, 16
        %v4021 = vor.u32 %v4019, %v4017
        %v4023 = vshll.u32 %v3985, 16
        %v4025 = vrot.slane %v4023, 1
        %v4026 = vsel %vm3990, %v4021, %v4025
        %v4027 = vshrl.u32 %v3985, 16
        %v4029 = vor.u32 %v4027, %v4025
        %v4031 = vshll.u32 %v3986, 16
        %v4033 = vrot.slane %v4031, 1
        %v4034 = vsel %vm3990, %v4029, %v4033
        %v4035 = vshrl.u32 %v3986, 16
        %v4037 = vor.u32 %v4035, %v4033
        %v4039 = vshll.u32 %v3987, 16
        %v4041 = vrot.slane %v4039, 1
        %v4042 = vsel %vm3990, %v4037, %v4041
        %v4043 = vshrl.u32 %v3987, 16
        %v4045 = vor.u32 %v4043, %v4041
        %v4047 = vshll.u32 %v3988, 16
        %v4049 = vrot.slane %v4047, 1
        %v4050 = vsel %vm3990, %v4045, %v4049
        %v4051 = vshrl.u32 %v3988, 16
        %v4053 = vor.u32 %v4051, %v4049
        %v4055 = vshll.u32 %v3989, 16
        %v4057 = vrot.slane %v4055, 1
        %v4058 = vsel %vm3990, %v4053, %v4057
        %v4063 = vunpack.c.l.b16 %v3943
        %v4064 = vunpack.c.l.b16 %v3944
        %v4065 = vunpack.c.l.b16 %v3945
        %v4066 = vunpack.c.l.b16 %v3946
        %v4067 = vpack.c.b16 %v4064, %v4063
        %v4068 = vpack.c.b16 %v4066, %v4065
        %v4072 = vsel %vm810, %v4002, 0
        %v4075 = vsel %vm810, %v4010, 0
        %v4078 = vsel %vm810, %v4018, 0
        %v4081 = vsel %vm810, %v4026, 0
        %v4084 = vsel %vm810, %v4034, 0
        %v4087 = vsel %vm810, %v4042, 0
        %v4090 = vsel %vm810, %v4050, 0
        %v4093 = vsel %vm810, %v4058, 0
        %4095 = vmatprep.subr.bf16.mxu0 0
        %4096 = vmatpush1.bf16.msra.mxu0 0
        %4097 = vmatprep.subr.bf16.mxu0 0
        %4098 = vmatpush1.bf16.msra.mxu0 0
        %4099 = vmatprep.subr.bf16.mxu0 0
        %4100 = vmatpush1.bf16.msra.mxu0 0
        %4101 = vmatprep.subr.bf16.mxu0 0
        %4102 = vmatpush1.bf16.msra.mxu0 0
        %4103 = vmatprep.subr.bf16.mxu0 0
        %4104 = vmatpush1.bf16.msra.mxu0 0
        %4105 = vmatprep.subr.bf16.mxu0 0
        %4106 = vmatpush1.bf16.msra.mxu0 0
        %4107 = vmatprep.subr.bf16.mxu0 0
        %4108 = vmatpush1.bf16.msra.mxu0 %v4068
        %4109 = vmatprep.subr.bf16.mxu0 0
        %4110 = vmatpush1.bf16.msra.mxu0 %v4067
        %4111 = vmatprep.subr.bf16.mxu0 0
        %4112 = vmatpush2.bf16.msra.mxu0 0
        %4113 = vmatprep.subr.bf16.mxu0 0
        %4114 = vmatpush2.bf16.msra.mxu0 0
        %4115 = vmatprep.subr.bf16.mxu0 0
        %4116 = vmatpush2.bf16.msra.mxu0 0
        %4117 = vmatprep.subr.bf16.mxu0 0
        %4118 = vmatpush2.bf16.msra.mxu0 0
        %4119 = vmatprep.subr.bf16.mxu0 0
        %4120 = vmatpush2.bf16.msra.mxu0 0
        %4121 = vmatprep.subr.bf16.mxu0 0
        %4122 = vmatpush2.bf16.msra.mxu0 0
        %4123 = vmatprep.subr.bf16.mxu0 0
        %4124 = vmatpush2.bf16.msra.mxu0 0
        %4125 = vmatprep.subr.bf16.mxu0 0
        %4126 = vmatpush2.bf16.msra.mxu0 0
        %4127 = vmatprep.mubr.bf16.mxu0 0
        %4128 = vmatmul.mubr.bf16.gmra.mxu0 %v4072
        %v4129 = vpop.f32.mrf.mxu0
        %v4130 = vadd.f32 0.0, %v4129
        %v4131 = vpop.f32.mrf.mxu0
        %v4132 = vpop.f32.mrf.mxu0
        %v4133 = vadd.f32 0.0, %v4132
        %v4134 = vpop.f32.mrf.mxu0
        %4135 = vmatprep.mubr.bf16.mxu0 0
        %4136 = vmatmul.mubr.bf16.gmra.mxu0 %v4075
        %v4137 = vpop.f32.mrf.mxu0
        %v4138 = vadd.f32 0.0, %v4137
        %v4139 = vpop.f32.mrf.mxu0
        %v4140 = vpop.f32.mrf.mxu0
        %v4141 = vadd.f32 0.0, %v4140
        %v4142 = vpop.f32.mrf.mxu0
        %4143 = vmatprep.mubr.bf16.mxu0 0
        %4144 = vmatmul.mubr.bf16.gmra.mxu0 %v4078
        %v4145 = vpop.f32.mrf.mxu0
        %v4146 = vadd.f32 0.0, %v4145
        %v4147 = vpop.f32.mrf.mxu0
        %v4148 = vpop.f32.mrf.mxu0
        %v4149 = vadd.f32 0.0, %v4148
        %v4150 = vpop.f32.mrf.mxu0
        %4151 = vmatprep.mubr.bf16.mxu0 0
        %4152 = vmatmul.mubr.bf16.gmra.mxu0 %v4081
        %v4153 = vpop.f32.mrf.mxu0
        %v4154 = vadd.f32 0.0, %v4153
        %v4155 = vpop.f32.mrf.mxu0
        %v4156 = vpop.f32.mrf.mxu0
        %v4157 = vadd.f32 0.0, %v4156
        %v4158 = vpop.f32.mrf.mxu0
        %4159 = vmatprep.mubr.bf16.mxu0 0
        %4160 = vmatmul.mubr.bf16.gmra.mxu0 %v4084
        %v4161 = vpop.f32.mrf.mxu0
        %v4162 = vadd.f32 0.0, %v4161
        %v4163 = vpop.f32.mrf.mxu0
        %v4164 = vpop.f32.mrf.mxu0
        %v4165 = vadd.f32 0.0, %v4164
        %v4166 = vpop.f32.mrf.mxu0
        %4167 = vmatprep.mubr.bf16.mxu0 0
        %4168 = vmatmul.mubr.bf16.gmra.mxu0 %v4087
        %v4169 = vpop.f32.mrf.mxu0
        %v4170 = vadd.f32 0.0, %v4169
        %v4171 = vpop.f32.mrf.mxu0
        %v4172 = vpop.f32.mrf.mxu0
        %v4173 = vadd.f32 0.0, %v4172
        %v4174 = vpop.f32.mrf.mxu0
        %4175 = vmatprep.mubr.bf16.mxu0 0
        %4176 = vmatmul.mubr.bf16.gmra.mxu0 %v4090
        %v4177 = vpop.f32.mrf.mxu0
        %v4178 = vadd.f32 0.0, %v4177
        %v4179 = vpop.f32.mrf.mxu0
        %v4180 = vpop.f32.mrf.mxu0
        %v4181 = vadd.f32 0.0, %v4180
        %v4182 = vpop.f32.mrf.mxu0
        %4183 = vmatprep.mubr.bf16.mxu0 0
        %4184 = vmatmul.mubr.bf16.gmra.mxu0 %v4093
        %v4185 = vpop.f32.mrf.mxu0
        %v4186 = vadd.f32 0.0, %v4185
        %v4187 = vpop.f32.mrf.mxu0
        %v4188 = vpop.f32.mrf.mxu0
        %v4189 = vadd.f32 0.0, %v4188
        %v4190 = vpop.f32.mrf.mxu0
        %4191 = vdwg.mxu0
        %v4196 = vunpack.c.l.b16 %v3938
        %v4197 = vunpack.c.l.b16 %v3939
        %v4198 = vunpack.c.l.b16 %v3940
        %v4199 = vunpack.c.l.b16 %v3941
        %v4200 = vpack.c.b16 %v4197, %v4196
        %v4201 = vpack.c.b16 %v4199, %v4198
        %v4204 = vsel %vm810, %v3981, 0
        %v4206 = vsel %vm810, %v3982, 0
        %v4208 = vsel %vm810, %v3983, 0
        %v4210 = vsel %vm810, %v3984, 0
        %v4212 = vsel %vm810, %v3985, 0
        %v4214 = vsel %vm810, %v3986, 0
        %v4216 = vsel %vm810, %v3987, 0
        %v4218 = vsel %vm810, %v3988, 0
        %4220 = vmatprep.subr.bf16.mxu0 0
        %4221 = vmatpush1.bf16.msra.mxu0 0
        %4222 = vmatprep.subr.bf16.mxu0 0
        %4223 = vmatpush1.bf16.msra.mxu0 0
        %4224 = vmatprep.subr.bf16.mxu0 0
        %4225 = vmatpush1.bf16.msra.mxu0 0
        %4226 = vmatprep.subr.bf16.mxu0 0
        %4227 = vmatpush1.bf16.msra.mxu0 0
        %4228 = vmatprep.subr.bf16.mxu0 0
        %4229 = vmatpush1.bf16.msra.mxu0 0
        %4230 = vmatprep.subr.bf16.mxu0 0
        %4231 = vmatpush1.bf16.msra.mxu0 0
        %4232 = vmatprep.subr.bf16.mxu0 0
        %4233 = vmatpush1.bf16.msra.mxu0 %v4201
        %4234 = vmatprep.subr.bf16.mxu0 0
        %4235 = vmatpush1.bf16.msra.mxu0 %v4200
        %4236 = vmatprep.subr.bf16.mxu0 0
        %4237 = vmatpush2.bf16.msra.mxu0 0
        %4238 = vmatprep.subr.bf16.mxu0 0
        %4239 = vmatpush2.bf16.msra.mxu0 0
        %4240 = vmatprep.subr.bf16.mxu0 0
        %4241 = vmatpush2.bf16.msra.mxu0 0
        %4242 = vmatprep.subr.bf16.mxu0 0
        %4243 = vmatpush2.bf16.msra.mxu0 0
        %4244 = vmatprep.subr.bf16.mxu0 0
        %4245 = vmatpush2.bf16.msra.mxu0 0
        %4246 = vmatprep.subr.bf16.mxu0 0
        %4247 = vmatpush2.bf16.msra.mxu0 0
        %4248 = vmatprep.subr.bf16.mxu0 0
        %4249 = vmatpush2.bf16.msra.mxu0 0
        %4250 = vmatprep.subr.bf16.mxu0 0
        %4251 = vmatpush2.bf16.msra.mxu0 0
        %4252 = vmatprep.mubr.bf16.mxu0 0
        %4253 = vmatmul.mubr.bf16.gmra.mxu0 %v4204
        %v4254 = vpop.f32.mrf.mxu0
        %v4255 = vadd.f32 %v4130, %v4254
        %v4256 = vpop.f32.mrf.mxu0
        %v4257 = vpop.f32.mrf.mxu0
        %v4258 = vadd.f32 %v4133, %v4257
        %v4259 = vpop.f32.mrf.mxu0
        %4260 = vmatprep.mubr.bf16.mxu0 0
        %4261 = vmatmul.mubr.bf16.gmra.mxu0 %v4206
        %v4262 = vpop.f32.mrf.mxu0
        %v4263 = vadd.f32 %v4138, %v4262
        %v4264 = vpop.f32.mrf.mxu0
        %v4265 = vpop.f32.mrf.mxu0
        %v4266 = vadd.f32 %v4141, %v4265
        %v4267 = vpop.f32.mrf.mxu0
        %4268 = vmatprep.mubr.bf16.mxu0 0
        %4269 = vmatmul.mubr.bf16.gmra.mxu0 %v4208
        %v4270 = vpop.f32.mrf.mxu0
        %v4271 = vadd.f32 %v4146, %v4270
        %v4272 = vpop.f32.mrf.mxu0
        %v4273 = vpop.f32.mrf.mxu0
        %v4274 = vadd.f32 %v4149, %v4273
        %v4275 = vpop.f32.mrf.mxu0
        %4276 = vmatprep.mubr.bf16.mxu0 0
        %4277 = vmatmul.mubr.bf16.gmra.mxu0 %v4210
        %v4278 = vpop.f32.mrf.mxu0
        %v4279 = vadd.f32 %v4154, %v4278
        %v4280 = vpop.f32.mrf.mxu0
        %v4281 = vpop.f32.mrf.mxu0
        %v4282 = vadd.f32 %v4157, %v4281
        %v4283 = vpop.f32.mrf.mxu0
        %4284 = vmatprep.mubr.bf16.mxu0 0
        %4285 = vmatmul.mubr.bf16.gmra.mxu0 %v4212
        %v4286 = vpop.f32.mrf.mxu0
        %v4287 = vadd.f32 %v4162, %v4286
        %v4288 = vpop.f32.mrf.mxu0
        %v4289 = vpop.f32.mrf.mxu0
        %v4290 = vadd.f32 %v4165, %v4289
        %v4291 = vpop.f32.mrf.mxu0
        %4292 = vmatprep.mubr.bf16.mxu0 0
        %4293 = vmatmul.mubr.bf16.gmra.mxu0 %v4214
        %v4294 = vpop.f32.mrf.mxu0
        %v4295 = vadd.f32 %v4170, %v4294
        %v4296 = vpop.f32.mrf.mxu0
        %v4297 = vpop.f32.mrf.mxu0
        %v4298 = vadd.f32 %v4173, %v4297
        %v4299 = vpop.f32.mrf.mxu0
        %4300 = vmatprep.mubr.bf16.mxu0 0
        %4301 = vmatmul.mubr.bf16.gmra.mxu0 %v4216
        %v4302 = vpop.f32.mrf.mxu0
        %v4303 = vadd.f32 %v4178, %v4302
        %v4304 = vpop.f32.mrf.mxu0
        %v4305 = vpop.f32.mrf.mxu0
        %v4306 = vadd.f32 %v4181, %v4305
        %v4307 = vpop.f32.mrf.mxu0
        %4308 = vmatprep.mubr.bf16.mxu0 0
        %4309 = vmatmul.mubr.bf16.gmra.mxu0 %v4218
        %v4310 = vpop.f32.mrf.mxu0
        %v4311 = vadd.f32 %v4186, %v4310
        %v4312 = vpop.f32.mrf.mxu0
        %v4313 = vpop.f32.mrf.mxu0
        %v4314 = vadd.f32 %v4189, %v4313
        %v4315 = vpop.f32.mrf.mxu0
        %4316 = vdwg.mxu0
        %v4317 = vld [vmem:[#allocation3] sm:$0xe]
        %v4318 = vld [vmem:[%s3 + $0x20] sm:$0xf]
        %v4319 = vld [vmem:[%s3 + $0x24] sm:$0xf]
        %v4320 = vld [vmem:[%s3 + $0x28] sm:$0xf]
        %v4321 = vld [vmem:[%s3 + $0x2c] sm:$0xf]
        %v4323 = vunpack.c.l.b16 %v4317
        %v4324 = vpack.c.b16 %v3965, %v4323
        %vm4325 = vcmask 1046528
        %v4326 = vrot.slane %v4324, 1
        %v4327 = vrot.slane %v3982, 1
        %v4328 = vsel %vm4325, %v4326, %v4327
        %v4329 = vrot.slane %v3983, 1
        %v4330 = vsel %vm4325, %v4327, %v4329
        %v4331 = vrot.slane %v3984, 1
        %v4332 = vsel %vm4325, %v4329, %v4331
        %v4333 = vrot.slane %v3985, 1
        %v4334 = vsel %vm4325, %v4331, %v4333
        %v4335 = vrot.slane %v3986, 1
        %v4336 = vsel %vm4325, %v4333, %v4335
        %v4337 = vrot.slane %v3987, 1
        %v4338 = vsel %vm4325, %v4335, %v4337
        %v4339 = vrot.slane %v3988, 1
        %v4340 = vsel %vm4325, %v4337, %v4339
        %v4341 = vrot.slane %v3989, 1
        %v4342 = vsel %vm4325, %v4339, %v4341
        %v4347 = vunpack.c.l.b16 %v4318
        %v4348 = vunpack.c.l.b16 %v4319
        %v4349 = vunpack.c.l.b16 %v4320
        %v4350 = vunpack.c.l.b16 %v4321
        %v4351 = vpack.c.b16 %v4348, %v4347
        %v4352 = vpack.c.b16 %v4350, %v4349
        %v4356 = vsel %vm810, %v4328, 0
        %v4359 = vsel %vm810, %v4330, 0
        %v4362 = vsel %vm810, %v4332, 0
        %v4365 = vsel %vm810, %v4334, 0
        %v4368 = vsel %vm810, %v4336, 0
        %v4371 = vsel %vm810, %v4338, 0
        %v4374 = vsel %vm810, %v4340, 0
        %v4377 = vsel %vm810, %v4342, 0
        %4379 = vmatprep.subr.bf16.mxu0 0
        %4380 = vmatpush1.bf16.msra.mxu0 0
        %4381 = vmatprep.subr.bf16.mxu0 0
        %4382 = vmatpush1.bf16.msra.mxu0 0
        %4383 = vmatprep.subr.bf16.mxu0 0
        %4384 = vmatpush1.bf16.msra.mxu0 0
        %4385 = vmatprep.subr.bf16.mxu0 0
        %4386 = vmatpush1.bf16.msra.mxu0 0
        %4387 = vmatprep.subr.bf16.mxu0 0
        %4388 = vmatpush1.bf16.msra.mxu0 0
        %4389 = vmatprep.subr.bf16.mxu0 0
        %4390 = vmatpush1.bf16.msra.mxu0 0
        %4391 = vmatprep.subr.bf16.mxu0 0
        %4392 = vmatpush1.bf16.msra.mxu0 %v4352
        %4393 = vmatprep.subr.bf16.mxu0 0
        %4394 = vmatpush1.bf16.msra.mxu0 %v4351
        %4395 = vmatprep.subr.bf16.mxu0 0
        %4396 = vmatpush2.bf16.msra.mxu0 0
        %4397 = vmatprep.subr.bf16.mxu0 0
        %4398 = vmatpush2.bf16.msra.mxu0 0
        %4399 = vmatprep.subr.bf16.mxu0 0
        %4400 = vmatpush2.bf16.msra.mxu0 0
        %4401 = vmatprep.subr.bf16.mxu0 0
        %4402 = vmatpush2.bf16.msra.mxu0 0
        %4403 = vmatprep.subr.bf16.mxu0 0
        %4404 = vmatpush2.bf16.msra.mxu0 0
        %4405 = vmatprep.subr.bf16.mxu0 0
        %4406 = vmatpush2.bf16.msra.mxu0 0
        %4407 = vmatprep.subr.bf16.mxu0 0
        %4408 = vmatpush2.bf16.msra.mxu0 0
        %4409 = vmatprep.subr.bf16.mxu0 0
        %4410 = vmatpush2.bf16.msra.mxu0 0
        %4411 = vmatprep.mubr.bf16.mxu0 0
        %4412 = vmatmul.mubr.bf16.gmra.mxu0 %v4356
        %v4413 = vpop.f32.mrf.mxu0
        %v4414 = vadd.f32 0.0, %v4413
        %v4415 = vpop.f32.mrf.mxu0
        %v4416 = vpop.f32.mrf.mxu0
        %v4417 = vadd.f32 0.0, %v4416
        %v4418 = vpop.f32.mrf.mxu0
        %4419 = vmatprep.mubr.bf16.mxu0 0
        %4420 = vmatmul.mubr.bf16.gmra.mxu0 %v4359
        %v4421 = vpop.f32.mrf.mxu0
        %v4422 = vadd.f32 0.0, %v4421
        %v4423 = vpop.f32.mrf.mxu0
        %v4424 = vpop.f32.mrf.mxu0
        %v4425 = vadd.f32 0.0, %v4424
        %v4426 = vpop.f32.mrf.mxu0
        %4427 = vmatprep.mubr.bf16.mxu0 0
        %4428 = vmatmul.mubr.bf16.gmra.mxu0 %v4362
        %v4429 = vpop.f32.mrf.mxu0
        %v4430 = vadd.f32 0.0, %v4429
        %v4431 = vpop.f32.mrf.mxu0
        %v4432 = vpop.f32.mrf.mxu0
        %v4433 = vadd.f32 0.0, %v4432
        %v4434 = vpop.f32.mrf.mxu0
        %4435 = vmatprep.mubr.bf16.mxu0 0
        %4436 = vmatmul.mubr.bf16.gmra.mxu0 %v4365
        %v4437 = vpop.f32.mrf.mxu0
        %v4438 = vadd.f32 0.0, %v4437
        %v4439 = vpop.f32.mrf.mxu0
        %v4440 = vpop.f32.mrf.mxu0
        %v4441 = vadd.f32 0.0, %v4440
        %v4442 = vpop.f32.mrf.mxu0
        %4443 = vmatprep.mubr.bf16.mxu0 0
        %4444 = vmatmul.mubr.bf16.gmra.mxu0 %v4368
        %v4445 = vpop.f32.mrf.mxu0
        %v4446 = vadd.f32 0.0, %v4445
        %v4447 = vpop.f32.mrf.mxu0
        %v4448 = vpop.f32.mrf.mxu0
        %v4449 = vadd.f32 0.0, %v4448
        %v4450 = vpop.f32.mrf.mxu0
        %4451 = vmatprep.mubr.bf16.mxu0 0
        %4452 = vmatmul.mubr.bf16.gmra.mxu0 %v4371
        %v4453 = vpop.f32.mrf.mxu0
        %v4454 = vadd.f32 0.0, %v4453
        %v4455 = vpop.f32.mrf.mxu0
        %v4456 = vpop.f32.mrf.mxu0
        %v4457 = vadd.f32 0.0, %v4456
        %v4458 = vpop.f32.mrf.mxu0
        %4459 = vmatprep.mubr.bf16.mxu0 0
        %4460 = vmatmul.mubr.bf16.gmra.mxu0 %v4374
        %v4461 = vpop.f32.mrf.mxu0
        %v4462 = vadd.f32 0.0, %v4461
        %v4463 = vpop.f32.mrf.mxu0
        %v4464 = vpop.f32.mrf.mxu0
        %v4465 = vadd.f32 0.0, %v4464
        %v4466 = vpop.f32.mrf.mxu0
        %4467 = vmatprep.mubr.bf16.mxu0 0
        %4468 = vmatmul.mubr.bf16.gmra.mxu0 %v4377
        %v4469 = vpop.f32.mrf.mxu0
        %v4470 = vadd.f32 0.0, %v4469
        %v4471 = vpop.f32.mrf.mxu0
        %v4472 = vpop.f32.mrf.mxu0
        %v4473 = vadd.f32 0.0, %v4472
        %v4474 = vpop.f32.mrf.mxu0
        %4475 = vdwg.mxu0
        %v4476 = vadd.f32 %v4255, %v4414
        %v4477 = vadd.f32 %v4258, %v4417
        %v4478 = vadd.f32 %v4263, %v4422
        %v4479 = vadd.f32 %v4266, %v4425
        %v4480 = vadd.f32 %v4271, %v4430
        %v4481 = vadd.f32 %v4274, %v4433
        %v4482 = vadd.f32 %v4279, %v4438
        %v4483 = vadd.f32 %v4282, %v4441
        %v4484 = vadd.f32 %v4287, %v4446
        %v4485 = vadd.f32 %v4290, %v4449
        %v4486 = vadd.f32 %v4295, %v4454
        %v4487 = vadd.f32 %v4298, %v4457
        %v4488 = vadd.f32 %v4303, %v4462
        %v4489 = vadd.f32 %v4306, %v4465
        %v4490 = vadd.f32 %v4311, %v4470
        %v4491 = vadd.f32 %v4314, %v4473
        %v4492 = vld [vmem:[#allocation3 + $0x8] sm:$0xf]
        %v4493 = vld [vmem:[#allocation3 + $0xc] sm:$0xf]
        %v4494 = vld [vmem:[#allocation3 + $0x10] sm:$0xf]
        %v4495 = vld [vmem:[#allocation3 + $0x14] sm:$0xf]
        %v4496 = vld [vmem:[#allocation3 + $0x18] sm:$0xf]
        %v4497 = vld [vmem:[#allocation3 + $0x1c] sm:$0xf]
        %v4498 = vld [vmem:[#allocation3 + $0x20] sm:$0xf]
        %v4499 = vld [vmem:[#allocation3 + $0x24] sm:$0xf]
        %v4500 = vld [vmem:[#allocation3 + $0x28] sm:$0xf]
        %v4501 = vld [vmem:[#allocation3 + $0x2c] sm:$0xf]
        %v4502 = vld [vmem:[#allocation3 + $0x30] sm:$0xf]
        %v4503 = vld [vmem:[#allocation3 + $0x34] sm:$0xf]
        %v4504 = vld [vmem:[#allocation3 + $0x38] sm:$0xf]
        %v4505 = vld [vmem:[#allocation3 + $0x3c] sm:$0xf]
        %v4506 = vld [vmem:[#allocation3 + $0x40] sm:$0xf]
        %v4507 = vld [vmem:[#allocation3 + $0x44] sm:$0xf]
        %v4508 = vld [vmem:[%s3 + $0x30] sm:$0xf]
        %v4509 = vld [vmem:[%s3 + $0x34] sm:$0xf]
        %v4510 = vld [vmem:[%s3 + $0x38] sm:$0xf]
        %v4511 = vld [vmem:[%s3 + $0x3c] sm:$0xf]
        %v4528 = vunpack.c.l.b16 %v4492
        %v4529 = vunpack.c.l.b16 %v4493
        %v4530 = vunpack.c.l.b16 %v4494
        %v4531 = vunpack.c.l.b16 %v4495
        %v4532 = vunpack.c.l.b16 %v4496
        %v4533 = vunpack.c.l.b16 %v4497
        %v4534 = vunpack.c.l.b16 %v4498
        %v4535 = vunpack.c.l.b16 %v4499
        %v4536 = vunpack.c.l.b16 %v4500
        %v4537 = vunpack.c.l.b16 %v4501
        %v4538 = vunpack.c.l.b16 %v4502
        %v4539 = vunpack.c.l.b16 %v4503
        %v4540 = vunpack.c.l.b16 %v4504
        %v4541 = vunpack.c.l.b16 %v4505
        %v4542 = vunpack.c.l.b16 %v4506
        %v4543 = vunpack.c.l.b16 %v4507
        %v4544 = vpack.c.b16 %v4529, %v4528
        %v4545 = vpack.c.b16 %v4531, %v4530
        %v4546 = vpack.c.b16 %v4533, %v4532
        %v4547 = vpack.c.b16 %v4535, %v4534
        %v4548 = vpack.c.b16 %v4537, %v4536
        %v4549 = vpack.c.b16 %v4539, %v4538
        %v4550 = vpack.c.b16 %v4541, %v4540
        %v4551 = vpack.c.b16 %v4543, %v4542
        %v4556 = vunpack.c.l.b16 %v4508
        %v4557 = vunpack.c.l.b16 %v4509
        %v4558 = vunpack.c.l.b16 %v4510
        %v4559 = vunpack.c.l.b16 %v4511
        %v4560 = vpack.c.b16 %v4557, %v4556
        %v4561 = vpack.c.b16 %v4559, %v4558
        %v4565 = vsel %vm810, %v4544, 0
        %v4568 = vsel %vm810, %v4545, 0
        %v4571 = vsel %vm810, %v4546, 0
        %v4574 = vsel %vm810, %v4547, 0
        %v4577 = vsel %vm810, %v4548, 0
        %v4580 = vsel %vm810, %v4549, 0
        %v4583 = vsel %vm810, %v4550, 0
        %v4586 = vsel %vm810, %v4551, 0
        %4588 = vmatprep.subr.bf16.mxu0 0
        %4589 = vmatpush1.bf16.msra.mxu0 0
        %4590 = vmatprep.subr.bf16.mxu0 0
        %4591 = vmatpush1.bf16.msra.mxu0 0
        %4592 = vmatprep.subr.bf16.mxu0 0
        %4593 = vmatpush1.bf16.msra.mxu0 0
        %4594 = vmatprep.subr.bf16.mxu0 0
        %4595 = vmatpush1.bf16.msra.mxu0 0
        %4596 = vmatprep.subr.bf16.mxu0 0
        %4597 = vmatpush1.bf16.msra.mxu0 0
        %4598 = vmatprep.subr.bf16.mxu0 0
        %4599 = vmatpush1.bf16.msra.mxu0 0
        %4600 = vmatprep.subr.bf16.mxu0 0
        %4601 = vmatpush1.bf16.msra.mxu0 %v4561
        %4602 = vmatprep.subr.bf16.mxu0 0
        %4603 = vmatpush1.bf16.msra.mxu0 %v4560
        %4604 = vmatprep.subr.bf16.mxu0 0
        %4605 = vmatpush2.bf16.msra.mxu0 0
        %4606 = vmatprep.subr.bf16.mxu0 0
        %4607 = vmatpush2.bf16.msra.mxu0 0
        %4608 = vmatprep.subr.bf16.mxu0 0
        %4609 = vmatpush2.bf16.msra.mxu0 0
        %4610 = vmatprep.subr.bf16.mxu0 0
        %4611 = vmatpush2.bf16.msra.mxu0 0
        %4612 = vmatprep.subr.bf16.mxu0 0
        %4613 = vmatpush2.bf16.msra.mxu0 0
        %4614 = vmatprep.subr.bf16.mxu0 0
        %4615 = vmatpush2.bf16.msra.mxu0 0
        %4616 = vmatprep.subr.bf16.mxu0 0
        %4617 = vmatpush2.bf16.msra.mxu0 0
        %4618 = vmatprep.subr.bf16.mxu0 0
        %4619 = vmatpush2.bf16.msra.mxu0 0
        %4620 = vmatprep.mubr.bf16.mxu0 0
        %4621 = vmatmul.mubr.bf16.gmra.mxu0 %v4565
        %v4622 = vpop.f32.mrf.mxu0
        %v4623 = vadd.f32 0.0, %v4622
        %v4624 = vpop.f32.mrf.mxu0
        %v4625 = vpop.f32.mrf.mxu0
        %v4626 = vadd.f32 0.0, %v4625
        %v4627 = vpop.f32.mrf.mxu0
        %4628 = vmatprep.mubr.bf16.mxu0 0
        %4629 = vmatmul.mubr.bf16.gmra.mxu0 %v4568
        %v4630 = vpop.f32.mrf.mxu0
        %v4631 = vadd.f32 0.0, %v4630
        %v4632 = vpop.f32.mrf.mxu0
        %v4633 = vpop.f32.mrf.mxu0
        %v4634 = vadd.f32 0.0, %v4633
        %v4635 = vpop.f32.mrf.mxu0
        %4636 = vmatprep.mubr.bf16.mxu0 0
        %4637 = vmatmul.mubr.bf16.gmra.mxu0 %v4571
        %v4638 = vpop.f32.mrf.mxu0
        %v4639 = vadd.f32 0.0, %v4638
        %v4640 = vpop.f32.mrf.mxu0
        %v4641 = vpop.f32.mrf.mxu0
        %v4642 = vadd.f32 0.0, %v4641
        %v4643 = vpop.f32.mrf.mxu0
        %4644 = vmatprep.mubr.bf16.mxu0 0
        %4645 = vmatmul.mubr.bf16.gmra.mxu0 %v4574
        %v4646 = vpop.f32.mrf.mxu0
        %v4647 = vadd.f32 0.0, %v4646
        %v4648 = vpop.f32.mrf.mxu0
        %v4649 = vpop.f32.mrf.mxu0
        %v4650 = vadd.f32 0.0, %v4649
        %v4651 = vpop.f32.mrf.mxu0
        %4652 = vmatprep.mubr.bf16.mxu0 0
        %4653 = vmatmul.mubr.bf16.gmra.mxu0 %v4577
        %v4654 = vpop.f32.mrf.mxu0
        %v4655 = vadd.f32 0.0, %v4654
        %v4656 = vpop.f32.mrf.mxu0
        %v4657 = vpop.f32.mrf.mxu0
        %v4658 = vadd.f32 0.0, %v4657
        %v4659 = vpop.f32.mrf.mxu0
        %4660 = vmatprep.mubr.bf16.mxu0 0
        %4661 = vmatmul.mubr.bf16.gmra.mxu0 %v4580
        %v4662 = vpop.f32.mrf.mxu0
        %v4663 = vadd.f32 0.0, %v4662
        %v4664 = vpop.f32.mrf.mxu0
        %v4665 = vpop.f32.mrf.mxu0
        %v4666 = vadd.f32 0.0, %v4665
        %v4667 = vpop.f32.mrf.mxu0
        %4668 = vmatprep.mubr.bf16.mxu0 0
        %4669 = vmatmul.mubr.bf16.gmra.mxu0 %v4583
        %v4670 = vpop.f32.mrf.mxu0
        %v4671 = vadd.f32 0.0, %v4670
        %v4672 = vpop.f32.mrf.mxu0
        %v4673 = vpop.f32.mrf.mxu0
        %v4674 = vadd.f32 0.0, %v4673
        %v4675 = vpop.f32.mrf.mxu0
        %4676 = vmatprep.mubr.bf16.mxu0 0
        %4677 = vmatmul.mubr.bf16.gmra.mxu0 %v4586
        %v4678 = vpop.f32.mrf.mxu0
        %v4679 = vadd.f32 0.0, %v4678
        %v4680 = vpop.f32.mrf.mxu0
        %v4681 = vpop.f32.mrf.mxu0
        %v4682 = vadd.f32 0.0, %v4681
        %v4683 = vpop.f32.mrf.mxu0
        %4684 = vdwg.mxu0
        %v4685 = vadd.f32 %v4476, %v4623
        %v4686 = vadd.f32 %v4477, %v4626
        %v4687 = vadd.f32 %v4478, %v4631
        %v4688 = vadd.f32 %v4479, %v4634
        %v4689 = vadd.f32 %v4480, %v4639
        %v4690 = vadd.f32 %v4481, %v4642
        %v4691 = vadd.f32 %v4482, %v4647
        %v4692 = vadd.f32 %v4483, %v4650
        %v4693 = vadd.f32 %v4484, %v4655
        %v4694 = vadd.f32 %v4485, %v4658
        %v4695 = vadd.f32 %v4486, %v4663
        %v4696 = vadd.f32 %v4487, %v4666
        %v4697 = vadd.f32 %v4488, %v4671
        %v4698 = vadd.f32 %v4489, %v4674
        %v4699 = vadd.f32 %v4490, %v4679
        %v4700 = vadd.f32 %v4491, %v4682
        %v4701 = vld [vmem:[#allocation3 + $0x8] sm:$0xf]
        %v4702 = vld [vmem:[#allocation3 + $0xc] sm:$0xf]
        %v4703 = vld [vmem:[#allocation3 + $0x10] sm:$0xf]
        %v4704 = vld [vmem:[#allocation3 + $0x14] sm:$0xf]
        %v4705 = vld [vmem:[#allocation3 + $0x18] sm:$0xf]
        %v4706 = vld [vmem:[#allocation3 + $0x1c] sm:$0xf]
        %v4707 = vld [vmem:[#allocation3 + $0x20] sm:$0xf]
        %v4708 = vld [vmem:[#allocation3 + $0x24] sm:$0xf]
        %v4709 = vld [vmem:[#allocation3 + $0x28] sm:$0xf]
        %v4710 = vld [vmem:[#allocation3 + $0x2c] sm:$0xf]
        %v4711 = vld [vmem:[#allocation3 + $0x30] sm:$0xf]
        %v4712 = vld [vmem:[#allocation3 + $0x34] sm:$0xf]
        %v4713 = vld [vmem:[#allocation3 + $0x38] sm:$0xf]
        %v4714 = vld [vmem:[#allocation3 + $0x3c] sm:$0xf]
        %v4715 = vld [vmem:[#allocation3 + $0x40] sm:$0xf]
        %v4716 = vld [vmem:[#allocation3 + $0x44] sm:$0xf]
        %v4717 = vld [vmem:[#allocation3 + $0x48] sm:$0x1]
        %v4718 = vld [vmem:[%s3 + $0x40] sm:$0xf]
        %v4719 = vld [vmem:[%s3 + $0x44] sm:$0xf]
        %v4720 = vld [vmem:[%s3 + $0x48] sm:$0xf]
        %v4721 = vld [vmem:[%s3 + $0x4c] sm:$0xf]
        %v4739 = vunpack.c.l.b16 %v4701
        %v4740 = vunpack.c.l.b16 %v4702
        %v4741 = vunpack.c.l.b16 %v4703
        %v4742 = vunpack.c.l.b16 %v4704
        %v4743 = vunpack.c.l.b16 %v4705
        %v4744 = vunpack.c.l.b16 %v4706
        %v4745 = vunpack.c.l.b16 %v4707
        %v4746 = vunpack.c.l.b16 %v4708
        %v4747 = vunpack.c.l.b16 %v4709
        %v4748 = vunpack.c.l.b16 %v4710
        %v4749 = vunpack.c.l.b16 %v4711
        %v4750 = vunpack.c.l.b16 %v4712
        %v4751 = vunpack.c.l.b16 %v4713
        %v4752 = vunpack.c.l.b16 %v4714
        %v4753 = vunpack.c.l.b16 %v4715
        %v4754 = vunpack.c.l.b16 %v4716
        %v4755 = vunpack.c.l.b16 %v4717
        %v4756 = vpack.c.b16 %v4740, %v4739
        %v4757 = vpack.c.b16 %v4742, %v4741
        %v4758 = vpack.c.b16 %v4744, %v4743
        %v4759 = vpack.c.b16 %v4746, %v4745
        %v4760 = vpack.c.b16 %v4748, %v4747
        %v4761 = vpack.c.b16 %v4750, %v4749
        %v4762 = vpack.c.b16 %v4752, %v4751
        %v4763 = vpack.c.b16 %v4754, %v4753
        %v4764 = vpack.c.b16 %v4755, %v4755
        %v4766 = vshrl.u32 %v4756, 16
        %v4768 = vshll.u32 %v4756, 16
        %v4770 = vrot.slane %v4768, 1
        %v4771 = vor.u32 %v4766, %v4770
        %v4773 = vshll.u32 %v4757, 16
        %v4775 = vrot.slane %v4773, 1
        %v4776 = vsel %vm3990, %v4771, %v4775
        %v4777 = vshrl.u32 %v4757, 16
        %v4779 = vor.u32 %v4777, %v4775
        %v4781 = vshll.u32 %v4758, 16
        %v4783 = vrot.slane %v4781, 1
        %v4784 = vsel %vm3990, %v4779, %v4783
        %v4785 = vshrl.u32 %v4758, 16
        %v4787 = vor.u32 %v4785, %v4783
        %v4789 = vshll.u32 %v4759, 16
        %v4791 = vrot.slane %v4789, 1
        %v4792 = vsel %vm3990, %v4787, %v4791
        %v4793 = vshrl.u32 %v4759, 16
        %v4795 = vor.u32 %v4793, %v4791
        %v4797 = vshll.u32 %v4760, 16
        %v4799 = vrot.slane %v4797, 1
        %v4800 = vsel %vm3990, %v4795, %v4799
        %v4801 = vshrl.u32 %v4760, 16
        %v4803 = vor.u32 %v4801, %v4799
        %v4805 = vshll.u32 %v4761, 16
        %v4807 = vrot.slane %v4805, 1
        %v4808 = vsel %vm3990, %v4803, %v4807
        %v4809 = vshrl.u32 %v4761, 16
        %v4811 = vor.u32 %v4809, %v4807
        %v4813 = vshll.u32 %v4762, 16
        %v4815 = vrot.slane %v4813, 1
        %v4816 = vsel %vm3990, %v4811, %v4815
        %v4817 = vshrl.u32 %v4762, 16
        %v4819 = vor.u32 %v4817, %v4815
        %v4821 = vshll.u32 %v4763, 16
        %v4823 = vrot.slane %v4821, 1
        %v4824 = vsel %vm3990, %v4819, %v4823
        %v4825 = vshrl.u32 %v4763, 16
        %v4827 = vor.u32 %v4825, %v4823
        %v4829 = vshll.u32 %v4764, 16
        %v4831 = vrot.slane %v4829, 1
        %v4832 = vsel %vm3990, %v4827, %v4831
        %v4837 = vunpack.c.l.b16 %v4718
        %v4838 = vunpack.c.l.b16 %v4719
        %v4839 = vunpack.c.l.b16 %v4720
        %v4840 = vunpack.c.l.b16 %v4721
        %v4841 = vpack.c.b16 %v4838, %v4837
        %v4842 = vpack.c.b16 %v4840, %v4839
        %v4846 = vsel %vm810, %v4776, 0
        %v4849 = vsel %vm810, %v4784, 0
        %v4852 = vsel %vm810, %v4792, 0
        %v4855 = vsel %vm810, %v4800, 0
        %v4858 = vsel %vm810, %v4808, 0
        %v4861 = vsel %vm810, %v4816, 0
        %v4864 = vsel %vm810, %v4824, 0
        %v4867 = vsel %vm810, %v4832, 0
        %4869 = vmatprep.subr.bf16.mxu0 0
        %4870 = vmatpush1.bf16.msra.mxu0 0
        %4871 = vmatprep.subr.bf16.mxu0 0
        %4872 = vmatpush1.bf16.msra.mxu0 0
        %4873 = vmatprep.subr.bf16.mxu0 0
        %4874 = vmatpush1.bf16.msra.mxu0 0
        %4875 = vmatprep.subr.bf16.mxu0 0
        %4876 = vmatpush1.bf16.msra.mxu0 0
        %4877 = vmatprep.subr.bf16.mxu0 0
        %4878 = vmatpush1.bf16.msra.mxu0 0
        %4879 = vmatprep.subr.bf16.mxu0 0
        %4880 = vmatpush1.bf16.msra.mxu0 0
        %4881 = vmatprep.subr.bf16.mxu0 0
        %4882 = vmatpush1.bf16.msra.mxu0 %v4842
        %4883 = vmatprep.subr.bf16.mxu0 0
        %4884 = vmatpush1.bf16.msra.mxu0 %v4841
        %4885 = vmatprep.subr.bf16.mxu0 0
        %4886 = vmatpush2.bf16.msra.mxu0 0
        %4887 = vmatprep.subr.bf16.mxu0 0
        %4888 = vmatpush2.bf16.msra.mxu0 0
        %4889 = vmatprep.subr.bf16.mxu0 0
        %4890 = vmatpush2.bf16.msra.mxu0 0
        %4891 = vmatprep.subr.bf16.mxu0 0
        %4892 = vmatpush2.bf16.msra.mxu0 0
        %4893 = vmatprep.subr.bf16.mxu0 0
        %4894 = vmatpush2.bf16.msra.mxu0 0
        %4895 = vmatprep.subr.bf16.mxu0 0
        %4896 = vmatpush2.bf16.msra.mxu0 0
        %4897 = vmatprep.subr.bf16.mxu0 0
        %4898 = vmatpush2.bf16.msra.mxu0 0
        %4899 = vmatprep.subr.bf16.mxu0 0
        %4900 = vmatpush2.bf16.msra.mxu0 0
        %4901 = vmatprep.mubr.bf16.mxu0 0
        %4902 = vmatmul.mubr.bf16.gmra.mxu0 %v4846
        %v4903 = vpop.f32.mrf.mxu0
        %v4904 = vadd.f32 0.0, %v4903
        %v4905 = vpop.f32.mrf.mxu0
        %v4906 = vpop.f32.mrf.mxu0
        %v4907 = vadd.f32 0.0, %v4906
        %v4908 = vpop.f32.mrf.mxu0
        %4909 = vmatprep.mubr.bf16.mxu0 0
        %4910 = vmatmul.mubr.bf16.gmra.mxu0 %v4849
        %v4911 = vpop.f32.mrf.mxu0
        %v4912 = vadd.f32 0.0, %v4911
        %v4913 = vpop.f32.mrf.mxu0
        %v4914 = vpop.f32.mrf.mxu0
        %v4915 = vadd.f32 0.0, %v4914
        %v4916 = vpop.f32.mrf.mxu0
        %4917 = vmatprep.mubr.bf16.mxu0 0
        %4918 = vmatmul.mubr.bf16.gmra.mxu0 %v4852
        %v4919 = vpop.f32.mrf.mxu0
        %v4920 = vadd.f32 0.0, %v4919
        %v4921 = vpop.f32.mrf.mxu0
        %v4922 = vpop.f32.mrf.mxu0
        %v4923 = vadd.f32 0.0, %v4922
        %v4924 = vpop.f32.mrf.mxu0
        %4925 = vmatprep.mubr.bf16.mxu0 0
        %4926 = vmatmul.mubr.bf16.gmra.mxu0 %v4855
        %v4927 = vpop.f32.mrf.mxu0
        %v4928 = vadd.f32 0.0, %v4927
        %v4929 = vpop.f32.mrf.mxu0
        %v4930 = vpop.f32.mrf.mxu0
        %v4931 = vadd.f32 0.0, %v4930
        %v4932 = vpop.f32.mrf.mxu0
        %4933 = vmatprep.mubr.bf16.mxu0 0
        %4934 = vmatmul.mubr.bf16.gmra.mxu0 %v4858
        %v4935 = vpop.f32.mrf.mxu0
        %v4936 = vadd.f32 0.0, %v4935
        %v4937 = vpop.f32.mrf.mxu0
        %v4938 = vpop.f32.mrf.mxu0
        %v4939 = vadd.f32 0.0, %v4938
        %v4940 = vpop.f32.mrf.mxu0
        %4941 = vmatprep.mubr.bf16.mxu0 0
        %4942 = vmatmul.mubr.bf16.gmra.mxu0 %v4861
        %v4943 = vpop.f32.mrf.mxu0
        %v4944 = vadd.f32 0.0, %v4943
        %v4945 = vpop.f32.mrf.mxu0
        %v4946 = vpop.f32.mrf.mxu0
        %v4947 = vadd.f32 0.0, %v4946
        %v4948 = vpop.f32.mrf.mxu0
        %4949 = vmatprep.mubr.bf16.mxu0 0
        %4950 = vmatmul.mubr.bf16.gmra.mxu0 %v4864
        %v4951 = vpop.f32.mrf.mxu0
        %v4952 = vadd.f32 0.0, %v4951
        %v4953 = vpop.f32.mrf.mxu0
        %v4954 = vpop.f32.mrf.mxu0
        %v4955 = vadd.f32 0.0, %v4954
        %v4956 = vpop.f32.mrf.mxu0
        %4957 = vmatprep.mubr.bf16.mxu0 0
        %4958 = vmatmul.mubr.bf16.gmra.mxu0 %v4867
        %v4959 = vpop.f32.mrf.mxu0
        %v4960 = vadd.f32 0.0, %v4959
        %v4961 = vpop.f32.mrf.mxu0
        %v4962 = vpop.f32.mrf.mxu0
        %v4963 = vadd.f32 0.0, %v4962
        %v4964 = vpop.f32.mrf.mxu0
        %4965 = vdwg.mxu0
        %v4966 = vadd.f32 %v4685, %v4904
        %v4967 = vadd.f32 %v4686, %v4907
        %v4968 = vadd.f32 %v4687, %v4912
        %v4969 = vadd.f32 %v4688, %v4915
        %v4970 = vadd.f32 %v4689, %v4920
        %v4971 = vadd.f32 %v4690, %v4923
        %v4972 = vadd.f32 %v4691, %v4928
        %v4973 = vadd.f32 %v4692, %v4931
        %v4974 = vadd.f32 %v4693, %v4936
        %v4975 = vadd.f32 %v4694, %v4939
        %v4976 = vadd.f32 %v4695, %v4944
        %v4977 = vadd.f32 %v4696, %v4947
        %v4978 = vadd.f32 %v4697, %v4952
        %v4979 = vadd.f32 %v4698, %v4955
        %v4980 = vadd.f32 %v4699, %v4960
        %v4981 = vadd.f32 %v4700, %v4963
        %v4982 = vld [vmem:[#allocation3 + $0x8] sm:$0xe]
        %v4983 = vld [vmem:[%s3 + $0x50] sm:$0xf]
        %v4984 = vld [vmem:[%s3 + $0x54] sm:$0xf]
        %v4985 = vld [vmem:[%s3 + $0x58] sm:$0xf]
        %v4986 = vld [vmem:[%s3 + $0x5c] sm:$0xf]
        %v4988 = vunpack.c.l.b16 %v4982
        %v4989 = vpack.c.b16 %v4740, %v4988
        %v4990 = vrot.slane %v4989, 1
        %v4991 = vrot.slane %v4757, 1
        %v4992 = vsel %vm4325, %v4990, %v4991
        %v4993 = vrot.slane %v4758, 1
        %v4994 = vsel %vm4325, %v4991, %v4993
        %v4995 = vrot.slane %v4759, 1
        %v4996 = vsel %vm4325, %v4993, %v4995
        %v4997 = vrot.slane %v4760, 1
        %v4998 = vsel %vm4325, %v4995, %v4997
        %v4999 = vrot.slane %v4761, 1
        %v5000 = vsel %vm4325, %v4997, %v4999
        %v5001 = vrot.slane %v4762, 1
        %v5002 = vsel %vm4325, %v4999, %v5001
        %v5003 = vrot.slane %v4763, 1
        %v5004 = vsel %vm4325, %v5001, %v5003
        %v5005 = vrot.slane %v4764, 1
        %v5006 = vsel %vm4325, %v5003, %v5005
        %v5011 = vunpack.c.l.b16 %v4983
        %v5012 = vunpack.c.l.b16 %v4984
        %v5013 = vunpack.c.l.b16 %v4985
        %v5014 = vunpack.c.l.b16 %v4986
        %v5015 = vpack.c.b16 %v5012, %v5011
        %v5016 = vpack.c.b16 %v5014, %v5013
        %v5020 = vsel %vm810, %v4992, 0
        %v5023 = vsel %vm810, %v4994, 0
        %v5026 = vsel %vm810, %v4996, 0
        %v5029 = vsel %vm810, %v4998, 0
        %v5032 = vsel %vm810, %v5000, 0
        %v5035 = vsel %vm810, %v5002, 0
        %v5038 = vsel %vm810, %v5004, 0
        %v5041 = vsel %vm810, %v5006, 0
        %5043 = vmatprep.subr.bf16.mxu0 0
        %5044 = vmatpush1.bf16.msra.mxu0 0
        %5045 = vmatprep.subr.bf16.mxu0 0
        %5046 = vmatpush1.bf16.msra.mxu0 0
        %5047 = vmatprep.subr.bf16.mxu0 0
        %5048 = vmatpush1.bf16.msra.mxu0 0
        %5049 = vmatprep.subr.bf16.mxu0 0
        %5050 = vmatpush1.bf16.msra.mxu0 0
        %5051 = vmatprep.subr.bf16.mxu0 0
        %5052 = vmatpush1.bf16.msra.mxu0 0
        %5053 = vmatprep.subr.bf16.mxu0 0
        %5054 = vmatpush1.bf16.msra.mxu0 0
        %5055 = vmatprep.subr.bf16.mxu0 0
        %5056 = vmatpush1.bf16.msra.mxu0 %v5016
        %5057 = vmatprep.subr.bf16.mxu0 0
        %5058 = vmatpush1.bf16.msra.mxu0 %v5015
        %5059 = vmatprep.subr.bf16.mxu0 0
        %5060 = vmatpush2.bf16.msra.mxu0 0
        %5061 = vmatprep.subr.bf16.mxu0 0
        %5062 = vmatpush2.bf16.msra.mxu0 0
        %5063 = vmatprep.subr.bf16.mxu0 0
        %5064 = vmatpush2.bf16.msra.mxu0 0
        %5065 = vmatprep.subr.bf16.mxu0 0
        %5066 = vmatpush2.bf16.msra.mxu0 0
        %5067 = vmatprep.subr.bf16.mxu0 0
        %5068 = vmatpush2.bf16.msra.mxu0 0
        %5069 = vmatprep.subr.bf16.mxu0 0
        %5070 = vmatpush2.bf16.msra.mxu0 0
        %5071 = vmatprep.subr.bf16.mxu0 0
        %5072 = vmatpush2.bf16.msra.mxu0 0
        %5073 = vmatprep.subr.bf16.mxu0 0
        %5074 = vmatpush2.bf16.msra.mxu0 0
        %5075 = vmatprep.mubr.bf16.mxu0 0
        %5076 = vmatmul.mubr.bf16.gmra.mxu0 %v5020
        %v5077 = vpop.f32.mrf.mxu0
        %v5078 = vadd.f32 0.0, %v5077
        %v5079 = vpop.f32.mrf.mxu0
        %v5080 = vpop.f32.mrf.mxu0
        %v5081 = vadd.f32 0.0, %v5080
        %v5082 = vpop.f32.mrf.mxu0
        %5083 = vmatprep.mubr.bf16.mxu0 0
        %5084 = vmatmul.mubr.bf16.gmra.mxu0 %v5023
        %v5085 = vpop.f32.mrf.mxu0
        %v5086 = vadd.f32 0.0, %v5085
        %v5087 = vpop.f32.mrf.mxu0
        %v5088 = vpop.f32.mrf.mxu0
        %v5089 = vadd.f32 0.0, %v5088
        %v5090 = vpop.f32.mrf.mxu0
        %5091 = vmatprep.mubr.bf16.mxu0 0
        %5092 = vmatmul.mubr.bf16.gmra.mxu0 %v5026
        %v5093 = vpop.f32.mrf.mxu0
        %v5094 = vadd.f32 0.0, %v5093
        %v5095 = vpop.f32.mrf.mxu0
        %v5096 = vpop.f32.mrf.mxu0
        %v5097 = vadd.f32 0.0, %v5096
        %v5098 = vpop.f32.mrf.mxu0
        %5099 = vmatprep.mubr.bf16.mxu0 0
        %5100 = vmatmul.mubr.bf16.gmra.mxu0 %v5029
        %v5101 = vpop.f32.mrf.mxu0
        %v5102 = vadd.f32 0.0, %v5101
        %v5103 = vpop.f32.mrf.mxu0
        %v5104 = vpop.f32.mrf.mxu0
        %v5105 = vadd.f32 0.0, %v5104
        %v5106 = vpop.f32.mrf.mxu0
        %5107 = vmatprep.mubr.bf16.mxu0 0
        %5108 = vmatmul.mubr.bf16.gmra.mxu0 %v5032
        %v5109 = vpop.f32.mrf.mxu0
        %v5110 = vadd.f32 0.0, %v5109
        %v5111 = vpop.f32.mrf.mxu0
        %v5112 = vpop.f32.mrf.mxu0
        %v5113 = vadd.f32 0.0, %v5112
        %v5114 = vpop.f32.mrf.mxu0
        %5115 = vmatprep.mubr.bf16.mxu0 0
        %5116 = vmatmul.mubr.bf16.gmra.mxu0 %v5035
        %v5117 = vpop.f32.mrf.mxu0
        %v5118 = vadd.f32 0.0, %v5117
        %v5119 = vpop.f32.mrf.mxu0
        %v5120 = vpop.f32.mrf.mxu0
        %v5121 = vadd.f32 0.0, %v5120
        %v5122 = vpop.f32.mrf.mxu0
        %5123 = vmatprep.mubr.bf16.mxu0 0
        %5124 = vmatmul.mubr.bf16.gmra.mxu0 %v5038
        %v5125 = vpop.f32.mrf.mxu0
        %v5126 = vadd.f32 0.0, %v5125
        %v5127 = vpop.f32.mrf.mxu0
        %v5128 = vpop.f32.mrf.mxu0
        %v5129 = vadd.f32 0.0, %v5128
        %v5130 = vpop.f32.mrf.mxu0
        %5131 = vmatprep.mubr.bf16.mxu0 0
        %5132 = vmatmul.mubr.bf16.gmra.mxu0 %v5041
        %v5133 = vpop.f32.mrf.mxu0
        %v5134 = vadd.f32 0.0, %v5133
        %v5135 = vpop.f32.mrf.mxu0
        %v5136 = vpop.f32.mrf.mxu0
        %v5137 = vadd.f32 0.0, %v5136
        %v5138 = vpop.f32.mrf.mxu0
        %5139 = vdwg.mxu0
        %v5140 = vadd.f32 %v4966, %v5078
        %v5141 = vadd.f32 %v4967, %v5081
        %v5142 = vadd.f32 %v4968, %v5086
        %v5143 = vadd.f32 %v4969, %v5089
        %v5144 = vadd.f32 %v4970, %v5094
        %v5145 = vadd.f32 %v4971, %v5097
        %v5146 = vadd.f32 %v4972, %v5102
        %v5147 = vadd.f32 %v4973, %v5105
        %v5148 = vadd.f32 %v4974, %v5110
        %v5149 = vadd.f32 %v4975, %v5113
        %v5150 = vadd.f32 %v4976, %v5118
        %v5151 = vadd.f32 %v4977, %v5121
        %v5152 = vadd.f32 %v4978, %v5126
        %v5153 = vadd.f32 %v4979, %v5129
        %v5154 = vadd.f32 %v4980, %v5134
        %v5155 = vadd.f32 %v4981, %v5137
        %v5156 = vld [vmem:[#allocation3 + $0x10] sm:$0xf]
        %v5157 = vld [vmem:[#allocation3 + $0x14] sm:$0xf]
        %v5158 = vld [vmem:[#allocation3 + $0x18] sm:$0xf]
        %v5159 = vld [vmem:[#allocation3 + $0x1c] sm:$0xf]
        %v5160 = vld [vmem:[#allocation3 + $0x20] sm:$0xf]
        %v5161 = vld [vmem:[#allocation3 + $0x24] sm:$0xf]
        %v5162 = vld [vmem:[#allocation3 + $0x28] sm:$0xf]
        %v5163 = vld [vmem:[#allocation3 + $0x2c] sm:$0xf]
        %v5164 = vld [vmem:[#allocation3 + $0x30] sm:$0xf]
        %v5165 = vld [vmem:[#allocation3 + $0x34] sm:$0xf]
        %v5166 = vld [vmem:[#allocation3 + $0x38] sm:$0xf]
        %v5167 = vld [vmem:[#allocation3 + $0x3c] sm:$0xf]
        %v5168 = vld [vmem:[#allocation3 + $0x40] sm:$0xf]
        %v5169 = vld [vmem:[#allocation3 + $0x44] sm:$0xf]
        %v5170 = vld [vmem:[#allocation3 + $0x48] sm:$0xf]
        %v5171 = vld [vmem:[#allocation3 + $0x4c] sm:$0xf]
        %v5172 = vld [vmem:[%s3 + $0x60] sm:$0xf]
        %v5173 = vld [vmem:[%s3 + $0x64] sm:$0xf]
        %v5174 = vld [vmem:[%s3 + $0x68] sm:$0xf]
        %v5175 = vld [vmem:[%s3 + $0x6c] sm:$0xf]
        %v5192 = vunpack.c.l.b16 %v5156
        %v5193 = vunpack.c.l.b16 %v5157
        %v5194 = vunpack.c.l.b16 %v5158
        %v5195 = vunpack.c.l.b16 %v5159
        %v5196 = vunpack.c.l.b16 %v5160
        %v5197 = vunpack.c.l.b16 %v5161
        %v5198 = vunpack.c.l.b16 %v5162
        %v5199 = vunpack.c.l.b16 %v5163
        %v5200 = vunpack.c.l.b16 %v5164
        %v5201 = vunpack.c.l.b16 %v5165
        %v5202 = vunpack.c.l.b16 %v5166
        %v5203 = vunpack.c.l.b16 %v5167
        %v5204 = vunpack.c.l.b16 %v5168
        %v5205 = vunpack.c.l.b16 %v5169
        %v5206 = vunpack.c.l.b16 %v5170
        %v5207 = vunpack.c.l.b16 %v5171
        %v5208 = vpack.c.b16 %v5193, %v5192
        %v5209 = vpack.c.b16 %v5195, %v5194
        %v5210 = vpack.c.b16 %v5197, %v5196
        %v5211 = vpack.c.b16 %v5199, %v5198
        %v5212 = vpack.c.b16 %v5201, %v5200
        %v5213 = vpack.c.b16 %v5203, %v5202
        %v5214 = vpack.c.b16 %v5205, %v5204
        %v5215 = vpack.c.b16 %v5207, %v5206
        %v5220 = vunpack.c.l.b16 %v5172
        %v5221 = vunpack.c.l.b16 %v5173
        %v5222 = vunpack.c.l.b16 %v5174
        %v5223 = vunpack.c.l.b16 %v5175
        %v5224 = vpack.c.b16 %v5221, %v5220
        %v5225 = vpack.c.b16 %v5223, %v5222
        %v5229 = vsel %vm810, %v5208, 0
        %v5232 = vsel %vm810, %v5209, 0
        %v5235 = vsel %vm810, %v5210, 0
        %v5238 = vsel %vm810, %v5211, 0
        %v5241 = vsel %vm810, %v5212, 0
        %v5244 = vsel %vm810, %v5213, 0
        %v5247 = vsel %vm810, %v5214, 0
        %v5250 = vsel %vm810, %v5215, 0
        %5252 = vmatprep.subr.bf16.mxu0 0
        %5253 = vmatpush1.bf16.msra.mxu0 0
        %5254 = vmatprep.subr.bf16.mxu0 0
        %5255 = vmatpush1.bf16.msra.mxu0 0
        %5256 = vmatprep.subr.bf16.mxu0 0
        %5257 = vmatpush1.bf16.msra.mxu0 0
        %5258 = vmatprep.subr.bf16.mxu0 0
        %5259 = vmatpush1.bf16.msra.mxu0 0
        %5260 = vmatprep.subr.bf16.mxu0 0
        %5261 = vmatpush1.bf16.msra.mxu0 0
        %5262 = vmatprep.subr.bf16.mxu0 0
        %5263 = vmatpush1.bf16.msra.mxu0 0
        %5264 = vmatprep.subr.bf16.mxu0 0
        %5265 = vmatpush1.bf16.msra.mxu0 %v5225
        %5266 = vmatprep.subr.bf16.mxu0 0
        %5267 = vmatpush1.bf16.msra.mxu0 %v5224
        %5268 = vmatprep.subr.bf16.mxu0 0
        %5269 = vmatpush2.bf16.msra.mxu0 0
        %5270 = vmatprep.subr.bf16.mxu0 0
        %5271 = vmatpush2.bf16.msra.mxu0 0
        %5272 = vmatprep.subr.bf16.mxu0 0
        %5273 = vmatpush2.bf16.msra.mxu0 0
        %5274 = vmatprep.subr.bf16.mxu0 0
        %5275 = vmatpush2.bf16.msra.mxu0 0
        %5276 = vmatprep.subr.bf16.mxu0 0
        %5277 = vmatpush2.bf16.msra.mxu0 0
        %5278 = vmatprep.subr.bf16.mxu0 0
        %5279 = vmatpush2.bf16.msra.mxu0 0
        %5280 = vmatprep.subr.bf16.mxu0 0
        %5281 = vmatpush2.bf16.msra.mxu0 0
        %5282 = vmatprep.subr.bf16.mxu0 0
        %5283 = vmatpush2.bf16.msra.mxu0 0
        %5284 = vmatprep.mubr.bf16.mxu0 0
        %5285 = vmatmul.mubr.bf16.gmra.mxu0 %v5229
        %v5286 = vpop.f32.mrf.mxu0
        %v5287 = vadd.f32 0.0, %v5286
        %v5288 = vpop.f32.mrf.mxu0
        %v5289 = vpop.f32.mrf.mxu0
        %v5290 = vadd.f32 0.0, %v5289
        %v5291 = vpop.f32.mrf.mxu0
        %5292 = vmatprep.mubr.bf16.mxu0 0
        %5293 = vmatmul.mubr.bf16.gmra.mxu0 %v5232
        %v5294 = vpop.f32.mrf.mxu0
        %v5295 = vadd.f32 0.0, %v5294
        %v5296 = vpop.f32.mrf.mxu0
        %v5297 = vpop.f32.mrf.mxu0
        %v5298 = vadd.f32 0.0, %v5297
        %v5299 = vpop.f32.mrf.mxu0
        %5300 = vmatprep.mubr.bf16.mxu0 0
        %5301 = vmatmul.mubr.bf16.gmra.mxu0 %v5235
        %v5302 = vpop.f32.mrf.mxu0
        %v5303 = vadd.f32 0.0, %v5302
        %v5304 = vpop.f32.mrf.mxu0
        %v5305 = vpop.f32.mrf.mxu0
        %v5306 = vadd.f32 0.0, %v5305
        %v5307 = vpop.f32.mrf.mxu0
        %5308 = vmatprep.mubr.bf16.mxu0 0
        %5309 = vmatmul.mubr.bf16.gmra.mxu0 %v5238
        %v5310 = vpop.f32.mrf.mxu0
        %v5311 = vadd.f32 0.0, %v5310
        %v5312 = vpop.f32.mrf.mxu0
        %v5313 = vpop.f32.mrf.mxu0
        %v5314 = vadd.f32 0.0, %v5313
        %v5315 = vpop.f32.mrf.mxu0
        %5316 = vmatprep.mubr.bf16.mxu0 0
        %5317 = vmatmul.mubr.bf16.gmra.mxu0 %v5241
        %v5318 = vpop.f32.mrf.mxu0
        %v5319 = vadd.f32 0.0, %v5318
        %v5320 = vpop.f32.mrf.mxu0
        %v5321 = vpop.f32.mrf.mxu0
        %v5322 = vadd.f32 0.0, %v5321
        %v5323 = vpop.f32.mrf.mxu0
        %5324 = vmatprep.mubr.bf16.mxu0 0
        %5325 = vmatmul.mubr.bf16.gmra.mxu0 %v5244
        %v5326 = vpop.f32.mrf.mxu0
        %v5327 = vadd.f32 0.0, %v5326
        %v5328 = vpop.f32.mrf.mxu0
        %v5329 = vpop.f32.mrf.mxu0
        %v5330 = vadd.f32 0.0, %v5329
        %v5331 = vpop.f32.mrf.mxu0
        %5332 = vmatprep.mubr.bf16.mxu0 0
        %5333 = vmatmul.mubr.bf16.gmra.mxu0 %v5247
        %v5334 = vpop.f32.mrf.mxu0
        %v5335 = vadd.f32 0.0, %v5334
        %v5336 = vpop.f32.mrf.mxu0
        %v5337 = vpop.f32.mrf.mxu0
        %v5338 = vadd.f32 0.0, %v5337
        %v5339 = vpop.f32.mrf.mxu0
        %5340 = vmatprep.mubr.bf16.mxu0 0
        %5341 = vmatmul.mubr.bf16.gmra.mxu0 %v5250
        %v5342 = vpop.f32.mrf.mxu0
        %v5343 = vadd.f32 0.0, %v5342
        %v5344 = vpop.f32.mrf.mxu0
        %v5345 = vpop.f32.mrf.mxu0
        %v5346 = vadd.f32 0.0, %v5345
        %v5347 = vpop.f32.mrf.mxu0
        %5348 = vdwg.mxu0
        %v5349 = vadd.f32 %v5140, %v5287
        %v5350 = vadd.f32 %v5141, %v5290
        %v5351 = vadd.f32 %v5142, %v5295
        %v5352 = vadd.f32 %v5143, %v5298
        %v5353 = vadd.f32 %v5144, %v5303
        %v5354 = vadd.f32 %v5145, %v5306
        %v5355 = vadd.f32 %v5146, %v5311
        %v5356 = vadd.f32 %v5147, %v5314
        %v5357 = vadd.f32 %v5148, %v5319
        %v5358 = vadd.f32 %v5149, %v5322
        %v5359 = vadd.f32 %v5150, %v5327
        %v5360 = vadd.f32 %v5151, %v5330
        %v5361 = vadd.f32 %v5152, %v5335
        %v5362 = vadd.f32 %v5153, %v5338
        %v5363 = vadd.f32 %v5154, %v5343
        %v5364 = vadd.f32 %v5155, %v5346
        %v5365 = vld [vmem:[#allocation3 + $0x10] sm:$0xf]
        %v5366 = vld [vmem:[#allocation3 + $0x14] sm:$0xf]
        %v5367 = vld [vmem:[#allocation3 + $0x18] sm:$0xf]
        %v5368 = vld [vmem:[#allocation3 + $0x1c] sm:$0xf]
        %v5369 = vld [vmem:[#allocation3 + $0x20] sm:$0xf]
        %v5370 = vld [vmem:[#allocation3 + $0x24] sm:$0xf]
        %v5371 = vld [vmem:[#allocation3 + $0x28] sm:$0xf]
        %v5372 = vld [vmem:[#allocation3 + $0x2c] sm:$0xf]
        %v5373 = vld [vmem:[#allocation3 + $0x30] sm:$0xf]
        %v5374 = vld [vmem:[#allocation3 + $0x34] sm:$0xf]
        %v5375 = vld [vmem:[#allocation3 + $0x38] sm:$0xf]
        %v5376 = vld [vmem:[#allocation3 + $0x3c] sm:$0xf]
        %v5377 = vld [vmem:[#allocation3 + $0x40] sm:$0xf]
        %v5378 = vld [vmem:[#allocation3 + $0x44] sm:$0xf]
        %v5379 = vld [vmem:[#allocation3 + $0x48] sm:$0xf]
        %v5380 = vld [vmem:[#allocation3 + $0x4c] sm:$0xf]
        %v5381 = vld [vmem:[#allocation3 + $0x50] sm:$0x1]
        %v5382 = vld [vmem:[%s3 + $0x70] sm:$0xf]
        %v5383 = vld [vmem:[%s3 + $0x74] sm:$0xf]
        %v5384 = vld [vmem:[%s3 + $0x78] sm:$0xf]
        %v5385 = vld [vmem:[%s3 + $0x7c] sm:$0xf]
        %v5403 = vunpack.c.l.b16 %v5365
        %v5404 = vunpack.c.l.b16 %v5366
        %v5405 = vunpack.c.l.b16 %v5367
        %v5406 = vunpack.c.l.b16 %v5368
        %v5407 = vunpack.c.l.b16 %v5369
        %v5408 = vunpack.c.l.b16 %v5370
        %v5409 = vunpack.c.l.b16 %v5371
        %v5410 = vunpack.c.l.b16 %v5372
        %v5411 = vunpack.c.l.b16 %v5373
        %v5412 = vunpack.c.l.b16 %v5374
        %v5413 = vunpack.c.l.b16 %v5375
        %v5414 = vunpack.c.l.b16 %v5376
        %v5415 = vunpack.c.l.b16 %v5377
        %v5416 = vunpack.c.l.b16 %v5378
        %v5417 = vunpack.c.l.b16 %v5379
        %v5418 = vunpack.c.l.b16 %v5380
        %v5419 = vunpack.c.l.b16 %v5381
        %v5420 = vpack.c.b16 %v5404, %v5403
        %v5421 = vpack.c.b16 %v5406, %v5405
        %v5422 = vpack.c.b16 %v5408, %v5407
        %v5423 = vpack.c.b16 %v5410, %v5409
        %v5424 = vpack.c.b16 %v5412, %v5411
        %v5425 = vpack.c.b16 %v5414, %v5413
        %v5426 = vpack.c.b16 %v5416, %v5415
        %v5427 = vpack.c.b16 %v5418, %v5417
        %v5428 = vpack.c.b16 %v5419, %v5419
        %v5430 = vshrl.u32 %v5420, 16
        %v5432 = vshll.u32 %v5420, 16
        %v5434 = vrot.slane %v5432, 1
        %v5435 = vor.u32 %v5430, %v5434
        %v5437 = vshll.u32 %v5421, 16
        %v5439 = vrot.slane %v5437, 1
        %v5440 = vsel %vm3990, %v5435, %v5439
        %v5441 = vshrl.u32 %v5421, 16
        %v5443 = vor.u32 %v5441, %v5439
        %v5445 = vshll.u32 %v5422, 16
        %v5447 = vrot.slane %v5445, 1
        %v5448 = vsel %vm3990, %v5443, %v5447
        %v5449 = vshrl.u32 %v5422, 16
        %v5451 = vor.u32 %v5449, %v5447
        %v5453 = vshll.u32 %v5423, 16
        %v5455 = vrot.slane %v5453, 1
        %v5456 = vsel %vm3990, %v5451, %v5455
        %v5457 = vshrl.u32 %v5423, 16
        %v5459 = vor.u32 %v5457, %v5455
        %v5461 = vshll.u32 %v5424, 16
        %v5463 = vrot.slane %v5461, 1
        %v5464 = vsel %vm3990, %v5459, %v5463
        %v5465 = vshrl.u32 %v5424, 16
        %v5467 = vor.u32 %v5465, %v5463
        %v5469 = vshll.u32 %v5425, 16
        %v5471 = vrot.slane %v5469, 1
        %v5472 = vsel %vm3990, %v5467, %v5471
        %v5473 = vshrl.u32 %v5425, 16
        %v5475 = vor.u32 %v5473, %v5471
        %v5477 = vshll.u32 %v5426, 16
        %v5479 = vrot.slane %v5477, 1
        %v5480 = vsel %vm3990, %v5475, %v5479
        %v5481 = vshrl.u32 %v5426, 16
        %v5483 = vor.u32 %v5481, %v5479
        %v5485 = vshll.u32 %v5427, 16
        %v5487 = vrot.slane %v5485, 1
        %v5488 = vsel %vm3990, %v5483, %v5487
        %v5489 = vshrl.u32 %v5427, 16
        %v5491 = vor.u32 %v5489, %v5487
        %v5493 = vshll.u32 %v5428, 16
        %v5495 = vrot.slane %v5493, 1
        %v5496 = vsel %vm3990, %v5491, %v5495
        %v5501 = vunpack.c.l.b16 %v5382
        %v5502 = vunpack.c.l.b16 %v5383
        %v5503 = vunpack.c.l.b16 %v5384
        %v5504 = vunpack.c.l.b16 %v5385
        %v5505 = vpack.c.b16 %v5502, %v5501
        %v5506 = vpack.c.b16 %v5504, %v5503
        %v5510 = vsel %vm810, %v5440, 0
        %v5513 = vsel %vm810, %v5448, 0
        %v5516 = vsel %vm810, %v5456, 0
        %v5519 = vsel %vm810, %v5464, 0
        %v5522 = vsel %vm810, %v5472, 0
        %v5525 = vsel %vm810, %v5480, 0
        %v5528 = vsel %vm810, %v5488, 0
        %v5531 = vsel %vm810, %v5496, 0
        %5533 = vmatprep.subr.bf16.mxu0 0
        %5534 = vmatpush1.bf16.msra.mxu0 0
        %5535 = vmatprep.subr.bf16.mxu0 0
        %5536 = vmatpush1.bf16.msra.mxu0 0
        %5537 = vmatprep.subr.bf16.mxu0 0
        %5538 = vmatpush1.bf16.msra.mxu0 0
        %5539 = vmatprep.subr.bf16.mxu0 0
        %5540 = vmatpush1.bf16.msra.mxu0 0
        %5541 = vmatprep.subr.bf16.mxu0 0
        %5542 = vmatpush1.bf16.msra.mxu0 0
        %5543 = vmatprep.subr.bf16.mxu0 0
        %5544 = vmatpush1.bf16.msra.mxu0 0
        %5545 = vmatprep.subr.bf16.mxu0 0
        %5546 = vmatpush1.bf16.msra.mxu0 %v5506
        %5547 = vmatprep.subr.bf16.mxu0 0
        %5548 = vmatpush1.bf16.msra.mxu0 %v5505
        %5549 = vmatprep.subr.bf16.mxu0 0
        %5550 = vmatpush2.bf16.msra.mxu0 0
        %5551 = vmatprep.subr.bf16.mxu0 0
        %5552 = vmatpush2.bf16.msra.mxu0 0
        %5553 = vmatprep.subr.bf16.mxu0 0
        %5554 = vmatpush2.bf16.msra.mxu0 0
        %5555 = vmatprep.subr.bf16.mxu0 0
        %5556 = vmatpush2.bf16.msra.mxu0 0
        %5557 = vmatprep.subr.bf16.mxu0 0
        %5558 = vmatpush2.bf16.msra.mxu0 0
        %5559 = vmatprep.subr.bf16.mxu0 0
        %5560 = vmatpush2.bf16.msra.mxu0 0
        %5561 = vmatprep.subr.bf16.mxu0 0
        %5562 = vmatpush2.bf16.msra.mxu0 0
        %5563 = vmatprep.subr.bf16.mxu0 0
        %5564 = vmatpush2.bf16.msra.mxu0 0
        %5565 = vmatprep.mubr.bf16.mxu0 0
        %5566 = vmatmul.mubr.bf16.gmra.mxu0 %v5510
        %v5567 = vpop.f32.mrf.mxu0
        %v5568 = vadd.f32 0.0, %v5567
        %v5569 = vpop.f32.mrf.mxu0
        %v5570 = vpop.f32.mrf.mxu0
        %v5571 = vadd.f32 0.0, %v5570
        %v5572 = vpop.f32.mrf.mxu0
        %5573 = vmatprep.mubr.bf16.mxu0 0
        %5574 = vmatmul.mubr.bf16.gmra.mxu0 %v5513
        %v5575 = vpop.f32.mrf.mxu0
        %v5576 = vadd.f32 0.0, %v5575
        %v5577 = vpop.f32.mrf.mxu0
        %v5578 = vpop.f32.mrf.mxu0
        %v5579 = vadd.f32 0.0, %v5578
        %v5580 = vpop.f32.mrf.mxu0
        %5581 = vmatprep.mubr.bf16.mxu0 0
        %5582 = vmatmul.mubr.bf16.gmra.mxu0 %v5516
        %v5583 = vpop.f32.mrf.mxu0
        %v5584 = vadd.f32 0.0, %v5583
        %v5585 = vpop.f32.mrf.mxu0
        %v5586 = vpop.f32.mrf.mxu0
        %v5587 = vadd.f32 0.0, %v5586
        %v5588 = vpop.f32.mrf.mxu0
        %5589 = vmatprep.mubr.bf16.mxu0 0
        %5590 = vmatmul.mubr.bf16.gmra.mxu0 %v5519
        %v5591 = vpop.f32.mrf.mxu0
        %v5592 = vadd.f32 0.0, %v5591
        %v5593 = vpop.f32.mrf.mxu0
        %v5594 = vpop.f32.mrf.mxu0
        %v5595 = vadd.f32 0.0, %v5594
        %v5596 = vpop.f32.mrf.mxu0
        %5597 = vmatprep.mubr.bf16.mxu0 0
        %5598 = vmatmul.mubr.bf16.gmra.mxu0 %v5522
        %v5599 = vpop.f32.mrf.mxu0
        %v5600 = vadd.f32 0.0, %v5599
        %v5601 = vpop.f32.mrf.mxu0
        %v5602 = vpop.f32.mrf.mxu0
        %v5603 = vadd.f32 0.0, %v5602
        %v5604 = vpop.f32.mrf.mxu0
        %5605 = vmatprep.mubr.bf16.mxu0 0
        %5606 = vmatmul.mubr.bf16.gmra.mxu0 %v5525
        %v5607 = vpop.f32.mrf.mxu0
        %v5608 = vadd.f32 0.0, %v5607
        %v5609 = vpop.f32.mrf.mxu0
        %v5610 = vpop.f32.mrf.mxu0
        %v5611 = vadd.f32 0.0, %v5610
        %v5612 = vpop.f32.mrf.mxu0
        %5613 = vmatprep.mubr.bf16.mxu0 0
        %5614 = vmatmul.mubr.bf16.gmra.mxu0 %v5528
        %v5615 = vpop.f32.mrf.mxu0
        %v5616 = vadd.f32 0.0, %v5615
        %v5617 = vpop.f32.mrf.mxu0
        %v5618 = vpop.f32.mrf.mxu0
        %v5619 = vadd.f32 0.0, %v5618
        %v5620 = vpop.f32.mrf.mxu0
        %5621 = vmatprep.mubr.bf16.mxu0 0
        %5622 = vmatmul.mubr.bf16.gmra.mxu0 %v5531
        %v5623 = vpop.f32.mrf.mxu0
        %v5624 = vadd.f32 0.0, %v5623
        %v5625 = vpop.f32.mrf.mxu0
        %v5626 = vpop.f32.mrf.mxu0
        %v5627 = vadd.f32 0.0, %v5626
        %v5628 = vpop.f32.mrf.mxu0
        %5629 = vdwg.mxu0
        %v5630 = vadd.f32 %v5349, %v5568
        %v5631 = vadd.f32 %v5350, %v5571
        %v5632 = vadd.f32 %v5351, %v5576
        %v5633 = vadd.f32 %v5352, %v5579
        %v5634 = vadd.f32 %v5353, %v5584
        %v5635 = vadd.f32 %v5354, %v5587
        %v5636 = vadd.f32 %v5355, %v5592
        %v5637 = vadd.f32 %v5356, %v5595
        %v5638 = vadd.f32 %v5357, %v5600
        %v5639 = vadd.f32 %v5358, %v5603
        %v5640 = vadd.f32 %v5359, %v5608
        %v5641 = vadd.f32 %v5360, %v5611
        %v5642 = vadd.f32 %v5361, %v5616
        %v5643 = vadd.f32 %v5362, %v5619
        %v5644 = vadd.f32 %v5363, %v5624
        %v5645 = vadd.f32 %v5364, %v5627
        %v5646 = vld [vmem:[#allocation3 + $0x10] sm:$0xe]
        %v5647 = vld [vmem:[%s3 + $0x80] sm:$0xf]
        %v5648 = vld [vmem:[%s3 + $0x84] sm:$0xf]
        %v5649 = vld [vmem:[%s3 + $0x88] sm:$0xf]
        %v5650 = vld [vmem:[%s3 + $0x8c] sm:$0xf]
        %v5652 = vunpack.c.l.b16 %v5646
        %v5653 = vpack.c.b16 %v5404, %v5652
        %v5654 = vrot.slane %v5653, 1
        %v5655 = vrot.slane %v5421, 1
        %v5656 = vsel %vm4325, %v5654, %v5655
        %v5657 = vrot.slane %v5422, 1
        %v5658 = vsel %vm4325, %v5655, %v5657
        %v5659 = vrot.slane %v5423, 1
        %v5660 = vsel %vm4325, %v5657, %v5659
        %v5661 = vrot.slane %v5424, 1
        %v5662 = vsel %vm4325, %v5659, %v5661
        %v5663 = vrot.slane %v5425, 1
        %v5664 = vsel %vm4325, %v5661, %v5663
        %v5665 = vrot.slane %v5426, 1
        %v5666 = vsel %vm4325, %v5663, %v5665
        %v5667 = vrot.slane %v5427, 1
        %v5668 = vsel %vm4325, %v5665, %v5667
        %v5669 = vrot.slane %v5428, 1
        %v5670 = vsel %vm4325, %v5667, %v5669
        %v5675 = vunpack.c.l.b16 %v5647
        %v5676 = vunpack.c.l.b16 %v5648
        %v5677 = vunpack.c.l.b16 %v5649
        %v5678 = vunpack.c.l.b16 %v5650
        %v5679 = vpack.c.b16 %v5676, %v5675
        %v5680 = vpack.c.b16 %v5678, %v5677
        %v5684 = vsel %vm810, %v5656, 0
        %v5687 = vsel %vm810, %v5658, 0
        %v5690 = vsel %vm810, %v5660, 0
        %v5693 = vsel %vm810, %v5662, 0
        %v5696 = vsel %vm810, %v5664, 0
        %v5699 = vsel %vm810, %v5666, 0
        %v5702 = vsel %vm810, %v5668, 0
        %v5705 = vsel %vm810, %v5670, 0
        %5707 = vmatprep.subr.bf16.mxu0 0
        %5708 = vmatpush1.bf16.msra.mxu0 0
        %5709 = vmatprep.subr.bf16.mxu0 0
        %5710 = vmatpush1.bf16.msra.mxu0 0
        %5711 = vmatprep.subr.bf16.mxu0 0
        %5712 = vmatpush1.bf16.msra.mxu0 0
        %5713 = vmatprep.subr.bf16.mxu0 0
        %5714 = vmatpush1.bf16.msra.mxu0 0
        %5715 = vmatprep.subr.bf16.mxu0 0
        %5716 = vmatpush1.bf16.msra.mxu0 0
        %5717 = vmatprep.subr.bf16.mxu0 0
        %5718 = vmatpush1.bf16.msra.mxu0 0
        %5719 = vmatprep.subr.bf16.mxu0 0
        %5720 = vmatpush1.bf16.msra.mxu0 %v5680
        %5721 = vmatprep.subr.bf16.mxu0 0
        %5722 = vmatpush1.bf16.msra.mxu0 %v5679
        %5723 = vmatprep.subr.bf16.mxu0 0
        %5724 = vmatpush2.bf16.msra.mxu0 0
        %5725 = vmatprep.subr.bf16.mxu0 0
        %5726 = vmatpush2.bf16.msra.mxu0 0
        %5727 = vmatprep.subr.bf16.mxu0 0
        %5728 = vmatpush2.bf16.msra.mxu0 0
        %5729 = vmatprep.subr.bf16.mxu0 0
        %5730 = vmatpush2.bf16.msra.mxu0 0
        %5731 = vmatprep.subr.bf16.mxu0 0
        %5732 = vmatpush2.bf16.msra.mxu0 0
        %5733 = vmatprep.subr.bf16.mxu0 0
        %5734 = vmatpush2.bf16.msra.mxu0 0
        %5735 = vmatprep.subr.bf16.mxu0 0
        %5736 = vmatpush2.bf16.msra.mxu0 0
        %5737 = vmatprep.subr.bf16.mxu0 0
        %5738 = vmatpush2.bf16.msra.mxu0 0
        %5739 = vmatprep.mubr.bf16.mxu0 0
        %5740 = vmatmul.mubr.bf16.gmra.mxu0 %v5684
        %v5741 = vpop.f32.mrf.mxu0
        %v5742 = vadd.f32 0.0, %v5741
        %v5743 = vpop.f32.mrf.mxu0
        %v5744 = vpop.f32.mrf.mxu0
        %v5745 = vadd.f32 0.0, %v5744
        %v5746 = vpop.f32.mrf.mxu0
        %5747 = vmatprep.mubr.bf16.mxu0 0
        %5748 = vmatmul.mubr.bf16.gmra.mxu0 %v5687
        %v5749 = vpop.f32.mrf.mxu0
        %v5750 = vadd.f32 0.0, %v5749
        %v5751 = vpop.f32.mrf.mxu0
        %v5752 = vpop.f32.mrf.mxu0
        %v5753 = vadd.f32 0.0, %v5752
        %v5754 = vpop.f32.mrf.mxu0
        %5755 = vmatprep.mubr.bf16.mxu0 0
        %5756 = vmatmul.mubr.bf16.gmra.mxu0 %v5690
        %v5757 = vpop.f32.mrf.mxu0
        %v5758 = vadd.f32 0.0, %v5757
        %v5759 = vpop.f32.mrf.mxu0
        %v5760 = vpop.f32.mrf.mxu0
        %v5761 = vadd.f32 0.0, %v5760
        %v5762 = vpop.f32.mrf.mxu0
        %5763 = vmatprep.mubr.bf16.mxu0 0
        %5764 = vmatmul.mubr.bf16.gmra.mxu0 %v5693
        %v5765 = vpop.f32.mrf.mxu0
        %v5766 = vadd.f32 0.0, %v5765
        %v5767 = vpop.f32.mrf.mxu0
        %v5768 = vpop.f32.mrf.mxu0
        %v5769 = vadd.f32 0.0, %v5768
        %v5770 = vpop.f32.mrf.mxu0
        %5771 = vmatprep.mubr.bf16.mxu0 0
        %5772 = vmatmul.mubr.bf16.gmra.mxu0 %v5696
        %v5773 = vpop.f32.mrf.mxu0
        %v5774 = vadd.f32 0.0, %v5773
        %v5775 = vpop.f32.mrf.mxu0
        %v5776 = vpop.f32.mrf.mxu0
        %v5777 = vadd.f32 0.0, %v5776
        %v5778 = vpop.f32.mrf.mxu0
        %5779 = vmatprep.mubr.bf16.mxu0 0
        %5780 = vmatmul.mubr.bf16.gmra.mxu0 %v5699
        %v5781 = vpop.f32.mrf.mxu0
        %v5782 = vadd.f32 0.0, %v5781
        %v5783 = vpop.f32.mrf.mxu0
        %v5784 = vpop.f32.mrf.mxu0
        %v5785 = vadd.f32 0.0, %v5784
        %v5786 = vpop.f32.mrf.mxu0
        %5787 = vmatprep.mubr.bf16.mxu0 0
        %5788 = vmatmul.mubr.bf16.gmra.mxu0 %v5702
        %v5789 = vpop.f32.mrf.mxu0
        %v5790 = vadd.f32 0.0, %v5789
        %v5791 = vpop.f32.mrf.mxu0
        %v5792 = vpop.f32.mrf.mxu0
        %v5793 = vadd.f32 0.0, %v5792
        %v5794 = vpop.f32.mrf.mxu0
        %5795 = vmatprep.mubr.bf16.mxu0 0
        %5796 = vmatmul.mubr.bf16.gmra.mxu0 %v5705
        %v5797 = vpop.f32.mrf.mxu0
        %v5798 = vadd.f32 0.0, %v5797
        %v5799 = vpop.f32.mrf.mxu0
        %v5800 = vpop.f32.mrf.mxu0
        %v5801 = vadd.f32 0.0, %v5800
        %v5802 = vpop.f32.mrf.mxu0
        %5803 = vdwg.mxu0
        %v5804 = vadd.f32 %v5630, %v5742
        %v5805 = vadd.f32 %v5631, %v5745
        %v5806 = vadd.f32 %v5632, %v5750
        %v5807 = vadd.f32 %v5633, %v5753
        %v5808 = vadd.f32 %v5634, %v5758
        %v5809 = vadd.f32 %v5635, %v5761
        %v5810 = vadd.f32 %v5636, %v5766
        %v5811 = vadd.f32 %v5637, %v5769
        %v5812 = vadd.f32 %v5638, %v5774
        %v5813 = vadd.f32 %v5639, %v5777
        %v5814 = vadd.f32 %v5640, %v5782
        %v5815 = vadd.f32 %v5641, %v5785
        %v5816 = vadd.f32 %v5642, %v5790
        %v5817 = vadd.f32 %v5643, %v5793
        %v5818 = vadd.f32 %v5644, %v5798
        %v5819 = vadd.f32 %v5645, %v5801
        %vm5820 = vcmask 523264
        %5821 = vst.msk [vmem:[#allocation4] sm:$0xff] %vm5820, %v5804
        %5822 = vst.msk [vmem:[#allocation4 + $0x8] sm:$0xff] %vm5820, %v5805
        %5823 = vst.msk [vmem:[#allocation4 + $0x10] sm:$0xff] %vm5820, %v5806
        %5824 = vst.msk [vmem:[#allocation4 + $0x18] sm:$0xff] %vm5820, %v5807
        %5825 = vst.msk [vmem:[#allocation4 + $0x20] sm:$0xff] %vm5820, %v5808
        %5826 = vst.msk [vmem:[#allocation4 + $0x28] sm:$0xff] %vm5820, %v5809
        %5827 = vst.msk [vmem:[#allocation4 + $0x30] sm:$0xff] %vm5820, %v5810
        %5828 = vst.msk [vmem:[#allocation4 + $0x38] sm:$0xff] %vm5820, %v5811
        %5829 = vst.msk [vmem:[#allocation4 + $0x40] sm:$0xff] %vm5820, %v5812
        %5830 = vst.msk [vmem:[#allocation4 + $0x48] sm:$0xff] %vm5820, %v5813
        %5831 = vst.msk [vmem:[#allocation4 + $0x50] sm:$0xff] %vm5820, %v5814
        %5832 = vst.msk [vmem:[#allocation4 + $0x58] sm:$0xff] %vm5820, %v5815
        %5833 = vst.msk [vmem:[#allocation4 + $0x60] sm:$0xff] %vm5820, %v5816
        %5834 = vst.msk [vmem:[#allocation4 + $0x68] sm:$0xff] %vm5820, %v5817
        %5835 = vst.msk [vmem:[#allocation4 + $0x70] sm:$0xff] %vm5820, %v5818
        %5836 = vst.msk [vmem:[#allocation4 + $0x78] sm:$0xff] %vm5820, %v5819
        %v5837 = vld [vmem:[#allocation3 + $0x40] sm:$0xf]
        %v5838 = vld [vmem:[#allocation3 + $0x44] sm:$0xf]
        %v5839 = vld [vmem:[#allocation3 + $0x48] sm:$0xf]
        %v5840 = vld [vmem:[#allocation3 + $0x4c] sm:$0xf]
        %v5841 = vld [vmem:[#allocation3 + $0x50] sm:$0xf]
        %v5842 = vld [vmem:[#allocation3 + $0x54] sm:$0xf]
        %v5843 = vld [vmem:[#allocation3 + $0x58] sm:$0xf]
        %v5844 = vld [vmem:[#allocation3 + $0x5c] sm:$0xf]
        %v5845 = vld [vmem:[#allocation3 + $0x60] sm:$0xf]
        %v5846 = vld [vmem:[#allocation3 + $0x64] sm:$0xf]
        %v5847 = vld [vmem:[#allocation3 + $0x68] sm:$0xf]
        %v5848 = vld [vmem:[#allocation3 + $0x6c] sm:$0x7]
        %v5849 = vld [vmem:[%s3] sm:$0xf]
        %v5850 = vld [vmem:[%s3 + $0x4] sm:$0xf]
        %v5851 = vld [vmem:[%s3 + $0x8] sm:$0xf]
        %v5852 = vld [vmem:[%s3 + $0xc] sm:$0xf]
        %v5853 = vld [vmem:[#allocation3 + $0x6c] sm:$0xf]
        %v5854 = vld [vmem:[%s3 + $0x10] sm:$0xf]
        %v5855 = vld [vmem:[%s3 + $0x14] sm:$0xf]
        %v5856 = vld [vmem:[%s3 + $0x18] sm:$0xf]
        %v5857 = vld [vmem:[%s3 + $0x1c] sm:$0xf]
        %v5870 = vunpack.c.l.b16 %v5837
        %v5871 = vunpack.c.l.b16 %v5838
        %v5872 = vunpack.c.l.b16 %v5839
        %v5873 = vunpack.c.l.b16 %v5840
        %v5874 = vunpack.c.l.b16 %v5841
        %v5875 = vunpack.c.l.b16 %v5842
        %v5876 = vunpack.c.l.b16 %v5843
        %v5877 = vunpack.c.l.b16 %v5844
        %v5878 = vunpack.c.l.b16 %v5845
        %v5879 = vunpack.c.l.b16 %v5846
        %v5880 = vunpack.c.l.b16 %v5847
        %v5881 = vunpack.c.l.b16 %v5853
        %v5882 = vpack.c.b16 %v5871, %v5870
        %v5883 = vpack.c.b16 %v5873, %v5872
        %v5884 = vpack.c.b16 %v5875, %v5874
        %v5885 = vpack.c.b16 %v5877, %v5876
        %v5886 = vpack.c.b16 %v5879, %v5878
        %v5887 = vpack.c.b16 %v5881, %v5880
        %v5889 = vshrl.u32 %v5882, 16
        %v5891 = vshll.u32 %v5882, 16
        %v5893 = vrot.slane %v5891, 1
        %v5894 = vor.u32 %v5889, %v5893
        %v5896 = vshll.u32 %v5883, 16
        %v5898 = vrot.slane %v5896, 1
        %v5899 = vsel %vm3990, %v5894, %v5898
        %v5900 = vshrl.u32 %v5883, 16
        %v5902 = vor.u32 %v5900, %v5898
        %v5904 = vshll.u32 %v5884, 16
        %v5906 = vrot.slane %v5904, 1
        %v5907 = vsel %vm3990, %v5902, %v5906
        %v5908 = vshrl.u32 %v5884, 16
        %v5910 = vor.u32 %v5908, %v5906
        %v5912 = vshll.u32 %v5885, 16
        %v5914 = vrot.slane %v5912, 1
        %v5915 = vsel %vm3990, %v5910, %v5914
        %v5916 = vshrl.u32 %v5885, 16
        %v5918 = vor.u32 %v5916, %v5914
        %v5920 = vshll.u32 %v5886, 16
        %v5922 = vrot.slane %v5920, 1
        %v5923 = vsel %vm3990, %v5918, %v5922
        %v5924 = vshrl.u32 %v5886, 16
        %v5926 = vor.u32 %v5924, %v5922
        %v5928 = vshll.u32 %v5887, 16
        %v5930 = vrot.slane %v5928, 1
        %v5931 = vsel %vm3990, %v5926, %v5930
        %v5932 = vshrl.u32 %v5887, 16
        %v5934 = vor.u32 %v5932, %v5930
        %v5939 = vunpack.c.l.b16 %v5854
        %v5940 = vunpack.c.l.b16 %v5855
        %v5941 = vunpack.c.l.b16 %v5856
        %v5942 = vunpack.c.l.b16 %v5857
        %v5943 = vpack.c.b16 %v5940, %v5939
        %v5944 = vpack.c.b16 %v5942, %v5941
        %v5948 = vsel %vm810, %v5899, 0
        %v5951 = vsel %vm810, %v5907, 0
        %v5954 = vsel %vm810, %v5915, 0
        %v5957 = vsel %vm810, %v5923, 0
        %v5960 = vsel %vm810, %v5931, 0
        %v5963 = vsel %vm810, %v5934, 0
        %5965 = vmatprep.subr.bf16.mxu0 0
        %5966 = vmatpush1.bf16.msra.mxu0 0
        %5967 = vmatprep.subr.bf16.mxu0 0
        %5968 = vmatpush1.bf16.msra.mxu0 0
        %5969 = vmatprep.subr.bf16.mxu0 0
        %5970 = vmatpush1.bf16.msra.mxu0 0
        %5971 = vmatprep.subr.bf16.mxu0 0
        %5972 = vmatpush1.bf16.msra.mxu0 0
        %5973 = vmatprep.subr.bf16.mxu0 0
        %5974 = vmatpush1.bf16.msra.mxu0 0
        %5975 = vmatprep.subr.bf16.mxu0 0
        %5976 = vmatpush1.bf16.msra.mxu0 0
        %5977 = vmatprep.subr.bf16.mxu0 0
        %5978 = vmatpush1.bf16.msra.mxu0 %v5944
        %5979 = vmatprep.subr.bf16.mxu0 0
        %5980 = vmatpush1.bf16.msra.mxu0 %v5943
        %5981 = vmatprep.subr.bf16.mxu0 0
        %5982 = vmatpush2.bf16.msra.mxu0 0
        %5983 = vmatprep.subr.bf16.mxu0 0
        %5984 = vmatpush2.bf16.msra.mxu0 0
        %5985 = vmatprep.subr.bf16.mxu0 0
        %5986 = vmatpush2.bf16.msra.mxu0 0
        %5987 = vmatprep.subr.bf16.mxu0 0
        %5988 = vmatpush2.bf16.msra.mxu0 0
        %5989 = vmatprep.subr.bf16.mxu0 0
        %5990 = vmatpush2.bf16.msra.mxu0 0
        %5991 = vmatprep.subr.bf16.mxu0 0
        %5992 = vmatpush2.bf16.msra.mxu0 0
        %5993 = vmatprep.subr.bf16.mxu0 0
        %5994 = vmatpush2.bf16.msra.mxu0 0
        %5995 = vmatprep.subr.bf16.mxu0 0
        %5996 = vmatpush2.bf16.msra.mxu0 0
        %5997 = vmatprep.mubr.bf16.mxu0 0
        %5998 = vmatmul.mubr.bf16.gmra.mxu0 %v5948
        %v5999 = vpop.f32.mrf.mxu0
        %v6000 = vadd.f32 0.0, %v5999
        %v6001 = vpop.f32.mrf.mxu0
        %v6002 = vpop.f32.mrf.mxu0
        %v6003 = vadd.f32 0.0, %v6002
        %v6004 = vpop.f32.mrf.mxu0
        %6005 = vmatprep.mubr.bf16.mxu0 0
        %6006 = vmatmul.mubr.bf16.gmra.mxu0 %v5951
        %v6007 = vpop.f32.mrf.mxu0
        %v6008 = vadd.f32 0.0, %v6007
        %v6009 = vpop.f32.mrf.mxu0
        %v6010 = vpop.f32.mrf.mxu0
        %v6011 = vadd.f32 0.0, %v6010
        %v6012 = vpop.f32.mrf.mxu0
        %6013 = vmatprep.mubr.bf16.mxu0 0
        %6014 = vmatmul.mubr.bf16.gmra.mxu0 %v5954
        %v6015 = vpop.f32.mrf.mxu0
        %v6016 = vadd.f32 0.0, %v6015
        %v6017 = vpop.f32.mrf.mxu0
        %v6018 = vpop.f32.mrf.mxu0
        %v6019 = vadd.f32 0.0, %v6018
        %v6020 = vpop.f32.mrf.mxu0
        %6021 = vmatprep.mubr.bf16.mxu0 0
        %6022 = vmatmul.mubr.bf16.gmra.mxu0 %v5957
        %v6023 = vpop.f32.mrf.mxu0
        %v6024 = vadd.f32 0.0, %v6023
        %v6025 = vpop.f32.mrf.mxu0
        %v6026 = vpop.f32.mrf.mxu0
        %v6027 = vadd.f32 0.0, %v6026
        %v6028 = vpop.f32.mrf.mxu0
        %6029 = vmatprep.mubr.bf16.mxu0 0
        %6030 = vmatmul.mubr.bf16.gmra.mxu0 %v5960
        %v6031 = vpop.f32.mrf.mxu0
        %v6032 = vadd.f32 0.0, %v6031
        %v6033 = vpop.f32.mrf.mxu0
        %v6034 = vpop.f32.mrf.mxu0
        %v6035 = vadd.f32 0.0, %v6034
        %v6036 = vpop.f32.mrf.mxu0
        %6037 = vmatprep.mubr.bf16.mxu0 0
        %6038 = vmatmul.mubr.bf16.gmra.mxu0 %v5963
        %v6039 = vpop.f32.mrf.mxu0
        %v6040 = vadd.f32 0.0, %v6039
        %v6041 = vpop.f32.mrf.mxu0
        %v6042 = vpop.f32.mrf.mxu0
        %v6043 = vadd.f32 0.0, %v6042
        %v6044 = vpop.f32.mrf.mxu0
        %6045 = vdwg.mxu0
        %v6047 = vunpack.c.l.b16 %v5848
        %v6048 = vpack.c.b16 %v6047, %v5880
        %v6053 = vunpack.c.l.b16 %v5849
        %v6054 = vunpack.c.l.b16 %v5850
        %v6055 = vunpack.c.l.b16 %v5851
        %v6056 = vunpack.c.l.b16 %v5852
        %v6057 = vpack.c.b16 %v6054, %v6053
        %v6058 = vpack.c.b16 %v6056, %v6055
        %v6061 = vsel %vm810, %v5882, 0
        %v6063 = vsel %vm810, %v5883, 0
        %v6065 = vsel %vm810, %v5884, 0
        %v6067 = vsel %vm810, %v5885, 0
        %v6069 = vsel %vm810, %v5886, 0
        %v6072 = vsel %vm810, %v6048, 0
        %6074 = vmatprep.subr.bf16.mxu0 0
        %6075 = vmatpush1.bf16.msra.mxu0 0
        %6076 = vmatprep.subr.bf16.mxu0 0
        %6077 = vmatpush1.bf16.msra.mxu0 0
        %6078 = vmatprep.subr.bf16.mxu0 0
        %6079 = vmatpush1.bf16.msra.mxu0 0
        %6080 = vmatprep.subr.bf16.mxu0 0
        %6081 = vmatpush1.bf16.msra.mxu0 0
        %6082 = vmatprep.subr.bf16.mxu0 0
        %6083 = vmatpush1.bf16.msra.mxu0 0
        %6084 = vmatprep.subr.bf16.mxu0 0
        %6085 = vmatpush1.bf16.msra.mxu0 0
        %6086 = vmatprep.subr.bf16.mxu0 0
        %6087 = vmatpush1.bf16.msra.mxu0 %v6058
        %6088 = vmatprep.subr.bf16.mxu0 0
        %6089 = vmatpush1.bf16.msra.mxu0 %v6057
        %6090 = vmatprep.subr.bf16.mxu0 0
        %6091 = vmatpush2.bf16.msra.mxu0 0
        %6092 = vmatprep.subr.bf16.mxu0 0
        %6093 = vmatpush2.bf16.msra.mxu0 0
        %6094 = vmatprep.subr.bf16.mxu0 0
        %6095 = vmatpush2.bf16.msra.mxu0 0
        %6096 = vmatprep.subr.bf16.mxu0 0
        %6097 = vmatpush2.bf16.msra.mxu0 0
        %6098 = vmatprep.subr.bf16.mxu0 0
        %6099 = vmatpush2.bf16.msra.mxu0 0
        %6100 = vmatprep.subr.bf16.mxu0 0
        %6101 = vmatpush2.bf16.msra.mxu0 0
        %6102 = vmatprep.subr.bf16.mxu0 0
        %6103 = vmatpush2.bf16.msra.mxu0 0
        %6104 = vmatprep.subr.bf16.mxu0 0
        %6105 = vmatpush2.bf16.msra.mxu0 0
        %6106 = vmatprep.mubr.bf16.mxu0 0
        %6107 = vmatmul.mubr.bf16.gmra.mxu0 %v6061
        %v6108 = vpop.f32.mrf.mxu0
        %v6109 = vadd.f32 %v6000, %v6108
        %v6110 = vpop.f32.mrf.mxu0
        %v6111 = vpop.f32.mrf.mxu0
        %v6112 = vadd.f32 %v6003, %v6111
        %v6113 = vpop.f32.mrf.mxu0
        %6114 = vmatprep.mubr.bf16.mxu0 0
        %6115 = vmatmul.mubr.bf16.gmra.mxu0 %v6063
        %v6116 = vpop.f32.mrf.mxu0
        %v6117 = vadd.f32 %v6008, %v6116
        %v6118 = vpop.f32.mrf.mxu0
        %v6119 = vpop.f32.mrf.mxu0
        %v6120 = vadd.f32 %v6011, %v6119
        %v6121 = vpop.f32.mrf.mxu0
        %6122 = vmatprep.mubr.bf16.mxu0 0
        %6123 = vmatmul.mubr.bf16.gmra.mxu0 %v6065
        %v6124 = vpop.f32.mrf.mxu0
        %v6125 = vadd.f32 %v6016, %v6124
        %v6126 = vpop.f32.mrf.mxu0
        %v6127 = vpop.f32.mrf.mxu0
        %v6128 = vadd.f32 %v6019, %v6127
        %v6129 = vpop.f32.mrf.mxu0
        %6130 = vmatprep.mubr.bf16.mxu0 0
        %6131 = vmatmul.mubr.bf16.gmra.mxu0 %v6067
        %v6132 = vpop.f32.mrf.mxu0
        %v6133 = vadd.f32 %v6024, %v6132
        %v6134 = vpop.f32.mrf.mxu0
        %v6135 = vpop.f32.mrf.mxu0
        %v6136 = vadd.f32 %v6027, %v6135
        %v6137 = vpop.f32.mrf.mxu0
        %6138 = vmatprep.mubr.bf16.mxu0 0
        %6139 = vmatmul.mubr.bf16.gmra.mxu0 %v6069
        %v6140 = vpop.f32.mrf.mxu0
        %v6141 = vadd.f32 %v6032, %v6140
        %v6142 = vpop.f32.mrf.mxu0
        %v6143 = vpop.f32.mrf.mxu0
        %v6144 = vadd.f32 %v6035, %v6143
        %v6145 = vpop.f32.mrf.mxu0
        %6146 = vmatprep.mubr.bf16.mxu0 0
        %6147 = vmatmul.mubr.bf16.gmra.mxu0 %v6072
        %v6148 = vpop.f32.mrf.mxu0
        %v6149 = vadd.f32 %v6040, %v6148
        %v6150 = vpop.f32.mrf.mxu0
        %v6151 = vpop.f32.mrf.mxu0
        %v6152 = vadd.f32 %v6043, %v6151
        %v6153 = vpop.f32.mrf.mxu0
        %6154 = vdwg.mxu0
        %v6155 = vld [vmem:[#allocation3 + $0x40] sm:$0xe]
        %v6156 = vld [vmem:[%s3 + $0x20] sm:$0xf]
        %v6157 = vld [vmem:[%s3 + $0x24] sm:$0xf]
        %v6158 = vld [vmem:[%s3 + $0x28] sm:$0xf]
        %v6159 = vld [vmem:[%s3 + $0x2c] sm:$0xf]
        %v6161 = vunpack.c.l.b16 %v6155
        %v6162 = vpack.c.b16 %v5871, %v6161
        %v6163 = vrot.slane %v6162, 1
        %v6164 = vrot.slane %v5883, 1
        %v6165 = vsel %vm4325, %v6163, %v6164
        %v6166 = vrot.slane %v5884, 1
        %v6167 = vsel %vm4325, %v6164, %v6166
        %v6168 = vrot.slane %v5885, 1
        %v6169 = vsel %vm4325, %v6166, %v6168
        %v6170 = vrot.slane %v5886, 1
        %v6171 = vsel %vm4325, %v6168, %v6170
        %v6172 = vrot.slane %v5887, 1
        %v6173 = vsel %vm4325, %v6170, %v6172
        %v6178 = vunpack.c.l.b16 %v6156
        %v6179 = vunpack.c.l.b16 %v6157
        %v6180 = vunpack.c.l.b16 %v6158
        %v6181 = vunpack.c.l.b16 %v6159
        %v6182 = vpack.c.b16 %v6179, %v6178
        %v6183 = vpack.c.b16 %v6181, %v6180
        %v6187 = vsel %vm810, %v6165, 0
        %v6190 = vsel %vm810, %v6167, 0
        %v6193 = vsel %vm810, %v6169, 0
        %v6196 = vsel %vm810, %v6171, 0
        %v6199 = vsel %vm810, %v6173, 0
        %v6202 = vsel %vm810, %v6172, 0
        %6204 = vmatprep.subr.bf16.mxu0 0
        %6205 = vmatpush1.bf16.msra.mxu0 0
        %6206 = vmatprep.subr.bf16.mxu0 0
        %6207 = vmatpush1.bf16.msra.mxu0 0
        %6208 = vmatprep.subr.bf16.mxu0 0
        %6209 = vmatpush1.bf16.msra.mxu0 0
        %6210 = vmatprep.subr.bf16.mxu0 0
        %6211 = vmatpush1.bf16.msra.mxu0 0
        %6212 = vmatprep.subr.bf16.mxu0 0
        %6213 = vmatpush1.bf16.msra.mxu0 0
        %6214 = vmatprep.subr.bf16.mxu0 0
        %6215 = vmatpush1.bf16.msra.mxu0 0
        %6216 = vmatprep.subr.bf16.mxu0 0
        %6217 = vmatpush1.bf16.msra.mxu0 %v6183
        %6218 = vmatprep.subr.bf16.mxu0 0
        %6219 = vmatpush1.bf16.msra.mxu0 %v6182
        %6220 = vmatprep.subr.bf16.mxu0 0
        %6221 = vmatpush2.bf16.msra.mxu0 0
        %6222 = vmatprep.subr.bf16.mxu0 0
        %6223 = vmatpush2.bf16.msra.mxu0 0
        %6224 = vmatprep.subr.bf16.mxu0 0
        %6225 = vmatpush2.bf16.msra.mxu0 0
        %6226 = vmatprep.subr.bf16.mxu0 0
        %6227 = vmatpush2.bf16.msra.mxu0 0
        %6228 = vmatprep.subr.bf16.mxu0 0
        %6229 = vmatpush2.bf16.msra.mxu0 0
        %6230 = vmatprep.subr.bf16.mxu0 0
        %6231 = vmatpush2.bf16.msra.mxu0 0
        %6232 = vmatprep.subr.bf16.mxu0 0
        %6233 = vmatpush2.bf16.msra.mxu0 0
        %6234 = vmatprep.subr.bf16.mxu0 0
        %6235 = vmatpush2.bf16.msra.mxu0 0
        %6236 = vmatprep.mubr.bf16.mxu0 0
        %6237 = vmatmul.mubr.bf16.gmra.mxu0 %v6187
        %v6238 = vpop.f32.mrf.mxu0
        %v6239 = vadd.f32 0.0, %v6238
        %v6240 = vpop.f32.mrf.mxu0
        %v6241 = vpop.f32.mrf.mxu0
        %v6242 = vadd.f32 0.0, %v6241
        %v6243 = vpop.f32.mrf.mxu0
        %6244 = vmatprep.mubr.bf16.mxu0 0
        %6245 = vmatmul.mubr.bf16.gmra.mxu0 %v6190
        %v6246 = vpop.f32.mrf.mxu0
        %v6247 = vadd.f32 0.0, %v6246
        %v6248 = vpop.f32.mrf.mxu0
        %v6249 = vpop.f32.mrf.mxu0
        %v6250 = vadd.f32 0.0, %v6249
        %v6251 = vpop.f32.mrf.mxu0
        %6252 = vmatprep.mubr.bf16.mxu0 0
        %6253 = vmatmul.mubr.bf16.gmra.mxu0 %v6193
        %v6254 = vpop.f32.mrf.mxu0
        %v6255 = vadd.f32 0.0, %v6254
        %v6256 = vpop.f32.mrf.mxu0
        %v6257 = vpop.f32.mrf.mxu0
        %v6258 = vadd.f32 0.0, %v6257
        %v6259 = vpop.f32.mrf.mxu0
        %6260 = vmatprep.mubr.bf16.mxu0 0
        %6261 = vmatmul.mubr.bf16.gmra.mxu0 %v6196
        %v6262 = vpop.f32.mrf.mxu0
        %v6263 = vadd.f32 0.0, %v6262
        %v6264 = vpop.f32.mrf.mxu0
        %v6265 = vpop.f32.mrf.mxu0
        %v6266 = vadd.f32 0.0, %v6265
        %v6267 = vpop.f32.mrf.mxu0
        %6268 = vmatprep.mubr.bf16.mxu0 0
        %6269 = vmatmul.mubr.bf16.gmra.mxu0 %v6199
        %v6270 = vpop.f32.mrf.mxu0
        %v6271 = vadd.f32 0.0, %v6270
        %v6272 = vpop.f32.mrf.mxu0
        %v6273 = vpop.f32.mrf.mxu0
        %v6274 = vadd.f32 0.0, %v6273
        %v6275 = vpop.f32.mrf.mxu0
        %6276 = vmatprep.mubr.bf16.mxu0 0
        %6277 = vmatmul.mubr.bf16.gmra.mxu0 %v6202
        %v6278 = vpop.f32.mrf.mxu0
        %v6279 = vadd.f32 0.0, %v6278
        %v6280 = vpop.f32.mrf.mxu0
        %v6281 = vpop.f32.mrf.mxu0
        %v6282 = vadd.f32 0.0, %v6281
        %v6283 = vpop.f32.mrf.mxu0
        %6284 = vdwg.mxu0
        %v6285 = vadd.f32 %v6109, %v6239
        %v6286 = vadd.f32 %v6112, %v6242
        %v6287 = vadd.f32 %v6117, %v6247
        %v6288 = vadd.f32 %v6120, %v6250
        %v6289 = vadd.f32 %v6125, %v6255
        %v6290 = vadd.f32 %v6128, %v6258
        %v6291 = vadd.f32 %v6133, %v6263
        %v6292 = vadd.f32 %v6136, %v6266
        %v6293 = vadd.f32 %v6141, %v6271
        %v6294 = vadd.f32 %v6144, %v6274
        %v6295 = vadd.f32 %v6149, %v6279
        %v6296 = vadd.f32 %v6152, %v6282
        %v6297 = vld [vmem:[#allocation3 + $0x48] sm:$0xf]
        %v6298 = vld [vmem:[#allocation3 + $0x4c] sm:$0xf]
        %v6299 = vld [vmem:[#allocation3 + $0x50] sm:$0xf]
        %v6300 = vld [vmem:[#allocation3 + $0x54] sm:$0xf]
        %v6301 = vld [vmem:[#allocation3 + $0x58] sm:$0xf]
        %v6302 = vld [vmem:[#allocation3 + $0x5c] sm:$0xf]
        %v6303 = vld [vmem:[#allocation3 + $0x60] sm:$0xf]
        %v6304 = vld [vmem:[#allocation3 + $0x64] sm:$0xf]
        %v6305 = vld [vmem:[#allocation3 + $0x68] sm:$0xf]
        %v6306 = vld [vmem:[#allocation3 + $0x6c] sm:$0xf]
        %v6307 = vld [vmem:[#allocation3 + $0x70] sm:$0xf]
        %v6308 = vld [vmem:[#allocation3 + $0x74] sm:$0x7]
        %v6309 = vld [vmem:[%s3 + $0x30] sm:$0xf]
        %v6310 = vld [vmem:[%s3 + $0x34] sm:$0xf]
        %v6311 = vld [vmem:[%s3 + $0x38] sm:$0xf]
        %v6312 = vld [vmem:[%s3 + $0x3c] sm:$0xf]
        %v6325 = vunpack.c.l.b16 %v6297
        %v6326 = vunpack.c.l.b16 %v6298
        %v6327 = vunpack.c.l.b16 %v6299
        %v6328 = vunpack.c.l.b16 %v6300
        %v6329 = vunpack.c.l.b16 %v6301
        %v6330 = vunpack.c.l.b16 %v6302
        %v6331 = vunpack.c.l.b16 %v6303
        %v6332 = vunpack.c.l.b16 %v6304
        %v6333 = vunpack.c.l.b16 %v6305
        %v6334 = vunpack.c.l.b16 %v6306
        %v6335 = vunpack.c.l.b16 %v6307
        %v6336 = vunpack.c.l.b16 %v6308
        %v6337 = vpack.c.b16 %v6326, %v6325
        %v6338 = vpack.c.b16 %v6328, %v6327
        %v6339 = vpack.c.b16 %v6330, %v6329
        %v6340 = vpack.c.b16 %v6332, %v6331
        %v6341 = vpack.c.b16 %v6334, %v6333
        %v6342 = vpack.c.b16 %v6336, %v6335
        %v6347 = vunpack.c.l.b16 %v6309
        %v6348 = vunpack.c.l.b16 %v6310
        %v6349 = vunpack.c.l.b16 %v6311
        %v6350 = vunpack.c.l.b16 %v6312
        %v6351 = vpack.c.b16 %v6348, %v6347
        %v6352 = vpack.c.b16 %v6350, %v6349
        %v6356 = vsel %vm810, %v6337, 0
        %v6359 = vsel %vm810, %v6338, 0
        %v6362 = vsel %vm810, %v6339, 0
        %v6365 = vsel %vm810, %v6340, 0
        %v6368 = vsel %vm810, %v6341, 0
        %v6371 = vsel %vm810, %v6342, 0
        %6373 = vmatprep.subr.bf16.mxu0 0
        %6374 = vmatpush1.bf16.msra.mxu0 0
        %6375 = vmatprep.subr.bf16.mxu0 0
        %6376 = vmatpush1.bf16.msra.mxu0 0
        %6377 = vmatprep.subr.bf16.mxu0 0
        %6378 = vmatpush1.bf16.msra.mxu0 0
        %6379 = vmatprep.subr.bf16.mxu0 0
        %6380 = vmatpush1.bf16.msra.mxu0 0
        %6381 = vmatprep.subr.bf16.mxu0 0
        %6382 = vmatpush1.bf16.msra.mxu0 0
        %6383 = vmatprep.subr.bf16.mxu0 0
        %6384 = vmatpush1.bf16.msra.mxu0 0
        %6385 = vmatprep.subr.bf16.mxu0 0
        %6386 = vmatpush1.bf16.msra.mxu0 %v6352
        %6387 = vmatprep.subr.bf16.mxu0 0
        %6388 = vmatpush1.bf16.msra.mxu0 %v6351
        %6389 = vmatprep.subr.bf16.mxu0 0
        %6390 = vmatpush2.bf16.msra.mxu0 0
        %6391 = vmatprep.subr.bf16.mxu0 0
        %6392 = vmatpush2.bf16.msra.mxu0 0
        %6393 = vmatprep.subr.bf16.mxu0 0
        %6394 = vmatpush2.bf16.msra.mxu0 0
        %6395 = vmatprep.subr.bf16.mxu0 0
        %6396 = vmatpush2.bf16.msra.mxu0 0
        %6397 = vmatprep.subr.bf16.mxu0 0
        %6398 = vmatpush2.bf16.msra.mxu0 0
        %6399 = vmatprep.subr.bf16.mxu0 0
        %6400 = vmatpush2.bf16.msra.mxu0 0
        %6401 = vmatprep.subr.bf16.mxu0 0
        %6402 = vmatpush2.bf16.msra.mxu0 0
        %6403 = vmatprep.subr.bf16.mxu0 0
        %6404 = vmatpush2.bf16.msra.mxu0 0
        %6405 = vmatprep.mubr.bf16.mxu0 0
        %6406 = vmatmul.mubr.bf16.gmra.mxu0 %v6356
        %v6407 = vpop.f32.mrf.mxu0
        %v6408 = vadd.f32 0.0, %v6407
        %v6409 = vpop.f32.mrf.mxu0
        %v6410 = vpop.f32.mrf.mxu0
        %v6411 = vadd.f32 0.0, %v6410
        %v6412 = vpop.f32.mrf.mxu0
        %6413 = vmatprep.mubr.bf16.mxu0 0
        %6414 = vmatmul.mubr.bf16.gmra.mxu0 %v6359
        %v6415 = vpop.f32.mrf.mxu0
        %v6416 = vadd.f32 0.0, %v6415
        %v6417 = vpop.f32.mrf.mxu0
        %v6418 = vpop.f32.mrf.mxu0
        %v6419 = vadd.f32 0.0, %v6418
        %v6420 = vpop.f32.mrf.mxu0
        %6421 = vmatprep.mubr.bf16.mxu0 0
        %6422 = vmatmul.mubr.bf16.gmra.mxu0 %v6362
        %v6423 = vpop.f32.mrf.mxu0
        %v6424 = vadd.f32 0.0, %v6423
        %v6425 = vpop.f32.mrf.mxu0
        %v6426 = vpop.f32.mrf.mxu0
        %v6427 = vadd.f32 0.0, %v6426
        %v6428 = vpop.f32.mrf.mxu0
        %6429 = vmatprep.mubr.bf16.mxu0 0
        %6430 = vmatmul.mubr.bf16.gmra.mxu0 %v6365
        %v6431 = vpop.f32.mrf.mxu0
        %v6432 = vadd.f32 0.0, %v6431
        %v6433 = vpop.f32.mrf.mxu0
        %v6434 = vpop.f32.mrf.mxu0
        %v6435 = vadd.f32 0.0, %v6434
        %v6436 = vpop.f32.mrf.mxu0
        %6437 = vmatprep.mubr.bf16.mxu0 0
        %6438 = vmatmul.mubr.bf16.gmra.mxu0 %v6368
        %v6439 = vpop.f32.mrf.mxu0
        %v6440 = vadd.f32 0.0, %v6439
        %v6441 = vpop.f32.mrf.mxu0
        %v6442 = vpop.f32.mrf.mxu0
        %v6443 = vadd.f32 0.0, %v6442
        %v6444 = vpop.f32.mrf.mxu0
        %6445 = vmatprep.mubr.bf16.mxu0 0
        %6446 = vmatmul.mubr.bf16.gmra.mxu0 %v6371
        %v6447 = vpop.f32.mrf.mxu0
        %v6448 = vadd.f32 0.0, %v6447
        %v6449 = vpop.f32.mrf.mxu0
        %v6450 = vpop.f32.mrf.mxu0
        %v6451 = vadd.f32 0.0, %v6450
        %v6452 = vpop.f32.mrf.mxu0
        %6453 = vdwg.mxu0
        %v6454 = vadd.f32 %v6285, %v6408
        %v6455 = vadd.f32 %v6286, %v6411
        %v6456 = vadd.f32 %v6287, %v6416
        %v6457 = vadd.f32 %v6288, %v6419
        %v6458 = vadd.f32 %v6289, %v6424
        %v6459 = vadd.f32 %v6290, %v6427
        %v6460 = vadd.f32 %v6291, %v6432
        %v6461 = vadd.f32 %v6292, %v6435
        %v6462 = vadd.f32 %v6293, %v6440
        %v6463 = vadd.f32 %v6294, %v6443
        %v6464 = vadd.f32 %v6295, %v6448
        %v6465 = vadd.f32 %v6296, %v6451
        %v6466 = vld [vmem:[#allocation3 + $0x74] sm:$0xf]
        %v6467 = vld [vmem:[%s3 + $0x40] sm:$0xf]
        %v6468 = vld [vmem:[%s3 + $0x44] sm:$0xf]
        %v6469 = vld [vmem:[%s3 + $0x48] sm:$0xf]
        %v6470 = vld [vmem:[%s3 + $0x4c] sm:$0xf]
        %v6472 = vunpack.c.l.b16 %v6466
        %v6473 = vpack.c.b16 %v6472, %v6335
        %v6474 = vshrl.u32 %v6337, 16
        %v6476 = vshll.u32 %v6337, 16
        %v6478 = vrot.slane %v6476, 1
        %v6479 = vor.u32 %v6474, %v6478
        %v6480 = vshll.u32 %v6338, 16
        %v6482 = vrot.slane %v6480, 1
        %v6483 = vsel %vm3990, %v6479, %v6482
        %v6484 = vshrl.u32 %v6338, 16
        %v6486 = vor.u32 %v6484, %v6482
        %v6487 = vshll.u32 %v6339, 16
        %v6489 = vrot.slane %v6487, 1
        %v6490 = vsel %vm3990, %v6486, %v6489
        %v6491 = vshrl.u32 %v6339, 16
        %v6493 = vor.u32 %v6491, %v6489
        %v6494 = vshll.u32 %v6340, 16
        %v6496 = vrot.slane %v6494, 1
        %v6497 = vsel %vm3990, %v6493, %v6496
        %v6498 = vshrl.u32 %v6340, 16
        %v6500 = vor.u32 %v6498, %v6496
        %v6501 = vshll.u32 %v6341, 16
        %v6503 = vrot.slane %v6501, 1
        %v6504 = vsel %vm3990, %v6500, %v6503
        %v6505 = vshrl.u32 %v6341, 16
        %v6507 = vor.u32 %v6505, %v6503
        %v6509 = vshll.u32 %v6473, 16
        %v6511 = vrot.slane %v6509, 1
        %v6512 = vsel %vm3990, %v6507, %v6511
        %v6513 = vshrl.u32 %v6473, 16
        %v6515 = vor.u32 %v6513, %v6511
        %v6520 = vunpack.c.l.b16 %v6467
        %v6521 = vunpack.c.l.b16 %v6468
        %v6522 = vunpack.c.l.b16 %v6469
        %v6523 = vunpack.c.l.b16 %v6470
        %v6524 = vpack.c.b16 %v6521, %v6520
        %v6525 = vpack.c.b16 %v6523, %v6522
        %v6529 = vsel %vm810, %v6483, 0
        %v6532 = vsel %vm810, %v6490, 0
        %v6535 = vsel %vm810, %v6497, 0
        %v6538 = vsel %vm810, %v6504, 0
        %v6541 = vsel %vm810, %v6512, 0
        %v6544 = vsel %vm810, %v6515, 0
        %6546 = vmatprep.subr.bf16.mxu0 0
        %6547 = vmatpush1.bf16.msra.mxu0 0
        %6548 = vmatprep.subr.bf16.mxu0 0
        %6549 = vmatpush1.bf16.msra.mxu0 0
        %6550 = vmatprep.subr.bf16.mxu0 0
        %6551 = vmatpush1.bf16.msra.mxu0 0
        %6552 = vmatprep.subr.bf16.mxu0 0
        %6553 = vmatpush1.bf16.msra.mxu0 0
        %6554 = vmatprep.subr.bf16.mxu0 0
        %6555 = vmatpush1.bf16.msra.mxu0 0
        %6556 = vmatprep.subr.bf16.mxu0 0
        %6557 = vmatpush1.bf16.msra.mxu0 0
        %6558 = vmatprep.subr.bf16.mxu0 0
        %6559 = vmatpush1.bf16.msra.mxu0 %v6525
        %6560 = vmatprep.subr.bf16.mxu0 0
        %6561 = vmatpush1.bf16.msra.mxu0 %v6524
        %6562 = vmatprep.subr.bf16.mxu0 0
        %6563 = vmatpush2.bf16.msra.mxu0 0
        %6564 = vmatprep.subr.bf16.mxu0 0
        %6565 = vmatpush2.bf16.msra.mxu0 0
        %6566 = vmatprep.subr.bf16.mxu0 0
        %6567 = vmatpush2.bf16.msra.mxu0 0
        %6568 = vmatprep.subr.bf16.mxu0 0
        %6569 = vmatpush2.bf16.msra.mxu0 0
        %6570 = vmatprep.subr.bf16.mxu0 0
        %6571 = vmatpush2.bf16.msra.mxu0 0
        %6572 = vmatprep.subr.bf16.mxu0 0
        %6573 = vmatpush2.bf16.msra.mxu0 0
        %6574 = vmatprep.subr.bf16.mxu0 0
        %6575 = vmatpush2.bf16.msra.mxu0 0
        %6576 = vmatprep.subr.bf16.mxu0 0
        %6577 = vmatpush2.bf16.msra.mxu0 0
        %6578 = vmatprep.mubr.bf16.mxu0 0
        %6579 = vmatmul.mubr.bf16.gmra.mxu0 %v6529
        %v6580 = vpop.f32.mrf.mxu0
        %v6581 = vadd.f32 0.0, %v6580
        %v6582 = vpop.f32.mrf.mxu0
        %v6583 = vpop.f32.mrf.mxu0
        %v6584 = vadd.f32 0.0, %v6583
        %v6585 = vpop.f32.mrf.mxu0
        %6586 = vmatprep.mubr.bf16.mxu0 0
        %6587 = vmatmul.mubr.bf16.gmra.mxu0 %v6532
        %v6588 = vpop.f32.mrf.mxu0
        %v6589 = vadd.f32 0.0, %v6588
        %v6590 = vpop.f32.mrf.mxu0
        %v6591 = vpop.f32.mrf.mxu0
        %v6592 = vadd.f32 0.0, %v6591
        %v6593 = vpop.f32.mrf.mxu0
        %6594 = vmatprep.mubr.bf16.mxu0 0
        %6595 = vmatmul.mubr.bf16.gmra.mxu0 %v6535
        %v6596 = vpop.f32.mrf.mxu0
        %v6597 = vadd.f32 0.0, %v6596
        %v6598 = vpop.f32.mrf.mxu0
        %v6599 = vpop.f32.mrf.mxu0
        %v6600 = vadd.f32 0.0, %v6599
        %v6601 = vpop.f32.mrf.mxu0
        %6602 = vmatprep.mubr.bf16.mxu0 0
        %6603 = vmatmul.mubr.bf16.gmra.mxu0 %v6538
        %v6604 = vpop.f32.mrf.mxu0
        %v6605 = vadd.f32 0.0, %v6604
        %v6606 = vpop.f32.mrf.mxu0
        %v6607 = vpop.f32.mrf.mxu0
        %v6608 = vadd.f32 0.0, %v6607
        %v6609 = vpop.f32.mrf.mxu0
        %6610 = vmatprep.mubr.bf16.mxu0 0
        %6611 = vmatmul.mubr.bf16.gmra.mxu0 %v6541
        %v6612 = vpop.f32.mrf.mxu0
        %v6613 = vadd.f32 0.0, %v6612
        %v6614 = vpop.f32.mrf.mxu0
        %v6615 = vpop.f32.mrf.mxu0
        %v6616 = vadd.f32 0.0, %v6615
        %v6617 = vpop.f32.mrf.mxu0
        %6618 = vmatprep.mubr.bf16.mxu0 0
        %6619 = vmatmul.mubr.bf16.gmra.mxu0 %v6544
        %v6620 = vpop.f32.mrf.mxu0
        %v6621 = vadd.f32 0.0, %v6620
        %v6622 = vpop.f32.mrf.mxu0
        %v6623 = vpop.f32.mrf.mxu0
        %v6624 = vadd.f32 0.0, %v6623
        %v6625 = vpop.f32.mrf.mxu0
        %6626 = vdwg.mxu0
        %v6627 = vadd.f32 %v6454, %v6581
        %v6628 = vadd.f32 %v6455, %v6584
        %v6629 = vadd.f32 %v6456, %v6589
        %v6630 = vadd.f32 %v6457, %v6592
        %v6631 = vadd.f32 %v6458, %v6597
        %v6632 = vadd.f32 %v6459, %v6600
        %v6633 = vadd.f32 %v6460, %v6605
        %v6634 = vadd.f32 %v6461, %v6608
        %v6635 = vadd.f32 %v6462, %v6613
        %v6636 = vadd.f32 %v6463, %v6616
        %v6637 = vadd.f32 %v6464, %v6621
        %v6638 = vadd.f32 %v6465, %v6624
        %v6639 = vld [vmem:[#allocation3 + $0x48] sm:$0xe]
        %v6640 = vld [vmem:[%s3 + $0x50] sm:$0xf]
        %v6641 = vld [vmem:[%s3 + $0x54] sm:$0xf]
        %v6642 = vld [vmem:[%s3 + $0x58] sm:$0xf]
        %v6643 = vld [vmem:[%s3 + $0x5c] sm:$0xf]
        %v6645 = vunpack.c.l.b16 %v6639
        %v6646 = vpack.c.b16 %v6326, %v6645
        %v6647 = vrot.slane %v6646, 1
        %v6648 = vrot.slane %v6338, 1
        %v6649 = vsel %vm4325, %v6647, %v6648
        %v6650 = vrot.slane %v6339, 1
        %v6651 = vsel %vm4325, %v6648, %v6650
        %v6652 = vrot.slane %v6340, 1
        %v6653 = vsel %vm4325, %v6650, %v6652
        %v6654 = vrot.slane %v6341, 1
        %v6655 = vsel %vm4325, %v6652, %v6654
        %v6656 = vrot.slane %v6473, 1
        %v6657 = vsel %vm4325, %v6654, %v6656
        %v6662 = vunpack.c.l.b16 %v6640
        %v6663 = vunpack.c.l.b16 %v6641
        %v6664 = vunpack.c.l.b16 %v6642
        %v6665 = vunpack.c.l.b16 %v6643
        %v6666 = vpack.c.b16 %v6663, %v6662
        %v6667 = vpack.c.b16 %v6665, %v6664
        %v6671 = vsel %vm810, %v6649, 0
        %v6674 = vsel %vm810, %v6651, 0
        %v6677 = vsel %vm810, %v6653, 0
        %v6680 = vsel %vm810, %v6655, 0
        %v6683 = vsel %vm810, %v6657, 0
        %v6686 = vsel %vm810, %v6656, 0
        %6688 = vmatprep.subr.bf16.mxu0 0
        %6689 = vmatpush1.bf16.msra.mxu0 0
        %6690 = vmatprep.subr.bf16.mxu0 0
        %6691 = vmatpush1.bf16.msra.mxu0 0
        %6692 = vmatprep.subr.bf16.mxu0 0
        %6693 = vmatpush1.bf16.msra.mxu0 0
        %6694 = vmatprep.subr.bf16.mxu0 0
        %6695 = vmatpush1.bf16.msra.mxu0 0
        %6696 = vmatprep.subr.bf16.mxu0 0
        %6697 = vmatpush1.bf16.msra.mxu0 0
        %6698 = vmatprep.subr.bf16.mxu0 0
        %6699 = vmatpush1.bf16.msra.mxu0 0
        %6700 = vmatprep.subr.bf16.mxu0 0
        %6701 = vmatpush1.bf16.msra.mxu0 %v6667
        %6702 = vmatprep.subr.bf16.mxu0 0
        %6703 = vmatpush1.bf16.msra.mxu0 %v6666
        %6704 = vmatprep.subr.bf16.mxu0 0
        %6705 = vmatpush2.bf16.msra.mxu0 0
        %6706 = vmatprep.subr.bf16.mxu0 0
        %6707 = vmatpush2.bf16.msra.mxu0 0
        %6708 = vmatprep.subr.bf16.mxu0 0
        %6709 = vmatpush2.bf16.msra.mxu0 0
        %6710 = vmatprep.subr.bf16.mxu0 0
        %6711 = vmatpush2.bf16.msra.mxu0 0
        %6712 = vmatprep.subr.bf16.mxu0 0
        %6713 = vmatpush2.bf16.msra.mxu0 0
        %6714 = vmatprep.subr.bf16.mxu0 0
        %6715 = vmatpush2.bf16.msra.mxu0 0
        %6716 = vmatprep.subr.bf16.mxu0 0
        %6717 = vmatpush2.bf16.msra.mxu0 0
        %6718 = vmatprep.subr.bf16.mxu0 0
        %6719 = vmatpush2.bf16.msra.mxu0 0
        %6720 = vmatprep.mubr.bf16.mxu0 0
        %6721 = vmatmul.mubr.bf16.gmra.mxu0 %v6671
        %v6722 = vpop.f32.mrf.mxu0
        %v6723 = vadd.f32 0.0, %v6722
        %v6724 = vpop.f32.mrf.mxu0
        %v6725 = vpop.f32.mrf.mxu0
        %v6726 = vadd.f32 0.0, %v6725
        %v6727 = vpop.f32.mrf.mxu0
        %6728 = vmatprep.mubr.bf16.mxu0 0
        %6729 = vmatmul.mubr.bf16.gmra.mxu0 %v6674
        %v6730 = vpop.f32.mrf.mxu0
        %v6731 = vadd.f32 0.0, %v6730
        %v6732 = vpop.f32.mrf.mxu0
        %v6733 = vpop.f32.mrf.mxu0
        %v6734 = vadd.f32 0.0, %v6733
        %v6735 = vpop.f32.mrf.mxu0
        %6736 = vmatprep.mubr.bf16.mxu0 0
        %6737 = vmatmul.mubr.bf16.gmra.mxu0 %v6677
        %v6738 = vpop.f32.mrf.mxu0
        %v6739 = vadd.f32 0.0, %v6738
        %v6740 = vpop.f32.mrf.mxu0
        %v6741 = vpop.f32.mrf.mxu0
        %v6742 = vadd.f32 0.0, %v6741
        %v6743 = vpop.f32.mrf.mxu0
        %6744 = vmatprep.mubr.bf16.mxu0 0
        %6745 = vmatmul.mubr.bf16.gmra.mxu0 %v6680
        %v6746 = vpop.f32.mrf.mxu0
        %v6747 = vadd.f32 0.0, %v6746
        %v6748 = vpop.f32.mrf.mxu0
        %v6749 = vpop.f32.mrf.mxu0
        %v6750 = vadd.f32 0.0, %v6749
        %v6751 = vpop.f32.mrf.mxu0
        %6752 = vmatprep.mubr.bf16.mxu0 0
        %6753 = vmatmul.mubr.bf16.gmra.mxu0 %v6683
        %v6754 = vpop.f32.mrf.mxu0
        %v6755 = vadd.f32 0.0, %v6754
        %v6756 = vpop.f32.mrf.mxu0
        %v6757 = vpop.f32.mrf.mxu0
        %v6758 = vadd.f32 0.0, %v6757
        %v6759 = vpop.f32.mrf.mxu0
        %6760 = vmatprep.mubr.bf16.mxu0 0
        %6761 = vmatmul.mubr.bf16.gmra.mxu0 %v6686
        %v6762 = vpop.f32.mrf.mxu0
        %v6763 = vadd.f32 0.0, %v6762
        %v6764 = vpop.f32.mrf.mxu0
        %v6765 = vpop.f32.mrf.mxu0
        %v6766 = vadd.f32 0.0, %v6765
        %v6767 = vpop.f32.mrf.mxu0
        %6768 = vdwg.mxu0
        %v6769 = vadd.f32 %v6627, %v6723
        %v6770 = vadd.f32 %v6628, %v6726
        %v6771 = vadd.f32 %v6629, %v6731
        %v6772 = vadd.f32 %v6630, %v6734
        %v6773 = vadd.f32 %v6631, %v6739
        %v6774 = vadd.f32 %v6632, %v6742
        %v6775 = vadd.f32 %v6633, %v6747
        %v6776 = vadd.f32 %v6634, %v6750
        %v6777 = vadd.f32 %v6635, %v6755
        %v6778 = vadd.f32 %v6636, %v6758
        %v6779 = vadd.f32 %v6637, %v6763
        %v6780 = vadd.f32 %v6638, %v6766
        %v6781 = vld [vmem:[#allocation3 + $0x50] sm:$0xf]
        %v6782 = vld [vmem:[#allocation3 + $0x54] sm:$0xf]
        %v6783 = vld [vmem:[#allocation3 + $0x58] sm:$0xf]
        %v6784 = vld [vmem:[#allocation3 + $0x5c] sm:$0xf]
        %v6785 = vld [vmem:[#allocation3 + $0x60] sm:$0xf]
        %v6786 = vld [vmem:[#allocation3 + $0x64] sm:$0xf]
        %v6787 = vld [vmem:[#allocation3 + $0x68] sm:$0xf]
        %v6788 = vld [vmem:[#allocation3 + $0x6c] sm:$0xf]
        %v6789 = vld [vmem:[#allocation3 + $0x70] sm:$0xf]
        %v6790 = vld [vmem:[#allocation3 + $0x74] sm:$0xf]
        %v6791 = vld [vmem:[#allocation3 + $0x78] sm:$0xf]
        %v6792 = vld [vmem:[#allocation3 + $0x7c] sm:$0x7]
        %v6793 = vld [vmem:[%s3 + $0x60] sm:$0xf]
        %v6794 = vld [vmem:[%s3 + $0x64] sm:$0xf]
        %v6795 = vld [vmem:[%s3 + $0x68] sm:$0xf]
        %v6796 = vld [vmem:[%s3 + $0x6c] sm:$0xf]
        %v6809 = vunpack.c.l.b16 %v6781
        %v6810 = vunpack.c.l.b16 %v6782
        %v6811 = vunpack.c.l.b16 %v6783
        %v6812 = vunpack.c.l.b16 %v6784
        %v6813 = vunpack.c.l.b16 %v6785
        %v6814 = vunpack.c.l.b16 %v6786
        %v6815 = vunpack.c.l.b16 %v6787
        %v6816 = vunpack.c.l.b16 %v6788
        %v6817 = vunpack.c.l.b16 %v6789
        %v6818 = vunpack.c.l.b16 %v6790
        %v6819 = vunpack.c.l.b16 %v6791
        %v6820 = vunpack.c.l.b16 %v6792
        %v6821 = vpack.c.b16 %v6810, %v6809
        %v6822 = vpack.c.b16 %v6812, %v6811
        %v6823 = vpack.c.b16 %v6814, %v6813
        %v6824 = vpack.c.b16 %v6816, %v6815
        %v6825 = vpack.c.b16 %v6818, %v6817
        %v6826 = vpack.c.b16 %v6820, %v6819
        %v6831 = vunpack.c.l.b16 %v6793
        %v6832 = vunpack.c.l.b16 %v6794
        %v6833 = vunpack.c.l.b16 %v6795
        %v6834 = vunpack.c.l.b16 %v6796
        %v6835 = vpack.c.b16 %v6832, %v6831
        %v6836 = vpack.c.b16 %v6834, %v6833
        %v6840 = vsel %vm810, %v6821, 0
        %v6843 = vsel %vm810, %v6822, 0
        %v6846 = vsel %vm810, %v6823, 0
        %v6849 = vsel %vm810, %v6824, 0
        %v6852 = vsel %vm810, %v6825, 0
        %v6855 = vsel %vm810, %v6826, 0
        %6857 = vmatprep.subr.bf16.mxu0 0
        %6858 = vmatpush1.bf16.msra.mxu0 0
        %6859 = vmatprep.subr.bf16.mxu0 0
        %6860 = vmatpush1.bf16.msra.mxu0 0
        %6861 = vmatprep.subr.bf16.mxu0 0
        %6862 = vmatpush1.bf16.msra.mxu0 0
        %6863 = vmatprep.subr.bf16.mxu0 0
        %6864 = vmatpush1.bf16.msra.mxu0 0
        %6865 = vmatprep.subr.bf16.mxu0 0
        %6866 = vmatpush1.bf16.msra.mxu0 0
        %6867 = vmatprep.subr.bf16.mxu0 0
        %6868 = vmatpush1.bf16.msra.mxu0 0
        %6869 = vmatprep.subr.bf16.mxu0 0
        %6870 = vmatpush1.bf16.msra.mxu0 %v6836
        %6871 = vmatprep.subr.bf16.mxu0 0
        %6872 = vmatpush1.bf16.msra.mxu0 %v6835
        %6873 = vmatprep.subr.bf16.mxu0 0
        %6874 = vmatpush2.bf16.msra.mxu0 0
        %6875 = vmatprep.subr.bf16.mxu0 0
        %6876 = vmatpush2.bf16.msra.mxu0 0
        %6877 = vmatprep.subr.bf16.mxu0 0
        %6878 = vmatpush2.bf16.msra.mxu0 0
        %6879 = vmatprep.subr.bf16.mxu0 0
        %6880 = vmatpush2.bf16.msra.mxu0 0
        %6881 = vmatprep.subr.bf16.mxu0 0
        %6882 = vmatpush2.bf16.msra.mxu0 0
        %6883 = vmatprep.subr.bf16.mxu0 0
        %6884 = vmatpush2.bf16.msra.mxu0 0
        %6885 = vmatprep.subr.bf16.mxu0 0
        %6886 = vmatpush2.bf16.msra.mxu0 0
        %6887 = vmatprep.subr.bf16.mxu0 0
        %6888 = vmatpush2.bf16.msra.mxu0 0
        %6889 = vmatprep.mubr.bf16.mxu0 0
        %6890 = vmatmul.mubr.bf16.gmra.mxu0 %v6840
        %v6891 = vpop.f32.mrf.mxu0
        %v6892 = vadd.f32 0.0, %v6891
        %v6893 = vpop.f32.mrf.mxu0
        %v6894 = vpop.f32.mrf.mxu0
        %v6895 = vadd.f32 0.0, %v6894
        %v6896 = vpop.f32.mrf.mxu0
        %6897 = vmatprep.mubr.bf16.mxu0 0
        %6898 = vmatmul.mubr.bf16.gmra.mxu0 %v6843
        %v6899 = vpop.f32.mrf.mxu0
        %v6900 = vadd.f32 0.0, %v6899
        %v6901 = vpop.f32.mrf.mxu0
        %v6902 = vpop.f32.mrf.mxu0
        %v6903 = vadd.f32 0.0, %v6902
        %v6904 = vpop.f32.mrf.mxu0
        %6905 = vmatprep.mubr.bf16.mxu0 0
        %6906 = vmatmul.mubr.bf16.gmra.mxu0 %v6846
        %v6907 = vpop.f32.mrf.mxu0
        %v6908 = vadd.f32 0.0, %v6907
        %v6909 = vpop.f32.mrf.mxu0
        %v6910 = vpop.f32.mrf.mxu0
        %v6911 = vadd.f32 0.0, %v6910
        %v6912 = vpop.f32.mrf.mxu0
        %6913 = vmatprep.mubr.bf16.mxu0 0
        %6914 = vmatmul.mubr.bf16.gmra.mxu0 %v6849
        %v6915 = vpop.f32.mrf.mxu0
        %v6916 = vadd.f32 0.0, %v6915
        %v6917 = vpop.f32.mrf.mxu0
        %v6918 = vpop.f32.mrf.mxu0
        %v6919 = vadd.f32 0.0, %v6918
        %v6920 = vpop.f32.mrf.mxu0
        %6921 = vmatprep.mubr.bf16.mxu0 0
        %6922 = vmatmul.mubr.bf16.gmra.mxu0 %v6852
        %v6923 = vpop.f32.mrf.mxu0
        %v6924 = vadd.f32 0.0, %v6923
        %v6925 = vpop.f32.mrf.mxu0
        %v6926 = vpop.f32.mrf.mxu0
        %v6927 = vadd.f32 0.0, %v6926
        %v6928 = vpop.f32.mrf.mxu0
        %6929 = vmatprep.mubr.bf16.mxu0 0
        %6930 = vmatmul.mubr.bf16.gmra.mxu0 %v6855
        %v6931 = vpop.f32.mrf.mxu0
        %v6932 = vadd.f32 0.0, %v6931
        %v6933 = vpop.f32.mrf.mxu0
        %v6934 = vpop.f32.mrf.mxu0
        %v6935 = vadd.f32 0.0, %v6934
        %v6936 = vpop.f32.mrf.mxu0
        %6937 = vdwg.mxu0
        %v6938 = vadd.f32 %v6769, %v6892
        %v6939 = vadd.f32 %v6770, %v6895
        %v6940 = vadd.f32 %v6771, %v6900
        %v6941 = vadd.f32 %v6772, %v6903
        %v6942 = vadd.f32 %v6773, %v6908
        %v6943 = vadd.f32 %v6774, %v6911
        %v6944 = vadd.f32 %v6775, %v6916
        %v6945 = vadd.f32 %v6776, %v6919
        %v6946 = vadd.f32 %v6777, %v6924
        %v6947 = vadd.f32 %v6778, %v6927
        %v6948 = vadd.f32 %v6779, %v6932
        %v6949 = vadd.f32 %v6780, %v6935
        %v6950 = vld [vmem:[#allocation3 + $0x7c] sm:$0xf]
        %v6951 = vld [vmem:[%s3 + $0x70] sm:$0xf]
        %v6952 = vld [vmem:[%s3 + $0x74] sm:$0xf]
        %v6953 = vld [vmem:[%s3 + $0x78] sm:$0xf]
        %v6954 = vld [vmem:[%s3 + $0x7c] sm:$0xf]
        %v6956 = vunpack.c.l.b16 %v6950
        %v6957 = vpack.c.b16 %v6956, %v6819
        %v6958 = vshrl.u32 %v6821, 16
        %v6960 = vshll.u32 %v6821, 16
        %v6962 = vrot.slane %v6960, 1
        %v6963 = vor.u32 %v6958, %v6962
        %v6964 = vshll.u32 %v6822, 16
        %v6966 = vrot.slane %v6964, 1
        %v6967 = vsel %vm3990, %v6963, %v6966
        %v6968 = vshrl.u32 %v6822, 16
        %v6970 = vor.u32 %v6968, %v6966
        %v6971 = vshll.u32 %v6823, 16
        %v6973 = vrot.slane %v6971, 1
        %v6974 = vsel %vm3990, %v6970, %v6973
        %v6975 = vshrl.u32 %v6823, 16
        %v6977 = vor.u32 %v6975, %v6973
        %v6978 = vshll.u32 %v6824, 16
        %v6980 = vrot.slane %v6978, 1
        %v6981 = vsel %vm3990, %v6977, %v6980
        %v6982 = vshrl.u32 %v6824, 16
        %v6984 = vor.u32 %v6982, %v6980
        %v6985 = vshll.u32 %v6825, 16
        %v6987 = vrot.slane %v6985, 1
        %v6988 = vsel %vm3990, %v6984, %v6987
        %v6989 = vshrl.u32 %v6825, 16
        %v6991 = vor.u32 %v6989, %v6987
        %v6993 = vshll.u32 %v6957, 16
        %v6995 = vrot.slane %v6993, 1
        %v6996 = vsel %vm3990, %v6991, %v6995
        %v6997 = vshrl.u32 %v6957, 16
        %v6999 = vor.u32 %v6997, %v6995
        %v7004 = vunpack.c.l.b16 %v6951
        %v7005 = vunpack.c.l.b16 %v6952
        %v7006 = vunpack.c.l.b16 %v6953
        %v7007 = vunpack.c.l.b16 %v6954
        %v7008 = vpack.c.b16 %v7005, %v7004
        %v7009 = vpack.c.b16 %v7007, %v7006
        %v7013 = vsel %vm810, %v6967, 0
        %v7016 = vsel %vm810, %v6974, 0
        %v7019 = vsel %vm810, %v6981, 0
        %v7022 = vsel %vm810, %v6988, 0
        %v7025 = vsel %vm810, %v6996, 0
        %v7028 = vsel %vm810, %v6999, 0
        %7030 = vmatprep.subr.bf16.mxu0 0
        %7031 = vmatpush1.bf16.msra.mxu0 0
        %7032 = vmatprep.subr.bf16.mxu0 0
        %7033 = vmatpush1.bf16.msra.mxu0 0
        %7034 = vmatprep.subr.bf16.mxu0 0
        %7035 = vmatpush1.bf16.msra.mxu0 0
        %7036 = vmatprep.subr.bf16.mxu0 0
        %7037 = vmatpush1.bf16.msra.mxu0 0
        %7038 = vmatprep.subr.bf16.mxu0 0
        %7039 = vmatpush1.bf16.msra.mxu0 0
        %7040 = vmatprep.subr.bf16.mxu0 0
        %7041 = vmatpush1.bf16.msra.mxu0 0
        %7042 = vmatprep.subr.bf16.mxu0 0
        %7043 = vmatpush1.bf16.msra.mxu0 %v7009
        %7044 = vmatprep.subr.bf16.mxu0 0
        %7045 = vmatpush1.bf16.msra.mxu0 %v7008
        %7046 = vmatprep.subr.bf16.mxu0 0
        %7047 = vmatpush2.bf16.msra.mxu0 0
        %7048 = vmatprep.subr.bf16.mxu0 0
        %7049 = vmatpush2.bf16.msra.mxu0 0
        %7050 = vmatprep.subr.bf16.mxu0 0
        %7051 = vmatpush2.bf16.msra.mxu0 0
        %7052 = vmatprep.subr.bf16.mxu0 0
        %7053 = vmatpush2.bf16.msra.mxu0 0
        %7054 = vmatprep.subr.bf16.mxu0 0
        %7055 = vmatpush2.bf16.msra.mxu0 0
        %7056 = vmatprep.subr.bf16.mxu0 0
        %7057 = vmatpush2.bf16.msra.mxu0 0
        %7058 = vmatprep.subr.bf16.mxu0 0
        %7059 = vmatpush2.bf16.msra.mxu0 0
        %7060 = vmatprep.subr.bf16.mxu0 0
        %7061 = vmatpush2.bf16.msra.mxu0 0
        %7062 = vmatprep.mubr.bf16.mxu0 0
        %7063 = vmatmul.mubr.bf16.gmra.mxu0 %v7013
        %v7064 = vpop.f32.mrf.mxu0
        %v7065 = vadd.f32 0.0, %v7064
        %v7066 = vpop.f32.mrf.mxu0
        %v7067 = vpop.f32.mrf.mxu0
        %v7068 = vadd.f32 0.0, %v7067
        %v7069 = vpop.f32.mrf.mxu0
        %7070 = vmatprep.mubr.bf16.mxu0 0
        %7071 = vmatmul.mubr.bf16.gmra.mxu0 %v7016
        %v7072 = vpop.f32.mrf.mxu0
        %v7073 = vadd.f32 0.0, %v7072
        %v7074 = vpop.f32.mrf.mxu0
        %v7075 = vpop.f32.mrf.mxu0
        %v7076 = vadd.f32 0.0, %v7075
        %v7077 = vpop.f32.mrf.mxu0
        %7078 = vmatprep.mubr.bf16.mxu0 0
        %7079 = vmatmul.mubr.bf16.gmra.mxu0 %v7019
        %v7080 = vpop.f32.mrf.mxu0
        %v7081 = vadd.f32 0.0, %v7080
        %v7082 = vpop.f32.mrf.mxu0
        %v7083 = vpop.f32.mrf.mxu0
        %v7084 = vadd.f32 0.0, %v7083
        %v7085 = vpop.f32.mrf.mxu0
        %7086 = vmatprep.mubr.bf16.mxu0 0
        %7087 = vmatmul.mubr.bf16.gmra.mxu0 %v7022
        %v7088 = vpop.f32.mrf.mxu0
        %v7089 = vadd.f32 0.0, %v7088
        %v7090 = vpop.f32.mrf.mxu0
        %v7091 = vpop.f32.mrf.mxu0
        %v7092 = vadd.f32 0.0, %v7091
        %v7093 = vpop.f32.mrf.mxu0
        %7094 = vmatprep.mubr.bf16.mxu0 0
        %7095 = vmatmul.mubr.bf16.gmra.mxu0 %v7025
        %v7096 = vpop.f32.mrf.mxu0
        %v7097 = vadd.f32 0.0, %v7096
        %v7098 = vpop.f32.mrf.mxu0
        %v7099 = vpop.f32.mrf.mxu0
        %v7100 = vadd.f32 0.0, %v7099
        %v7101 = vpop.f32.mrf.mxu0
        %7102 = vmatprep.mubr.bf16.mxu0 0
        %7103 = vmatmul.mubr.bf16.gmra.mxu0 %v7028
        %v7104 = vpop.f32.mrf.mxu0
        %v7105 = vadd.f32 0.0, %v7104
        %v7106 = vpop.f32.mrf.mxu0
        %v7107 = vpop.f32.mrf.mxu0
        %v7108 = vadd.f32 0.0, %v7107
        %v7109 = vpop.f32.mrf.mxu0
        %7110 = vdwg.mxu0
        %v7111 = vadd.f32 %v6938, %v7065
        %v7112 = vadd.f32 %v6939, %v7068
        %v7113 = vadd.f32 %v6940, %v7073
        %v7114 = vadd.f32 %v6941, %v7076
        %v7115 = vadd.f32 %v6942, %v7081
        %v7116 = vadd.f32 %v6943, %v7084
        %v7117 = vadd.f32 %v6944, %v7089
        %v7118 = vadd.f32 %v6945, %v7092
        %v7119 = vadd.f32 %v6946, %v7097
        %v7120 = vadd.f32 %v6947, %v7100
        %v7121 = vadd.f32 %v6948, %v7105
        %v7122 = vadd.f32 %v6949, %v7108
        %v7123 = vld [vmem:[#allocation3 + $0x50] sm:$0xe]
        %v7124 = vld [vmem:[%s3 + $0x80] sm:$0xf]
        %v7125 = vld [vmem:[%s3 + $0x84] sm:$0xf]
        %v7126 = vld [vmem:[%s3 + $0x88] sm:$0xf]
        %v7127 = vld [vmem:[%s3 + $0x8c] sm:$0xf]
        %v7129 = vunpack.c.l.b16 %v7123
        %v7130 = vpack.c.b16 %v6810, %v7129
        %v7131 = vrot.slane %v7130, 1
        %v7132 = vrot.slane %v6822, 1
        %v7133 = vsel %vm4325, %v7131, %v7132
        %v7134 = vrot.slane %v6823, 1
        %v7135 = vsel %vm4325, %v7132, %v7134
        %v7136 = vrot.slane %v6824, 1
        %v7137 = vsel %vm4325, %v7134, %v7136
        %v7138 = vrot.slane %v6825, 1
        %v7139 = vsel %vm4325, %v7136, %v7138
        %v7140 = vrot.slane %v6957, 1
        %v7141 = vsel %vm4325, %v7138, %v7140
        %v7146 = vunpack.c.l.b16 %v7124
        %v7147 = vunpack.c.l.b16 %v7125
        %v7148 = vunpack.c.l.b16 %v7126
        %v7149 = vunpack.c.l.b16 %v7127
        %v7150 = vpack.c.b16 %v7147, %v7146
        %v7151 = vpack.c.b16 %v7149, %v7148
        %v7155 = vsel %vm810, %v7133, 0
        %v7158 = vsel %vm810, %v7135, 0
        %v7161 = vsel %vm810, %v7137, 0
        %v7164 = vsel %vm810, %v7139, 0
        %v7167 = vsel %vm810, %v7141, 0
        %v7170 = vsel %vm810, %v7140, 0
        %7172 = vmatprep.subr.bf16.mxu0 0
        %7173 = vmatpush1.bf16.msra.mxu0 0
        %7174 = vmatprep.subr.bf16.mxu0 0
        %7175 = vmatpush1.bf16.msra.mxu0 0
        %7176 = vmatprep.subr.bf16.mxu0 0
        %7177 = vmatpush1.bf16.msra.mxu0 0
        %7178 = vmatprep.subr.bf16.mxu0 0
        %7179 = vmatpush1.bf16.msra.mxu0 0
        %7180 = vmatprep.subr.bf16.mxu0 0
        %7181 = vmatpush1.bf16.msra.mxu0 0
        %7182 = vmatprep.subr.bf16.mxu0 0
        %7183 = vmatpush1.bf16.msra.mxu0 0
        %7184 = vmatprep.subr.bf16.mxu0 0
        %7185 = vmatpush1.bf16.msra.mxu0 %v7151
        %7186 = vmatprep.subr.bf16.mxu0 0
        %7187 = vmatpush1.bf16.msra.mxu0 %v7150
        %7188 = vmatprep.subr.bf16.mxu0 0
        %7189 = vmatpush2.bf16.msra.mxu0 0
        %7190 = vmatprep.subr.bf16.mxu0 0
        %7191 = vmatpush2.bf16.msra.mxu0 0
        %7192 = vmatprep.subr.bf16.mxu0 0
        %7193 = vmatpush2.bf16.msra.mxu0 0
        %7194 = vmatprep.subr.bf16.mxu0 0
        %7195 = vmatpush2.bf16.msra.mxu0 0
        %7196 = vmatprep.subr.bf16.mxu0 0
        %7197 = vmatpush2.bf16.msra.mxu0 0
        %7198 = vmatprep.subr.bf16.mxu0 0
        %7199 = vmatpush2.bf16.msra.mxu0 0
        %7200 = vmatprep.subr.bf16.mxu0 0
        %7201 = vmatpush2.bf16.msra.mxu0 0
        %7202 = vmatprep.subr.bf16.mxu0 0
        %7203 = vmatpush2.bf16.msra.mxu0 0
        %7204 = vmatprep.mubr.bf16.mxu0 0
        %7205 = vmatmul.mubr.bf16.gmra.mxu0 %v7155
        %v7206 = vpop.f32.mrf.mxu0
        %v7207 = vadd.f32 0.0, %v7206
        %v7208 = vpop.f32.mrf.mxu0
        %v7209 = vpop.f32.mrf.mxu0
        %v7210 = vadd.f32 0.0, %v7209
        %v7211 = vpop.f32.mrf.mxu0
        %7212 = vmatprep.mubr.bf16.mxu0 0
        %7213 = vmatmul.mubr.bf16.gmra.mxu0 %v7158
        %v7214 = vpop.f32.mrf.mxu0
        %v7215 = vadd.f32 0.0, %v7214
        %v7216 = vpop.f32.mrf.mxu0
        %v7217 = vpop.f32.mrf.mxu0
        %v7218 = vadd.f32 0.0, %v7217
        %v7219 = vpop.f32.mrf.mxu0
        %7220 = vmatprep.mubr.bf16.mxu0 0
        %7221 = vmatmul.mubr.bf16.gmra.mxu0 %v7161
        %v7222 = vpop.f32.mrf.mxu0
        %v7223 = vadd.f32 0.0, %v7222
        %v7224 = vpop.f32.mrf.mxu0
        %v7225 = vpop.f32.mrf.mxu0
        %v7226 = vadd.f32 0.0, %v7225
        %v7227 = vpop.f32.mrf.mxu0
        %7228 = vmatprep.mubr.bf16.mxu0 0
        %7229 = vmatmul.mubr.bf16.gmra.mxu0 %v7164
        %v7230 = vpop.f32.mrf.mxu0
        %v7231 = vadd.f32 0.0, %v7230
        %v7232 = vpop.f32.mrf.mxu0
        %v7233 = vpop.f32.mrf.mxu0
        %v7234 = vadd.f32 0.0, %v7233
        %v7235 = vpop.f32.mrf.mxu0
        %7236 = vmatprep.mubr.bf16.mxu0 0
        %7237 = vmatmul.mubr.bf16.gmra.mxu0 %v7167
        %v7238 = vpop.f32.mrf.mxu0
        %v7239 = vadd.f32 0.0, %v7238
        %v7240 = vpop.f32.mrf.mxu0
        %v7241 = vpop.f32.mrf.mxu0
        %v7242 = vadd.f32 0.0, %v7241
        %v7243 = vpop.f32.mrf.mxu0
        %7244 = vmatprep.mubr.bf16.mxu0 0
        %7245 = vmatmul.mubr.bf16.gmra.mxu0 %v7170
        %v7246 = vpop.f32.mrf.mxu0
        %v7247 = vadd.f32 0.0, %v7246
        %v7248 = vpop.f32.mrf.mxu0
        %v7249 = vpop.f32.mrf.mxu0
        %v7250 = vadd.f32 0.0, %v7249
        %v7251 = vpop.f32.mrf.mxu0
        %7252 = vdwg.mxu0
        %v7253 = vadd.f32 %v7111, %v7207
        %v7254 = vadd.f32 %v7112, %v7210
        %v7255 = vadd.f32 %v7113, %v7215
        %v7256 = vadd.f32 %v7114, %v7218
        %v7257 = vadd.f32 %v7115, %v7223
        %v7258 = vadd.f32 %v7116, %v7226
        %v7259 = vadd.f32 %v7117, %v7231
        %v7260 = vadd.f32 %v7118, %v7234
        %v7261 = vadd.f32 %v7119, %v7239
        %v7262 = vadd.f32 %v7120, %v7242
        %v7263 = vadd.f32 %v7121, %v7247
        %v7264 = vadd.f32 %v7122, %v7250
        %7265 = vst.msk [vmem:[#allocation4 + $0x80] sm:$0xff] %vm5820, %v7253
        %7266 = vst.msk [vmem:[#allocation4 + $0x88] sm:$0xff] %vm5820, %v7254
        %7267 = vst.msk [vmem:[#allocation4 + $0x90] sm:$0xff] %vm5820, %v7255
        %7268 = vst.msk [vmem:[#allocation4 + $0x98] sm:$0xff] %vm5820, %v7256
        %7269 = vst.msk [vmem:[#allocation4 + $0xa0] sm:$0xff] %vm5820, %v7257
        %7270 = vst.msk [vmem:[#allocation4 + $0xa8] sm:$0xff] %vm5820, %v7258
        %7271 = vst.msk [vmem:[#allocation4 + $0xb0] sm:$0xff] %vm5820, %v7259
        %7272 = vst.msk [vmem:[#allocation4 + $0xb8] sm:$0xff] %vm5820, %v7260
        %7273 = vst.msk [vmem:[#allocation4 + $0xc0] sm:$0xff] %vm5820, %v7261
        %7274 = vst.msk [vmem:[#allocation4 + $0xc8] sm:$0xff] %vm5820, %v7262
        %7275 = vst.msk [vmem:[#allocation4 + $0xd0] sm:$0xff] %vm5820, %v7263
        %vm7276 = vcmask 521216
        %7277 = vst.msk [vmem:[#allocation4 + $0xd8] sm:$0x3f] %vm7276, %v7264
        %v7278 = vld [vmem:[%s4] sm:$0x1]
        %v7279 = vld [vmem:[%s12] sm:$0x7f]
        %v7280 = vld [vmem:[#allocation4] sm:$0xff]
        %v7281 = vld [vmem:[#allocation4 + $0x8] sm:$0x1f]
        %v7282 = vld [vmem:[#allocation4 + $0x1] sm:$0xff]
        %v7283 = vld [vmem:[#allocation4 + $0x9] sm:$0x1f]
        %v7284 = vmax.f32 %v7280, %v7282
        %v7285 = vmax.f32 %v7281, %v7283
        %v7286 = vld [vmem:[#allocation4 + $0x10] sm:$0xff]
        %v7287 = vld [vmem:[#allocation4 + $0x18] sm:$0x1f]
        %v7288 = vmax.f32 %v7284, %v7286
        %v7289 = vmax.f32 %v7285, %v7287
        %v7290 = vld [vmem:[#allocation4 + $0x11] sm:$0xff]
        %v7291 = vld [vmem:[#allocation4 + $0x19] sm:$0x1f]
        %v7292 = vmax.f32 %v7288, %v7290
        %v7293 = vmax.f32 %v7289, %v7291
        %v7295 = vlaneseq
        %v7296 = vshrl.u32 %v7295, 7
        %v7297 = vsub.s32 0, %v7296
        %v7298 = vrot.slane %v7278, %v7297
        %vm7300 = vcmask 105472
        %v7302 = vsel %vm7300, %v7279, 0
        %v7305 = vsel %vm642, %v7293, 0
        %7307 = vmatprep.subr.mxu0 0.0
        %7308 = vmatpush1.msra.mxu0 0.0
        %7309 = vmatprep.subr.mxu0 0.0
        %7310 = vmatpush1.msra.mxu0 0.0
        %7311 = vmatprep.subr.mxu0 0.0
        %7312 = vmatpush1.msra.mxu0 0.0
        %7313 = vmatprep.subr.mxu0 0.0
        %7314 = vmatpush1.msra.mxu0 0.0
        %7315 = vmatprep.subr.mxu0 0.0
        %7316 = vmatpush1.msra.mxu0 0.0
        %7317 = vmatprep.subr.mxu0 0.0
        %7318 = vmatpush1.msra.mxu0 0.0
        %7319 = vmatprep.subr.mxu0 0.0
        %7320 = vmatpush1.msra.mxu0 0.0
        %7321 = vmatprep.subr.mxu0 0.0
        %7322 = vmatpush1.msra.mxu0 0.0
        %7323 = vmatprep.subr.mxu0 0.0
        %7324 = vmatpush1.msra.mxu0 0.0
        %7325 = vmatprep.subr.mxu0 0.0
        %7326 = vmatpush1.msra.mxu0 0.0
        %7327 = vmatprep.subr.mxu0 0.0
        %7328 = vmatpush1.msra.mxu0 0.0
        %7329 = vmatprep.subr.mxu0 0.0
        %7330 = vmatpush1.msra.mxu0 0.0
        %7331 = vmatprep.subr.mxu0 0.0
        %7332 = vmatpush1.msra.mxu0 0.0
        %7333 = vmatprep.subr.mxu0 0.0
        %7334 = vmatpush1.msra.mxu0 0.0
        %7335 = vmatprep.subr.mxu0 0.0
        %7336 = vmatpush1.msra.mxu0 %v7305
        %7337 = vmatprep.subr.mxu0 0.0
        %7338 = vmatpush1.msra.mxu0 %v7292
        %7339 = vmatprep.subr.mxu0 0.0
        %7340 = vmatpush2.msra.mxu0 0.0
        %7341 = vmatprep.subr.mxu0 0.0
        %7342 = vmatpush2.msra.mxu0 0.0
        %7343 = vmatprep.subr.mxu0 0.0
        %7344 = vmatpush2.msra.mxu0 0.0
        %7345 = vmatprep.subr.mxu0 0.0
        %7346 = vmatpush2.msra.mxu0 0.0
        %7347 = vmatprep.subr.mxu0 0.0
        %7348 = vmatpush2.msra.mxu0 0.0
        %7349 = vmatprep.subr.mxu0 0.0
        %7350 = vmatpush2.msra.mxu0 0.0
        %7351 = vmatprep.subr.mxu0 0.0
        %7352 = vmatpush2.msra.mxu0 0.0
        %7353 = vmatprep.subr.mxu0 0.0
        %7354 = vmatpush2.msra.mxu0 0.0
        %7355 = vmatprep.subr.mxu0 0.0
        %7356 = vmatpush2.msra.mxu0 0.0
        %7357 = vmatprep.subr.mxu0 0.0
        %7358 = vmatpush2.msra.mxu0 0.0
        %7359 = vmatprep.subr.mxu0 0.0
        %7360 = vmatpush2.msra.mxu0 0.0
        %7361 = vmatprep.subr.mxu0 0.0
        %7362 = vmatpush2.msra.mxu0 0.0
        %7363 = vmatprep.subr.mxu0 0.0
        %7364 = vmatpush2.msra.mxu0 0.0
        %7365 = vmatprep.subr.mxu0 0.0
        %7366 = vmatpush2.msra.mxu0 0.0
        %7367 = vmatprep.subr.mxu0 0.0
        %7368 = vmatpush2.msra.mxu0 0.0
        %7369 = vmatprep.subr.mxu0 0.0
        %7370 = vmatpush2.msra.mxu0 0.0
        %7371 = vmatprep.mubr.f32.mxu0 0.0
        %7372 = vmatmul.mubr.f32.gmra.mxu0 %v7302
        %v7373 = vpop.f32.mrf.mxu0
        %v7374 = vadd.f32 %v7298, %v7373
        %v7375 = vpop.f32.mrf.mxu0
        %7376 = vdwg.mxu0
        %v7377 = vmax.f32 %v7374, 0.0
        %v7378 = vpack.c.bf16 %v7377, %v7377
        %vm7379 = vcmask 519168
        %vm7380 = vsmask.f32 3328
        %vm7381 = vmand %vm7379, %vm7380
        %v7382 = vld [vmem:[#allocation5] sm:$0xf]
        %v7383 = vsel %vm7381, %v7378, %v7382
        %7384 = vst [vmem:[#allocation5] sm:$0xf] %v7383
        %v7385 = vld [vmem:[#allocation4 + $0x20] sm:$0xff]
        %v7386 = vld [vmem:[#allocation4 + $0x28] sm:$0x1f]
        %v7387 = vld [vmem:[#allocation4 + $0x21] sm:$0xff]
        %v7388 = vld [vmem:[#allocation4 + $0x29] sm:$0x1f]
        %v7389 = vmax.f32 %v7385, %v7387
        %v7390 = vmax.f32 %v7386, %v7388
        %v7391 = vld [vmem:[#allocation4 + $0x30] sm:$0xff]
        %v7392 = vld [vmem:[#allocation4 + $0x38] sm:$0x1f]
        %v7393 = vmax.f32 %v7389, %v7391
        %v7394 = vmax.f32 %v7390, %v7392
        %v7395 = vld [vmem:[#allocation4 + $0x31] sm:$0xff]
        %v7396 = vld [vmem:[#allocation4 + $0x39] sm:$0x1f]
        %v7397 = vmax.f32 %v7393, %v7395
        %v7398 = vmax.f32 %v7394, %v7396
        %v7400 = vsel %vm642, %v7398, 0
        %7402 = vmatprep.subr.mxu0 0.0
        %7403 = vmatpush1.msra.mxu0 0.0
        %7404 = vmatprep.subr.mxu0 0.0
        %7405 = vmatpush1.msra.mxu0 0.0
        %7406 = vmatprep.subr.mxu0 0.0
        %7407 = vmatpush1.msra.mxu0 0.0
        %7408 = vmatprep.subr.mxu0 0.0
        %7409 = vmatpush1.msra.mxu0 0.0
        %7410 = vmatprep.subr.mxu0 0.0
        %7411 = vmatpush1.msra.mxu0 0.0
        %7412 = vmatprep.subr.mxu0 0.0
        %7413 = vmatpush1.msra.mxu0 0.0
        %7414 = vmatprep.subr.mxu0 0.0
        %7415 = vmatpush1.msra.mxu0 0.0
        %7416 = vmatprep.subr.mxu0 0.0
        %7417 = vmatpush1.msra.mxu0 0.0
        %7418 = vmatprep.subr.mxu0 0.0
        %7419 = vmatpush1.msra.mxu0 0.0
        %7420 = vmatprep.subr.mxu0 0.0
        %7421 = vmatpush1.msra.mxu0 0.0
        %7422 = vmatprep.subr.mxu0 0.0
        %7423 = vmatpush1.msra.mxu0 0.0
        %7424 = vmatprep.subr.mxu0 0.0
        %7425 = vmatpush1.msra.mxu0 0.0
        %7426 = vmatprep.subr.mxu0 0.0
        %7427 = vmatpush1.msra.mxu0 0.0
        %7428 = vmatprep.subr.mxu0 0.0
        %7429 = vmatpush1.msra.mxu0 0.0
        %7430 = vmatprep.subr.mxu0 0.0
        %7431 = vmatpush1.msra.mxu0 %v7400
        %7432 = vmatprep.subr.mxu0 0.0
        %7433 = vmatpush1.msra.mxu0 %v7397
        %7434 = vmatprep.subr.mxu0 0.0
        %7435 = vmatpush2.msra.mxu0 0.0
        %7436 = vmatprep.subr.mxu0 0.0
        %7437 = vmatpush2.msra.mxu0 0.0
        %7438 = vmatprep.subr.mxu0 0.0
        %7439 = vmatpush2.msra.mxu0 0.0
        %7440 = vmatprep.subr.mxu0 0.0
        %7441 = vmatpush2.msra.mxu0 0.0
        %7442 = vmatprep.subr.mxu0 0.0
        %7443 = vmatpush2.msra.mxu0 0.0
        %7444 = vmatprep.subr.mxu0 0.0
        %7445 = vmatpush2.msra.mxu0 0.0
        %7446 = vmatprep.subr.mxu0 0.0
        %7447 = vmatpush2.msra.mxu0 0.0
        %7448 = vmatprep.subr.mxu0 0.0
        %7449 = vmatpush2.msra.mxu0 0.0
        %7450 = vmatprep.subr.mxu0 0.0
        %7451 = vmatpush2.msra.mxu0 0.0
        %7452 = vmatprep.subr.mxu0 0.0
        %7453 = vmatpush2.msra.mxu0 0.0
        %7454 = vmatprep.subr.mxu0 0.0
        %7455 = vmatpush2.msra.mxu0 0.0
        %7456 = vmatprep.subr.mxu0 0.0
        %7457 = vmatpush2.msra.mxu0 0.0
        %7458 = vmatprep.subr.mxu0 0.0
        %7459 = vmatpush2.msra.mxu0 0.0
        %7460 = vmatprep.subr.mxu0 0.0
        %7461 = vmatpush2.msra.mxu0 0.0
        %7462 = vmatprep.subr.mxu0 0.0
        %7463 = vmatpush2.msra.mxu0 0.0
        %7464 = vmatprep.subr.mxu0 0.0
        %7465 = vmatpush2.msra.mxu0 0.0
        %7466 = vmatprep.mubr.f32.mxu0 0.0
        %7467 = vmatmul.mubr.f32.gmra.mxu0 %v7302
        %v7468 = vpop.f32.mrf.mxu0
        %v7469 = vadd.f32 %v7298, %v7468
        %v7470 = vpop.f32.mrf.mxu0
        %7471 = vdwg.mxu0
        %v7472 = vmax.f32 %v7469, 0.0
        %v7473 = vpack.c.bf16 %v7472, %v7472
        %v7475 = vunpack.c.l.b16 %v7473
        %v7476 = vpack.c.b16 %v7475, %v7475
        %v7478 = vshll.u32 %v7476, 16
        %v7480 = vrot.slane %v7478, 5
        %v7481 = vshrl.u32 %v7476, 16
        %v7483 = vrot.slane %v7481, 4
        %v7484 = vor.u32 %v7483, %v7480
        %v7485 = vrot.slane %v7484, 4
        %vm7488 = vcmask 519171
        %vm7489 = vsmask.f32 7950
        %vm7490 = vmand %vm7488, %vm7489
        %v7491 = vld [vmem:[#allocation5] sm:$0x8]
        %v7492 = vsel %vm7490, %v7480, %v7491
        %7493 = vst [vmem:[#allocation5] sm:$0x8] %v7492
        %vm7494 = vcmask 518144
        %7495 = vst.msk [vmem:[#allocation5 + $0x4] sm:$0x7] %vm7494, %v7485
        %v7496 = vld [vmem:[#allocation4 + $0x40] sm:$0xff]
        %v7497 = vld [vmem:[#allocation4 + $0x48] sm:$0x1f]
        %v7498 = vld [vmem:[#allocation4 + $0x41] sm:$0xff]
        %v7499 = vld [vmem:[#allocation4 + $0x49] sm:$0x1f]
        %v7500 = vmax.f32 %v7496, %v7498
        %v7501 = vmax.f32 %v7497, %v7499
        %v7502 = vld [vmem:[#allocation4 + $0x50] sm:$0xff]
        %v7503 = vld [vmem:[#allocation4 + $0x58] sm:$0x1f]
        %v7504 = vmax.f32 %v7500, %v7502
        %v7505 = vmax.f32 %v7501, %v7503
        %v7506 = vld [vmem:[#allocation4 + $0x51] sm:$0xff]
        %v7507 = vld [vmem:[#allocation4 + $0x59] sm:$0x1f]
        %v7508 = vmax.f32 %v7504, %v7506
        %v7509 = vmax.f32 %v7505, %v7507
        %v7511 = vsel %vm642, %v7509, 0
        %7513 = vmatprep.subr.mxu0 0.0
        %7514 = vmatpush1.msra.mxu0 0.0
        %7515 = vmatprep.subr.mxu0 0.0
        %7516 = vmatpush1.msra.mxu0 0.0
        %7517 = vmatprep.subr.mxu0 0.0
        %7518 = vmatpush1.msra.mxu0 0.0
        %7519 = vmatprep.subr.mxu0 0.0
        %7520 = vmatpush1.msra.mxu0 0.0
        %7521 = vmatprep.subr.mxu0 0.0
        %7522 = vmatpush1.msra.mxu0 0.0
        %7523 = vmatprep.subr.mxu0 0.0
        %7524 = vmatpush1.msra.mxu0 0.0
        %7525 = vmatprep.subr.mxu0 0.0
        %7526 = vmatpush1.msra.mxu0 0.0
        %7527 = vmatprep.subr.mxu0 0.0
        %7528 = vmatpush1.msra.mxu0 0.0
        %7529 = vmatprep.subr.mxu0 0.0
        %7530 = vmatpush1.msra.mxu0 0.0
        %7531 = vmatprep.subr.mxu0 0.0
        %7532 = vmatpush1.msra.mxu0 0.0
        %7533 = vmatprep.subr.mxu0 0.0
        %7534 = vmatpush1.msra.mxu0 0.0
        %7535 = vmatprep.subr.mxu0 0.0
        %7536 = vmatpush1.msra.mxu0 0.0
        %7537 = vmatprep.subr.mxu0 0.0
        %7538 = vmatpush1.msra.mxu0 0.0
        %7539 = vmatprep.subr.mxu0 0.0
        %7540 = vmatpush1.msra.mxu0 0.0
        %7541 = vmatprep.subr.mxu0 0.0
        %7542 = vmatpush1.msra.mxu0 %v7511
        %7543 = vmatprep.subr.mxu0 0.0
        %7544 = vmatpush1.msra.mxu0 %v7508
        %7545 = vmatprep.subr.mxu0 0.0
        %7546 = vmatpush2.msra.mxu0 0.0
        %7547 = vmatprep.subr.mxu0 0.0
        %7548 = vmatpush2.msra.mxu0 0.0
        %7549 = vmatprep.subr.mxu0 0.0
        %7550 = vmatpush2.msra.mxu0 0.0
        %7551 = vmatprep.subr.mxu0 0.0
        %7552 = vmatpush2.msra.mxu0 0.0
        %7553 = vmatprep.subr.mxu0 0.0
        %7554 = vmatpush2.msra.mxu0 0.0
        %7555 = vmatprep.subr.mxu0 0.0
        %7556 = vmatpush2.msra.mxu0 0.0
        %7557 = vmatprep.subr.mxu0 0.0
        %7558 = vmatpush2.msra.mxu0 0.0
        %7559 = vmatprep.subr.mxu0 0.0
        %7560 = vmatpush2.msra.mxu0 0.0
        %7561 = vmatprep.subr.mxu0 0.0
        %7562 = vmatpush2.msra.mxu0 0.0
        %7563 = vmatprep.subr.mxu0 0.0
        %7564 = vmatpush2.msra.mxu0 0.0
        %7565 = vmatprep.subr.mxu0 0.0
        %7566 = vmatpush2.msra.mxu0 0.0
        %7567 = vmatprep.subr.mxu0 0.0
        %7568 = vmatpush2.msra.mxu0 0.0
        %7569 = vmatprep.subr.mxu0 0.0
        %7570 = vmatpush2.msra.mxu0 0.0
        %7571 = vmatprep.subr.mxu0 0.0
        %7572 = vmatpush2.msra.mxu0 0.0
        %7573 = vmatprep.subr.mxu0 0.0
        %7574 = vmatpush2.msra.mxu0 0.0
        %7575 = vmatprep.subr.mxu0 0.0
        %7576 = vmatpush2.msra.mxu0 0.0
        %7577 = vmatprep.mubr.f32.mxu0 0.0
        %7578 = vmatmul.mubr.f32.gmra.mxu0 %v7302
        %v7579 = vpop.f32.mrf.mxu0
        %v7580 = vadd.f32 %v7298, %v7579
        %v7581 = vpop.f32.mrf.mxu0
        %7582 = vdwg.mxu0
        %v7583 = vmax.f32 %v7580, 0.0
        %v7584 = vpack.c.bf16 %v7583, %v7583
        %v7586 = vunpack.c.l.b16 %v7584
        %v7587 = vpack.c.b16 %v7586, %v7586
        %v7588 = vrot.slane %v7587, 5
        %v7589 = vrot.slane %v7588, 4
        %vm7592 = vcmask 519171
        %7593 = vst.msk [vmem:[#allocation5 + $0x4] sm:$0x8] %vm7592, %v7588
        %vm7594 = vcmask 518144
        %vm7595 = vsmask.f32 2304
        %vm7596 = vmand %vm7594, %vm7595
        %v7597 = vld [vmem:[#allocation5 + $0x8] sm:$0x7]
        %v7598 = vsel %vm7596, %v7589, %v7597
        %7599 = vst [vmem:[#allocation5 + $0x8] sm:$0x7] %v7598
        %v7600 = vld [vmem:[#allocation4 + $0x60] sm:$0xff]
        %v7601 = vld [vmem:[#allocation4 + $0x68] sm:$0x1f]
        %v7602 = vld [vmem:[#allocation4 + $0x61] sm:$0xff]
        %v7603 = vld [vmem:[#allocation4 + $0x69] sm:$0x1f]
        %v7604 = vmax.f32 %v7600, %v7602
        %v7605 = vmax.f32 %v7601, %v7603
        %v7606 = vld [vmem:[#allocation4 + $0x70] sm:$0xff]
        %v7607 = vld [vmem:[#allocation4 + $0x78] sm:$0x1f]
        %v7608 = vmax.f32 %v7604, %v7606
        %v7609 = vmax.f32 %v7605, %v7607
        %v7610 = vld [vmem:[#allocation4 + $0x71] sm:$0xff]
        %v7611 = vld [vmem:[#allocation4 + $0x79] sm:$0x1f]
        %v7612 = vmax.f32 %v7608, %v7610
        %v7613 = vmax.f32 %v7609, %v7611
        %v7615 = vsel %vm642, %v7613, 0
        %7617 = vmatprep.subr.mxu0 0.0
        %7618 = vmatpush1.msra.mxu0 0.0
        %7619 = vmatprep.subr.mxu0 0.0
        %7620 = vmatpush1.msra.mxu0 0.0
        %7621 = vmatprep.subr.mxu0 0.0
        %7622 = vmatpush1.msra.mxu0 0.0
        %7623 = vmatprep.subr.mxu0 0.0
        %7624 = vmatpush1.msra.mxu0 0.0
        %7625 = vmatprep.subr.mxu0 0.0
        %7626 = vmatpush1.msra.mxu0 0.0
        %7627 = vmatprep.subr.mxu0 0.0
        %7628 = vmatpush1.msra.mxu0 0.0
        %7629 = vmatprep.subr.mxu0 0.0
        %7630 = vmatpush1.msra.mxu0 0.0
        %7631 = vmatprep.subr.mxu0 0.0
        %7632 = vmatpush1.msra.mxu0 0.0
        %7633 = vmatprep.subr.mxu0 0.0
        %7634 = vmatpush1.msra.mxu0 0.0
        %7635 = vmatprep.subr.mxu0 0.0
        %7636 = vmatpush1.msra.mxu0 0.0
        %7637 = vmatprep.subr.mxu0 0.0
        %7638 = vmatpush1.msra.mxu0 0.0
        %7639 = vmatprep.subr.mxu0 0.0
        %7640 = vmatpush1.msra.mxu0 0.0
        %7641 = vmatprep.subr.mxu0 0.0
        %7642 = vmatpush1.msra.mxu0 0.0
        %7643 = vmatprep.subr.mxu0 0.0
        %7644 = vmatpush1.msra.mxu0 0.0
        %7645 = vmatprep.subr.mxu0 0.0
        %7646 = vmatpush1.msra.mxu0 %v7615
        %7647 = vmatprep.subr.mxu0 0.0
        %7648 = vmatpush1.msra.mxu0 %v7612
        %7649 = vmatprep.subr.mxu0 0.0
        %7650 = vmatpush2.msra.mxu0 0.0
        %7651 = vmatprep.subr.mxu0 0.0
        %7652 = vmatpush2.msra.mxu0 0.0
        %7653 = vmatprep.subr.mxu0 0.0
        %7654 = vmatpush2.msra.mxu0 0.0
        %7655 = vmatprep.subr.mxu0 0.0
        %7656 = vmatpush2.msra.mxu0 0.0
        %7657 = vmatprep.subr.mxu0 0.0
        %7658 = vmatpush2.msra.mxu0 0.0
        %7659 = vmatprep.subr.mxu0 0.0
        %7660 = vmatpush2.msra.mxu0 0.0
        %7661 = vmatprep.subr.mxu0 0.0
        %7662 = vmatpush2.msra.mxu0 0.0
        %7663 = vmatprep.subr.mxu0 0.0
        %7664 = vmatpush2.msra.mxu0 0.0
        %7665 = vmatprep.subr.mxu0 0.0
        %7666 = vmatpush2.msra.mxu0 0.0
        %7667 = vmatprep.subr.mxu0 0.0
        %7668 = vmatpush2.msra.mxu0 0.0
        %7669 = vmatprep.subr.mxu0 0.0
        %7670 = vmatpush2.msra.mxu0 0.0
        %7671 = vmatprep.subr.mxu0 0.0
        %7672 = vmatpush2.msra.mxu0 0.0
        %7673 = vmatprep.subr.mxu0 0.0
        %7674 = vmatpush2.msra.mxu0 0.0
        %7675 = vmatprep.subr.mxu0 0.0
        %7676 = vmatpush2.msra.mxu0 0.0
        %7677 = vmatprep.subr.mxu0 0.0
        %7678 = vmatpush2.msra.mxu0 0.0
        %7679 = vmatprep.subr.mxu0 0.0
        %7680 = vmatpush2.msra.mxu0 0.0
        %7681 = vmatprep.mubr.f32.mxu0 0.0
        %7682 = vmatmul.mubr.f32.gmra.mxu0 %v7302
        %v7683 = vpop.f32.mrf.mxu0
        %v7684 = vadd.f32 %v7298, %v7683
        %v7685 = vpop.f32.mrf.mxu0
        %7686 = vdwg.mxu0
        %v7687 = vmax.f32 %v7684, 0.0
        %v7688 = vpack.c.bf16 %v7687, %v7687
        %v7690 = vunpack.c.l.b16 %v7688
        %v7691 = vpack.c.b16 %v7690, %v7690
        %v7693 = vshrl.u32 %v7691, 16
        %v7695 = vrot.slane %v7693, 5
        %v7696 = vshll.u32 %v7691, 16
        %v7698 = vrot.slane %v7696, 6
        %v7699 = vor.u32 %v7695, %v7698
        %v7700 = vrot.slane %v7699, 4
        %vm7703 = vcmask 519170
        %vm7704 = vsmask.f32 7946
        %vm7705 = vmand %vm7703, %vm7704
        %v7706 = vld [vmem:[#allocation5 + $0x8] sm:$0xc]
        %v7707 = vsel %vm7705, %v7699, %v7706
        %7708 = vst [vmem:[#allocation5 + $0x8] sm:$0xc] %v7707
        %vm7709 = vcmask 517120
        %7710 = vst.msk [vmem:[#allocation5 + $0xc] sm:$0x3] %vm7709, %v7700
        %v7711 = vld [vmem:[#allocation4 + $0x80] sm:$0xff]
        %v7712 = vld [vmem:[#allocation4 + $0x88] sm:$0x1f]
        %v7713 = vld [vmem:[#allocation4 + $0x81] sm:$0xff]
        %v7714 = vld [vmem:[#allocation4 + $0x89] sm:$0x1f]
        %v7715 = vmax.f32 %v7711, %v7713
        %v7716 = vmax.f32 %v7712, %v7714
        %v7717 = vld [vmem:[#allocation4 + $0x90] sm:$0xff]
        %v7718 = vld [vmem:[#allocation4 + $0x98] sm:$0x1f]
        %v7719 = vmax.f32 %v7715, %v7717
        %v7720 = vmax.f32 %v7716, %v7718
        %v7721 = vld [vmem:[#allocation4 + $0x91] sm:$0xff]
        %v7722 = vld [vmem:[#allocation4 + $0x99] sm:$0x1f]
        %v7723 = vmax.f32 %v7719, %v7721
        %v7724 = vmax.f32 %v7720, %v7722
        %v7726 = vsel %vm642, %v7724, 0
        %7728 = vmatprep.subr.mxu0 0.0
        %7729 = vmatpush1.msra.mxu0 0.0
        %7730 = vmatprep.subr.mxu0 0.0
        %7731 = vmatpush1.msra.mxu0 0.0
        %7732 = vmatprep.subr.mxu0 0.0
        %7733 = vmatpush1.msra.mxu0 0.0
        %7734 = vmatprep.subr.mxu0 0.0
        %7735 = vmatpush1.msra.mxu0 0.0
        %7736 = vmatprep.subr.mxu0 0.0
        %7737 = vmatpush1.msra.mxu0 0.0
        %7738 = vmatprep.subr.mxu0 0.0
        %7739 = vmatpush1.msra.mxu0 0.0
        %7740 = vmatprep.subr.mxu0 0.0
        %7741 = vmatpush1.msra.mxu0 0.0
        %7742 = vmatprep.subr.mxu0 0.0
        %7743 = vmatpush1.msra.mxu0 0.0
        %7744 = vmatprep.subr.mxu0 0.0
        %7745 = vmatpush1.msra.mxu0 0.0
        %7746 = vmatprep.subr.mxu0 0.0
        %7747 = vmatpush1.msra.mxu0 0.0
        %7748 = vmatprep.subr.mxu0 0.0
        %7749 = vmatpush1.msra.mxu0 0.0
        %7750 = vmatprep.subr.mxu0 0.0
        %7751 = vmatpush1.msra.mxu0 0.0
        %7752 = vmatprep.subr.mxu0 0.0
        %7753 = vmatpush1.msra.mxu0 0.0
        %7754 = vmatprep.subr.mxu0 0.0
        %7755 = vmatpush1.msra.mxu0 0.0
        %7756 = vmatprep.subr.mxu0 0.0
        %7757 = vmatpush1.msra.mxu0 %v7726
        %7758 = vmatprep.subr.mxu0 0.0
        %7759 = vmatpush1.msra.mxu0 %v7723
        %7760 = vmatprep.subr.mxu0 0.0
        %7761 = vmatpush2.msra.mxu0 0.0
        %7762 = vmatprep.subr.mxu0 0.0
        %7763 = vmatpush2.msra.mxu0 0.0
        %7764 = vmatprep.subr.mxu0 0.0
        %7765 = vmatpush2.msra.mxu0 0.0
        %7766 = vmatprep.subr.mxu0 0.0
        %7767 = vmatpush2.msra.mxu0 0.0
        %7768 = vmatprep.subr.mxu0 0.0
        %7769 = vmatpush2.msra.mxu0 0.0
        %7770 = vmatprep.subr.mxu0 0.0
        %7771 = vmatpush2.msra.mxu0 0.0
        %7772 = vmatprep.subr.mxu0 0.0
        %7773 = vmatpush2.msra.mxu0 0.0
        %7774 = vmatprep.subr.mxu0 0.0
        %7775 = vmatpush2.msra.mxu0 0.0
        %7776 = vmatprep.subr.mxu0 0.0
        %7777 = vmatpush2.msra.mxu0 0.0
        %7778 = vmatprep.subr.mxu0 0.0
        %7779 = vmatpush2.msra.mxu0 0.0
        %7780 = vmatprep.subr.mxu0 0.0
        %7781 = vmatpush2.msra.mxu0 0.0
        %7782 = vmatprep.subr.mxu0 0.0
        %7783 = vmatpush2.msra.mxu0 0.0
        %7784 = vmatprep.subr.mxu0 0.0
        %7785 = vmatpush2.msra.mxu0 0.0
        %7786 = vmatprep.subr.mxu0 0.0
        %7787 = vmatpush2.msra.mxu0 0.0
        %7788 = vmatprep.subr.mxu0 0.0
        %7789 = vmatpush2.msra.mxu0 0.0
        %7790 = vmatprep.subr.mxu0 0.0
        %7791 = vmatpush2.msra.mxu0 0.0
        %7792 = vmatprep.mubr.f32.mxu0 0.0
        %7793 = vmatmul.mubr.f32.gmra.mxu0 %v7302
        %v7794 = vpop.f32.mrf.mxu0
        %v7795 = vadd.f32 %v7298, %v7794
        %v7796 = vpop.f32.mrf.mxu0
        %7797 = vdwg.mxu0
        %v7798 = vmax.f32 %v7795, 0.0
        %v7799 = vpack.c.bf16 %v7798, %v7798
        %v7801 = vunpack.c.l.b16 %v7799
        %v7802 = vpack.c.b16 %v7801, %v7801
        %v7803 = vrot.slane %v7802, 6
        %v7804 = vrot.slane %v7803, 4
        %vm7807 = vcmask 519170
        %7808 = vst.msk [vmem:[#allocation5 + $0xc] sm:$0xc] %vm7807, %v7803
        %vm7809 = vcmask 517120
        %vm7810 = vsmask.f32 1280
        %vm7811 = vmand %vm7809, %vm7810
        %v7812 = vld [vmem:[#allocation5 + $0x10] sm:$0x3]
        %v7813 = vsel %vm7811, %v7804, %v7812
        %7814 = vst [vmem:[#allocation5 + $0x10] sm:$0x3] %v7813
        %v7815 = vld [vmem:[#allocation4 + $0xa0] sm:$0xff]
        %v7816 = vld [vmem:[#allocation4 + $0xa8] sm:$0x1f]
        %v7817 = vld [vmem:[#allocation4 + $0xa1] sm:$0xff]
        %v7818 = vld [vmem:[#allocation4 + $0xa9] sm:$0x1f]
        %v7819 = vmax.f32 %v7815, %v7817
        %v7820 = vmax.f32 %v7816, %v7818
        %v7821 = vld [vmem:[#allocation4 + $0xb0] sm:$0xff]
        %v7822 = vld [vmem:[#allocation4 + $0xb8] sm:$0x1f]
        %v7823 = vmax.f32 %v7819, %v7821
        %v7824 = vmax.f32 %v7820, %v7822
        %v7825 = vld [vmem:[#allocation4 + $0xb1] sm:$0xff]
        %v7826 = vld [vmem:[#allocation4 + $0xb9] sm:$0x1f]
        %v7827 = vmax.f32 %v7823, %v7825
        %v7828 = vmax.f32 %v7824, %v7826
        %v7830 = vsel %vm642, %v7828, 0
        %7832 = vmatprep.subr.mxu0 0.0
        %7833 = vmatpush1.msra.mxu0 0.0
        %7834 = vmatprep.subr.mxu0 0.0
        %7835 = vmatpush1.msra.mxu0 0.0
        %7836 = vmatprep.subr.mxu0 0.0
        %7837 = vmatpush1.msra.mxu0 0.0
        %7838 = vmatprep.subr.mxu0 0.0
        %7839 = vmatpush1.msra.mxu0 0.0
        %7840 = vmatprep.subr.mxu0 0.0
        %7841 = vmatpush1.msra.mxu0 0.0
        %7842 = vmatprep.subr.mxu0 0.0
        %7843 = vmatpush1.msra.mxu0 0.0
        %7844 = vmatprep.subr.mxu0 0.0
        %7845 = vmatpush1.msra.mxu0 0.0
        %7846 = vmatprep.subr.mxu0 0.0
        %7847 = vmatpush1.msra.mxu0 0.0
        %7848 = vmatprep.subr.mxu0 0.0
        %7849 = vmatpush1.msra.mxu0 0.0
        %7850 = vmatprep.subr.mxu0 0.0
        %7851 = vmatpush1.msra.mxu0 0.0
        %7852 = vmatprep.subr.mxu0 0.0
        %7853 = vmatpush1.msra.mxu0 0.0
        %7854 = vmatprep.subr.mxu0 0.0
        %7855 = vmatpush1.msra.mxu0 0.0
        %7856 = vmatprep.subr.mxu0 0.0
        %7857 = vmatpush1.msra.mxu0 0.0
        %7858 = vmatprep.subr.mxu0 0.0
        %7859 = vmatpush1.msra.mxu0 0.0
        %7860 = vmatprep.subr.mxu0 0.0
        %7861 = vmatpush1.msra.mxu0 %v7830
        %7862 = vmatprep.subr.mxu0 0.0
        %7863 = vmatpush1.msra.mxu0 %v7827
        %7864 = vmatprep.subr.mxu0 0.0
        %7865 = vmatpush2.msra.mxu0 0.0
        %7866 = vmatprep.subr.mxu0 0.0
        %7867 = vmatpush2.msra.mxu0 0.0
        %7868 = vmatprep.subr.mxu0 0.0
        %7869 = vmatpush2.msra.mxu0 0.0
        %7870 = vmatprep.subr.mxu0 0.0
        %7871 = vmatpush2.msra.mxu0 0.0
        %7872 = vmatprep.subr.mxu0 0.0
        %7873 = vmatpush2.msra.mxu0 0.0
        %7874 = vmatprep.subr.mxu0 0.0
        %7875 = vmatpush2.msra.mxu0 0.0
        %7876 = vmatprep.subr.mxu0 0.0
        %7877 = vmatpush2.msra.mxu0 0.0
        %7878 = vmatprep.subr.mxu0 0.0
        %7879 = vmatpush2.msra.mxu0 0.0
        %7880 = vmatprep.subr.mxu0 0.0
        %7881 = vmatpush2.msra.mxu0 0.0
        %7882 = vmatprep.subr.mxu0 0.0
        %7883 = vmatpush2.msra.mxu0 0.0
        %7884 = vmatprep.subr.mxu0 0.0
        %7885 = vmatpush2.msra.mxu0 0.0
        %7886 = vmatprep.subr.mxu0 0.0
        %7887 = vmatpush2.msra.mxu0 0.0
        %7888 = vmatprep.subr.mxu0 0.0
        %7889 = vmatpush2.msra.mxu0 0.0
        %7890 = vmatprep.subr.mxu0 0.0
        %7891 = vmatpush2.msra.mxu0 0.0
        %7892 = vmatprep.subr.mxu0 0.0
        %7893 = vmatpush2.msra.mxu0 0.0
        %7894 = vmatprep.subr.mxu0 0.0
        %7895 = vmatpush2.msra.mxu0 0.0
        %7896 = vmatprep.mubr.f32.mxu0 0.0
        %7897 = vmatmul.mubr.f32.gmra.mxu0 %v7302
        %v7898 = vpop.f32.mrf.mxu0
        %v7899 = vadd.f32 %v7298, %v7898
        %v7900 = vpop.f32.mrf.mxu0
        %7901 = vdwg.mxu0
        %v7902 = vmax.f32 %v7899, 0.0
        %v7903 = vpack.c.bf16 %v7902, %v7902
        %v7905 = vunpack.c.l.b16 %v7903
        %v7906 = vpack.c.b16 %v7905, %v7905
        %v7908 = vshrl.u32 %v7906, 16
        %v7910 = vrot.slane %v7908, 6
        %v7911 = vshll.u32 %v7906, 16
        %v7913 = vrot.slane %v7911, 7
        %v7914 = vor.u32 %v7910, %v7913
        %v7915 = vrot.slane %v7914, 4
        %vm7918 = vcmask 519169
        %vm7919 = vsmask.f32 7942
        %vm7920 = vmand %vm7918, %vm7919
        %v7921 = vld [vmem:[#allocation5 + $0x10] sm:$0xe]
        %v7922 = vsel %vm7920, %v7914, %v7921
        %7923 = vst [vmem:[#allocation5 + $0x10] sm:$0xe] %v7922
        %vm7924 = vcmask 516096
        %7925 = vst.msk [vmem:[#allocation5 + $0x14] sm:$0x1] %vm7924, %v7915
        %v7926 = vld [vmem:[#allocation4 + $0xc0] sm:$0xff]
        %v7927 = vld [vmem:[#allocation4 + $0xc8] sm:$0x1f]
        %v7928 = vld [vmem:[#allocation4 + $0xc1] sm:$0xff]
        %v7929 = vld [vmem:[#allocation4 + $0xc9] sm:$0x1f]
        %v7930 = vmax.f32 %v7926, %v7928
        %v7931 = vmax.f32 %v7927, %v7929
        %v7932 = vld [vmem:[#allocation4 + $0xd0] sm:$0xff]
        %v7933 = vld [vmem:[#allocation4 + $0xd8] sm:$0x1f]
        %v7934 = vmax.f32 %v7930, %v7932
        %v7935 = vmax.f32 %v7931, %v7933
        %v7936 = vld [vmem:[#allocation4 + $0xd1] sm:$0xff]
        %v7937 = vld [vmem:[#allocation4 + $0xd9] sm:$0x1f]
        %v7938 = vmax.f32 %v7934, %v7936
        %v7939 = vmax.f32 %v7935, %v7937
        %v7941 = vsel %vm642, %v7939, 0
        %7943 = vmatprep.subr.mxu0 0.0
        %7944 = vmatpush1.msra.mxu0 0.0
        %7945 = vmatprep.subr.mxu0 0.0
        %7946 = vmatpush1.msra.mxu0 0.0
        %7947 = vmatprep.subr.mxu0 0.0
        %7948 = vmatpush1.msra.mxu0 0.0
        %7949 = vmatprep.subr.mxu0 0.0
        %7950 = vmatpush1.msra.mxu0 0.0
        %7951 = vmatprep.subr.mxu0 0.0
        %7952 = vmatpush1.msra.mxu0 0.0
        %7953 = vmatprep.subr.mxu0 0.0
        %7954 = vmatpush1.msra.mxu0 0.0
        %7955 = vmatprep.subr.mxu0 0.0
        %7956 = vmatpush1.msra.mxu0 0.0
        %7957 = vmatprep.subr.mxu0 0.0
        %7958 = vmatpush1.msra.mxu0 0.0
        %7959 = vmatprep.subr.mxu0 0.0
        %7960 = vmatpush1.msra.mxu0 0.0
        %7961 = vmatprep.subr.mxu0 0.0
        %7962 = vmatpush1.msra.mxu0 0.0
        %7963 = vmatprep.subr.mxu0 0.0
        %7964 = vmatpush1.msra.mxu0 0.0
        %7965 = vmatprep.subr.mxu0 0.0
        %7966 = vmatpush1.msra.mxu0 0.0
        %7967 = vmatprep.subr.mxu0 0.0
        %7968 = vmatpush1.msra.mxu0 0.0
        %7969 = vmatprep.subr.mxu0 0.0
        %7970 = vmatpush1.msra.mxu0 0.0
        %7971 = vmatprep.subr.mxu0 0.0
        %7972 = vmatpush1.msra.mxu0 %v7941
        %7973 = vmatprep.subr.mxu0 0.0
        %7974 = vmatpush1.msra.mxu0 %v7938
        %7975 = vmatprep.subr.mxu0 0.0
        %7976 = vmatpush2.msra.mxu0 0.0
        %7977 = vmatprep.subr.mxu0 0.0
        %7978 = vmatpush2.msra.mxu0 0.0
        %7979 = vmatprep.subr.mxu0 0.0
        %7980 = vmatpush2.msra.mxu0 0.0
        %7981 = vmatprep.subr.mxu0 0.0
        %7982 = vmatpush2.msra.mxu0 0.0
        %7983 = vmatprep.subr.mxu0 0.0
        %7984 = vmatpush2.msra.mxu0 0.0
        %7985 = vmatprep.subr.mxu0 0.0
        %7986 = vmatpush2.msra.mxu0 0.0
        %7987 = vmatprep.subr.mxu0 0.0
        %7988 = vmatpush2.msra.mxu0 0.0
        %7989 = vmatprep.subr.mxu0 0.0
        %7990 = vmatpush2.msra.mxu0 0.0
        %7991 = vmatprep.subr.mxu0 0.0
        %7992 = vmatpush2.msra.mxu0 0.0
        %7993 = vmatprep.subr.mxu0 0.0
        %7994 = vmatpush2.msra.mxu0 0.0
        %7995 = vmatprep.subr.mxu0 0.0
        %7996 = vmatpush2.msra.mxu0 0.0
        %7997 = vmatprep.subr.mxu0 0.0
        %7998 = vmatpush2.msra.mxu0 0.0
        %7999 = vmatprep.subr.mxu0 0.0
        %8000 = vmatpush2.msra.mxu0 0.0
        %8001 = vmatprep.subr.mxu0 0.0
        %8002 = vmatpush2.msra.mxu0 0.0
        %8003 = vmatprep.subr.mxu0 0.0
        %8004 = vmatpush2.msra.mxu0 0.0
        %8005 = vmatprep.subr.mxu0 0.0
        %8006 = vmatpush2.msra.mxu0 0.0
        %8007 = vmatprep.mubr.f32.mxu0 0.0
        %8008 = vmatmul.mubr.f32.gmra.mxu0 %v7302
        %v8009 = vpop.f32.mrf.mxu0
        %v8010 = vadd.f32 %v7298, %v8009
        %v8011 = vpop.f32.mrf.mxu0
        %8012 = vdwg.mxu0
        %v8013 = vmax.f32 %v8010, 0.0
        %v8014 = vpack.c.bf16 %v8013, %v8013
        %v8016 = vunpack.c.l.b16 %v8014
        %v8017 = vpack.c.b16 %v8016, %v8016
        %v8018 = vrot.slane %v8017, 7
        %v8019 = vrot.slane %v8018, 4
        %vm8022 = vcmask 519169
        %8023 = vst.msk [vmem:[#allocation5 + $0x14] sm:$0xe] %vm8022, %v8018
        %vm8024 = vcmask 516096
        %vm8025 = vsmask.f32 256
        %vm8026 = vmand %vm8024, %vm8025
        %v8027 = vld [vmem:[#allocation5 + $0x18] sm:$0x1]
        %v8028 = vsel %vm8026, %v8019, %v8027
        %8029 = vst [vmem:[#allocation5 + $0x18] sm:$0x1] %v8028
        %v8030 = vld [vmem:[#allocation5] sm:$0xf]
        %v8031 = vld [vmem:[#allocation5 + $0x4] sm:$0xf]
        %v8032 = vld [vmem:[#allocation5 + $0x8] sm:$0xf]
        %v8033 = vld [vmem:[#allocation5 + $0xc] sm:$0xf]
        %v8034 = vld [vmem:[#allocation5 + $0x10] sm:$0x1]
        %v8035 = vld [vmem:[%s5] sm:$0xf]
        %v8036 = vld [vmem:[%s5 + $0x4] sm:$0xf]
        %v8037 = vld [vmem:[%s5 + $0x8] sm:$0xf]
        %v8038 = vld [vmem:[%s5 + $0xc] sm:$0xf]
        %v8039 = vld [vmem:[%s5 + $0x10] sm:$0xf]
        %v8040 = vld [vmem:[%s5 + $0x14] sm:$0xf]
        %v8041 = vld [vmem:[%s5 + $0x18] sm:$0xf]
        %v8042 = vld [vmem:[%s5 + $0x1c] sm:$0xf]
        %v8043 = vld [vmem:[%s5 + $0x20] sm:$0xf]
        %v8044 = vld [vmem:[%s5 + $0x24] sm:$0xf]
        %v8045 = vld [vmem:[%s5 + $0x28] sm:$0xf]
        %v8046 = vld [vmem:[%s5 + $0x2c] sm:$0xf]
        %v8047 = vld [vmem:[%s5 + $0x30] sm:$0xf]
        %v8048 = vld [vmem:[%s5 + $0x34] sm:$0xf]
        %v8049 = vld [vmem:[%s5 + $0x38] sm:$0xf]
        %v8050 = vld [vmem:[%s5 + $0x3c] sm:$0xf]
        %v8056 = vunpack.c.l.b16 %v8030
        %v8057 = vunpack.c.l.b16 %v8031
        %v8058 = vunpack.c.l.b16 %v8032
        %v8059 = vunpack.c.l.b16 %v8033
        %v8060 = vunpack.c.l.b16 %v8034
        %v8061 = vpack.c.b16 %v8057, %v8056
        %v8062 = vpack.c.b16 %v8059, %v8058
        %v8063 = vpack.c.b16 %v8060, %v8060
        %v8065 = vshrl.u32 %v8061, 16
        %v8067 = vshll.u32 %v8061, 16
        %v8069 = vrot.slane %v8067, 1
        %v8070 = vor.u32 %v8065, %v8069
        %v8072 = vshll.u32 %v8062, 16
        %v8074 = vrot.slane %v8072, 1
        %v8075 = vsel %vm3990, %v8070, %v8074
        %v8076 = vshrl.u32 %v8062, 16
        %v8078 = vor.u32 %v8076, %v8074
        %v8080 = vshll.u32 %v8063, 16
        %v8082 = vrot.slane %v8080, 1
        %v8083 = vsel %vm3990, %v8078, %v8082
        %v8084 = vshrl.u32 %v8063, 16
        %v8094 = vunpack.c.l.b16 %v8043
        %v8095 = vunpack.c.l.b16 %v8044
        %v8096 = vunpack.c.l.b16 %v8045
        %v8097 = vunpack.c.l.b16 %v8046
        %v8098 = vunpack.c.l.b16 %v8047
        %v8099 = vunpack.c.l.b16 %v8048
        %v8100 = vunpack.c.l.b16 %v8049
        %v8101 = vunpack.c.l.b16 %v8050
        %v8102 = vpack.c.b16 %v8095, %v8094
        %v8103 = vpack.c.b16 %v8097, %v8096
        %v8104 = vpack.c.b16 %v8099, %v8098
        %v8105 = vpack.c.b16 %v8101, %v8100
        %v8111 = vsel %vm5820, %v8075, 0
        %v8114 = vsel %vm5820, %v8083, 0
        %v8117 = vsel %vm5820, %v8084, 0
        %8119 = vmatprep.subr.bf16.mxu0 0
        %8120 = vmatpush1.bf16.msra.mxu0 0
        %8121 = vmatprep.subr.bf16.mxu0 0
        %8122 = vmatpush1.bf16.msra.mxu0 0
        %8123 = vmatprep.subr.bf16.mxu0 0
        %8124 = vmatpush1.bf16.msra.mxu0 0
        %8125 = vmatprep.subr.bf16.mxu0 0
        %8126 = vmatpush1.bf16.msra.mxu0 0
        %8127 = vmatprep.subr.bf16.mxu0 0
        %8128 = vmatpush1.bf16.msra.mxu0 %v8105
        %8129 = vmatprep.subr.bf16.mxu0 0
        %8130 = vmatpush1.bf16.msra.mxu0 %v8104
        %8131 = vmatprep.subr.bf16.mxu0 0
        %8132 = vmatpush1.bf16.msra.mxu0 %v8103
        %8133 = vmatprep.subr.bf16.mxu0 0
        %8134 = vmatpush1.bf16.msra.mxu0 %v8102
        %8135 = vmatprep.subr.bf16.mxu0 0
        %8136 = vmatpush2.bf16.msra.mxu0 0
        %8137 = vmatprep.subr.bf16.mxu0 0
        %8138 = vmatpush2.bf16.msra.mxu0 0
        %8139 = vmatprep.subr.bf16.mxu0 0
        %8140 = vmatpush2.bf16.msra.mxu0 0
        %8141 = vmatprep.subr.bf16.mxu0 0
        %8142 = vmatpush2.bf16.msra.mxu0 0
        %8143 = vmatprep.subr.bf16.mxu0 0
        %8144 = vmatpush2.bf16.msra.mxu0 0
        %8145 = vmatprep.subr.bf16.mxu0 0
        %8146 = vmatpush2.bf16.msra.mxu0 0
        %8147 = vmatprep.subr.bf16.mxu0 0
        %8148 = vmatpush2.bf16.msra.mxu0 0
        %8149 = vmatprep.subr.bf16.mxu0 0
        %8150 = vmatpush2.bf16.msra.mxu0 0
        %8151 = vmatprep.mubr.bf16.mxu0 0
        %8152 = vmatmul.mubr.bf16.gmra.mxu0 %v8111
        %v8153 = vpop.f32.mrf.mxu0
        %v8154 = vadd.f32 0.0, %v8153
        %v8155 = vpop.f32.mrf.mxu0
        %v8156 = vpop.f32.mrf.mxu0
        %v8157 = vadd.f32 0.0, %v8156
        %v8158 = vpop.f32.mrf.mxu0
        %8159 = vmatprep.mubr.bf16.mxu0 0
        %8160 = vmatmul.mubr.bf16.gmra.mxu0 %v8114
        %v8161 = vpop.f32.mrf.mxu0
        %v8162 = vadd.f32 0.0, %v8161
        %v8163 = vpop.f32.mrf.mxu0
        %v8164 = vpop.f32.mrf.mxu0
        %v8165 = vadd.f32 0.0, %v8164
        %v8166 = vpop.f32.mrf.mxu0
        %8167 = vmatprep.mubr.bf16.mxu0 0
        %8168 = vmatmul.mubr.bf16.gmra.mxu0 %v8117
        %v8169 = vpop.f32.mrf.mxu0
        %v8170 = vadd.f32 0.0, %v8169
        %v8171 = vpop.f32.mrf.mxu0
        %v8172 = vpop.f32.mrf.mxu0
        %v8173 = vpop.f32.mrf.mxu0
        %8174 = vdwg.mxu0
        %v8183 = vunpack.c.l.b16 %v8035
        %v8184 = vunpack.c.l.b16 %v8036
        %v8185 = vunpack.c.l.b16 %v8037
        %v8186 = vunpack.c.l.b16 %v8038
        %v8187 = vunpack.c.l.b16 %v8039
        %v8188 = vunpack.c.l.b16 %v8040
        %v8189 = vunpack.c.l.b16 %v8041
        %v8190 = vunpack.c.l.b16 %v8042
        %v8191 = vpack.c.b16 %v8184, %v8183
        %v8192 = vpack.c.b16 %v8186, %v8185
        %v8193 = vpack.c.b16 %v8188, %v8187
        %v8194 = vpack.c.b16 %v8190, %v8189
        %v8199 = vsel %vm5820, %v8061, 0
        %v8201 = vsel %vm5820, %v8062, 0
        %v8203 = vsel %vm5820, %v8063, 0
        %8205 = vmatprep.subr.bf16.mxu0 0
        %8206 = vmatpush1.bf16.msra.mxu0 0
        %8207 = vmatprep.subr.bf16.mxu0 0
        %8208 = vmatpush1.bf16.msra.mxu0 0
        %8209 = vmatprep.subr.bf16.mxu0 0
        %8210 = vmatpush1.bf16.msra.mxu0 0
        %8211 = vmatprep.subr.bf16.mxu0 0
        %8212 = vmatpush1.bf16.msra.mxu0 0
        %8213 = vmatprep.subr.bf16.mxu0 0
        %8214 = vmatpush1.bf16.msra.mxu0 %v8194
        %8215 = vmatprep.subr.bf16.mxu0 0
        %8216 = vmatpush1.bf16.msra.mxu0 %v8193
        %8217 = vmatprep.subr.bf16.mxu0 0
        %8218 = vmatpush1.bf16.msra.mxu0 %v8192
        %8219 = vmatprep.subr.bf16.mxu0 0
        %8220 = vmatpush1.bf16.msra.mxu0 %v8191
        %8221 = vmatprep.subr.bf16.mxu0 0
        %8222 = vmatpush2.bf16.msra.mxu0 0
        %8223 = vmatprep.subr.bf16.mxu0 0
        %8224 = vmatpush2.bf16.msra.mxu0 0
        %8225 = vmatprep.subr.bf16.mxu0 0
        %8226 = vmatpush2.bf16.msra.mxu0 0
        %8227 = vmatprep.subr.bf16.mxu0 0
        %8228 = vmatpush2.bf16.msra.mxu0 0
        %8229 = vmatprep.subr.bf16.mxu0 0
        %8230 = vmatpush2.bf16.msra.mxu0 0
        %8231 = vmatprep.subr.bf16.mxu0 0
        %8232 = vmatpush2.bf16.msra.mxu0 0
        %8233 = vmatprep.subr.bf16.mxu0 0
        %8234 = vmatpush2.bf16.msra.mxu0 0
        %8235 = vmatprep.subr.bf16.mxu0 0
        %8236 = vmatpush2.bf16.msra.mxu0 0
        %8237 = vmatprep.mubr.bf16.mxu0 0
        %8238 = vmatmul.mubr.bf16.gmra.mxu0 %v8199
        %v8239 = vpop.f32.mrf.mxu0
        %v8240 = vadd.f32 %v8154, %v8239
        %v8241 = vpop.f32.mrf.mxu0
        %v8242 = vpop.f32.mrf.mxu0
        %v8243 = vadd.f32 %v8157, %v8242
        %v8244 = vpop.f32.mrf.mxu0
        %8245 = vmatprep.mubr.bf16.mxu0 0
        %8246 = vmatmul.mubr.bf16.gmra.mxu0 %v8201
        %v8247 = vpop.f32.mrf.mxu0
        %v8248 = vadd.f32 %v8162, %v8247
        %v8249 = vpop.f32.mrf.mxu0
        %v8250 = vpop.f32.mrf.mxu0
        %v8251 = vadd.f32 %v8165, %v8250
        %v8252 = vpop.f32.mrf.mxu0
        %8253 = vmatprep.mubr.bf16.mxu0 0
        %8254 = vmatmul.mubr.bf16.gmra.mxu0 %v8203
        %v8255 = vpop.f32.mrf.mxu0
        %v8256 = vadd.f32 %v8170, %v8255
        %v8257 = vpop.f32.mrf.mxu0
        %v8258 = vpop.f32.mrf.mxu0
        %v8259 = vpop.f32.mrf.mxu0
        %8260 = vdwg.mxu0
        %v8261 = vld [vmem:[#allocation5] sm:$0xe]
        %v8262 = vld [vmem:[#allocation5 + $0x10] sm:$0x3]
        %v8263 = vld [vmem:[%s5 + $0x40] sm:$0xf]
        %v8264 = vld [vmem:[%s5 + $0x44] sm:$0xf]
        %v8265 = vld [vmem:[%s5 + $0x48] sm:$0xf]
        %v8266 = vld [vmem:[%s5 + $0x4c] sm:$0xf]
        %v8267 = vld [vmem:[%s5 + $0x50] sm:$0xf]
        %v8268 = vld [vmem:[%s5 + $0x54] sm:$0xf]
        %v8269 = vld [vmem:[%s5 + $0x58] sm:$0xf]
        %v8270 = vld [vmem:[%s5 + $0x5c] sm:$0xf]
        %v8273 = vunpack.c.l.b16 %v8261
        %v8274 = vunpack.c.l.b16 %v8262
        %v8275 = vpack.c.b16 %v8057, %v8273
        %v8276 = vpack.c.b16 %v8274, %v8274
        %v8277 = vrot.slane %v8275, 1
        %v8278 = vrot.slane %v8062, 1
        %v8279 = vsel %vm4325, %v8277, %v8278
        %v8280 = vrot.slane %v8276, 1
        %v8281 = vsel %vm4325, %v8278, %v8280
        %v8290 = vunpack.c.l.b16 %v8263
        %v8291 = vunpack.c.l.b16 %v8264
        %v8292 = vunpack.c.l.b16 %v8265
        %v8293 = vunpack.c.l.b16 %v8266
        %v8294 = vunpack.c.l.b16 %v8267
        %v8295 = vunpack.c.l.b16 %v8268
        %v8296 = vunpack.c.l.b16 %v8269
        %v8297 = vunpack.c.l.b16 %v8270
        %v8298 = vpack.c.b16 %v8291, %v8290
        %v8299 = vpack.c.b16 %v8293, %v8292
        %v8300 = vpack.c.b16 %v8295, %v8294
        %v8301 = vpack.c.b16 %v8297, %v8296
        %v8307 = vsel %vm5820, %v8279, 0
        %v8310 = vsel %vm5820, %v8281, 0
        %v8313 = vsel %vm5820, %v8280, 0
        %8315 = vmatprep.subr.bf16.mxu0 0
        %8316 = vmatpush1.bf16.msra.mxu0 0
        %8317 = vmatprep.subr.bf16.mxu0 0
        %8318 = vmatpush1.bf16.msra.mxu0 0
        %8319 = vmatprep.subr.bf16.mxu0 0
        %8320 = vmatpush1.bf16.msra.mxu0 0
        %8321 = vmatprep.subr.bf16.mxu0 0
        %8322 = vmatpush1.bf16.msra.mxu0 0
        %8323 = vmatprep.subr.bf16.mxu0 0
        %8324 = vmatpush1.bf16.msra.mxu0 %v8301
        %8325 = vmatprep.subr.bf16.mxu0 0
        %8326 = vmatpush1.bf16.msra.mxu0 %v8300
        %8327 = vmatprep.subr.bf16.mxu0 0
        %8328 = vmatpush1.bf16.msra.mxu0 %v8299
        %8329 = vmatprep.subr.bf16.mxu0 0
        %8330 = vmatpush1.bf16.msra.mxu0 %v8298
        %8331 = vmatprep.subr.bf16.mxu0 0
        %8332 = vmatpush2.bf16.msra.mxu0 0
        %8333 = vmatprep.subr.bf16.mxu0 0
        %8334 = vmatpush2.bf16.msra.mxu0 0
        %8335 = vmatprep.subr.bf16.mxu0 0
        %8336 = vmatpush2.bf16.msra.mxu0 0
        %8337 = vmatprep.subr.bf16.mxu0 0
        %8338 = vmatpush2.bf16.msra.mxu0 0
        %8339 = vmatprep.subr.bf16.mxu0 0
        %8340 = vmatpush2.bf16.msra.mxu0 0
        %8341 = vmatprep.subr.bf16.mxu0 0
        %8342 = vmatpush2.bf16.msra.mxu0 0
        %8343 = vmatprep.subr.bf16.mxu0 0
        %8344 = vmatpush2.bf16.msra.mxu0 0
        %8345 = vmatprep.subr.bf16.mxu0 0
        %8346 = vmatpush2.bf16.msra.mxu0 0
        %8347 = vmatprep.mubr.bf16.mxu0 0
        %8348 = vmatmul.mubr.bf16.gmra.mxu0 %v8307
        %v8349 = vpop.f32.mrf.mxu0
        %v8350 = vadd.f32 0.0, %v8349
        %v8351 = vpop.f32.mrf.mxu0
        %v8352 = vpop.f32.mrf.mxu0
        %v8353 = vadd.f32 0.0, %v8352
        %v8354 = vpop.f32.mrf.mxu0
        %8355 = vmatprep.mubr.bf16.mxu0 0
        %8356 = vmatmul.mubr.bf16.gmra.mxu0 %v8310
        %v8357 = vpop.f32.mrf.mxu0
        %v8358 = vadd.f32 0.0, %v8357
        %v8359 = vpop.f32.mrf.mxu0
        %v8360 = vpop.f32.mrf.mxu0
        %v8361 = vadd.f32 0.0, %v8360
        %v8362 = vpop.f32.mrf.mxu0
        %8363 = vmatprep.mubr.bf16.mxu0 0
        %8364 = vmatmul.mubr.bf16.gmra.mxu0 %v8313
        %v8365 = vpop.f32.mrf.mxu0
        %v8366 = vadd.f32 0.0, %v8365
        %v8367 = vpop.f32.mrf.mxu0
        %v8368 = vpop.f32.mrf.mxu0
        %v8369 = vpop.f32.mrf.mxu0
        %8370 = vdwg.mxu0
        %v8371 = vadd.f32 %v8240, %v8350
        %v8372 = vadd.f32 %v8243, %v8353
        %v8373 = vadd.f32 %v8248, %v8358
        %v8374 = vadd.f32 %v8251, %v8361
        %v8375 = vadd.f32 %v8256, %v8366
        %v8376 = vld [vmem:[#allocation5] sm:$0x8]
        %v8377 = vld [vmem:[#allocation5 + $0x10] sm:$0xf]
        %v8378 = vld [vmem:[%s5 + $0x60] sm:$0xf]
        %v8379 = vld [vmem:[%s5 + $0x64] sm:$0xf]
        %v8380 = vld [vmem:[%s5 + $0x68] sm:$0xf]
        %v8381 = vld [vmem:[%s5 + $0x6c] sm:$0xf]
        %v8382 = vld [vmem:[%s5 + $0x70] sm:$0xf]
        %v8383 = vld [vmem:[%s5 + $0x74] sm:$0xf]
        %v8384 = vld [vmem:[%s5 + $0x78] sm:$0xf]
        %v8385 = vld [vmem:[%s5 + $0x7c] sm:$0xf]
        %v8388 = vunpack.c.l.b16 %v8376
        %v8389 = vunpack.c.l.b16 %v8377
        %v8390 = vpack.c.b16 %v8057, %v8388
        %v8391 = vpack.c.b16 %v8389, %v8389
        %vm8392 = vsmask.f32 4352
        %v8394 = vshrl.u32 %v8390, 16
        %v8396 = vrot.slane %v8394, 3
        %v8397 = vshll.u32 %v8390, 16
        %v8399 = vrot.slane %v8397, 4
        %v8400 = vor.u32 %v8396, %v8399
        %v8401 = vrot.slane %v8076, 3
        %v8402 = vrot.slane %v8072, 4
        %v8403 = vor.u32 %v8401, %v8402
        %v8404 = vsel %vm8392, %v8400, %v8403
        %v8406 = vshrl.u32 %v8391, 16
        %v8408 = vrot.slane %v8406, 3
        %v8409 = vshll.u32 %v8391, 16
        %v8411 = vrot.slane %v8409, 4
        %v8412 = vor.u32 %v8408, %v8411
        %v8413 = vsel %vm8392, %v8403, %v8412
        %v8422 = vunpack.c.l.b16 %v8378
        %v8423 = vunpack.c.l.b16 %v8379
        %v8424 = vunpack.c.l.b16 %v8380
        %v8425 = vunpack.c.l.b16 %v8381
        %v8426 = vunpack.c.l.b16 %v8382
        %v8427 = vunpack.c.l.b16 %v8383
        %v8428 = vunpack.c.l.b16 %v8384
        %v8429 = vunpack.c.l.b16 %v8385
        %v8430 = vpack.c.b16 %v8423, %v8422
        %v8431 = vpack.c.b16 %v8425, %v8424
        %v8432 = vpack.c.b16 %v8427, %v8426
        %v8433 = vpack.c.b16 %v8429, %v8428
        %v8439 = vsel %vm5820, %v8404, 0
        %v8442 = vsel %vm5820, %v8413, 0
        %v8445 = vsel %vm5820, %v8408, 0
        %8447 = vmatprep.subr.bf16.mxu0 0
        %8448 = vmatpush1.bf16.msra.mxu0 0
        %8449 = vmatprep.subr.bf16.mxu0 0
        %8450 = vmatpush1.bf16.msra.mxu0 0
        %8451 = vmatprep.subr.bf16.mxu0 0
        %8452 = vmatpush1.bf16.msra.mxu0 0
        %8453 = vmatprep.subr.bf16.mxu0 0
        %8454 = vmatpush1.bf16.msra.mxu0 0
        %8455 = vmatprep.subr.bf16.mxu0 0
        %8456 = vmatpush1.bf16.msra.mxu0 %v8433
        %8457 = vmatprep.subr.bf16.mxu0 0
        %8458 = vmatpush1.bf16.msra.mxu0 %v8432
        %8459 = vmatprep.subr.bf16.mxu0 0
        %8460 = vmatpush1.bf16.msra.mxu0 %v8431
        %8461 = vmatprep.subr.bf16.mxu0 0
        %8462 = vmatpush1.bf16.msra.mxu0 %v8430
        %8463 = vmatprep.subr.bf16.mxu0 0
        %8464 = vmatpush2.bf16.msra.mxu0 0
        %8465 = vmatprep.subr.bf16.mxu0 0
        %8466 = vmatpush2.bf16.msra.mxu0 0
        %8467 = vmatprep.subr.bf16.mxu0 0
        %8468 = vmatpush2.bf16.msra.mxu0 0
        %8469 = vmatprep.subr.bf16.mxu0 0
        %8470 = vmatpush2.bf16.msra.mxu0 0
        %8471 = vmatprep.subr.bf16.mxu0 0
        %8472 = vmatpush2.bf16.msra.mxu0 0
        %8473 = vmatprep.subr.bf16.mxu0 0
        %8474 = vmatpush2.bf16.msra.mxu0 0
        %8475 = vmatprep.subr.bf16.mxu0 0
        %8476 = vmatpush2.bf16.msra.mxu0 0
        %8477 = vmatprep.subr.bf16.mxu0 0
        %8478 = vmatpush2.bf16.msra.mxu0 0
        %8479 = vmatprep.mubr.bf16.mxu0 0
        %8480 = vmatmul.mubr.bf16.gmra.mxu0 %v8439
        %v8481 = vpop.f32.mrf.mxu0
        %v8482 = vadd.f32 0.0, %v8481
        %v8483 = vpop.f32.mrf.mxu0
        %v8484 = vpop.f32.mrf.mxu0
        %v8485 = vadd.f32 0.0, %v8484
        %v8486 = vpop.f32.mrf.mxu0
        %8487 = vmatprep.mubr.bf16.mxu0 0
        %8488 = vmatmul.mubr.bf16.gmra.mxu0 %v8442
        %v8489 = vpop.f32.mrf.mxu0
        %v8490 = vadd.f32 0.0, %v8489
        %v8491 = vpop.f32.mrf.mxu0
        %v8492 = vpop.f32.mrf.mxu0
        %v8493 = vadd.f32 0.0, %v8492
        %v8494 = vpop.f32.mrf.mxu0
        %8495 = vmatprep.mubr.bf16.mxu0 0
        %8496 = vmatmul.mubr.bf16.gmra.mxu0 %v8445
        %v8497 = vpop.f32.mrf.mxu0
        %v8498 = vadd.f32 0.0, %v8497
        %v8499 = vpop.f32.mrf.mxu0
        %v8500 = vpop.f32.mrf.mxu0
        %v8501 = vpop.f32.mrf.mxu0
        %8502 = vdwg.mxu0
        %v8503 = vadd.f32 %v8371, %v8482
        %v8504 = vadd.f32 %v8372, %v8485
        %v8505 = vadd.f32 %v8373, %v8490
        %v8506 = vadd.f32 %v8374, %v8493
        %v8507 = vadd.f32 %v8375, %v8498
        %v8508 = vld [vmem:[#allocation5 + $0x4] sm:$0xf]
        %v8509 = vld [vmem:[#allocation5 + $0x8] sm:$0xf]
        %v8510 = vld [vmem:[#allocation5 + $0xc] sm:$0xf]
        %v8511 = vld [vmem:[#allocation5 + $0x10] sm:$0xf]
        %v8512 = vld [vmem:[#allocation5 + $0x14] sm:$0x1]
        %v8513 = vld [vmem:[%s5 + $0x80] sm:$0xf]
        %v8514 = vld [vmem:[%s5 + $0x84] sm:$0xf]
        %v8515 = vld [vmem:[%s5 + $0x88] sm:$0xf]
        %v8516 = vld [vmem:[%s5 + $0x8c] sm:$0xf]
        %v8517 = vld [vmem:[%s5 + $0x90] sm:$0xf]
        %v8518 = vld [vmem:[%s5 + $0x94] sm:$0xf]
        %v8519 = vld [vmem:[%s5 + $0x98] sm:$0xf]
        %v8520 = vld [vmem:[%s5 + $0x9c] sm:$0xf]
        %v8526 = vunpack.c.l.b16 %v8508
        %v8527 = vunpack.c.l.b16 %v8509
        %v8528 = vunpack.c.l.b16 %v8510
        %v8529 = vunpack.c.l.b16 %v8511
        %v8530 = vunpack.c.l.b16 %v8512
        %v8531 = vpack.c.b16 %v8527, %v8526
        %v8532 = vpack.c.b16 %v8529, %v8528
        %v8533 = vpack.c.b16 %v8530, %v8530
        %v8542 = vunpack.c.l.b16 %v8513
        %v8543 = vunpack.c.l.b16 %v8514
        %v8544 = vunpack.c.l.b16 %v8515
        %v8545 = vunpack.c.l.b16 %v8516
        %v8546 = vunpack.c.l.b16 %v8517
        %v8547 = vunpack.c.l.b16 %v8518
        %v8548 = vunpack.c.l.b16 %v8519
        %v8549 = vunpack.c.l.b16 %v8520
        %v8550 = vpack.c.b16 %v8543, %v8542
        %v8551 = vpack.c.b16 %v8545, %v8544
        %v8552 = vpack.c.b16 %v8547, %v8546
        %v8553 = vpack.c.b16 %v8549, %v8548
        %v8559 = vsel %vm5820, %v8531, 0
        %v8562 = vsel %vm5820, %v8532, 0
        %v8565 = vsel %vm5820, %v8533, 0
        %8567 = vmatprep.subr.bf16.mxu0 0
        %8568 = vmatpush1.bf16.msra.mxu0 0
        %8569 = vmatprep.subr.bf16.mxu0 0
        %8570 = vmatpush1.bf16.msra.mxu0 0
        %8571 = vmatprep.subr.bf16.mxu0 0
        %8572 = vmatpush1.bf16.msra.mxu0 0
        %8573 = vmatprep.subr.bf16.mxu0 0
        %8574 = vmatpush1.bf16.msra.mxu0 0
        %8575 = vmatprep.subr.bf16.mxu0 0
        %8576 = vmatpush1.bf16.msra.mxu0 %v8553
        %8577 = vmatprep.subr.bf16.mxu0 0
        %8578 = vmatpush1.bf16.msra.mxu0 %v8552
        %8579 = vmatprep.subr.bf16.mxu0 0
        %8580 = vmatpush1.bf16.msra.mxu0 %v8551
        %8581 = vmatprep.subr.bf16.mxu0 0
        %8582 = vmatpush1.bf16.msra.mxu0 %v8550
        %8583 = vmatprep.subr.bf16.mxu0 0
        %8584 = vmatpush2.bf16.msra.mxu0 0
        %8585 = vmatprep.subr.bf16.mxu0 0
        %8586 = vmatpush2.bf16.msra.mxu0 0
        %8587 = vmatprep.subr.bf16.mxu0 0
        %8588 = vmatpush2.bf16.msra.mxu0 0
        %8589 = vmatprep.subr.bf16.mxu0 0
        %8590 = vmatpush2.bf16.msra.mxu0 0
        %8591 = vmatprep.subr.bf16.mxu0 0
        %8592 = vmatpush2.bf16.msra.mxu0 0
        %8593 = vmatprep.subr.bf16.mxu0 0
        %8594 = vmatpush2.bf16.msra.mxu0 0
        %8595 = vmatprep.subr.bf16.mxu0 0
        %8596 = vmatpush2.bf16.msra.mxu0 0
        %8597 = vmatprep.subr.bf16.mxu0 0
        %8598 = vmatpush2.bf16.msra.mxu0 0
        %8599 = vmatprep.mubr.bf16.mxu0 0
        %8600 = vmatmul.mubr.bf16.gmra.mxu0 %v8559
        %v8601 = vpop.f32.mrf.mxu0
        %v8602 = vadd.f32 0.0, %v8601
        %v8603 = vpop.f32.mrf.mxu0
        %v8604 = vpop.f32.mrf.mxu0
        %v8605 = vadd.f32 0.0, %v8604
        %v8606 = vpop.f32.mrf.mxu0
        %8607 = vmatprep.mubr.bf16.mxu0 0
        %8608 = vmatmul.mubr.bf16.gmra.mxu0 %v8562
        %v8609 = vpop.f32.mrf.mxu0
        %v8610 = vadd.f32 0.0, %v8609
        %v8611 = vpop.f32.mrf.mxu0
        %v8612 = vpop.f32.mrf.mxu0
        %v8613 = vadd.f32 0.0, %v8612
        %v8614 = vpop.f32.mrf.mxu0
        %8615 = vmatprep.mubr.bf16.mxu0 0
        %8616 = vmatmul.mubr.bf16.gmra.mxu0 %v8565
        %v8617 = vpop.f32.mrf.mxu0
        %v8618 = vadd.f32 0.0, %v8617
        %v8619 = vpop.f32.mrf.mxu0
        %v8620 = vpop.f32.mrf.mxu0
        %v8621 = vpop.f32.mrf.mxu0
        %8622 = vdwg.mxu0
        %v8623 = vadd.f32 %v8503, %v8602
        %v8624 = vadd.f32 %v8504, %v8605
        %v8625 = vadd.f32 %v8505, %v8610
        %v8626 = vadd.f32 %v8506, %v8613
        %v8627 = vadd.f32 %v8507, %v8618
        %v8628 = vld [vmem:[%s5 + $0xa0] sm:$0xf]
        %v8629 = vld [vmem:[%s5 + $0xa4] sm:$0xf]
        %v8630 = vld [vmem:[%s5 + $0xa8] sm:$0xf]
        %v8631 = vld [vmem:[%s5 + $0xac] sm:$0xf]
        %v8632 = vld [vmem:[%s5 + $0xb0] sm:$0xf]
        %v8633 = vld [vmem:[%s5 + $0xb4] sm:$0xf]
        %v8634 = vld [vmem:[%s5 + $0xb8] sm:$0xf]
        %v8635 = vld [vmem:[%s5 + $0xbc] sm:$0xf]
        %v8636 = vshrl.u32 %v8531, 16
        %v8638 = vshll.u32 %v8531, 16
        %v8640 = vrot.slane %v8638, 1
        %v8641 = vor.u32 %v8636, %v8640
        %v8642 = vshll.u32 %v8532, 16
        %v8644 = vrot.slane %v8642, 1
        %v8645 = vsel %vm3990, %v8641, %v8644
        %v8646 = vshrl.u32 %v8532, 16
        %v8648 = vor.u32 %v8646, %v8644
        %v8649 = vshll.u32 %v8533, 16
        %v8651 = vrot.slane %v8649, 1
        %v8652 = vsel %vm3990, %v8648, %v8651
        %v8653 = vshrl.u32 %v8533, 16
        %v8663 = vunpack.c.l.b16 %v8628
        %v8664 = vunpack.c.l.b16 %v8629
        %v8665 = vunpack.c.l.b16 %v8630
        %v8666 = vunpack.c.l.b16 %v8631
        %v8667 = vunpack.c.l.b16 %v8632
        %v8668 = vunpack.c.l.b16 %v8633
        %v8669 = vunpack.c.l.b16 %v8634
        %v8670 = vunpack.c.l.b16 %v8635
        %v8671 = vpack.c.b16 %v8664, %v8663
        %v8672 = vpack.c.b16 %v8666, %v8665
        %v8673 = vpack.c.b16 %v8668, %v8667
        %v8674 = vpack.c.b16 %v8670, %v8669
        %v8680 = vsel %vm5820, %v8645, 0
        %v8683 = vsel %vm5820, %v8652, 0
        %v8686 = vsel %vm5820, %v8653, 0
        %8688 = vmatprep.subr.bf16.mxu0 0
        %8689 = vmatpush1.bf16.msra.mxu0 0
        %8690 = vmatprep.subr.bf16.mxu0 0
        %8691 = vmatpush1.bf16.msra.mxu0 0
        %8692 = vmatprep.subr.bf16.mxu0 0
        %8693 = vmatpush1.bf16.msra.mxu0 0
        %8694 = vmatprep.subr.bf16.mxu0 0
        %8695 = vmatpush1.bf16.msra.mxu0 0
        %8696 = vmatprep.subr.bf16.mxu0 0
        %8697 = vmatpush1.bf16.msra.mxu0 %v8674
        %8698 = vmatprep.subr.bf16.mxu0 0
        %8699 = vmatpush1.bf16.msra.mxu0 %v8673
        %8700 = vmatprep.subr.bf16.mxu0 0
        %8701 = vmatpush1.bf16.msra.mxu0 %v8672
        %8702 = vmatprep.subr.bf16.mxu0 0
        %8703 = vmatpush1.bf16.msra.mxu0 %v8671
        %8704 = vmatprep.subr.bf16.mxu0 0
        %8705 = vmatpush2.bf16.msra.mxu0 0
        %8706 = vmatprep.subr.bf16.mxu0 0
        %8707 = vmatpush2.bf16.msra.mxu0 0
        %8708 = vmatprep.subr.bf16.mxu0 0
        %8709 = vmatpush2.bf16.msra.mxu0 0
        %8710 = vmatprep.subr.bf16.mxu0 0
        %8711 = vmatpush2.bf16.msra.mxu0 0
        %8712 = vmatprep.subr.bf16.mxu0 0
        %8713 = vmatpush2.bf16.msra.mxu0 0
        %8714 = vmatprep.subr.bf16.mxu0 0
        %8715 = vmatpush2.bf16.msra.mxu0 0
        %8716 = vmatprep.subr.bf16.mxu0 0
        %8717 = vmatpush2.bf16.msra.mxu0 0
        %8718 = vmatprep.subr.bf16.mxu0 0
        %8719 = vmatpush2.bf16.msra.mxu0 0
        %8720 = vmatprep.mubr.bf16.mxu0 0
        %8721 = vmatmul.mubr.bf16.gmra.mxu0 %v8680
        %v8722 = vpop.f32.mrf.mxu0
        %v8723 = vadd.f32 0.0, %v8722
        %v8724 = vpop.f32.mrf.mxu0
        %v8725 = vpop.f32.mrf.mxu0
        %v8726 = vadd.f32 0.0, %v8725
        %v8727 = vpop.f32.mrf.mxu0
        %8728 = vmatprep.mubr.bf16.mxu0 0
        %8729 = vmatmul.mubr.bf16.gmra.mxu0 %v8683
        %v8730 = vpop.f32.mrf.mxu0
        %v8731 = vadd.f32 0.0, %v8730
        %v8732 = vpop.f32.mrf.mxu0
        %v8733 = vpop.f32.mrf.mxu0
        %v8734 = vadd.f32 0.0, %v8733
        %v8735 = vpop.f32.mrf.mxu0
        %8736 = vmatprep.mubr.bf16.mxu0 0
        %8737 = vmatmul.mubr.bf16.gmra.mxu0 %v8686
        %v8738 = vpop.f32.mrf.mxu0
        %v8739 = vadd.f32 0.0, %v8738
        %v8740 = vpop.f32.mrf.mxu0
        %v8741 = vpop.f32.mrf.mxu0
        %v8742 = vpop.f32.mrf.mxu0
        %8743 = vdwg.mxu0
        %v8744 = vadd.f32 %v8623, %v8723
        %v8745 = vadd.f32 %v8624, %v8726
        %v8746 = vadd.f32 %v8625, %v8731
        %v8747 = vadd.f32 %v8626, %v8734
        %v8748 = vadd.f32 %v8627, %v8739
        %v8749 = vld [vmem:[#allocation5 + $0x4] sm:$0x8]
        %v8750 = vld [vmem:[#allocation5 + $0x14] sm:$0xf]
        %v8751 = vld [vmem:[%s5 + $0xc0] sm:$0xf]
        %v8752 = vld [vmem:[%s5 + $0xc4] sm:$0xf]
        %v8753 = vld [vmem:[%s5 + $0xc8] sm:$0xf]
        %v8754 = vld [vmem:[%s5 + $0xcc] sm:$0xf]
        %v8755 = vld [vmem:[%s5 + $0xd0] sm:$0xf]
        %v8756 = vld [vmem:[%s5 + $0xd4] sm:$0xf]
        %v8757 = vld [vmem:[%s5 + $0xd8] sm:$0xf]
        %v8758 = vld [vmem:[%s5 + $0xdc] sm:$0xf]
        %v8761 = vunpack.c.l.b16 %v8749
        %v8762 = vunpack.c.l.b16 %v8750
        %v8763 = vpack.c.b16 %v8527, %v8761
        %v8764 = vpack.c.b16 %v8762, %v8762
        %vm8765 = vcmask 1044480
        %v8766 = vrot.slane %v8763, 3
        %v8767 = vrot.slane %v8532, 3
        %v8768 = vsel %vm8765, %v8766, %v8767
        %v8769 = vrot.slane %v8764, 3
        %v8770 = vsel %vm8765, %v8767, %v8769
        %v8779 = vunpack.c.l.b16 %v8751
        %v8780 = vunpack.c.l.b16 %v8752
        %v8781 = vunpack.c.l.b16 %v8753
        %v8782 = vunpack.c.l.b16 %v8754
        %v8783 = vunpack.c.l.b16 %v8755
        %v8784 = vunpack.c.l.b16 %v8756
        %v8785 = vunpack.c.l.b16 %v8757
        %v8786 = vunpack.c.l.b16 %v8758
        %v8787 = vpack.c.b16 %v8780, %v8779
        %v8788 = vpack.c.b16 %v8782, %v8781
        %v8789 = vpack.c.b16 %v8784, %v8783
        %v8790 = vpack.c.b16 %v8786, %v8785
        %v8796 = vsel %vm5820, %v8768, 0
        %v8799 = vsel %vm5820, %v8770, 0
        %v8802 = vsel %vm5820, %v8769, 0
        %8804 = vmatprep.subr.bf16.mxu0 0
        %8805 = vmatpush1.bf16.msra.mxu0 0
        %8806 = vmatprep.subr.bf16.mxu0 0
        %8807 = vmatpush1.bf16.msra.mxu0 0
        %8808 = vmatprep.subr.bf16.mxu0 0
        %8809 = vmatpush1.bf16.msra.mxu0 0
        %8810 = vmatprep.subr.bf16.mxu0 0
        %8811 = vmatpush1.bf16.msra.mxu0 0
        %8812 = vmatprep.subr.bf16.mxu0 0
        %8813 = vmatpush1.bf16.msra.mxu0 %v8790
        %8814 = vmatprep.subr.bf16.mxu0 0
        %8815 = vmatpush1.bf16.msra.mxu0 %v8789
        %8816 = vmatprep.subr.bf16.mxu0 0
        %8817 = vmatpush1.bf16.msra.mxu0 %v8788
        %8818 = vmatprep.subr.bf16.mxu0 0
        %8819 = vmatpush1.bf16.msra.mxu0 %v8787
        %8820 = vmatprep.subr.bf16.mxu0 0
        %8821 = vmatpush2.bf16.msra.mxu0 0
        %8822 = vmatprep.subr.bf16.mxu0 0
        %8823 = vmatpush2.bf16.msra.mxu0 0
        %8824 = vmatprep.subr.bf16.mxu0 0
        %8825 = vmatpush2.bf16.msra.mxu0 0
        %8826 = vmatprep.subr.bf16.mxu0 0
        %8827 = vmatpush2.bf16.msra.mxu0 0
        %8828 = vmatprep.subr.bf16.mxu0 0
        %8829 = vmatpush2.bf16.msra.mxu0 0
        %8830 = vmatprep.subr.bf16.mxu0 0
        %8831 = vmatpush2.bf16.msra.mxu0 0
        %8832 = vmatprep.subr.bf16.mxu0 0
        %8833 = vmatpush2.bf16.msra.mxu0 0
        %8834 = vmatprep.subr.bf16.mxu0 0
        %8835 = vmatpush2.bf16.msra.mxu0 0
        %8836 = vmatprep.mubr.bf16.mxu0 0
        %8837 = vmatmul.mubr.bf16.gmra.mxu0 %v8796
        %v8838 = vpop.f32.mrf.mxu0
        %v8839 = vadd.f32 0.0, %v8838
        %v8840 = vpop.f32.mrf.mxu0
        %v8841 = vpop.f32.mrf.mxu0
        %v8842 = vadd.f32 0.0, %v8841
        %v8843 = vpop.f32.mrf.mxu0
        %8844 = vmatprep.mubr.bf16.mxu0 0
        %8845 = vmatmul.mubr.bf16.gmra.mxu0 %v8799
        %v8846 = vpop.f32.mrf.mxu0
        %v8847 = vadd.f32 0.0, %v8846
        %v8848 = vpop.f32.mrf.mxu0
        %v8849 = vpop.f32.mrf.mxu0
        %v8850 = vadd.f32 0.0, %v8849
        %v8851 = vpop.f32.mrf.mxu0
        %8852 = vmatprep.mubr.bf16.mxu0 0
        %8853 = vmatmul.mubr.bf16.gmra.mxu0 %v8802
        %v8854 = vpop.f32.mrf.mxu0
        %v8855 = vadd.f32 0.0, %v8854
        %v8856 = vpop.f32.mrf.mxu0
        %v8857 = vpop.f32.mrf.mxu0
        %v8858 = vpop.f32.mrf.mxu0
        %8859 = vdwg.mxu0
        %v8860 = vadd.f32 %v8744, %v8839
        %v8861 = vadd.f32 %v8745, %v8842
        %v8862 = vadd.f32 %v8746, %v8847
        %v8863 = vadd.f32 %v8747, %v8850
        %v8864 = vadd.f32 %v8748, %v8855
        %v8865 = vld [vmem:[%s5 + $0xe0] sm:$0xf]
        %v8866 = vld [vmem:[%s5 + $0xe4] sm:$0xf]
        %v8867 = vld [vmem:[%s5 + $0xe8] sm:$0xf]
        %v8868 = vld [vmem:[%s5 + $0xec] sm:$0xf]
        %v8869 = vld [vmem:[%s5 + $0xf0] sm:$0xf]
        %v8870 = vld [vmem:[%s5 + $0xf4] sm:$0xf]
        %v8871 = vld [vmem:[%s5 + $0xf8] sm:$0xf]
        %v8872 = vld [vmem:[%s5 + $0xfc] sm:$0xf]
        %v8874 = vshrl.u32 %v8763, 16
        %v8876 = vrot.slane %v8874, 3
        %v8877 = vshll.u32 %v8763, 16
        %v8879 = vrot.slane %v8877, 4
        %v8880 = vor.u32 %v8876, %v8879
        %v8881 = vrot.slane %v8646, 3
        %v8882 = vrot.slane %v8642, 4
        %v8883 = vor.u32 %v8881, %v8882
        %v8884 = vsel %vm8392, %v8880, %v8883
        %v8886 = vshrl.u32 %v8764, 16
        %v8888 = vrot.slane %v8886, 3
        %v8889 = vshll.u32 %v8764, 16
        %v8891 = vrot.slane %v8889, 4
        %v8892 = vor.u32 %v8888, %v8891
        %v8893 = vsel %vm8392, %v8883, %v8892
        %v8902 = vunpack.c.l.b16 %v8865
        %v8903 = vunpack.c.l.b16 %v8866
        %v8904 = vunpack.c.l.b16 %v8867
        %v8905 = vunpack.c.l.b16 %v8868
        %v8906 = vunpack.c.l.b16 %v8869
        %v8907 = vunpack.c.l.b16 %v8870
        %v8908 = vunpack.c.l.b16 %v8871
        %v8909 = vunpack.c.l.b16 %v8872
        %v8910 = vpack.c.b16 %v8903, %v8902
        %v8911 = vpack.c.b16 %v8905, %v8904
        %v8912 = vpack.c.b16 %v8907, %v8906
        %v8913 = vpack.c.b16 %v8909, %v8908
        %v8919 = vsel %vm5820, %v8884, 0
        %v8922 = vsel %vm5820, %v8893, 0
        %v8925 = vsel %vm5820, %v8888, 0
        %8927 = vmatprep.subr.bf16.mxu0 0
        %8928 = vmatpush1.bf16.msra.mxu0 0
        %8929 = vmatprep.subr.bf16.mxu0 0
        %8930 = vmatpush1.bf16.msra.mxu0 0
        %8931 = vmatprep.subr.bf16.mxu0 0
        %8932 = vmatpush1.bf16.msra.mxu0 0
        %8933 = vmatprep.subr.bf16.mxu0 0
        %8934 = vmatpush1.bf16.msra.mxu0 0
        %8935 = vmatprep.subr.bf16.mxu0 0
        %8936 = vmatpush1.bf16.msra.mxu0 %v8913
        %8937 = vmatprep.subr.bf16.mxu0 0
        %8938 = vmatpush1.bf16.msra.mxu0 %v8912
        %8939 = vmatprep.subr.bf16.mxu0 0
        %8940 = vmatpush1.bf16.msra.mxu0 %v8911
        %8941 = vmatprep.subr.bf16.mxu0 0
        %8942 = vmatpush1.bf16.msra.mxu0 %v8910
        %8943 = vmatprep.subr.bf16.mxu0 0
        %8944 = vmatpush2.bf16.msra.mxu0 0
        %8945 = vmatprep.subr.bf16.mxu0 0
        %8946 = vmatpush2.bf16.msra.mxu0 0
        %8947 = vmatprep.subr.bf16.mxu0 0
        %8948 = vmatpush2.bf16.msra.mxu0 0
        %8949 = vmatprep.subr.bf16.mxu0 0
        %8950 = vmatpush2.bf16.msra.mxu0 0
        %8951 = vmatprep.subr.bf16.mxu0 0
        %8952 = vmatpush2.bf16.msra.mxu0 0
        %8953 = vmatprep.subr.bf16.mxu0 0
        %8954 = vmatpush2.bf16.msra.mxu0 0
        %8955 = vmatprep.subr.bf16.mxu0 0
        %8956 = vmatpush2.bf16.msra.mxu0 0
        %8957 = vmatprep.subr.bf16.mxu0 0
        %8958 = vmatpush2.bf16.msra.mxu0 0
        %8959 = vmatprep.mubr.bf16.mxu0 0
        %8960 = vmatmul.mubr.bf16.gmra.mxu0 %v8919
        %v8961 = vpop.f32.mrf.mxu0
        %v8962 = vadd.f32 0.0, %v8961
        %v8963 = vpop.f32.mrf.mxu0
        %v8964 = vpop.f32.mrf.mxu0
        %v8965 = vadd.f32 0.0, %v8964
        %v8966 = vpop.f32.mrf.mxu0
        %8967 = vmatprep.mubr.bf16.mxu0 0
        %8968 = vmatmul.mubr.bf16.gmra.mxu0 %v8922
        %v8969 = vpop.f32.mrf.mxu0
        %v8970 = vadd.f32 0.0, %v8969
        %v8971 = vpop.f32.mrf.mxu0
        %v8972 = vpop.f32.mrf.mxu0
        %v8973 = vadd.f32 0.0, %v8972
        %v8974 = vpop.f32.mrf.mxu0
        %8975 = vmatprep.mubr.bf16.mxu0 0
        %8976 = vmatmul.mubr.bf16.gmra.mxu0 %v8925
        %v8977 = vpop.f32.mrf.mxu0
        %v8978 = vadd.f32 0.0, %v8977
        %v8979 = vpop.f32.mrf.mxu0
        %v8980 = vpop.f32.mrf.mxu0
        %v8981 = vpop.f32.mrf.mxu0
        %8982 = vdwg.mxu0
        %v8983 = vadd.f32 %v8860, %v8962
        %v8984 = vadd.f32 %v8861, %v8965
        %v8985 = vadd.f32 %v8862, %v8970
        %v8986 = vadd.f32 %v8863, %v8973
        %v8987 = vadd.f32 %v8864, %v8978
        %v8988 = vld [vmem:[#allocation5 + $0x8] sm:$0xf]
        %v8989 = vld [vmem:[#allocation5 + $0xc] sm:$0xf]
        %v8990 = vld [vmem:[#allocation5 + $0x10] sm:$0xf]
        %v8991 = vld [vmem:[#allocation5 + $0x14] sm:$0xf]
        %v8992 = vld [vmem:[#allocation5 + $0x18] sm:$0x1]
        %v8993 = vld [vmem:[%s5 + $0x100] sm:$0xf]
        %v8994 = vld [vmem:[%s5 + $0x104] sm:$0xf]
        %v8995 = vld [vmem:[%s5 + $0x108] sm:$0xf]
        %v8996 = vld [vmem:[%s5 + $0x10c] sm:$0xf]
        %v8997 = vld [vmem:[%s5 + $0x110] sm:$0xf]
        %v8998 = vld [vmem:[%s5 + $0x114] sm:$0xf]
        %v8999 = vld [vmem:[%s5 + $0x118] sm:$0xf]
        %v9000 = vld [vmem:[%s5 + $0x11c] sm:$0xf]
        %v9006 = vunpack.c.l.b16 %v8988
        %v9007 = vunpack.c.l.b16 %v8989
        %v9008 = vunpack.c.l.b16 %v8990
        %v9009 = vunpack.c.l.b16 %v8991
        %v9010 = vunpack.c.l.b16 %v8992
        %v9011 = vpack.c.b16 %v9007, %v9006
        %v9012 = vpack.c.b16 %v9009, %v9008
        %v9013 = vpack.c.b16 %v9010, %v9010
        %v9022 = vunpack.c.l.b16 %v8993
        %v9023 = vunpack.c.l.b16 %v8994
        %v9024 = vunpack.c.l.b16 %v8995
        %v9025 = vunpack.c.l.b16 %v8996
        %v9026 = vunpack.c.l.b16 %v8997
        %v9027 = vunpack.c.l.b16 %v8998
        %v9028 = vunpack.c.l.b16 %v8999
        %v9029 = vunpack.c.l.b16 %v9000
        %v9030 = vpack.c.b16 %v9023, %v9022
        %v9031 = vpack.c.b16 %v9025, %v9024
        %v9032 = vpack.c.b16 %v9027, %v9026
        %v9033 = vpack.c.b16 %v9029, %v9028
        %v9039 = vsel %vm5820, %v9011, 0
        %v9042 = vsel %vm5820, %v9012, 0
        %v9045 = vsel %vm5820, %v9013, 0
        %9047 = vmatprep.subr.bf16.mxu0 0
        %9048 = vmatpush1.bf16.msra.mxu0 0
        %9049 = vmatprep.subr.bf16.mxu0 0
        %9050 = vmatpush1.bf16.msra.mxu0 0
        %9051 = vmatprep.subr.bf16.mxu0 0
        %9052 = vmatpush1.bf16.msra.mxu0 0
        %9053 = vmatprep.subr.bf16.mxu0 0
        %9054 = vmatpush1.bf16.msra.mxu0 0
        %9055 = vmatprep.subr.bf16.mxu0 0
        %9056 = vmatpush1.bf16.msra.mxu0 %v9033
        %9057 = vmatprep.subr.bf16.mxu0 0
        %9058 = vmatpush1.bf16.msra.mxu0 %v9032
        %9059 = vmatprep.subr.bf16.mxu0 0
        %9060 = vmatpush1.bf16.msra.mxu0 %v9031
        %9061 = vmatprep.subr.bf16.mxu0 0
        %9062 = vmatpush1.bf16.msra.mxu0 %v9030
        %9063 = vmatprep.subr.bf16.mxu0 0
        %9064 = vmatpush2.bf16.msra.mxu0 0
        %9065 = vmatprep.subr.bf16.mxu0 0
        %9066 = vmatpush2.bf16.msra.mxu0 0
        %9067 = vmatprep.subr.bf16.mxu0 0
        %9068 = vmatpush2.bf16.msra.mxu0 0
        %9069 = vmatprep.subr.bf16.mxu0 0
        %9070 = vmatpush2.bf16.msra.mxu0 0
        %9071 = vmatprep.subr.bf16.mxu0 0
        %9072 = vmatpush2.bf16.msra.mxu0 0
        %9073 = vmatprep.subr.bf16.mxu0 0
        %9074 = vmatpush2.bf16.msra.mxu0 0
        %9075 = vmatprep.subr.bf16.mxu0 0
        %9076 = vmatpush2.bf16.msra.mxu0 0
        %9077 = vmatprep.subr.bf16.mxu0 0
        %9078 = vmatpush2.bf16.msra.mxu0 0
        %9079 = vmatprep.mubr.bf16.mxu0 0
        %9080 = vmatmul.mubr.bf16.gmra.mxu0 %v9039
        %v9081 = vpop.f32.mrf.mxu0
        %v9082 = vadd.f32 0.0, %v9081
        %v9083 = vpop.f32.mrf.mxu0
        %v9084 = vpop.f32.mrf.mxu0
        %v9085 = vadd.f32 0.0, %v9084
        %v9086 = vpop.f32.mrf.mxu0
        %9087 = vmatprep.mubr.bf16.mxu0 0
        %9088 = vmatmul.mubr.bf16.gmra.mxu0 %v9042
        %v9089 = vpop.f32.mrf.mxu0
        %v9090 = vadd.f32 0.0, %v9089
        %v9091 = vpop.f32.mrf.mxu0
        %v9092 = vpop.f32.mrf.mxu0
        %v9093 = vadd.f32 0.0, %v9092
        %v9094 = vpop.f32.mrf.mxu0
        %9095 = vmatprep.mubr.bf16.mxu0 0
        %9096 = vmatmul.mubr.bf16.gmra.mxu0 %v9045
        %v9097 = vpop.f32.mrf.mxu0
        %v9098 = vadd.f32 0.0, %v9097
        %v9099 = vpop.f32.mrf.mxu0
        %v9100 = vpop.f32.mrf.mxu0
        %v9101 = vpop.f32.mrf.mxu0
        %9102 = vdwg.mxu0
        %v9103 = vadd.f32 %v8983, %v9082
        %v9104 = vadd.f32 %v8984, %v9085
        %v9105 = vadd.f32 %v8985, %v9090
        %v9106 = vadd.f32 %v8986, %v9093
        %v9107 = vadd.f32 %v8987, %v9098
        %9108 = vst.msk [vmem:[#allocation6] sm:$0xff] %vm5820, %v9103
        %9109 = vst.msk [vmem:[#allocation6 + $0x8] sm:$0xff] %vm5820, %v9104
        %9110 = vst.msk [vmem:[#allocation6 + $0x10] sm:$0xff] %vm5820, %v9105
        %9111 = vst.msk [vmem:[#allocation6 + $0x18] sm:$0xff] %vm5820, %v9106
        %9112 = vst.msk [vmem:[#allocation6 + $0x20] sm:$0x1] %vm7924, %v9107
        %v9113 = vld [vmem:[%s6] sm:$0x1]
        %v9114 = vld [vmem:[%s13] sm:$0x3]
        %v9115 = vld [vmem:[#allocation6] sm:$0xf]
        %v9116 = vld [vmem:[#allocation6 + $0x1] sm:$0xf]
        %v9117 = vmax.f32 %v9115, %v9116
        %v9118 = vld [vmem:[#allocation6 + $0x7] sm:$0xf]
        %v9119 = vmax.f32 %v9117, %v9118
        %v9120 = vld [vmem:[#allocation6 + $0x8] sm:$0xf]
        %v9121 = vmax.f32 %v9119, %v9120
        %v9123 = vlaneseq
        %v9124 = vshrl.u32 %v9123, 7
        %v9125 = vsub.s32 0, %v9124
        %v9126 = vrot.slane %v9113, %v9125
        %vm9128 = vcmask 31744
        %v9130 = vsel %vm9128, %v9114, 0
        %vm9132 = vcmask 1043456
        %v9134 = vsel %vm9132, %v9121, 0
        %9136 = vmatprep.subr.mxu0 0.0
        %9137 = vmatpush1.msra.mxu0 0.0
        %9138 = vmatprep.subr.mxu0 0.0
        %9139 = vmatpush1.msra.mxu0 0.0
        %9140 = vmatprep.subr.mxu0 0.0
        %9141 = vmatpush1.msra.mxu0 0.0
        %9142 = vmatprep.subr.mxu0 0.0
        %9143 = vmatpush1.msra.mxu0 0.0
        %9144 = vmatprep.subr.mxu0 0.0
        %9145 = vmatpush1.msra.mxu0 0.0
        %9146 = vmatprep.subr.mxu0 0.0
        %9147 = vmatpush1.msra.mxu0 0.0
        %9148 = vmatprep.subr.mxu0 0.0
        %9149 = vmatpush1.msra.mxu0 0.0
        %9150 = vmatprep.subr.mxu0 0.0
        %9151 = vmatpush1.msra.mxu0 0.0
        %9152 = vmatprep.subr.mxu0 0.0
        %9153 = vmatpush1.msra.mxu0 0.0
        %9154 = vmatprep.subr.mxu0 0.0
        %9155 = vmatpush1.msra.mxu0 0.0
        %9156 = vmatprep.subr.mxu0 0.0
        %9157 = vmatpush1.msra.mxu0 0.0
        %9158 = vmatprep.subr.mxu0 0.0
        %9159 = vmatpush1.msra.mxu0 0.0
        %9160 = vmatprep.subr.mxu0 0.0
        %9161 = vmatpush1.msra.mxu0 0.0
        %9162 = vmatprep.subr.mxu0 0.0
        %9163 = vmatpush1.msra.mxu0 0.0
        %9164 = vmatprep.subr.mxu0 0.0
        %9165 = vmatpush1.msra.mxu0 0.0
        %9166 = vmatprep.subr.mxu0 0.0
        %9167 = vmatpush1.msra.mxu0 %v9134
        %9168 = vmatprep.subr.mxu0 0.0
        %9169 = vmatpush2.msra.mxu0 0.0
        %9170 = vmatprep.subr.mxu0 0.0
        %9171 = vmatpush2.msra.mxu0 0.0
        %9172 = vmatprep.subr.mxu0 0.0
        %9173 = vmatpush2.msra.mxu0 0.0
        %9174 = vmatprep.subr.mxu0 0.0
        %9175 = vmatpush2.msra.mxu0 0.0
        %9176 = vmatprep.subr.mxu0 0.0
        %9177 = vmatpush2.msra.mxu0 0.0
        %9178 = vmatprep.subr.mxu0 0.0
        %9179 = vmatpush2.msra.mxu0 0.0
        %9180 = vmatprep.subr.mxu0 0.0
        %9181 = vmatpush2.msra.mxu0 0.0
        %9182 = vmatprep.subr.mxu0 0.0
        %9183 = vmatpush2.msra.mxu0 0.0
        %9184 = vmatprep.subr.mxu0 0.0
        %9185 = vmatpush2.msra.mxu0 0.0
        %9186 = vmatprep.subr.mxu0 0.0
        %9187 = vmatpush2.msra.mxu0 0.0
        %9188 = vmatprep.subr.mxu0 0.0
        %9189 = vmatpush2.msra.mxu0 0.0
        %9190 = vmatprep.subr.mxu0 0.0
        %9191 = vmatpush2.msra.mxu0 0.0
        %9192 = vmatprep.subr.mxu0 0.0
        %9193 = vmatpush2.msra.mxu0 0.0
        %9194 = vmatprep.subr.mxu0 0.0
        %9195 = vmatpush2.msra.mxu0 0.0
        %9196 = vmatprep.subr.mxu0 0.0
        %9197 = vmatpush2.msra.mxu0 0.0
        %9198 = vmatprep.subr.mxu0 0.0
        %9199 = vmatpush2.msra.mxu0 0.0
        %9200 = vmatprep.mubr.f32.mxu0 0.0
        %9201 = vmatmul.mubr.f32.gmra.mxu0 %v9130
        %v9202 = vpop.f32.mrf.mxu0
        %v9203 = vadd.f32 %v9126, %v9202
        %v9204 = vpop.f32.mrf.mxu0
        %9205 = vdwg.mxu0
        %v9206 = vmax.f32 %v9203, 0.0
        %v9207 = vpack.c.bf16 %v9206, %v9206
        %9208 = vst.msk [vmem:[#allocation7] sm:$0x1] %vm7924, %v9207
        %v9209 = vld [vmem:[#allocation6 + $0xe] sm:$0xf]
        %v9210 = vld [vmem:[#allocation6 + $0xf] sm:$0xf]
        %v9211 = vmax.f32 %v9209, %v9210
        %v9212 = vld [vmem:[#allocation6 + $0x15] sm:$0xf]
        %v9213 = vmax.f32 %v9211, %v9212
        %v9214 = vld [vmem:[#allocation6 + $0x16] sm:$0xf]
        %v9215 = vmax.f32 %v9213, %v9214
        %v9217 = vsel %vm9132, %v9215, 0
        %9219 = vmatprep.subr.mxu0 0.0
        %9220 = vmatpush1.msra.mxu0 0.0
        %9221 = vmatprep.subr.mxu0 0.0
        %9222 = vmatpush1.msra.mxu0 0.0
        %9223 = vmatprep.subr.mxu0 0.0
        %9224 = vmatpush1.msra.mxu0 0.0
        %9225 = vmatprep.subr.mxu0 0.0
        %9226 = vmatpush1.msra.mxu0 0.0
        %9227 = vmatprep.subr.mxu0 0.0
        %9228 = vmatpush1.msra.mxu0 0.0
        %9229 = vmatprep.subr.mxu0 0.0
        %9230 = vmatpush1.msra.mxu0 0.0
        %9231 = vmatprep.subr.mxu0 0.0
        %9232 = vmatpush1.msra.mxu0 0.0
        %9233 = vmatprep.subr.mxu0 0.0
        %9234 = vmatpush1.msra.mxu0 0.0
        %9235 = vmatprep.subr.mxu0 0.0
        %9236 = vmatpush1.msra.mxu0 0.0
        %9237 = vmatprep.subr.mxu0 0.0
        %9238 = vmatpush1.msra.mxu0 0.0
        %9239 = vmatprep.subr.mxu0 0.0
        %9240 = vmatpush1.msra.mxu0 0.0
        %9241 = vmatprep.subr.mxu0 0.0
        %9242 = vmatpush1.msra.mxu0 0.0
        %9243 = vmatprep.subr.mxu0 0.0
        %9244 = vmatpush1.msra.mxu0 0.0
        %9245 = vmatprep.subr.mxu0 0.0
        %9246 = vmatpush1.msra.mxu0 0.0
        %9247 = vmatprep.subr.mxu0 0.0
        %9248 = vmatpush1.msra.mxu0 0.0
        %9249 = vmatprep.subr.mxu0 0.0
        %9250 = vmatpush1.msra.mxu0 %v9217
        %9251 = vmatprep.subr.mxu0 0.0
        %9252 = vmatpush2.msra.mxu0 0.0
        %9253 = vmatprep.subr.mxu0 0.0
        %9254 = vmatpush2.msra.mxu0 0.0
        %9255 = vmatprep.subr.mxu0 0.0
        %9256 = vmatpush2.msra.mxu0 0.0
        %9257 = vmatprep.subr.mxu0 0.0
        %9258 = vmatpush2.msra.mxu0 0.0
        %9259 = vmatprep.subr.mxu0 0.0
        %9260 = vmatpush2.msra.mxu0 0.0
        %9261 = vmatprep.subr.mxu0 0.0
        %9262 = vmatpush2.msra.mxu0 0.0
        %9263 = vmatprep.subr.mxu0 0.0
        %9264 = vmatpush2.msra.mxu0 0.0
        %9265 = vmatprep.subr.mxu0 0.0
        %9266 = vmatpush2.msra.mxu0 0.0
        %9267 = vmatprep.subr.mxu0 0.0
        %9268 = vmatpush2.msra.mxu0 0.0
        %9269 = vmatprep.subr.mxu0 0.0
        %9270 = vmatpush2.msra.mxu0 0.0
        %9271 = vmatprep.subr.mxu0 0.0
        %9272 = vmatpush2.msra.mxu0 0.0
        %9273 = vmatprep.subr.mxu0 0.0
        %9274 = vmatpush2.msra.mxu0 0.0
        %9275 = vmatprep.subr.mxu0 0.0
        %9276 = vmatpush2.msra.mxu0 0.0
        %9277 = vmatprep.subr.mxu0 0.0
        %9278 = vmatpush2.msra.mxu0 0.0
        %9279 = vmatprep.subr.mxu0 0.0
        %9280 = vmatpush2.msra.mxu0 0.0
        %9281 = vmatprep.subr.mxu0 0.0
        %9282 = vmatpush2.msra.mxu0 0.0
        %9283 = vmatprep.mubr.f32.mxu0 0.0
        %9284 = vmatmul.mubr.f32.gmra.mxu0 %v9130
        %v9285 = vpop.f32.mrf.mxu0
        %v9286 = vadd.f32 %v9126, %v9285
        %v9287 = vpop.f32.mrf.mxu0
        %9288 = vdwg.mxu0
        %v9289 = vmax.f32 %v9286, 0.0
        %v9290 = vpack.c.bf16 %v9289, %v9289
        %v9293 = vunpack.c.l.s4 1983009808
        %v9294 = vunpack.c.0.s8 %v9293
        %v9295 = vlaneseq
        %v9296 = vshrl.u32 %v9295, 7
        %v9297 = vsub.s32 %v9294, %v9296
        %v9298 = vrot.slane %v9290, %v9297
        %v9299 = vrot.slane %v9298, 7
        %vm9301 = vcmask 517121
        %9302 = vst.msk [vmem:[#allocation7] sm:$0x2] %vm9301, %v9299
        %v9303 = vld [vmem:[%s8] sm:$0x1]
        %v9304 = vld [vmem:[#allocation7] sm:$0x1]
        %v9305 = vld [vmem:[%s7] sm:$0xf]
        %v9306 = vld [vmem:[%s7 + $0x4] sm:$0xf]
        %v9307 = vld [vmem:[%s7 + $0x8] sm:$0xf]
        %v9308 = vld [vmem:[%s7 + $0xc] sm:$0xf]
        %v9309 = vld [vmem:[%s7 + $0x10] sm:$0xf]
        %v9310 = vld [vmem:[%s7 + $0x14] sm:$0xf]
        %v9311 = vld [vmem:[%s7 + $0x18] sm:$0xf]
        %v9312 = vld [vmem:[%s7 + $0x1c] sm:$0xf]
        %v9321 = vunpack.c.l.b16 %v9305
        %v9322 = vunpack.c.l.b16 %v9306
        %v9323 = vunpack.c.l.b16 %v9307
        %v9324 = vunpack.c.l.b16 %v9308
        %v9325 = vunpack.c.l.b16 %v9309
        %v9326 = vunpack.c.l.b16 %v9310
        %v9327 = vunpack.c.l.b16 %v9311
        %v9328 = vunpack.c.l.b16 %v9312
        %v9329 = vpack.c.b16 %v9322, %v9321
        %v9330 = vpack.c.b16 %v9324, %v9323
        %v9331 = vpack.c.b16 %v9326, %v9325
        %v9332 = vpack.c.b16 %v9328, %v9327
        %v9338 = vsel %vm5820, %v9304, 0
        %9340 = vmatprep.subr.bf16.mxu0 0
        %9341 = vmatpush1.bf16.msra.mxu0 0
        %9342 = vmatprep.subr.bf16.mxu0 0
        %9343 = vmatpush1.bf16.msra.mxu0 0
        %9344 = vmatprep.subr.bf16.mxu0 0
        %9345 = vmatpush1.bf16.msra.mxu0 0
        %9346 = vmatprep.subr.bf16.mxu0 0
        %9347 = vmatpush1.bf16.msra.mxu0 0
        %9348 = vmatprep.subr.bf16.mxu0 0
        %9349 = vmatpush1.bf16.msra.mxu0 %v9332
        %9350 = vmatprep.subr.bf16.mxu0 0
        %9351 = vmatpush1.bf16.msra.mxu0 %v9331
        %9352 = vmatprep.subr.bf16.mxu0 0
        %9353 = vmatpush1.bf16.msra.mxu0 %v9330
        %9354 = vmatprep.subr.bf16.mxu0 0
        %9355 = vmatpush1.bf16.msra.mxu0 %v9329
        %9356 = vmatprep.subr.bf16.mxu0 0
        %9357 = vmatpush2.bf16.msra.mxu0 0
        %9358 = vmatprep.subr.bf16.mxu0 0
        %9359 = vmatpush2.bf16.msra.mxu0 0
        %9360 = vmatprep.subr.bf16.mxu0 0
        %9361 = vmatpush2.bf16.msra.mxu0 0
        %9362 = vmatprep.subr.bf16.mxu0 0
        %9363 = vmatpush2.bf16.msra.mxu0 0
        %9364 = vmatprep.subr.bf16.mxu0 0
        %9365 = vmatpush2.bf16.msra.mxu0 0
        %9366 = vmatprep.subr.bf16.mxu0 0
        %9367 = vmatpush2.bf16.msra.mxu0 0
        %9368 = vmatprep.subr.bf16.mxu0 0
        %9369 = vmatpush2.bf16.msra.mxu0 0
        %9370 = vmatprep.subr.bf16.mxu0 0
        %9371 = vmatpush2.bf16.msra.mxu0 0
        %9372 = vmatprep.mubr.bf16.mxu0 0
        %9373 = vmatmul.mubr.bf16.gmra.mxu0 %v9338
        %v9374 = vpop.f32.mrf.mxu0
        %v9375 = vadd.f32 0.0, %v9374
        %v9376 = vpop.f32.mrf.mxu0
        %v9377 = vpop.f32.mrf.mxu0
        %v9378 = vpop.f32.mrf.mxu0
        %9379 = vdwg.mxu0
        %v9380 = vadd.f32 %v9303, %v9375
        %v9381 = vld [vmem:[%s7 + $0x20] sm:$0xf]
        %v9382 = vld [vmem:[%s7 + $0x24] sm:$0xf]
        %v9383 = vld [vmem:[%s7 + $0x28] sm:$0xf]
        %v9384 = vld [vmem:[%s7 + $0x2c] sm:$0xf]
        %v9385 = vld [vmem:[%s7 + $0x30] sm:$0xf]
        %v9386 = vld [vmem:[%s7 + $0x34] sm:$0xf]
        %v9387 = vld [vmem:[%s7 + $0x38] sm:$0xf]
        %v9388 = vld [vmem:[%s7 + $0x3c] sm:$0xf]
        %v9391 = vunpack.c.l.s4 1983009808
        %v9392 = vunpack.c.0.s8 %v9391
        %v9393 = vlaneseq
        %v9394 = vshrl.u32 %v9393, 7
        %v9395 = vsub.s32 %v9392, %v9394
        %v9396 = vrot.slane %v9304, %v9395
        %v9398 = vshrl.u32 %v9396, 16
        %v9408 = vunpack.c.l.b16 %v9381
        %v9409 = vunpack.c.l.b16 %v9382
        %v9410 = vunpack.c.l.b16 %v9383
        %v9411 = vunpack.c.l.b16 %v9384
        %v9412 = vunpack.c.l.b16 %v9385
        %v9413 = vunpack.c.l.b16 %v9386
        %v9414 = vunpack.c.l.b16 %v9387
        %v9415 = vunpack.c.l.b16 %v9388
        %v9416 = vpack.c.b16 %v9409, %v9408
        %v9417 = vpack.c.b16 %v9411, %v9410
        %v9418 = vpack.c.b16 %v9413, %v9412
        %v9419 = vpack.c.b16 %v9415, %v9414
        %v9425 = vsel %vm5820, %v9398, 0
        %9427 = vmatprep.subr.bf16.mxu0 0
        %9428 = vmatpush1.bf16.msra.mxu0 0
        %9429 = vmatprep.subr.bf16.mxu0 0
        %9430 = vmatpush1.bf16.msra.mxu0 0
        %9431 = vmatprep.subr.bf16.mxu0 0
        %9432 = vmatpush1.bf16.msra.mxu0 0
        %9433 = vmatprep.subr.bf16.mxu0 0
        %9434 = vmatpush1.bf16.msra.mxu0 0
        %9435 = vmatprep.subr.bf16.mxu0 0
        %9436 = vmatpush1.bf16.msra.mxu0 %v9419
        %9437 = vmatprep.subr.bf16.mxu0 0
        %9438 = vmatpush1.bf16.msra.mxu0 %v9418
        %9439 = vmatprep.subr.bf16.mxu0 0
        %9440 = vmatpush1.bf16.msra.mxu0 %v9417
        %9441 = vmatprep.subr.bf16.mxu0 0
        %9442 = vmatpush1.bf16.msra.mxu0 %v9416
        %9443 = vmatprep.subr.bf16.mxu0 0
        %9444 = vmatpush2.bf16.msra.mxu0 0
        %9445 = vmatprep.subr.bf16.mxu0 0
        %9446 = vmatpush2.bf16.msra.mxu0 0
        %9447 = vmatprep.subr.bf16.mxu0 0
        %9448 = vmatpush2.bf16.msra.mxu0 0
        %9449 = vmatprep.subr.bf16.mxu0 0
        %9450 = vmatpush2.bf16.msra.mxu0 0
        %9451 = vmatprep.subr.bf16.mxu0 0
        %9452 = vmatpush2.bf16.msra.mxu0 0
        %9453 = vmatprep.subr.bf16.mxu0 0
        %9454 = vmatpush2.bf16.msra.mxu0 0
        %9455 = vmatprep.subr.bf16.mxu0 0
        %9456 = vmatpush2.bf16.msra.mxu0 0
        %9457 = vmatprep.subr.bf16.mxu0 0
        %9458 = vmatpush2.bf16.msra.mxu0 0
        %9459 = vmatprep.mubr.bf16.mxu0 0
        %9460 = vmatmul.mubr.bf16.gmra.mxu0 %v9425
        %v9461 = vpop.f32.mrf.mxu0
        %v9462 = vadd.f32 0.0, %v9461
        %v9463 = vpop.f32.mrf.mxu0
        %v9464 = vpop.f32.mrf.mxu0
        %v9465 = vpop.f32.mrf.mxu0
        %9466 = vdwg.mxu0
        %v9467 = vadd.f32 %v9380, %v9462
        %v9468 = vld [vmem:[#allocation7] sm:$0x2]
        %v9469 = vld [vmem:[%s7 + $0x40] sm:$0xf]
        %v9470 = vld [vmem:[%s7 + $0x44] sm:$0xf]
        %v9471 = vld [vmem:[%s7 + $0x48] sm:$0xf]
        %v9472 = vld [vmem:[%s7 + $0x4c] sm:$0xf]
        %v9473 = vld [vmem:[%s7 + $0x50] sm:$0xf]
        %v9474 = vld [vmem:[%s7 + $0x54] sm:$0xf]
        %v9475 = vld [vmem:[%s7 + $0x58] sm:$0xf]
        %v9476 = vld [vmem:[%s7 + $0x5c] sm:$0xf]
        %v9479 = vunpack.c.l.s4 1983009808
        %v9480 = vunpack.c.0.s8 %v9479
        %v9481 = vlaneseq
        %v9482 = vshrl.u32 %v9481, 7
        %v9483 = vsub.s32 %v9480, %v9482
        %v9484 = vrot.slane %v9468, %v9483
        %v9485 = vrot.slane %v9484, 1
        %v9494 = vunpack.c.l.b16 %v9469
        %v9495 = vunpack.c.l.b16 %v9470
        %v9496 = vunpack.c.l.b16 %v9471
        %v9497 = vunpack.c.l.b16 %v9472
        %v9498 = vunpack.c.l.b16 %v9473
        %v9499 = vunpack.c.l.b16 %v9474
        %v9500 = vunpack.c.l.b16 %v9475
        %v9501 = vunpack.c.l.b16 %v9476
        %v9502 = vpack.c.b16 %v9495, %v9494
        %v9503 = vpack.c.b16 %v9497, %v9496
        %v9504 = vpack.c.b16 %v9499, %v9498
        %v9505 = vpack.c.b16 %v9501, %v9500
        %v9511 = vsel %vm5820, %v9485, 0
        %9513 = vmatprep.subr.bf16.mxu0 0
        %9514 = vmatpush1.bf16.msra.mxu0 0
        %9515 = vmatprep.subr.bf16.mxu0 0
        %9516 = vmatpush1.bf16.msra.mxu0 0
        %9517 = vmatprep.subr.bf16.mxu0 0
        %9518 = vmatpush1.bf16.msra.mxu0 0
        %9519 = vmatprep.subr.bf16.mxu0 0
        %9520 = vmatpush1.bf16.msra.mxu0 0
        %9521 = vmatprep.subr.bf16.mxu0 0
        %9522 = vmatpush1.bf16.msra.mxu0 %v9505
        %9523 = vmatprep.subr.bf16.mxu0 0
        %9524 = vmatpush1.bf16.msra.mxu0 %v9504
        %9525 = vmatprep.subr.bf16.mxu0 0
        %9526 = vmatpush1.bf16.msra.mxu0 %v9503
        %9527 = vmatprep.subr.bf16.mxu0 0
        %9528 = vmatpush1.bf16.msra.mxu0 %v9502
        %9529 = vmatprep.subr.bf16.mxu0 0
        %9530 = vmatpush2.bf16.msra.mxu0 0
        %9531 = vmatprep.subr.bf16.mxu0 0
        %9532 = vmatpush2.bf16.msra.mxu0 0
        %9533 = vmatprep.subr.bf16.mxu0 0
        %9534 = vmatpush2.bf16.msra.mxu0 0
        %9535 = vmatprep.subr.bf16.mxu0 0
        %9536 = vmatpush2.bf16.msra.mxu0 0
        %9537 = vmatprep.subr.bf16.mxu0 0
        %9538 = vmatpush2.bf16.msra.mxu0 0
        %9539 = vmatprep.subr.bf16.mxu0 0
        %9540 = vmatpush2.bf16.msra.mxu0 0
        %9541 = vmatprep.subr.bf16.mxu0 0
        %9542 = vmatpush2.bf16.msra.mxu0 0
        %9543 = vmatprep.subr.bf16.mxu0 0
        %9544 = vmatpush2.bf16.msra.mxu0 0
        %9545 = vmatprep.mubr.bf16.mxu0 0
        %9546 = vmatmul.mubr.bf16.gmra.mxu0 %v9511
        %v9547 = vpop.f32.mrf.mxu0
        %v9548 = vadd.f32 0.0, %v9547
        %v9549 = vpop.f32.mrf.mxu0
        %v9550 = vpop.f32.mrf.mxu0
        %v9551 = vpop.f32.mrf.mxu0
        %9552 = vdwg.mxu0
        %v9553 = vadd.f32 %v9467, %v9548
        %v9554 = vld [vmem:[#allocation7] sm:$0x2]
        %v9555 = vld [vmem:[%s7 + $0x60] sm:$0xf]
        %v9556 = vld [vmem:[%s7 + $0x64] sm:$0xf]
        %v9557 = vld [vmem:[%s7 + $0x68] sm:$0xf]
        %v9558 = vld [vmem:[%s7 + $0x6c] sm:$0xf]
        %v9559 = vld [vmem:[%s7 + $0x70] sm:$0xf]
        %v9560 = vld [vmem:[%s7 + $0x74] sm:$0xf]
        %v9561 = vld [vmem:[%s7 + $0x78] sm:$0xf]
        %v9562 = vld [vmem:[%s7 + $0x7c] sm:$0xf]
        %v9565 = vunpack.c.l.s4 1983009808
        %v9566 = vunpack.c.0.s8 %v9565
        %v9567 = vlaneseq
        %v9568 = vshrl.u32 %v9567, 7
        %v9569 = vsub.s32 %v9566, %v9568
        %v9570 = vrot.slane %v9554, %v9569
        %v9572 = vshrl.u32 %v9570, 16
        %v9574 = vrot.slane %v9572, 1
        %v9583 = vunpack.c.l.b16 %v9555
        %v9584 = vunpack.c.l.b16 %v9556
        %v9585 = vunpack.c.l.b16 %v9557
        %v9586 = vunpack.c.l.b16 %v9558
        %v9587 = vunpack.c.l.b16 %v9559
        %v9588 = vunpack.c.l.b16 %v9560
        %v9589 = vunpack.c.l.b16 %v9561
        %v9590 = vunpack.c.l.b16 %v9562
        %v9591 = vpack.c.b16 %v9584, %v9583
        %v9592 = vpack.c.b16 %v9586, %v9585
        %v9593 = vpack.c.b16 %v9588, %v9587
        %v9594 = vpack.c.b16 %v9590, %v9589
        %v9600 = vsel %vm5820, %v9574, 0
        %9602 = vmatprep.subr.bf16.mxu0 0
        %9603 = vmatpush1.bf16.msra.mxu0 0
        %9604 = vmatprep.subr.bf16.mxu0 0
        %9605 = vmatpush1.bf16.msra.mxu0 0
        %9606 = vmatprep.subr.bf16.mxu0 0
        %9607 = vmatpush1.bf16.msra.mxu0 0
        %9608 = vmatprep.subr.bf16.mxu0 0
        %9609 = vmatpush1.bf16.msra.mxu0 0
        %9610 = vmatprep.subr.bf16.mxu0 0
        %9611 = vmatpush1.bf16.msra.mxu0 %v9594
        %9612 = vmatprep.subr.bf16.mxu0 0
        %9613 = vmatpush1.bf16.msra.mxu0 %v9593
        %9614 = vmatprep.subr.bf16.mxu0 0
        %9615 = vmatpush1.bf16.msra.mxu0 %v9592
        %9616 = vmatprep.subr.bf16.mxu0 0
        %9617 = vmatpush1.bf16.msra.mxu0 %v9591
        %9618 = vmatprep.subr.bf16.mxu0 0
        %9619 = vmatpush2.bf16.msra.mxu0 0
        %9620 = vmatprep.subr.bf16.mxu0 0
        %9621 = vmatpush2.bf16.msra.mxu0 0
        %9622 = vmatprep.subr.bf16.mxu0 0
        %9623 = vmatpush2.bf16.msra.mxu0 0
        %9624 = vmatprep.subr.bf16.mxu0 0
        %9625 = vmatpush2.bf16.msra.mxu0 0
        %9626 = vmatprep.subr.bf16.mxu0 0
        %9627 = vmatpush2.bf16.msra.mxu0 0
        %9628 = vmatprep.subr.bf16.mxu0 0
        %9629 = vmatpush2.bf16.msra.mxu0 0
        %9630 = vmatprep.subr.bf16.mxu0 0
        %9631 = vmatpush2.bf16.msra.mxu0 0
        %9632 = vmatprep.subr.bf16.mxu0 0
        %9633 = vmatpush2.bf16.msra.mxu0 0
        %9634 = vmatprep.mubr.bf16.mxu0 0
        %9635 = vmatmul.mubr.bf16.gmra.mxu0 %v9600
        %v9636 = vpop.f32.mrf.mxu0
        %v9637 = vadd.f32 0.0, %v9636
        %v9638 = vpop.f32.mrf.mxu0
        %v9639 = vpop.f32.mrf.mxu0
        %v9640 = vpop.f32.mrf.mxu0
        %9641 = vdwg.mxu0
        %v9642 = vadd.f32 %v9553, %v9637
        %v9643 = vmax.f32 %v9642, 0.0
        %v9644 = vpack.c.bf16 %v9643, %v9643
        %v9645 = vld [vmem:[%s9] sm:$0xf]
        %v9646 = vld [vmem:[%s9 + $0x4] sm:$0xf]
        %v9647 = vld [vmem:[%s9 + $0x8] sm:$0xf]
        %v9648 = vld [vmem:[%s9 + $0xc] sm:$0xf]
        %v9649 = vld [vmem:[%s9 + $0x10] sm:$0xf]
        %v9650 = vld [vmem:[%s9 + $0x14] sm:$0xf]
        %v9651 = vld [vmem:[%s9 + $0x18] sm:$0xf]
        %v9652 = vld [vmem:[%s9 + $0x1c] sm:$0xf]
        %v9653 = vld [vmem:[%s10] sm:$0x1]
        %v9662 = vunpack.c.l.b16 %v9645
        %v9663 = vunpack.c.l.b16 %v9646
        %v9664 = vunpack.c.l.b16 %v9647
        %v9665 = vunpack.c.l.b16 %v9648
        %v9666 = vunpack.c.l.b16 %v9649
        %v9667 = vunpack.c.l.b16 %v9650
        %v9668 = vunpack.c.l.b16 %v9651
        %v9669 = vunpack.c.l.b16 %v9652
        %v9670 = vpack.c.b16 %v9663, %v9662
        %v9671 = vpack.c.b16 %v9665, %v9664
        %v9672 = vpack.c.b16 %v9667, %v9666
        %v9673 = vpack.c.b16 %v9669, %v9668
        %v9679 = vsel %vm5820, %v9644, 0
        %9681 = vmatprep.subr.bf16.mxu0 0
        %9682 = vmatpush1.bf16.msra.mxu0 0
        %9683 = vmatprep.subr.bf16.mxu0 0
        %9684 = vmatpush1.bf16.msra.mxu0 0
        %9685 = vmatprep.subr.bf16.mxu0 0
        %9686 = vmatpush1.bf16.msra.mxu0 0
        %9687 = vmatprep.subr.bf16.mxu0 0
        %9688 = vmatpush1.bf16.msra.mxu0 0
        %9689 = vmatprep.subr.bf16.mxu0 0
        %9690 = vmatpush1.bf16.msra.mxu0 %v9673
        %9691 = vmatprep.subr.bf16.mxu0 0
        %9692 = vmatpush1.bf16.msra.mxu0 %v9672
        %9693 = vmatprep.subr.bf16.mxu0 0
        %9694 = vmatpush1.bf16.msra.mxu0 %v9671
        %9695 = vmatprep.subr.bf16.mxu0 0
        %9696 = vmatpush1.bf16.msra.mxu0 %v9670
        %9697 = vmatprep.subr.bf16.mxu0 0
        %9698 = vmatpush2.bf16.msra.mxu0 0
        %9699 = vmatprep.subr.bf16.mxu0 0
        %9700 = vmatpush2.bf16.msra.mxu0 0
        %9701 = vmatprep.subr.bf16.mxu0 0
        %9702 = vmatpush2.bf16.msra.mxu0 0
        %9703 = vmatprep.subr.bf16.mxu0 0
        %9704 = vmatpush2.bf16.msra.mxu0 0
        %9705 = vmatprep.subr.bf16.mxu0 0
        %9706 = vmatpush2.bf16.msra.mxu0 0
        %9707 = vmatprep.subr.bf16.mxu0 0
        %9708 = vmatpush2.bf16.msra.mxu0 0
        %9709 = vmatprep.subr.bf16.mxu0 0
        %9710 = vmatpush2.bf16.msra.mxu0 0
        %9711 = vmatprep.subr.bf16.mxu0 0
        %9712 = vmatpush2.bf16.msra.mxu0 0
        %9713 = vmatprep.mubr.bf16.mxu0 0
        %9714 = vmatmul.mubr.bf16.gmra.mxu0 %v9679
        %v9715 = vpop.f32.mrf.mxu0
        %v9716 = vadd.f32 %v9653, %v9715
        %v9717 = vpop.f32.mrf.mxu0
        %v9718 = vpop.f32.mrf.mxu0
        %v9719 = vpop.f32.mrf.mxu0
        %9720 = vdwg.mxu0
        %vm9721 = vcmask 73728
        %9722 = vst.msk [vmem:[%s459] sm:$0x1] %vm9721, %v9716
        %s9723 = sand.u32 %s335, 1
        %s9724 = scalar_lea.sflag [#allocation9], %s9723
        %s9725 = sand.u32 %s335, 1
        %s9726 = scalar_lea.vmem [#allocation8], %s9725
        // Predicated region
        $region77: #{hochuli_forward.1} parent=75 // pred_check
          %p9727 = pneg %p345
        $region78: #{hochuli_forward.1} parent=75 // pred_check_branch
          %9729 = sbr.rel (%p9727) target = $region80
        $region79: #{hochuli_forward.1} parent=75 // pred_region
          %s9731 = ssub.s32 16, 16
          %9732 = vsyncadd %s9724, %s9731
          %s9733 = smul.addr %s28, 16
          %s9734 = scalar_lea.hbm %s14, %s9733
          %s9736 = sshll.u32 %s9726, 4
          %s9737 = int_to_ptr.vmem [resolvable:$true] %s9736
          %9739 = dma.vmem_to_hbm [thread:$0]  %s9737, 16, %s9734, %s9724
        $region80: #{hochuli_forward.1} parent=75 // pred_fallthru
          _
      $region76: #{hochuli_forward.1} parent=5 // pred_fallthru
        _
      %p9740 = scmp.le.s32.totalorder 2, %s23
      // Predicated region
      $region81: #{hochuli_forward.1} parent=5 // pred_check
        %p9741 = pneg %p9740
      $region82: #{hochuli_forward.1} parent=5 // pred_check_branch
        %9743 = sbr.rel (%p9741) target = $region84
      $region83: #{hochuli_forward.1} parent=5 // pred_region
        %s9744 = ssub.s32 %s23, 2
        // Predicated region
        $region85: #{hochuli_forward.1} parent=83 // pred_check
          %p9745 = pneg %p351
        $region86: #{hochuli_forward.1} parent=83 // pred_check_branch
          %9747 = sbr.rel (%p9745) target = $region88
        $region87: #{hochuli_forward.1} parent=83 // pred_region
          %s9748 = sand.u32 %s336, 1
          %s9749 = scalar_lea.sflag [#allocation9], %s9748
          %s9750 = sand.u32 %s336, 1
          %s9751 = scalar_lea.vmem [#allocation8], %s9750
          %9752 = dma.done %s9749, 16
        $region88: #{hochuli_forward.1} parent=83 // pred_fallthru
          _
      $region84: #{hochuli_forward.1} parent=5 // pred_fallthru
        _
    $region6: #{hochuli_forward.1} parent=1 // loop_footer
      %s27 = sadd.s32 1, %s23
    $region7: #{hochuli_forward.1} parent=1 // loop_footer_branch
      %22 = sbr.rel target = $region3
    $region8: #{hochuli_forward.1} parent=1 // loop_exit
      _
    %9753 = vsyncpa [#allocation9], 1
    %s9754 = scalar_lea.sflag [#allocation9], 1
    %9755 = vsyncpa %s9754, 1

</llo_original>
